<compile_context>
chip_gen: v7x
topology: tpu7x:2x2x1
jax: 0.10.0
libtpu: 0.0.40
codegen_flags: <defaults>
</compile_context>

<pallas_src>
import jax
import jax.numpy as jnp
from jax.experimental import pallas as pl
from jax.experimental.pallas import tpu as pltpu


def _upsample2x_kernel(x_ref, o_ref):
    # x_ref: (TB, TH, TW) -> o_ref: (TB, 2*TH, 2*TW); pure duplication, zero FLOPs.
    x = x_ref[...]
    xw = jnp.repeat(x, 2, axis=2)            # lane (column) duplication
    o_ref[...] = jnp.repeat(xw, 2, axis=1)   # sublane (row) duplication
    # TODO(synk): on v7x, if a bundle dump shows the XLU/relayout slot binding ahead
    # of HBM DMA, replace the axis=1 repeat with two sublane-stride-2 stores
    # (o_ref[:, pl.ds(0, TH, 2), :] = xw / pl.ds(1, TH, 2)) and, for 16-bit dtypes,
    # do the column duplication on the VPU via (x | x << 16) + pltpu.bitcast.


def _largest_divisor_leq(n, cap):
    cap = max(1, min(n, cap))
    for d in range(cap, 0, -1):
        if n % d == 0:
            return d
    return 1


def _largest_aligned_divisor_leq(n, cap, align):
    """Largest divisor of n that is a multiple of `align` and <= cap; None if none."""
    d = (min(n, max(cap, align)) // align) * align
    while d >= align:
        if n % d == 0:
            return d
        d -= align
    return None


def _hw_params():
    """Generation-aware tuning knobs (traffic/step, scoped VMEM limit, min grid steps)."""
    kind = ""
    try:
        kind = jax.devices()[0].device_kind.lower()
    except Exception:
        pass
    if "v7" in kind or "7x" in kind:
        # v7x: ~3.2 TB/s HBM, only 64 MiB VMEM/TC, 2 TCs -> bigger steps, tighter
        # VMEM cap, and keep >=4 parallel grid steps so both TensorCores stay fed.
        return dict(target_bytes=4 << 20, vmem_limit=32 << 20, min_steps=4)
    if "v6" in kind:
        return dict(target_bytes=2 << 20, vmem_limit=64 << 20, min_steps=2)
    if "v5" in kind:
        return dict(target_bytes=2 << 20, vmem_limit=48 << 20, min_steps=2)
    # Unknown generation: conservative VMEM cap, moderate step size.
    return dict(target_bytes=2 << 20, vmem_limit=32 << 20, min_steps=2)


def upsample_nearest_2x(x, *, force_tiles=None):
    """x: (N, C, H, W) -> (N, C, 2H, 2W), nearest-neighbor, scale_factor=2."""
    N, C, H, W = x.shape
    B = N * C
    itemsize = jnp.dtype(x.dtype).itemsize
    x_flat = x.reshape(B, H, W)

    hw = _hw_params()
    target_bytes = hw["target_bytes"]
    vmem_limit = hw["vmem_limit"]
    min_steps = hw["min_steps"]

    # Dtype-aware sublane alignment: sub-32-bit dtypes pack along sublanes
    # ((16,128) for 2-byte, (32,128) for 1-byte dtypes).
    sub_align = {4: 8, 2: 16, 1: 32}.get(itemsize, 8)

    # Per-step VMEM ~= double-buffered (in + out) blocks (2*(1+4)=10x the input
    # block) plus in-kernel temporaries from the two repeats (~7x more) -> ~18x.
    vmem_mult = 18
    vmem_budget = (vmem_limit * 3) // 5      # leave headroom under the scoped limit

    if force_tiles is not None:
        TB, TH, TW = force_tiles
    else:
        # --- lane (W) tiling: only for extremely wide planes -------------------
        TW = W
        min_slab_bytes = vmem_mult * sub_align * W * itemsize   # TB=1, TH=sub_align
        if W > 128 and min_slab_bytes > vmem_budget:
            tw_cap = max(128, vmem_budget // (vmem_mult * sub_align * itemsize))
            TW = max(128, (min(tw_cap, W) // 128) * 128)

        # --- sublane (H) tiling: whenever a full-plane slab would blow VMEM ----
        TH = H
        if TW == W:
            full_block_bytes = vmem_mult * H * W * itemsize
            if full_block_bytes > vmem_budget:
                th_cap = max(sub_align, vmem_budget // (vmem_mult * W * itemsize))
                th = _largest_aligned_divisor_leq(H, th_cap, sub_align)
                if th is None:
                    # Tail-safe path: dtype-aligned, non-dividing tile + cdiv grid
                    # (edge blocks are padded on read / masked on write).
                    th = max(sub_align, (th_cap // sub_align) * sub_align)
                TH = th
        else:
            TH = sub_align

        # --- plane (B) batching to reach the per-step traffic target -----------
        if TH == H and TW == W:
            per_plane_traffic = 5 * H * W * itemsize   # 1x read + 4x write
            tb_cap = max(1, target_bytes // per_plane_traffic)
            tb_cap = min(tb_cap, max(1, vmem_budget // (vmem_mult * H * W * itemsize)))
            if B >= min_steps:
                # Keep >= min_steps grid steps (TC balance on v7x, pipelining else).
                tb_cap = min(tb_cap, max(1, B // min_steps))
            TB = _largest_divisor_leq(B, min(B, tb_cap))
        else:
            TB = 1

        # --- few large planes: force an H split so the parallel grid still has
        # >= min_steps steps (feeds both v7x TensorCores / the DMA pipeline) ----
        steps = pl.cdiv(B, TB) * pl.cdiv(H, TH) * pl.cdiv(W, TW)
        if steps < min_steps and TH == H and H >= 2 * sub_align:
            want = pl.cdiv(min_steps, pl.cdiv(B, TB) * pl.cdiv(W, TW))
            th_cap = max(sub_align, H // max(1, want))
            th = _largest_aligned_divisor_leq(H, th_cap, sub_align)
            if th is None:
                th = max(sub_align, (th_cap // sub_align) * sub_align)
            TH = th

    grid = (pl.cdiv(B, TB), pl.cdiv(H, TH), pl.cdiv(W, TW))

    # TODO(synk): for very small W (output last dim < 128) stores remain lane-masked
    # and the NCHW output array itself is lane-padded by XLA; making the kernel
    # lane-dense would require presenting a flattened-plane output and a relayout
    # outside, which just moves the cost for this caller-visible layout.
    # TODO(synk): if xprof ever shows exposed input DMA at these block sizes, add
    # pipeline_mode=pl.Buffered(3) on the input BlockSpec (reads are only 1/5 of traffic).
    out_flat = pl.pallas_call(
        _upsample2x_kernel,
        out_shape=jax.ShapeDtypeStruct((B, 2 * H, 2 * W), x.dtype),
        grid_spec=pltpu.PrefetchScalarGridSpec(
            num_scalar_prefetch=0,
            grid=grid,
            in_specs=[pl.BlockSpec((TB, TH, TW), lambda b, h, w: (b, h, w))],
            out_specs=pl.BlockSpec((TB, 2 * TH, 2 * TW), lambda b, h, w: (b, h, w)),
        ),
        compiler_params=pltpu.CompilerParams(
            dimension_semantics=("parallel", "parallel", "parallel"),
            vmem_limit_bytes=vmem_limit),
        cost_estimate=pl.CostEstimate(
            flops=0,
            transcendentals=0,
            bytes_accessed=5 * B * H * W * itemsize),
    )(x_flat)

    return out_flat.reshape(N, C, 2 * H, 2 * W)


if __name__ == "__main__":
    key = jax.random.PRNGKey(0)
    k0, k1, k2 = jax.random.split(key, 3)

    # Main case: matches the module's expected NCHW input at small shapes.
    N, C, H, W = 2, 4, 16, 16
    x = jax.random.normal(k0, (N, C, H, W), dtype=jnp.float32)
    y = jax.block_until_ready(upsample_nearest_2x(x))
    ref = jnp.repeat(jnp.repeat(x, 2, axis=2), 2, axis=3)
    assert y.shape == (N, C, 2 * H, 2 * W), y.shape
    assert jnp.array_equal(y, ref), "mismatch vs nearest-upsample reference (f32)"

    # Tail-safe H-tiling path (H=20 not divisible by the 8-row tile): forced small
    # tiles exercise the cdiv grid + masked edge blocks used for big planes.
    x2 = jax.random.normal(k1, (1, 1, 20, 16), dtype=jnp.float32)
    y2 = jax.block_until_ready(upsample_nearest_2x(x2, force_tiles=(1, 8, 16)))
    ref2 = jnp.repeat(jnp.repeat(x2, 2, axis=2), 2, axis=3)
    assert jnp.array_equal(y2, ref2), "mismatch vs reference (tail-tiled f32)"

    # bf16 path (dtype-aware sublane alignment / packed tiles), exact duplication.
    x3 = jax.random.normal(k2, (1, 2, 32, 16), dtype=jnp.bfloat16)
    y3 = jax.block_until_ready(upsample_nearest_2x(x3))
    ref3 = jnp.repeat(jnp.repeat(x3, 2, axis=2), 2, axis=3)
    assert jnp.array_equal(y3, ref3), "mismatch vs reference (bf16)"

    print("KERNEL_OK")
</pallas_src>

<mosaic_0001>
module attributes {stable_mosaic.version = 11 : i64} {
  func.func @_upsample2x_kernel(%arg0: i32, %arg1: i32, %arg2: i32, %arg3: memref<4x16x16xf32, #tpu.memory_space<vmem>>, %arg4: memref<4x32x32xf32, #tpu.memory_space<vmem>>) attributes {dimension_semantics = [#tpu.dimension_semantics<parallel>, #tpu.dimension_semantics<parallel>, #tpu.dimension_semantics<parallel>], iteration_bounds = array<i64: 2, 1, 1>, scalar_prefetch = 0 : i64, scratch_operands = 0 : i64, tpu.core_type = #tpu.core_type<tc>, window_params = [{transform_indices = @transform_0, window_bounds = array<i64: 4, 16, 16>}, {transform_indices = @transform_1, window_bounds = array<i64: 4, 32, 32>}]} {
    %c0 = arith.constant 0 : index
    %c0_0 = arith.constant 0 : index
    %c0_1 = arith.constant 0 : index
    %0 = vector.load %arg3[%c0, %c0_0, %c0_1] : memref<4x16x16xf32, #tpu.memory_space<vmem>>, vector<4x16x16xf32>
    %1 = vector.shape_cast %0 : vector<4x16x16xf32> to vector<4x16x16x1xf32>
    %2 = vector.broadcast %1 : vector<4x16x16x1xf32> to vector<4x16x16x2xf32>
    %3 = vector.shape_cast %2 : vector<4x16x16x2xf32> to vector<4x16x32xf32>
    %4 = vector.shape_cast %3 : vector<4x16x32xf32> to vector<4x16x1x32xf32>
    %5 = vector.broadcast %4 : vector<4x16x1x32xf32> to vector<4x16x2x32xf32>
    %6 = vector.shape_cast %5 : vector<4x16x2x32xf32> to vector<4x32x32xf32>
    %c0_2 = arith.constant 0 : index
    %c0_3 = arith.constant 0 : index
    %c0_4 = arith.constant 0 : index
    %7 = vector.load %arg4[%c0_2, %c0_3, %c0_4] : memref<4x32x32xf32, #tpu.memory_space<vmem>>, vector<4x32x32xf32>
    tpu.vector_store %arg4[%c0_2, %c0_3, %c0_4], %6 {strides = array<i32>} : memref<4x32x32xf32, #tpu.memory_space<vmem>>, vector<4x32x32xf32>,
    return
  }
  func.func @transform_0(%arg0: i32, %arg1: i32, %arg2: i32) -> (i32, i32, i32) {
    %c0_i32 = arith.constant 0 : i32
    return %arg0, %arg1, %arg2 : i32, i32, i32
  }
  func.func @transform_1(%arg0: i32, %arg1: i32, %arg2: i32) -> (i32, i32, i32) {
    %c0_i32 = arith.constant 0 : i32
    return %arg0, %arg1, %arg2 : i32, i32, i32
  }
}

</mosaic_0001>

<llo_original>
// kernel: tpu_custom_call.1
$region0: #{tpu_custom_call.1}
  #allocation0 [shape = 'u32[]', space=smem, size = 0x4, offset = 0x4, fixed_abs, tag = 'smem constant byte address 0x4 - core index']
  #allocation1 [shape = 'u32[144,128]{1,0:T(1,128)}', space=vmem, size = 0x12000, scoped, tag = 'internal scratch']
  %s0 = inlined_call_operand.hbm [shape: f32[8,16,16], index: 0, kind: input, shape index: {}]
  %s1 = inlined_call_operand.hbm [shape: f32[8,32,32], index: 1, kind: output, shape index: {}]
  %s2 = sld [smem:[#allocation0]]
  $region41: #{tpu_custom_call.1} parent=0
    _
  %s4 = ssub.s32 1, %s2
  %s5 = scalar_select 0, %s4, %s2
  $region1: #{tpu_custom_call.1} parent=0
    #allocation2 [shape = 'u8[65536]{0}', space=vmem, size = 0x10000, scoped, tag = 'input window, operand 0']
    #allocation3 [shape = 's32[2]{0}', space=sflag, size = 0x8, scoped, tag = 'scoped memory for tpu_custom_call.1']
    #allocation4 [shape = 's32[2]{0}', space=sflag, size = 0x8, scoped, tag = 'scoped memory for tpu_custom_call.1']
    #allocation5 [shape = 'u8[131072]{0}', space=vmem, size = 0x20000, scoped, tag = 'output window, operand 0']
    %6 = vsyncpa [#allocation3], 0
    %s7 = scalar_lea.sflag [#allocation3], 1
    %8 = vsyncpa %s7, 0
    %9 = vsyncpa [#allocation4], 0
    %s10 = scalar_lea.sflag [#allocation4], 1
    %11 = vsyncpa %s10, 0
    loop: start=0, step=1, limit=4
    $region2: #{tpu_custom_call.1} parent=1 // loop_pre_header
      _
    $region3: #{tpu_custom_call.1} parent=1 // loop_header
      %s13 = sphi 0, %s17
      %p14 = scmp.ge.s32.totalorder %s13, 4
      %s20 = sphi 0, %s39
      %s21 = sphi 0, %s35
      %s22 = sphi 0, %s31
      %s23 = sphi 0, %s20
      %s24 = sphi 0, %s21
      %s25 = sphi 0, %s22
      %s26 = sphi 0, %s23
      %s27 = sphi 0, %s24
      %s28 = sphi 0, %s25
      %s46 = sphi 0, %s48
      %s49 = sphi 0, %s46
      %s50 = sphi 0, %s49
      %s66 = sphi 0, %s50
      %s76 = sphi 0, %s78
      %s79 = sphi 0, %s76
      %s80 = sphi 0, %s79
      %s96 = sphi 0, %s80
    $region4: #{tpu_custom_call.1} parent=1 // loop_header_branch
      %16 = sbr.rel (%p14) target = $region8
    $region5: #{tpu_custom_call.1} parent=1 // loop_body
      %s18 = ssub.s32 %s13, 1
      %s19 = ssub.s32 %s13, 2
      %s29 = sadd.s32 1, %s22
      %p30 = scmp.ge.s32.totalorder %s29, 1
      %s31 = scalar_select %p30, 0, %s29
      %s32 = sadd.s32 1, %s21
      %s33 = scalar_select %p30, %s32, %s21
      %p34 = scmp.ge.s32.totalorder %s33, 1
      %s35 = scalar_select %p34, 0, %s33
      %s36 = sadd.s32 1, %s20
      %s37 = scalar_select %p34, %s36, %s20
      %p38 = scmp.ge.s32.totalorder %s37, 2
      %s39 = scalar_select %p38, 0, %s37
      %s40 = ssub.s32 %s20, %s39
      %s41 = ssub.s32 %s21, %s35
      %s42 = sor.u32 %s40, %s41
      %s43 = ssub.s32 %s22, %s31
      %s44 = sor.u32 %s42, %s43
      %p45 = scmp.eq.s32.totalorder %s44, 0
      %s47 = sadd.s32 %s46, 1
      %s48 = scalar_select %p45, %s46, %s47
      %p51 = pneg %p45
      %p52 = scmp.eq.s32.totalorder %s13, 1
      %p53 = por %p51, %p52
      %p54 = scmp.ne.s32.totalorder %s46, %s49
      %p55 = scmp.eq.s32.totalorder %s13, 0
      %p56 = por %p54, %p55
      %p57 = scmp.ne.s32.totalorder %s46, %s49
      %p58 = scmp.eq.s32.totalorder %s18, 1
      %p59 = por %p57, %p58
      %p60 = scmp.ne.s32.totalorder %s49, %s50
      %p61 = scmp.eq.s32.totalorder %s18, 0
      %p62 = por %p60, %p61
      %p63 = scmp.ne.s32.totalorder %s49, %s50
      %p64 = scmp.eq.s32.totalorder %s19, 1
      %p65 = por %p63, %p64
      %p67 = scmp.ne.s32.totalorder %s50, %s66
      %p68 = scmp.eq.s32.totalorder %s19, 0
      %p69 = por %p67, %p68
      %s70 = ssub.s32 %s20, %s39
      %s71 = ssub.s32 %s21, %s35
      %s72 = sor.u32 %s70, %s71
      %s73 = ssub.s32 %s22, %s31
      %s74 = sor.u32 %s72, %s73
      %p75 = scmp.eq.s32.totalorder %s74, 0
      %s77 = sadd.s32 %s76, 1
      %s78 = scalar_select %p75, %s76, %s77
      %p81 = pneg %p75
      %p82 = scmp.eq.s32.totalorder %s13, 1
      %p83 = por %p81, %p82
      %p84 = scmp.ne.s32.totalorder %s76, %s79
      %p85 = scmp.eq.s32.totalorder %s13, 0
      %p86 = por %p84, %p85
      %p87 = scmp.ne.s32.totalorder %s76, %s79
      %p88 = scmp.eq.s32.totalorder %s18, 1
      %p89 = por %p87, %p88
      %p90 = scmp.ne.s32.totalorder %s79, %s80
      %p91 = scmp.eq.s32.totalorder %s18, 0
      %p92 = por %p90, %p91
      %p93 = scmp.ne.s32.totalorder %s79, %s80
      %p94 = scmp.eq.s32.totalorder %s19, 1
      %p95 = por %p93, %p94
      %p97 = scmp.ne.s32.totalorder %s80, %s96
      %p98 = scmp.eq.s32.totalorder %s19, 0
      %p99 = por %p97, %p98
      %p100 = scmp.le.s32.totalorder 1, %s13
      %p101 = scmp.lt.s32.totalorder %s13, 3
      %p102 = pnand %p100, %p101
      %p103 = pneg %p102
      // Predicated region
      $region9: #{tpu_custom_call.1} parent=5 // pred_check
        _
      $region10: #{tpu_custom_call.1} parent=5 // pred_check_branch
        %105 = sbr.rel (%p102) target = $region12
      $region11: #{tpu_custom_call.1} parent=5 // pred_region
        %s106 = ssub.s32 %s13, 1
      $region12: #{tpu_custom_call.1} parent=5 // pred_fallthru
        _
      %p107 = scmp.lt.s32.totalorder %s13, 2
      // Predicated region
      $region13: #{tpu_custom_call.1} parent=5 // pred_check
        %p108 = pneg %p107
      $region14: #{tpu_custom_call.1} parent=5 // pred_check_branch
        %110 = sbr.rel (%p108) target = $region16
      $region15: #{tpu_custom_call.1} parent=5 // pred_region
        // Predicated region
        $region17: #{tpu_custom_call.1} parent=15 // pred_check
          %p111 = pneg %p56
        $region18: #{tpu_custom_call.1} parent=15 // pred_check_branch
          %113 = sbr.rel (%p111) target = $region20
        $region19: #{tpu_custom_call.1} parent=15 // pred_region
          %s114 = sand.u32 %s46, 1
          %s115 = scalar_lea.sflag [#allocation3], %s114
          %s116 = sand.u32 %s46, 1
          %s117 = smul.addr %s116, 64
          %s118 = scalar_lea.vmem [#allocation2], %s117
          %s119 = smul.u32 4, %s20
          %s120 = smul.u32 2, %s21
          %s122 = ssub.s32 1024, 1024
          %123 = vsyncadd %s115, %s122
          %s124 = sadd.s32 %s22, %s120
          %s125 = smul.addr %s119, 2
          %s126 = sadd.s32 %s124, %s125
          %s127 = smul.addr %s126, 128
          %s128 = scalar_lea.hbm %s0, %s127
          %s129 = sshll.u32 %s118, 4
          %s130 = int_to_ptr.vmem [resolvable:$true] %s129
          %135 = dma.hbm_to_vmem [thread:$0]  %s128, 1024, %s130, %s115, 128, 128, 8
        $region20: #{tpu_custom_call.1} parent=15 // pred_fallthru
          _
      $region16: #{tpu_custom_call.1} parent=5 // pred_fallthru
        _
      %p136 = scmp.le.s32.totalorder 1, %s13
      %p137 = scmp.lt.s32.totalorder %s13, 3
      %p138 = pnand %p136, %p137
      %p139 = pneg %p138
      // Predicated region
      $region21: #{tpu_custom_call.1} parent=5 // pred_check
        _
      $region22: #{tpu_custom_call.1} parent=5 // pred_check_branch
        %141 = sbr.rel (%p138) target = $region24
      $region23: #{tpu_custom_call.1} parent=5 // pred_region
        %s142 = ssub.s32 %s13, 1
        %s143 = sand.u32 %s49, 1
        %s144 = scalar_lea.sflag [#allocation3], %s143
        %s145 = sand.u32 %s49, 1
        %s146 = smul.addr %s145, 64
        %s147 = scalar_lea.vmem [#allocation2], %s146
        // Predicated region
        $region25: #{tpu_custom_call.1} parent=23 // pred_check
          %p148 = pneg %p62
        $region26: #{tpu_custom_call.1} parent=23 // pred_check_branch
          %150 = sbr.rel (%p148) target = $region28
        $region27: #{tpu_custom_call.1} parent=23 // pred_region
          %151 = dma.done %s144, 1024
        $region28: #{tpu_custom_call.1} parent=23 // pred_fallthru
          _
        %s152 = sand.u32 %s49, 1
        %s153 = scalar_lea.sflag [#allocation3], %s152
        %s154 = sand.u32 %s49, 1
        %s155 = smul.addr %s154, 64
        %s156 = scalar_lea.vmem [#allocation2], %s155
        %p157 = pneg %p62
        %p158 = pneg %p59
        %p159 = pneg %p92
        %p160 = pneg %p89
        %s161 = sand.u32 %s79, 1
        %s162 = scalar_lea.sflag [#allocation4], %s161
        %s163 = sand.u32 %s79, 1
        %s164 = smul.addr %s163, 128
        %s165 = scalar_lea.vmem [#allocation5], %s164
        %s166 = smul.u32 4, %s23
        %s167 = smul.u32 2, %s24
        %s168 = smul.u32 4, %s23
        %s169 = smul.u32 4, %s24
        %v170 = vld [vmem:[%s147] sm:$0xff]
        %v171 = vld [vmem:[%s147 + $0x8] sm:$0xff]
        %v172 = vld [vmem:[%s147 + $0x10] sm:$0xff]
        %v173 = vld [vmem:[%s147 + $0x18] sm:$0xff]
        %v174 = vld [vmem:[%s147 + $0x20] sm:$0xff]
        %v175 = vld [vmem:[%s147 + $0x28] sm:$0xff]
        %v176 = vld [vmem:[%s147 + $0x30] sm:$0xff]
        %v177 = vld [vmem:[%s147 + $0x38] sm:$0xff]
        %v178 = vlaneseq
        %v179 = vshrl.u32 %v178, 7
        %v180 = vsub.s32 0, %v179
        %v181 = vrot.slane %v170, %v180
        %183 = vbcast.lane.b32.xlu0 %v181, 256
        %v184 = vpop.permute.xlu0 %183
        %s186 = sor.u32 256, 8
        %187 = vbcast.lane.b32.xlu0 %v181, %s186
        %v188 = vpop.permute.xlu0 %187
        %v189 = vlaneseq
        %v190 = vshrl.u32 %v189, 7
        %v191 = vsub.s32 1, %v190
        %v192 = vrot.slane %v170, %v191
        %194 = vbcast.lane.b32.xlu0 %v192, 256
        %v195 = vpop.permute.xlu0 %194
        %s197 = sor.u32 256, 8
        %198 = vbcast.lane.b32.xlu0 %v192, %s197
        %v199 = vpop.permute.xlu0 %198
        %v200 = vlaneseq
        %v201 = vshrl.u32 %v200, 7
        %v202 = vsub.s32 2, %v201
        %v203 = vrot.slane %v170, %v202
        %205 = vbcast.lane.b32.xlu0 %v203, 256
        %v206 = vpop.permute.xlu0 %205
        %s208 = sor.u32 256, 8
        %209 = vbcast.lane.b32.xlu0 %v203, %s208
        %v210 = vpop.permute.xlu0 %209
        %v211 = vlaneseq
        %v212 = vshrl.u32 %v211, 7
        %v213 = vsub.s32 3, %v212
        %v214 = vrot.slane %v170, %v213
        %216 = vbcast.lane.b32.xlu0 %v214, 256
        %v217 = vpop.permute.xlu0 %216
        %s219 = sor.u32 256, 8
        %220 = vbcast.lane.b32.xlu0 %v214, %s219
        %v221 = vpop.permute.xlu0 %220
        %v222 = vlaneseq
        %v223 = vshrl.u32 %v222, 7
        %v224 = vsub.s32 4, %v223
        %v225 = vrot.slane %v170, %v224
        %227 = vbcast.lane.b32.xlu0 %v225, 256
        %v228 = vpop.permute.xlu0 %227
        %s230 = sor.u32 256, 8
        %231 = vbcast.lane.b32.xlu0 %v225, %s230
        %v232 = vpop.permute.xlu0 %231
        %v233 = vlaneseq
        %v234 = vshrl.u32 %v233, 7
        %v235 = vsub.s32 5, %v234
        %v236 = vrot.slane %v170, %v235
        %238 = vbcast.lane.b32.xlu0 %v236, 256
        %v239 = vpop.permute.xlu0 %238
        %s241 = sor.u32 256, 8
        %242 = vbcast.lane.b32.xlu0 %v236, %s241
        %v243 = vpop.permute.xlu0 %242
        %v244 = vlaneseq
        %v245 = vshrl.u32 %v244, 7
        %v246 = vsub.s32 6, %v245
        %v247 = vrot.slane %v170, %v246
        %249 = vbcast.lane.b32.xlu0 %v247, 256
        %v250 = vpop.permute.xlu0 %249
        %s252 = sor.u32 256, 8
        %253 = vbcast.lane.b32.xlu0 %v247, %s252
        %v254 = vpop.permute.xlu0 %253
        %v255 = vlaneseq
        %v256 = vshrl.u32 %v255, 7
        %v257 = vsub.s32 7, %v256
        %v258 = vrot.slane %v170, %v257
        %260 = vbcast.lane.b32.xlu0 %v258, 256
        %v261 = vpop.permute.xlu0 %260
        %s263 = sor.u32 256, 8
        %264 = vbcast.lane.b32.xlu0 %v258, %s263
        %v265 = vpop.permute.xlu0 %264
        %v266 = vlaneseq
        %v267 = vshrl.u32 %v266, 7
        %v268 = vsub.s32 0, %v267
        %v269 = vrot.slane %v171, %v268
        %271 = vbcast.lane.b32.xlu0 %v269, 256
        %v272 = vpop.permute.xlu0 %271
        %s274 = sor.u32 256, 8
        %275 = vbcast.lane.b32.xlu0 %v269, %s274
        %v276 = vpop.permute.xlu0 %275
        %v277 = vlaneseq
        %v278 = vshrl.u32 %v277, 7
        %v279 = vsub.s32 1, %v278
        %v280 = vrot.slane %v171, %v279
        %282 = vbcast.lane.b32.xlu0 %v280, 256
        %v283 = vpop.permute.xlu0 %282
        %s285 = sor.u32 256, 8
        %286 = vbcast.lane.b32.xlu0 %v280, %s285
        %v287 = vpop.permute.xlu0 %286
        %v288 = vlaneseq
        %v289 = vshrl.u32 %v288, 7
        %v290 = vsub.s32 2, %v289
        %v291 = vrot.slane %v171, %v290
        %293 = vbcast.lane.b32.xlu0 %v291, 256
        %v294 = vpop.permute.xlu0 %293
        %s296 = sor.u32 256, 8
        %297 = vbcast.lane.b32.xlu0 %v291, %s296
        %v298 = vpop.permute.xlu0 %297
        %v299 = vlaneseq
        %v300 = vshrl.u32 %v299, 7
        %v301 = vsub.s32 3, %v300
        %v302 = vrot.slane %v171, %v301
        %304 = vbcast.lane.b32.xlu0 %v302, 256
        %v305 = vpop.permute.xlu0 %304
        %s307 = sor.u32 256, 8
        %308 = vbcast.lane.b32.xlu0 %v302, %s307
        %v309 = vpop.permute.xlu0 %308
        %v310 = vlaneseq
        %v311 = vshrl.u32 %v310, 7
        %v312 = vsub.s32 4, %v311
        %v313 = vrot.slane %v171, %v312
        %315 = vbcast.lane.b32.xlu0 %v313, 256
        %v316 = vpop.permute.xlu0 %315
        %s318 = sor.u32 256, 8
        %319 = vbcast.lane.b32.xlu0 %v313, %s318
        %v320 = vpop.permute.xlu0 %319
        %v321 = vlaneseq
        %v322 = vshrl.u32 %v321, 7
        %v323 = vsub.s32 5, %v322
        %v324 = vrot.slane %v171, %v323
        %326 = vbcast.lane.b32.xlu0 %v324, 256
        %v327 = vpop.permute.xlu0 %326
        %s329 = sor.u32 256, 8
        %330 = vbcast.lane.b32.xlu0 %v324, %s329
        %v331 = vpop.permute.xlu0 %330
        %v332 = vlaneseq
        %v333 = vshrl.u32 %v332, 7
        %v334 = vsub.s32 6, %v333
        %v335 = vrot.slane %v171, %v334
        %337 = vbcast.lane.b32.xlu0 %v335, 256
        %v338 = vpop.permute.xlu0 %337
        %s340 = sor.u32 256, 8
        %341 = vbcast.lane.b32.xlu0 %v335, %s340
        %v342 = vpop.permute.xlu0 %341
        %v343 = vlaneseq
        %v344 = vshrl.u32 %v343, 7
        %v345 = vsub.s32 7, %v344
        %v346 = vrot.slane %v171, %v345
        %348 = vbcast.lane.b32.xlu0 %v346, 256
        %v349 = vpop.permute.xlu0 %348
        %s351 = sor.u32 256, 8
        %352 = vbcast.lane.b32.xlu0 %v346, %s351
        %v353 = vpop.permute.xlu0 %352
        %v354 = vlaneseq
        %v355 = vshrl.u32 %v354, 7
        %v356 = vsub.s32 0, %v355
        %v357 = vrot.slane %v172, %v356
        %359 = vbcast.lane.b32.xlu0 %v357, 256
        %v360 = vpop.permute.xlu0 %359
        %s362 = sor.u32 256, 8
        %363 = vbcast.lane.b32.xlu0 %v357, %s362
        %v364 = vpop.permute.xlu0 %363
        %v365 = vlaneseq
        %v366 = vshrl.u32 %v365, 7
        %v367 = vsub.s32 1, %v366
        %v368 = vrot.slane %v172, %v367
        %370 = vbcast.lane.b32.xlu0 %v368, 256
        %v371 = vpop.permute.xlu0 %370
        %s373 = sor.u32 256, 8
        %374 = vbcast.lane.b32.xlu0 %v368, %s373
        %v375 = vpop.permute.xlu0 %374
        %v376 = vlaneseq
        %v377 = vshrl.u32 %v376, 7
        %v378 = vsub.s32 2, %v377
        %v379 = vrot.slane %v172, %v378
        %381 = vbcast.lane.b32.xlu0 %v379, 256
        %v382 = vpop.permute.xlu0 %381
        %s384 = sor.u32 256, 8
        %385 = vbcast.lane.b32.xlu0 %v379, %s384
        %v386 = vpop.permute.xlu0 %385
        %v387 = vlaneseq
        %v388 = vshrl.u32 %v387, 7
        %v389 = vsub.s32 3, %v388
        %v390 = vrot.slane %v172, %v389
        %392 = vbcast.lane.b32.xlu0 %v390, 256
        %v393 = vpop.permute.xlu0 %392
        %s395 = sor.u32 256, 8
        %396 = vbcast.lane.b32.xlu0 %v390, %s395
        %v397 = vpop.permute.xlu0 %396
        %v398 = vlaneseq
        %v399 = vshrl.u32 %v398, 7
        %v400 = vsub.s32 4, %v399
        %v401 = vrot.slane %v172, %v400
        %403 = vbcast.lane.b32.xlu0 %v401, 256
        %v404 = vpop.permute.xlu0 %403
        %s406 = sor.u32 256, 8
        %407 = vbcast.lane.b32.xlu0 %v401, %s406
        %v408 = vpop.permute.xlu0 %407
        %v409 = vlaneseq
        %v410 = vshrl.u32 %v409, 7
        %v411 = vsub.s32 5, %v410
        %v412 = vrot.slane %v172, %v411
        %414 = vbcast.lane.b32.xlu0 %v412, 256
        %v415 = vpop.permute.xlu0 %414
        %s417 = sor.u32 256, 8
        %418 = vbcast.lane.b32.xlu0 %v412, %s417
        %v419 = vpop.permute.xlu0 %418
        %v420 = vlaneseq
        %v421 = vshrl.u32 %v420, 7
        %v422 = vsub.s32 6, %v421
        %v423 = vrot.slane %v172, %v422
        %425 = vbcast.lane.b32.xlu0 %v423, 256
        %v426 = vpop.permute.xlu0 %425
        %s428 = sor.u32 256, 8
        %429 = vbcast.lane.b32.xlu0 %v423, %s428
        %v430 = vpop.permute.xlu0 %429
        %v431 = vlaneseq
        %v432 = vshrl.u32 %v431, 7
        %v433 = vsub.s32 7, %v432
        %v434 = vrot.slane %v172, %v433
        %436 = vbcast.lane.b32.xlu0 %v434, 256
        %v437 = vpop.permute.xlu0 %436
        %s439 = sor.u32 256, 8
        %440 = vbcast.lane.b32.xlu0 %v434, %s439
        %v441 = vpop.permute.xlu0 %440
        %v442 = vlaneseq
        %v443 = vshrl.u32 %v442, 7
        %v444 = vsub.s32 0, %v443
        %v445 = vrot.slane %v173, %v444
        %447 = vbcast.lane.b32.xlu0 %v445, 256
        %v448 = vpop.permute.xlu0 %447
        %s450 = sor.u32 256, 8
        %451 = vbcast.lane.b32.xlu0 %v445, %s450
        %v452 = vpop.permute.xlu0 %451
        %v453 = vlaneseq
        %v454 = vshrl.u32 %v453, 7
        %v455 = vsub.s32 1, %v454
        %v456 = vrot.slane %v173, %v455
        %458 = vbcast.lane.b32.xlu0 %v456, 256
        %v459 = vpop.permute.xlu0 %458
        %s461 = sor.u32 256, 8
        %462 = vbcast.lane.b32.xlu0 %v456, %s461
        %v463 = vpop.permute.xlu0 %462
        %v464 = vlaneseq
        %v465 = vshrl.u32 %v464, 7
        %v466 = vsub.s32 2, %v465
        %v467 = vrot.slane %v173, %v466
        %469 = vbcast.lane.b32.xlu0 %v467, 256
        %v470 = vpop.permute.xlu0 %469
        %s472 = sor.u32 256, 8
        %473 = vbcast.lane.b32.xlu0 %v467, %s472
        %v474 = vpop.permute.xlu0 %473
        %v475 = vlaneseq
        %v476 = vshrl.u32 %v475, 7
        %v477 = vsub.s32 3, %v476
        %v478 = vrot.slane %v173, %v477
        %480 = vbcast.lane.b32.xlu0 %v478, 256
        %v481 = vpop.permute.xlu0 %480
        %s483 = sor.u32 256, 8
        %484 = vbcast.lane.b32.xlu0 %v478, %s483
        %v485 = vpop.permute.xlu0 %484
        %v486 = vlaneseq
        %v487 = vshrl.u32 %v486, 7
        %v488 = vsub.s32 4, %v487
        %v489 = vrot.slane %v173, %v488
        %491 = vbcast.lane.b32.xlu0 %v489, 256
        %v492 = vpop.permute.xlu0 %491
        %s494 = sor.u32 256, 8
        %495 = vbcast.lane.b32.xlu0 %v489, %s494
        %v496 = vpop.permute.xlu0 %495
        %v497 = vlaneseq
        %v498 = vshrl.u32 %v497, 7
        %v499 = vsub.s32 5, %v498
        %v500 = vrot.slane %v173, %v499
        %502 = vbcast.lane.b32.xlu0 %v500, 256
        %v503 = vpop.permute.xlu0 %502
        %s505 = sor.u32 256, 8
        %506 = vbcast.lane.b32.xlu0 %v500, %s505
        %v507 = vpop.permute.xlu0 %506
        %v508 = vlaneseq
        %v509 = vshrl.u32 %v508, 7
        %v510 = vsub.s32 6, %v509
        %v511 = vrot.slane %v173, %v510
        %513 = vbcast.lane.b32.xlu0 %v511, 256
        %v514 = vpop.permute.xlu0 %513
        %s516 = sor.u32 256, 8
        %517 = vbcast.lane.b32.xlu0 %v511, %s516
        %v518 = vpop.permute.xlu0 %517
        %v519 = vlaneseq
        %v520 = vshrl.u32 %v519, 7
        %v521 = vsub.s32 7, %v520
        %v522 = vrot.slane %v173, %v521
        %524 = vbcast.lane.b32.xlu0 %v522, 256
        %v525 = vpop.permute.xlu0 %524
        %s527 = sor.u32 256, 8
        %528 = vbcast.lane.b32.xlu0 %v522, %s527
        %v529 = vpop.permute.xlu0 %528
        %v530 = vlaneseq
        %v531 = vshrl.u32 %v530, 7
        %v532 = vsub.s32 0, %v531
        %v533 = vrot.slane %v174, %v532
        %535 = vbcast.lane.b32.xlu0 %v533, 256
        %v536 = vpop.permute.xlu0 %535
        %s538 = sor.u32 256, 8
        %539 = vbcast.lane.b32.xlu0 %v533, %s538
        %v540 = vpop.permute.xlu0 %539
        %v541 = vlaneseq
        %v542 = vshrl.u32 %v541, 7
        %v543 = vsub.s32 1, %v542
        %v544 = vrot.slane %v174, %v543
        %546 = vbcast.lane.b32.xlu0 %v544, 256
        %v547 = vpop.permute.xlu0 %546
        %s549 = sor.u32 256, 8
        %550 = vbcast.lane.b32.xlu0 %v544, %s549
        %v551 = vpop.permute.xlu0 %550
        %v552 = vlaneseq
        %v553 = vshrl.u32 %v552, 7
        %v554 = vsub.s32 2, %v553
        %v555 = vrot.slane %v174, %v554
        %557 = vbcast.lane.b32.xlu0 %v555, 256
        %v558 = vpop.permute.xlu0 %557
        %s560 = sor.u32 256, 8
        %561 = vbcast.lane.b32.xlu0 %v555, %s560
        %v562 = vpop.permute.xlu0 %561
        %v563 = vlaneseq
        %v564 = vshrl.u32 %v563, 7
        %v565 = vsub.s32 3, %v564
        %v566 = vrot.slane %v174, %v565
        %568 = vbcast.lane.b32.xlu0 %v566, 256
        %v569 = vpop.permute.xlu0 %568
        %s571 = sor.u32 256, 8
        %572 = vbcast.lane.b32.xlu0 %v566, %s571
        %v573 = vpop.permute.xlu0 %572
        %v574 = vlaneseq
        %v575 = vshrl.u32 %v574, 7
        %v576 = vsub.s32 4, %v575
        %v577 = vrot.slane %v174, %v576
        %579 = vbcast.lane.b32.xlu0 %v577, 256
        %v580 = vpop.permute.xlu0 %579
        %s582 = sor.u32 256, 8
        %583 = vbcast.lane.b32.xlu0 %v577, %s582
        %v584 = vpop.permute.xlu0 %583
        %v585 = vlaneseq
        %v586 = vshrl.u32 %v585, 7
        %v587 = vsub.s32 5, %v586
        %v588 = vrot.slane %v174, %v587
        %590 = vbcast.lane.b32.xlu0 %v588, 256
        %v591 = vpop.permute.xlu0 %590
        %s593 = sor.u32 256, 8
        %594 = vbcast.lane.b32.xlu0 %v588, %s593
        %v595 = vpop.permute.xlu0 %594
        %v596 = vlaneseq
        %v597 = vshrl.u32 %v596, 7
        %v598 = vsub.s32 6, %v597
        %v599 = vrot.slane %v174, %v598
        %601 = vbcast.lane.b32.xlu0 %v599, 256
        %v602 = vpop.permute.xlu0 %601
        %s604 = sor.u32 256, 8
        %605 = vbcast.lane.b32.xlu0 %v599, %s604
        %v606 = vpop.permute.xlu0 %605
        %v607 = vlaneseq
        %v608 = vshrl.u32 %v607, 7
        %v609 = vsub.s32 7, %v608
        %v610 = vrot.slane %v174, %v609
        %612 = vbcast.lane.b32.xlu0 %v610, 256
        %v613 = vpop.permute.xlu0 %612
        %s615 = sor.u32 256, 8
        %616 = vbcast.lane.b32.xlu0 %v610, %s615
        %v617 = vpop.permute.xlu0 %616
        %v618 = vlaneseq
        %v619 = vshrl.u32 %v618, 7
        %v620 = vsub.s32 0, %v619
        %v621 = vrot.slane %v175, %v620
        %623 = vbcast.lane.b32.xlu0 %v621, 256
        %v624 = vpop.permute.xlu0 %623
        %s626 = sor.u32 256, 8
        %627 = vbcast.lane.b32.xlu0 %v621, %s626
        %v628 = vpop.permute.xlu0 %627
        %v629 = vlaneseq
        %v630 = vshrl.u32 %v629, 7
        %v631 = vsub.s32 1, %v630
        %v632 = vrot.slane %v175, %v631
        %634 = vbcast.lane.b32.xlu0 %v632, 256
        %v635 = vpop.permute.xlu0 %634
        %s637 = sor.u32 256, 8
        %638 = vbcast.lane.b32.xlu0 %v632, %s637
        %v639 = vpop.permute.xlu0 %638
        %v640 = vlaneseq
        %v641 = vshrl.u32 %v640, 7
        %v642 = vsub.s32 2, %v641
        %v643 = vrot.slane %v175, %v642
        %645 = vbcast.lane.b32.xlu0 %v643, 256
        %v646 = vpop.permute.xlu0 %645
        %s648 = sor.u32 256, 8
        %649 = vbcast.lane.b32.xlu0 %v643, %s648
        %v650 = vpop.permute.xlu0 %649
        %v651 = vlaneseq
        %v652 = vshrl.u32 %v651, 7
        %v653 = vsub.s32 3, %v652
        %v654 = vrot.slane %v175, %v653
        %656 = vbcast.lane.b32.xlu0 %v654, 256
        %v657 = vpop.permute.xlu0 %656
        %s659 = sor.u32 256, 8
        %660 = vbcast.lane.b32.xlu0 %v654, %s659
        %v661 = vpop.permute.xlu0 %660
        %v662 = vlaneseq
        %v663 = vshrl.u32 %v662, 7
        %v664 = vsub.s32 4, %v663
        %v665 = vrot.slane %v175, %v664
        %667 = vbcast.lane.b32.xlu0 %v665, 256
        %v668 = vpop.permute.xlu0 %667
        %s670 = sor.u32 256, 8
        %671 = vbcast.lane.b32.xlu0 %v665, %s670
        %v672 = vpop.permute.xlu0 %671
        %v673 = vlaneseq
        %v674 = vshrl.u32 %v673, 7
        %v675 = vsub.s32 5, %v674
        %v676 = vrot.slane %v175, %v675
        %678 = vbcast.lane.b32.xlu0 %v676, 256
        %v679 = vpop.permute.xlu0 %678
        %s681 = sor.u32 256, 8
        %682 = vbcast.lane.b32.xlu0 %v676, %s681
        %v683 = vpop.permute.xlu0 %682
        %v684 = vlaneseq
        %v685 = vshrl.u32 %v684, 7
        %v686 = vsub.s32 6, %v685
        %v687 = vrot.slane %v175, %v686
        %689 = vbcast.lane.b32.xlu0 %v687, 256
        %v690 = vpop.permute.xlu0 %689
        %s692 = sor.u32 256, 8
        %693 = vbcast.lane.b32.xlu0 %v687, %s692
        %v694 = vpop.permute.xlu0 %693
        %v695 = vlaneseq
        %v696 = vshrl.u32 %v695, 7
        %v697 = vsub.s32 7, %v696
        %v698 = vrot.slane %v175, %v697
        %700 = vbcast.lane.b32.xlu0 %v698, 256
        %v701 = vpop.permute.xlu0 %700
        %s703 = sor.u32 256, 8
        %704 = vbcast.lane.b32.xlu0 %v698, %s703
        %v705 = vpop.permute.xlu0 %704
        %v706 = vlaneseq
        %v707 = vshrl.u32 %v706, 7
        %v708 = vsub.s32 0, %v707
        %v709 = vrot.slane %v176, %v708
        %711 = vbcast.lane.b32.xlu0 %v709, 256
        %v712 = vpop.permute.xlu0 %711
        %s714 = sor.u32 256, 8
        %715 = vbcast.lane.b32.xlu0 %v709, %s714
        %v716 = vpop.permute.xlu0 %715
        %v717 = vlaneseq
        %v718 = vshrl.u32 %v717, 7
        %v719 = vsub.s32 1, %v718
        %v720 = vrot.slane %v176, %v719
        %722 = vbcast.lane.b32.xlu0 %v720, 256
        %v723 = vpop.permute.xlu0 %722
        %s725 = sor.u32 256, 8
        %726 = vbcast.lane.b32.xlu0 %v720, %s725
        %v727 = vpop.permute.xlu0 %726
        %v728 = vlaneseq
        %v729 = vshrl.u32 %v728, 7
        %v730 = vsub.s32 2, %v729
        %v731 = vrot.slane %v176, %v730
        %733 = vbcast.lane.b32.xlu0 %v731, 256
        %v734 = vpop.permute.xlu0 %733
        %s736 = sor.u32 256, 8
        %737 = vbcast.lane.b32.xlu0 %v731, %s736
        %v738 = vpop.permute.xlu0 %737
        %v739 = vlaneseq
        %v740 = vshrl.u32 %v739, 7
        %v741 = vsub.s32 3, %v740
        %v742 = vrot.slane %v176, %v741
        %744 = vbcast.lane.b32.xlu0 %v742, 256
        %v745 = vpop.permute.xlu0 %744
        %s747 = sor.u32 256, 8
        %748 = vbcast.lane.b32.xlu0 %v742, %s747
        %v749 = vpop.permute.xlu0 %748
        %v750 = vlaneseq
        %v751 = vshrl.u32 %v750, 7
        %v752 = vsub.s32 4, %v751
        %v753 = vrot.slane %v176, %v752
        %755 = vbcast.lane.b32.xlu0 %v753, 256
        %v756 = vpop.permute.xlu0 %755
        %s758 = sor.u32 256, 8
        %759 = vbcast.lane.b32.xlu0 %v753, %s758
        %v760 = vpop.permute.xlu0 %759
        %v761 = vlaneseq
        %v762 = vshrl.u32 %v761, 7
        %v763 = vsub.s32 5, %v762
        %v764 = vrot.slane %v176, %v763
        %766 = vbcast.lane.b32.xlu0 %v764, 256
        %v767 = vpop.permute.xlu0 %766
        %s769 = sor.u32 256, 8
        %770 = vbcast.lane.b32.xlu0 %v764, %s769
        %v771 = vpop.permute.xlu0 %770
        %v772 = vlaneseq
        %v773 = vshrl.u32 %v772, 7
        %v774 = vsub.s32 6, %v773
        %v775 = vrot.slane %v176, %v774
        %777 = vbcast.lane.b32.xlu0 %v775, 256
        %v778 = vpop.permute.xlu0 %777
        %s780 = sor.u32 256, 8
        %781 = vbcast.lane.b32.xlu0 %v775, %s780
        %v782 = vpop.permute.xlu0 %781
        %v783 = vlaneseq
        %v784 = vshrl.u32 %v783, 7
        %v785 = vsub.s32 7, %v784
        %v786 = vrot.slane %v176, %v785
        %788 = vbcast.lane.b32.xlu0 %v786, 256
        %v789 = vpop.permute.xlu0 %788
        %s791 = sor.u32 256, 8
        %792 = vbcast.lane.b32.xlu0 %v786, %s791
        %v793 = vpop.permute.xlu0 %792
        %v794 = vlaneseq
        %v795 = vshrl.u32 %v794, 7
        %v796 = vsub.s32 0, %v795
        %v797 = vrot.slane %v177, %v796
        %799 = vbcast.lane.b32.xlu0 %v797, 256
        %v800 = vpop.permute.xlu0 %799
        %s802 = sor.u32 256, 8
        %803 = vbcast.lane.b32.xlu0 %v797, %s802
        %v804 = vpop.permute.xlu0 %803
        %v805 = vlaneseq
        %v806 = vshrl.u32 %v805, 7
        %v807 = vsub.s32 1, %v806
        %v808 = vrot.slane %v177, %v807
        %810 = vbcast.lane.b32.xlu0 %v808, 256
        %v811 = vpop.permute.xlu0 %810
        %s813 = sor.u32 256, 8
        %814 = vbcast.lane.b32.xlu0 %v808, %s813
        %v815 = vpop.permute.xlu0 %814
        %v816 = vlaneseq
        %v817 = vshrl.u32 %v816, 7
        %v818 = vsub.s32 2, %v817
        %v819 = vrot.slane %v177, %v818
        %821 = vbcast.lane.b32.xlu0 %v819, 256
        %v822 = vpop.permute.xlu0 %821
        %s824 = sor.u32 256, 8
        %825 = vbcast.lane.b32.xlu0 %v819, %s824
        %v826 = vpop.permute.xlu0 %825
        %v827 = vlaneseq
        %v828 = vshrl.u32 %v827, 7
        %v829 = vsub.s32 3, %v828
        %v830 = vrot.slane %v177, %v829
        %832 = vbcast.lane.b32.xlu0 %v830, 256
        %v833 = vpop.permute.xlu0 %832
        %s835 = sor.u32 256, 8
        %836 = vbcast.lane.b32.xlu0 %v830, %s835
        %v837 = vpop.permute.xlu0 %836
        %v838 = vlaneseq
        %v839 = vshrl.u32 %v838, 7
        %v840 = vsub.s32 4, %v839
        %v841 = vrot.slane %v177, %v840
        %843 = vbcast.lane.b32.xlu0 %v841, 256
        %v844 = vpop.permute.xlu0 %843
        %s846 = sor.u32 256, 8
        %847 = vbcast.lane.b32.xlu0 %v841, %s846
        %v848 = vpop.permute.xlu0 %847
        %v849 = vlaneseq
        %v850 = vshrl.u32 %v849, 7
        %v851 = vsub.s32 5, %v850
        %v852 = vrot.slane %v177, %v851
        %854 = vbcast.lane.b32.xlu0 %v852, 256
        %v855 = vpop.permute.xlu0 %854
        %s857 = sor.u32 256, 8
        %858 = vbcast.lane.b32.xlu0 %v852, %s857
        %v859 = vpop.permute.xlu0 %858
        %v860 = vlaneseq
        %v861 = vshrl.u32 %v860, 7
        %v862 = vsub.s32 6, %v861
        %v863 = vrot.slane %v177, %v862
        %865 = vbcast.lane.b32.xlu0 %v863, 256
        %v866 = vpop.permute.xlu0 %865
        %s868 = sor.u32 256, 8
        %869 = vbcast.lane.b32.xlu0 %v863, %s868
        %v870 = vpop.permute.xlu0 %869
        %v871 = vlaneseq
        %v872 = vshrl.u32 %v871, 7
        %v873 = vsub.s32 7, %v872
        %v874 = vrot.slane %v177, %v873
        %876 = vbcast.lane.b32.xlu0 %v874, 256
        %v877 = vpop.permute.xlu0 %876
        %s879 = sor.u32 256, 8
        %880 = vbcast.lane.b32.xlu0 %v874, %s879
        %v881 = vpop.permute.xlu0 %880
        %v882 = vcombine.high %v184, 0.0
        %v884 = vunpack.c.l.s4 1983009808
        %v885 = vunpack.c.0.s8 %v884
        %v886 = vlaneseq
        %v887 = vshrl.u32 %v886, 7
        %v888 = vsub.s32 %v885, %v887
        %v889 = vrot.slane %v184, %v888
        %v891 = vunpack.c.l.s4 1983009808
        %v892 = vunpack.c.0.s8 %v891
        %v893 = vlaneseq
        %v894 = vshrl.u32 %v893, 7
        %v895 = vsub.s32 %v892, %v894
        %v896 = vrot.slane %v882, %v895
        %v897 = vcombine.high %v889, 0.0
        %v899 = vunpack.c.l.s4 1934713408
        %v900 = vunpack.c.0.s8 %v899
        %v901 = vlaneseq
        %v902 = vshrl.u32 %v901, 7
        %v903 = vsub.s32 %v900, %v902
        %v904 = vrot.slane %v889, %v903
        %v906 = vunpack.c.l.s4 1934713408
        %v907 = vunpack.c.0.s8 %v906
        %v908 = vlaneseq
        %v909 = vshrl.u32 %v908, 7
        %v910 = vsub.s32 %v907, %v909
        %v911 = vrot.slane %v897, %v910
        %v912 = vcombine.high %v896, 0.0
        %v914 = vunpack.c.l.s4 1934713408
        %v915 = vunpack.c.0.s8 %v914
        %v916 = vlaneseq
        %v917 = vshrl.u32 %v916, 7
        %v918 = vsub.s32 %v915, %v917
        %v919 = vrot.slane %v896, %v918
        %v921 = vunpack.c.l.s4 1934713408
        %v922 = vunpack.c.0.s8 %v921
        %v923 = vlaneseq
        %v924 = vshrl.u32 %v923, 7
        %v925 = vsub.s32 %v922, %v924
        %v926 = vrot.slane %v912, %v925
        %v927 = vcombine.high %v904, 0.0
        %v928 = vcombine.high %v911, 0.0
        %v929 = vcombine.high %v919, 0.0
        %v930 = vcombine.high %v926, 0.0
        %v931 = vcombine.high %v188, 0.0
        %v933 = vunpack.c.l.s4 1983009808
        %v934 = vunpack.c.0.s8 %v933
        %v935 = vlaneseq
        %v936 = vshrl.u32 %v935, 7
        %v937 = vsub.s32 %v934, %v936
        %v938 = vrot.slane %v188, %v937
        %v940 = vunpack.c.l.s4 1983009808
        %v941 = vunpack.c.0.s8 %v940
        %v942 = vlaneseq
        %v943 = vshrl.u32 %v942, 7
        %v944 = vsub.s32 %v941, %v943
        %v945 = vrot.slane %v931, %v944
        %v946 = vcombine.high %v938, 0.0
        %v948 = vunpack.c.l.s4 1934713408
        %v949 = vunpack.c.0.s8 %v948
        %v950 = vlaneseq
        %v951 = vshrl.u32 %v950, 7
        %v952 = vsub.s32 %v949, %v951
        %v953 = vrot.slane %v938, %v952
        %v955 = vunpack.c.l.s4 1934713408
        %v956 = vunpack.c.0.s8 %v955
        %v957 = vlaneseq
        %v958 = vshrl.u32 %v957, 7
        %v959 = vsub.s32 %v956, %v958
        %v960 = vrot.slane %v946, %v959
        %v961 = vcombine.high %v945, 0.0
        %v963 = vunpack.c.l.s4 1934713408
        %v964 = vunpack.c.0.s8 %v963
        %v965 = vlaneseq
        %v966 = vshrl.u32 %v965, 7
        %v967 = vsub.s32 %v964, %v966
        %v968 = vrot.slane %v945, %v967
        %v970 = vunpack.c.l.s4 1934713408
        %v971 = vunpack.c.0.s8 %v970
        %v972 = vlaneseq
        %v973 = vshrl.u32 %v972, 7
        %v974 = vsub.s32 %v971, %v973
        %v975 = vrot.slane %v961, %v974
        %v976 = vcombine.high %v953, 0.0
        %v977 = vcombine.high %v960, 0.0
        %v978 = vcombine.high %v968, 0.0
        %v979 = vcombine.high %v975, 0.0
        %v980 = vcombine.high %v195, 0.0
        %v982 = vunpack.c.l.s4 1983009808
        %v983 = vunpack.c.0.s8 %v982
        %v984 = vlaneseq
        %v985 = vshrl.u32 %v984, 7
        %v986 = vsub.s32 %v983, %v985
        %v987 = vrot.slane %v195, %v986
        %v989 = vunpack.c.l.s4 1983009808
        %v990 = vunpack.c.0.s8 %v989
        %v991 = vlaneseq
        %v992 = vshrl.u32 %v991, 7
        %v993 = vsub.s32 %v990, %v992
        %v994 = vrot.slane %v980, %v993
        %v995 = vcombine.high %v987, 0.0
        %v997 = vunpack.c.l.s4 1934713408
        %v998 = vunpack.c.0.s8 %v997
        %v999 = vlaneseq
        %v1000 = vshrl.u32 %v999, 7
        %v1001 = vsub.s32 %v998, %v1000
        %v1002 = vrot.slane %v987, %v1001
        %v1004 = vunpack.c.l.s4 1934713408
        %v1005 = vunpack.c.0.s8 %v1004
        %v1006 = vlaneseq
        %v1007 = vshrl.u32 %v1006, 7
        %v1008 = vsub.s32 %v1005, %v1007
        %v1009 = vrot.slane %v995, %v1008
        %v1010 = vcombine.high %v994, 0.0
        %v1012 = vunpack.c.l.s4 1934713408
        %v1013 = vunpack.c.0.s8 %v1012
        %v1014 = vlaneseq
        %v1015 = vshrl.u32 %v1014, 7
        %v1016 = vsub.s32 %v1013, %v1015
        %v1017 = vrot.slane %v994, %v1016
        %v1019 = vunpack.c.l.s4 1934713408
        %v1020 = vunpack.c.0.s8 %v1019
        %v1021 = vlaneseq
        %v1022 = vshrl.u32 %v1021, 7
        %v1023 = vsub.s32 %v1020, %v1022
        %v1024 = vrot.slane %v1010, %v1023
        %v1025 = vcombine.high %v1002, 0.0
        %v1026 = vcombine.high %v1009, 0.0
        %v1027 = vcombine.high %v1017, 0.0
        %v1028 = vcombine.high %v1024, 0.0
        %v1029 = vcombine.high %v199, 0.0
        %v1031 = vunpack.c.l.s4 1983009808
        %v1032 = vunpack.c.0.s8 %v1031
        %v1033 = vlaneseq
        %v1034 = vshrl.u32 %v1033, 7
        %v1035 = vsub.s32 %v1032, %v1034
        %v1036 = vrot.slane %v199, %v1035
        %v1038 = vunpack.c.l.s4 1983009808
        %v1039 = vunpack.c.0.s8 %v1038
        %v1040 = vlaneseq
        %v1041 = vshrl.u32 %v1040, 7
        %v1042 = vsub.s32 %v1039, %v1041
        %v1043 = vrot.slane %v1029, %v1042
        %v1044 = vcombine.high %v1036, 0.0
        %v1046 = vunpack.c.l.s4 1934713408
        %v1047 = vunpack.c.0.s8 %v1046
        %v1048 = vlaneseq
        %v1049 = vshrl.u32 %v1048, 7
        %v1050 = vsub.s32 %v1047, %v1049
        %v1051 = vrot.slane %v1036, %v1050
        %v1053 = vunpack.c.l.s4 1934713408
        %v1054 = vunpack.c.0.s8 %v1053
        %v1055 = vlaneseq
        %v1056 = vshrl.u32 %v1055, 7
        %v1057 = vsub.s32 %v1054, %v1056
        %v1058 = vrot.slane %v1044, %v1057
        %v1059 = vcombine.high %v1043, 0.0
        %v1061 = vunpack.c.l.s4 1934713408
        %v1062 = vunpack.c.0.s8 %v1061
        %v1063 = vlaneseq
        %v1064 = vshrl.u32 %v1063, 7
        %v1065 = vsub.s32 %v1062, %v1064
        %v1066 = vrot.slane %v1043, %v1065
        %v1068 = vunpack.c.l.s4 1934713408
        %v1069 = vunpack.c.0.s8 %v1068
        %v1070 = vlaneseq
        %v1071 = vshrl.u32 %v1070, 7
        %v1072 = vsub.s32 %v1069, %v1071
        %v1073 = vrot.slane %v1059, %v1072
        %v1074 = vcombine.high %v1051, 0.0
        %v1075 = vcombine.high %v1058, 0.0
        %v1076 = vcombine.high %v1066, 0.0
        %v1077 = vcombine.high %v1073, 0.0
        %v1078 = vcombine.high %v206, 0.0
        %v1080 = vunpack.c.l.s4 1983009808
        %v1081 = vunpack.c.0.s8 %v1080
        %v1082 = vlaneseq
        %v1083 = vshrl.u32 %v1082, 7
        %v1084 = vsub.s32 %v1081, %v1083
        %v1085 = vrot.slane %v206, %v1084
        %v1087 = vunpack.c.l.s4 1983009808
        %v1088 = vunpack.c.0.s8 %v1087
        %v1089 = vlaneseq
        %v1090 = vshrl.u32 %v1089, 7
        %v1091 = vsub.s32 %v1088, %v1090
        %v1092 = vrot.slane %v1078, %v1091
        %v1093 = vcombine.high %v1085, 0.0
        %v1095 = vunpack.c.l.s4 1934713408
        %v1096 = vunpack.c.0.s8 %v1095
        %v1097 = vlaneseq
        %v1098 = vshrl.u32 %v1097, 7
        %v1099 = vsub.s32 %v1096, %v1098
        %v1100 = vrot.slane %v1085, %v1099
        %v1102 = vunpack.c.l.s4 1934713408
        %v1103 = vunpack.c.0.s8 %v1102
        %v1104 = vlaneseq
        %v1105 = vshrl.u32 %v1104, 7
        %v1106 = vsub.s32 %v1103, %v1105
        %v1107 = vrot.slane %v1093, %v1106
        %v1108 = vcombine.high %v1092, 0.0
        %v1110 = vunpack.c.l.s4 1934713408
        %v1111 = vunpack.c.0.s8 %v1110
        %v1112 = vlaneseq
        %v1113 = vshrl.u32 %v1112, 7
        %v1114 = vsub.s32 %v1111, %v1113
        %v1115 = vrot.slane %v1092, %v1114
        %v1117 = vunpack.c.l.s4 1934713408
        %v1118 = vunpack.c.0.s8 %v1117
        %v1119 = vlaneseq
        %v1120 = vshrl.u32 %v1119, 7
        %v1121 = vsub.s32 %v1118, %v1120
        %v1122 = vrot.slane %v1108, %v1121
        %v1123 = vcombine.high %v1100, 0.0
        %v1124 = vcombine.high %v1107, 0.0
        %v1125 = vcombine.high %v1115, 0.0
        %v1126 = vcombine.high %v1122, 0.0
        %v1127 = vcombine.high %v210, 0.0
        %v1129 = vunpack.c.l.s4 1983009808
        %v1130 = vunpack.c.0.s8 %v1129
        %v1131 = vlaneseq
        %v1132 = vshrl.u32 %v1131, 7
        %v1133 = vsub.s32 %v1130, %v1132
        %v1134 = vrot.slane %v210, %v1133
        %v1136 = vunpack.c.l.s4 1983009808
        %v1137 = vunpack.c.0.s8 %v1136
        %v1138 = vlaneseq
        %v1139 = vshrl.u32 %v1138, 7
        %v1140 = vsub.s32 %v1137, %v1139
        %v1141 = vrot.slane %v1127, %v1140
        %v1142 = vcombine.high %v1134, 0.0
        %v1144 = vunpack.c.l.s4 1934713408
        %v1145 = vunpack.c.0.s8 %v1144
        %v1146 = vlaneseq
        %v1147 = vshrl.u32 %v1146, 7
        %v1148 = vsub.s32 %v1145, %v1147
        %v1149 = vrot.slane %v1134, %v1148
        %v1151 = vunpack.c.l.s4 1934713408
        %v1152 = vunpack.c.0.s8 %v1151
        %v1153 = vlaneseq
        %v1154 = vshrl.u32 %v1153, 7
        %v1155 = vsub.s32 %v1152, %v1154
        %v1156 = vrot.slane %v1142, %v1155
        %v1157 = vcombine.high %v1141, 0.0
        %v1159 = vunpack.c.l.s4 1934713408
        %v1160 = vunpack.c.0.s8 %v1159
        %v1161 = vlaneseq
        %v1162 = vshrl.u32 %v1161, 7
        %v1163 = vsub.s32 %v1160, %v1162
        %v1164 = vrot.slane %v1141, %v1163
        %v1166 = vunpack.c.l.s4 1934713408
        %v1167 = vunpack.c.0.s8 %v1166
        %v1168 = vlaneseq
        %v1169 = vshrl.u32 %v1168, 7
        %v1170 = vsub.s32 %v1167, %v1169
        %v1171 = vrot.slane %v1157, %v1170
        %v1172 = vcombine.high %v1149, 0.0
        %v1173 = vcombine.high %v1156, 0.0
        %v1174 = vcombine.high %v1164, 0.0
        %v1175 = vcombine.high %v1171, 0.0
        %v1176 = vcombine.high %v217, 0.0
        %v1178 = vunpack.c.l.s4 1983009808
        %v1179 = vunpack.c.0.s8 %v1178
        %v1180 = vlaneseq
        %v1181 = vshrl.u32 %v1180, 7
        %v1182 = vsub.s32 %v1179, %v1181
        %v1183 = vrot.slane %v217, %v1182
        %v1185 = vunpack.c.l.s4 1983009808
        %v1186 = vunpack.c.0.s8 %v1185
        %v1187 = vlaneseq
        %v1188 = vshrl.u32 %v1187, 7
        %v1189 = vsub.s32 %v1186, %v1188
        %v1190 = vrot.slane %v1176, %v1189
        %v1191 = vcombine.high %v1183, 0.0
        %v1193 = vunpack.c.l.s4 1934713408
        %v1194 = vunpack.c.0.s8 %v1193
        %v1195 = vlaneseq
        %v1196 = vshrl.u32 %v1195, 7
        %v1197 = vsub.s32 %v1194, %v1196
        %v1198 = vrot.slane %v1183, %v1197
        %v1200 = vunpack.c.l.s4 1934713408
        %v1201 = vunpack.c.0.s8 %v1200
        %v1202 = vlaneseq
        %v1203 = vshrl.u32 %v1202, 7
        %v1204 = vsub.s32 %v1201, %v1203
        %v1205 = vrot.slane %v1191, %v1204
        %v1206 = vcombine.high %v1190, 0.0
        %v1208 = vunpack.c.l.s4 1934713408
        %v1209 = vunpack.c.0.s8 %v1208
        %v1210 = vlaneseq
        %v1211 = vshrl.u32 %v1210, 7
        %v1212 = vsub.s32 %v1209, %v1211
        %v1213 = vrot.slane %v1190, %v1212
        %v1215 = vunpack.c.l.s4 1934713408
        %v1216 = vunpack.c.0.s8 %v1215
        %v1217 = vlaneseq
        %v1218 = vshrl.u32 %v1217, 7
        %v1219 = vsub.s32 %v1216, %v1218
        %v1220 = vrot.slane %v1206, %v1219
        %v1221 = vcombine.high %v1198, 0.0
        %v1222 = vcombine.high %v1205, 0.0
        %v1223 = vcombine.high %v1213, 0.0
        %v1224 = vcombine.high %v1220, 0.0
        %v1225 = vcombine.high %v221, 0.0
        %v1227 = vunpack.c.l.s4 1983009808
        %v1228 = vunpack.c.0.s8 %v1227
        %v1229 = vlaneseq
        %v1230 = vshrl.u32 %v1229, 7
        %v1231 = vsub.s32 %v1228, %v1230
        %v1232 = vrot.slane %v221, %v1231
        %v1234 = vunpack.c.l.s4 1983009808
        %v1235 = vunpack.c.0.s8 %v1234
        %v1236 = vlaneseq
        %v1237 = vshrl.u32 %v1236, 7
        %v1238 = vsub.s32 %v1235, %v1237
        %v1239 = vrot.slane %v1225, %v1238
        %v1240 = vcombine.high %v1232, 0.0
        %v1242 = vunpack.c.l.s4 1934713408
        %v1243 = vunpack.c.0.s8 %v1242
        %v1244 = vlaneseq
        %v1245 = vshrl.u32 %v1244, 7
        %v1246 = vsub.s32 %v1243, %v1245
        %v1247 = vrot.slane %v1232, %v1246
        %v1249 = vunpack.c.l.s4 1934713408
        %v1250 = vunpack.c.0.s8 %v1249
        %v1251 = vlaneseq
        %v1252 = vshrl.u32 %v1251, 7
        %v1253 = vsub.s32 %v1250, %v1252
        %v1254 = vrot.slane %v1240, %v1253
        %v1255 = vcombine.high %v1239, 0.0
        %v1257 = vunpack.c.l.s4 1934713408
        %v1258 = vunpack.c.0.s8 %v1257
        %v1259 = vlaneseq
        %v1260 = vshrl.u32 %v1259, 7
        %v1261 = vsub.s32 %v1258, %v1260
        %v1262 = vrot.slane %v1239, %v1261
        %v1264 = vunpack.c.l.s4 1934713408
        %v1265 = vunpack.c.0.s8 %v1264
        %v1266 = vlaneseq
        %v1267 = vshrl.u32 %v1266, 7
        %v1268 = vsub.s32 %v1265, %v1267
        %v1269 = vrot.slane %v1255, %v1268
        %v1270 = vcombine.high %v1247, 0.0
        %v1271 = vcombine.high %v1254, 0.0
        %v1272 = vcombine.high %v1262, 0.0
        %v1273 = vcombine.high %v1269, 0.0
        %v1274 = vcombine.high %v228, 0.0
        %v1276 = vunpack.c.l.s4 1983009808
        %v1277 = vunpack.c.0.s8 %v1276
        %v1278 = vlaneseq
        %v1279 = vshrl.u32 %v1278, 7
        %v1280 = vsub.s32 %v1277, %v1279
        %v1281 = vrot.slane %v228, %v1280
        %v1283 = vunpack.c.l.s4 1983009808
        %v1284 = vunpack.c.0.s8 %v1283
        %v1285 = vlaneseq
        %v1286 = vshrl.u32 %v1285, 7
        %v1287 = vsub.s32 %v1284, %v1286
        %v1288 = vrot.slane %v1274, %v1287
        %v1289 = vcombine.high %v1281, 0.0
        %v1291 = vunpack.c.l.s4 1934713408
        %v1292 = vunpack.c.0.s8 %v1291
        %v1293 = vlaneseq
        %v1294 = vshrl.u32 %v1293, 7
        %v1295 = vsub.s32 %v1292, %v1294
        %v1296 = vrot.slane %v1281, %v1295
        %v1298 = vunpack.c.l.s4 1934713408
        %v1299 = vunpack.c.0.s8 %v1298
        %v1300 = vlaneseq
        %v1301 = vshrl.u32 %v1300, 7
        %v1302 = vsub.s32 %v1299, %v1301
        %v1303 = vrot.slane %v1289, %v1302
        %v1304 = vcombine.high %v1288, 0.0
        %v1306 = vunpack.c.l.s4 1934713408
        %v1307 = vunpack.c.0.s8 %v1306
        %v1308 = vlaneseq
        %v1309 = vshrl.u32 %v1308, 7
        %v1310 = vsub.s32 %v1307, %v1309
        %v1311 = vrot.slane %v1288, %v1310
        %v1313 = vunpack.c.l.s4 1934713408
        %v1314 = vunpack.c.0.s8 %v1313
        %v1315 = vlaneseq
        %v1316 = vshrl.u32 %v1315, 7
        %v1317 = vsub.s32 %v1314, %v1316
        %v1318 = vrot.slane %v1304, %v1317
        %v1319 = vcombine.high %v1296, 0.0
        %v1320 = vcombine.high %v1303, 0.0
        %v1321 = vcombine.high %v1311, 0.0
        %v1322 = vcombine.high %v1318, 0.0
        %v1323 = vcombine.high %v232, 0.0
        %v1325 = vunpack.c.l.s4 1983009808
        %v1326 = vunpack.c.0.s8 %v1325
        %v1327 = vlaneseq
        %v1328 = vshrl.u32 %v1327, 7
        %v1329 = vsub.s32 %v1326, %v1328
        %v1330 = vrot.slane %v232, %v1329
        %v1332 = vunpack.c.l.s4 1983009808
        %v1333 = vunpack.c.0.s8 %v1332
        %v1334 = vlaneseq
        %v1335 = vshrl.u32 %v1334, 7
        %v1336 = vsub.s32 %v1333, %v1335
        %v1337 = vrot.slane %v1323, %v1336
        %v1338 = vcombine.high %v1330, 0.0
        %v1340 = vunpack.c.l.s4 1934713408
        %v1341 = vunpack.c.0.s8 %v1340
        %v1342 = vlaneseq
        %v1343 = vshrl.u32 %v1342, 7
        %v1344 = vsub.s32 %v1341, %v1343
        %v1345 = vrot.slane %v1330, %v1344
        %v1347 = vunpack.c.l.s4 1934713408
        %v1348 = vunpack.c.0.s8 %v1347
        %v1349 = vlaneseq
        %v1350 = vshrl.u32 %v1349, 7
        %v1351 = vsub.s32 %v1348, %v1350
        %v1352 = vrot.slane %v1338, %v1351
        %v1353 = vcombine.high %v1337, 0.0
        %v1355 = vunpack.c.l.s4 1934713408
        %v1356 = vunpack.c.0.s8 %v1355
        %v1357 = vlaneseq
        %v1358 = vshrl.u32 %v1357, 7
        %v1359 = vsub.s32 %v1356, %v1358
        %v1360 = vrot.slane %v1337, %v1359
        %v1362 = vunpack.c.l.s4 1934713408
        %v1363 = vunpack.c.0.s8 %v1362
        %v1364 = vlaneseq
        %v1365 = vshrl.u32 %v1364, 7
        %v1366 = vsub.s32 %v1363, %v1365
        %v1367 = vrot.slane %v1353, %v1366
        %v1368 = vcombine.high %v1345, 0.0
        %v1369 = vcombine.high %v1352, 0.0
        %v1370 = vcombine.high %v1360, 0.0
        %v1371 = vcombine.high %v1367, 0.0
        %v1372 = vcombine.high %v239, 0.0
        %v1374 = vunpack.c.l.s4 1983009808
        %v1375 = vunpack.c.0.s8 %v1374
        %v1376 = vlaneseq
        %v1377 = vshrl.u32 %v1376, 7
        %v1378 = vsub.s32 %v1375, %v1377
        %v1379 = vrot.slane %v239, %v1378
        %v1381 = vunpack.c.l.s4 1983009808
        %v1382 = vunpack.c.0.s8 %v1381
        %v1383 = vlaneseq
        %v1384 = vshrl.u32 %v1383, 7
        %v1385 = vsub.s32 %v1382, %v1384
        %v1386 = vrot.slane %v1372, %v1385
        %v1387 = vcombine.high %v1379, 0.0
        %v1389 = vunpack.c.l.s4 1934713408
        %v1390 = vunpack.c.0.s8 %v1389
        %v1391 = vlaneseq
        %v1392 = vshrl.u32 %v1391, 7
        %v1393 = vsub.s32 %v1390, %v1392
        %v1394 = vrot.slane %v1379, %v1393
        %v1396 = vunpack.c.l.s4 1934713408
        %v1397 = vunpack.c.0.s8 %v1396
        %v1398 = vlaneseq
        %v1399 = vshrl.u32 %v1398, 7
        %v1400 = vsub.s32 %v1397, %v1399
        %v1401 = vrot.slane %v1387, %v1400
        %v1402 = vcombine.high %v1386, 0.0
        %v1404 = vunpack.c.l.s4 1934713408
        %v1405 = vunpack.c.0.s8 %v1404
        %v1406 = vlaneseq
        %v1407 = vshrl.u32 %v1406, 7
        %v1408 = vsub.s32 %v1405, %v1407
        %v1409 = vrot.slane %v1386, %v1408
        %v1411 = vunpack.c.l.s4 1934713408
        %v1412 = vunpack.c.0.s8 %v1411
        %v1413 = vlaneseq
        %v1414 = vshrl.u32 %v1413, 7
        %v1415 = vsub.s32 %v1412, %v1414
        %v1416 = vrot.slane %v1402, %v1415
        %v1417 = vcombine.high %v1394, 0.0
        %v1418 = vcombine.high %v1401, 0.0
        %v1419 = vcombine.high %v1409, 0.0
        %v1420 = vcombine.high %v1416, 0.0
        %v1421 = vcombine.high %v243, 0.0
        %v1423 = vunpack.c.l.s4 1983009808
        %v1424 = vunpack.c.0.s8 %v1423
        %v1425 = vlaneseq
        %v1426 = vshrl.u32 %v1425, 7
        %v1427 = vsub.s32 %v1424, %v1426
        %v1428 = vrot.slane %v243, %v1427
        %v1430 = vunpack.c.l.s4 1983009808
        %v1431 = vunpack.c.0.s8 %v1430
        %v1432 = vlaneseq
        %v1433 = vshrl.u32 %v1432, 7
        %v1434 = vsub.s32 %v1431, %v1433
        %v1435 = vrot.slane %v1421, %v1434
        %v1436 = vcombine.high %v1428, 0.0
        %v1438 = vunpack.c.l.s4 1934713408
        %v1439 = vunpack.c.0.s8 %v1438
        %v1440 = vlaneseq
        %v1441 = vshrl.u32 %v1440, 7
        %v1442 = vsub.s32 %v1439, %v1441
        %v1443 = vrot.slane %v1428, %v1442
        %v1445 = vunpack.c.l.s4 1934713408
        %v1446 = vunpack.c.0.s8 %v1445
        %v1447 = vlaneseq
        %v1448 = vshrl.u32 %v1447, 7
        %v1449 = vsub.s32 %v1446, %v1448
        %v1450 = vrot.slane %v1436, %v1449
        %v1451 = vcombine.high %v1435, 0.0
        %v1453 = vunpack.c.l.s4 1934713408
        %v1454 = vunpack.c.0.s8 %v1453
        %v1455 = vlaneseq
        %v1456 = vshrl.u32 %v1455, 7
        %v1457 = vsub.s32 %v1454, %v1456
        %v1458 = vrot.slane %v1435, %v1457
        %v1460 = vunpack.c.l.s4 1934713408
        %v1461 = vunpack.c.0.s8 %v1460
        %v1462 = vlaneseq
        %v1463 = vshrl.u32 %v1462, 7
        %v1464 = vsub.s32 %v1461, %v1463
        %v1465 = vrot.slane %v1451, %v1464
        %v1466 = vcombine.high %v1443, 0.0
        %v1467 = vcombine.high %v1450, 0.0
        %v1468 = vcombine.high %v1458, 0.0
        %v1469 = vcombine.high %v1465, 0.0
        %v1470 = vcombine.high %v250, 0.0
        %v1472 = vunpack.c.l.s4 1983009808
        %v1473 = vunpack.c.0.s8 %v1472
        %v1474 = vlaneseq
        %v1475 = vshrl.u32 %v1474, 7
        %v1476 = vsub.s32 %v1473, %v1475
        %v1477 = vrot.slane %v250, %v1476
        %v1479 = vunpack.c.l.s4 1983009808
        %v1480 = vunpack.c.0.s8 %v1479
        %v1481 = vlaneseq
        %v1482 = vshrl.u32 %v1481, 7
        %v1483 = vsub.s32 %v1480, %v1482
        %v1484 = vrot.slane %v1470, %v1483
        %v1485 = vcombine.high %v1477, 0.0
        %v1487 = vunpack.c.l.s4 1934713408
        %v1488 = vunpack.c.0.s8 %v1487
        %v1489 = vlaneseq
        %v1490 = vshrl.u32 %v1489, 7
        %v1491 = vsub.s32 %v1488, %v1490
        %v1492 = vrot.slane %v1477, %v1491
        %v1494 = vunpack.c.l.s4 1934713408
        %v1495 = vunpack.c.0.s8 %v1494
        %v1496 = vlaneseq
        %v1497 = vshrl.u32 %v1496, 7
        %v1498 = vsub.s32 %v1495, %v1497
        %v1499 = vrot.slane %v1485, %v1498
        %v1500 = vcombine.high %v1484, 0.0
        %v1502 = vunpack.c.l.s4 1934713408
        %v1503 = vunpack.c.0.s8 %v1502
        %v1504 = vlaneseq
        %v1505 = vshrl.u32 %v1504, 7
        %v1506 = vsub.s32 %v1503, %v1505
        %v1507 = vrot.slane %v1484, %v1506
        %v1509 = vunpack.c.l.s4 1934713408
        %v1510 = vunpack.c.0.s8 %v1509
        %v1511 = vlaneseq
        %v1512 = vshrl.u32 %v1511, 7
        %v1513 = vsub.s32 %v1510, %v1512
        %v1514 = vrot.slane %v1500, %v1513
        %v1515 = vcombine.high %v1492, 0.0
        %v1516 = vcombine.high %v1499, 0.0
        %v1517 = vcombine.high %v1507, 0.0
        %v1518 = vcombine.high %v1514, 0.0
        %v1519 = vcombine.high %v254, 0.0
        %v1521 = vunpack.c.l.s4 1983009808
        %v1522 = vunpack.c.0.s8 %v1521
        %v1523 = vlaneseq
        %v1524 = vshrl.u32 %v1523, 7
        %v1525 = vsub.s32 %v1522, %v1524
        %v1526 = vrot.slane %v254, %v1525
        %v1528 = vunpack.c.l.s4 1983009808
        %v1529 = vunpack.c.0.s8 %v1528
        %v1530 = vlaneseq
        %v1531 = vshrl.u32 %v1530, 7
        %v1532 = vsub.s32 %v1529, %v1531
        %v1533 = vrot.slane %v1519, %v1532
        %v1534 = vcombine.high %v1526, 0.0
        %v1536 = vunpack.c.l.s4 1934713408
        %v1537 = vunpack.c.0.s8 %v1536
        %v1538 = vlaneseq
        %v1539 = vshrl.u32 %v1538, 7
        %v1540 = vsub.s32 %v1537, %v1539
        %v1541 = vrot.slane %v1526, %v1540
        %v1543 = vunpack.c.l.s4 1934713408
        %v1544 = vunpack.c.0.s8 %v1543
        %v1545 = vlaneseq
        %v1546 = vshrl.u32 %v1545, 7
        %v1547 = vsub.s32 %v1544, %v1546
        %v1548 = vrot.slane %v1534, %v1547
        %v1549 = vcombine.high %v1533, 0.0
        %v1551 = vunpack.c.l.s4 1934713408
        %v1552 = vunpack.c.0.s8 %v1551
        %v1553 = vlaneseq
        %v1554 = vshrl.u32 %v1553, 7
        %v1555 = vsub.s32 %v1552, %v1554
        %v1556 = vrot.slane %v1533, %v1555
        %v1558 = vunpack.c.l.s4 1934713408
        %v1559 = vunpack.c.0.s8 %v1558
        %v1560 = vlaneseq
        %v1561 = vshrl.u32 %v1560, 7
        %v1562 = vsub.s32 %v1559, %v1561
        %v1563 = vrot.slane %v1549, %v1562
        %v1564 = vcombine.high %v1541, 0.0
        %v1565 = vcombine.high %v1548, 0.0
        %v1566 = vcombine.high %v1556, 0.0
        %v1567 = vcombine.high %v1563, 0.0
        %v1568 = vcombine.high %v261, 0.0
        %v1570 = vunpack.c.l.s4 1983009808
        %v1571 = vunpack.c.0.s8 %v1570
        %v1572 = vlaneseq
        %v1573 = vshrl.u32 %v1572, 7
        %v1574 = vsub.s32 %v1571, %v1573
        %v1575 = vrot.slane %v261, %v1574
        %v1577 = vunpack.c.l.s4 1983009808
        %v1578 = vunpack.c.0.s8 %v1577
        %v1579 = vlaneseq
        %v1580 = vshrl.u32 %v1579, 7
        %v1581 = vsub.s32 %v1578, %v1580
        %v1582 = vrot.slane %v1568, %v1581
        %v1583 = vcombine.high %v1575, 0.0
        %v1585 = vunpack.c.l.s4 1934713408
        %v1586 = vunpack.c.0.s8 %v1585
        %v1587 = vlaneseq
        %v1588 = vshrl.u32 %v1587, 7
        %v1589 = vsub.s32 %v1586, %v1588
        %v1590 = vrot.slane %v1575, %v1589
        %v1592 = vunpack.c.l.s4 1934713408
        %v1593 = vunpack.c.0.s8 %v1592
        %v1594 = vlaneseq
        %v1595 = vshrl.u32 %v1594, 7
        %v1596 = vsub.s32 %v1593, %v1595
        %v1597 = vrot.slane %v1583, %v1596
        %v1598 = vcombine.high %v1582, 0.0
        %v1600 = vunpack.c.l.s4 1934713408
        %v1601 = vunpack.c.0.s8 %v1600
        %v1602 = vlaneseq
        %v1603 = vshrl.u32 %v1602, 7
        %v1604 = vsub.s32 %v1601, %v1603
        %v1605 = vrot.slane %v1582, %v1604
        %v1607 = vunpack.c.l.s4 1934713408
        %v1608 = vunpack.c.0.s8 %v1607
        %v1609 = vlaneseq
        %v1610 = vshrl.u32 %v1609, 7
        %v1611 = vsub.s32 %v1608, %v1610
        %v1612 = vrot.slane %v1598, %v1611
        %v1613 = vcombine.high %v1590, 0.0
        %v1614 = vcombine.high %v1597, 0.0
        %v1615 = vcombine.high %v1605, 0.0
        %v1616 = vcombine.high %v1612, 0.0
        %v1617 = vcombine.high %v265, 0.0
        %v1619 = vunpack.c.l.s4 1983009808
        %v1620 = vunpack.c.0.s8 %v1619
        %v1621 = vlaneseq
        %v1622 = vshrl.u32 %v1621, 7
        %v1623 = vsub.s32 %v1620, %v1622
        %v1624 = vrot.slane %v265, %v1623
        %v1626 = vunpack.c.l.s4 1983009808
        %v1627 = vunpack.c.0.s8 %v1626
        %v1628 = vlaneseq
        %v1629 = vshrl.u32 %v1628, 7
        %v1630 = vsub.s32 %v1627, %v1629
        %v1631 = vrot.slane %v1617, %v1630
        %v1632 = vcombine.high %v1624, 0.0
        %v1634 = vunpack.c.l.s4 1934713408
        %v1635 = vunpack.c.0.s8 %v1634
        %v1636 = vlaneseq
        %v1637 = vshrl.u32 %v1636, 7
        %v1638 = vsub.s32 %v1635, %v1637
        %v1639 = vrot.slane %v1624, %v1638
        %v1641 = vunpack.c.l.s4 1934713408
        %v1642 = vunpack.c.0.s8 %v1641
        %v1643 = vlaneseq
        %v1644 = vshrl.u32 %v1643, 7
        %v1645 = vsub.s32 %v1642, %v1644
        %v1646 = vrot.slane %v1632, %v1645
        %v1647 = vcombine.high %v1631, 0.0
        %v1649 = vunpack.c.l.s4 1934713408
        %v1650 = vunpack.c.0.s8 %v1649
        %v1651 = vlaneseq
        %v1652 = vshrl.u32 %v1651, 7
        %v1653 = vsub.s32 %v1650, %v1652
        %v1654 = vrot.slane %v1631, %v1653
        %v1656 = vunpack.c.l.s4 1934713408
        %v1657 = vunpack.c.0.s8 %v1656
        %v1658 = vlaneseq
        %v1659 = vshrl.u32 %v1658, 7
        %v1660 = vsub.s32 %v1657, %v1659
        %v1661 = vrot.slane %v1647, %v1660
        %v1662 = vcombine.high %v1639, 0.0
        %v1663 = vcombine.high %v1646, 0.0
        %v1664 = vcombine.high %v1654, 0.0
        %v1665 = vcombine.high %v1661, 0.0
        %v1666 = vcombine.high %v272, 0.0
        %v1668 = vunpack.c.l.s4 1983009808
        %v1669 = vunpack.c.0.s8 %v1668
        %v1670 = vlaneseq
        %v1671 = vshrl.u32 %v1670, 7
        %v1672 = vsub.s32 %v1669, %v1671
        %v1673 = vrot.slane %v272, %v1672
        %v1675 = vunpack.c.l.s4 1983009808
        %v1676 = vunpack.c.0.s8 %v1675
        %v1677 = vlaneseq
        %v1678 = vshrl.u32 %v1677, 7
        %v1679 = vsub.s32 %v1676, %v1678
        %v1680 = vrot.slane %v1666, %v1679
        %v1681 = vcombine.high %v1673, 0.0
        %v1683 = vunpack.c.l.s4 1934713408
        %v1684 = vunpack.c.0.s8 %v1683
        %v1685 = vlaneseq
        %v1686 = vshrl.u32 %v1685, 7
        %v1687 = vsub.s32 %v1684, %v1686
        %v1688 = vrot.slane %v1673, %v1687
        %v1690 = vunpack.c.l.s4 1934713408
        %v1691 = vunpack.c.0.s8 %v1690
        %v1692 = vlaneseq
        %v1693 = vshrl.u32 %v1692, 7
        %v1694 = vsub.s32 %v1691, %v1693
        %v1695 = vrot.slane %v1681, %v1694
        %v1696 = vcombine.high %v1680, 0.0
        %v1698 = vunpack.c.l.s4 1934713408
        %v1699 = vunpack.c.0.s8 %v1698
        %v1700 = vlaneseq
        %v1701 = vshrl.u32 %v1700, 7
        %v1702 = vsub.s32 %v1699, %v1701
        %v1703 = vrot.slane %v1680, %v1702
        %v1705 = vunpack.c.l.s4 1934713408
        %v1706 = vunpack.c.0.s8 %v1705
        %v1707 = vlaneseq
        %v1708 = vshrl.u32 %v1707, 7
        %v1709 = vsub.s32 %v1706, %v1708
        %v1710 = vrot.slane %v1696, %v1709
        %v1711 = vcombine.high %v1688, 0.0
        %v1712 = vcombine.high %v1695, 0.0
        %v1713 = vcombine.high %v1703, 0.0
        %v1714 = vcombine.high %v1710, 0.0
        %v1715 = vcombine.high %v276, 0.0
        %v1717 = vunpack.c.l.s4 1983009808
        %v1718 = vunpack.c.0.s8 %v1717
        %v1719 = vlaneseq
        %v1720 = vshrl.u32 %v1719, 7
        %v1721 = vsub.s32 %v1718, %v1720
        %v1722 = vrot.slane %v276, %v1721
        %v1724 = vunpack.c.l.s4 1983009808
        %v1725 = vunpack.c.0.s8 %v1724
        %v1726 = vlaneseq
        %v1727 = vshrl.u32 %v1726, 7
        %v1728 = vsub.s32 %v1725, %v1727
        %v1729 = vrot.slane %v1715, %v1728
        %v1730 = vcombine.high %v1722, 0.0
        %v1732 = vunpack.c.l.s4 1934713408
        %v1733 = vunpack.c.0.s8 %v1732
        %v1734 = vlaneseq
        %v1735 = vshrl.u32 %v1734, 7
        %v1736 = vsub.s32 %v1733, %v1735
        %v1737 = vrot.slane %v1722, %v1736
        %v1739 = vunpack.c.l.s4 1934713408
        %v1740 = vunpack.c.0.s8 %v1739
        %v1741 = vlaneseq
        %v1742 = vshrl.u32 %v1741, 7
        %v1743 = vsub.s32 %v1740, %v1742
        %v1744 = vrot.slane %v1730, %v1743
        %v1745 = vcombine.high %v1729, 0.0
        %v1747 = vunpack.c.l.s4 1934713408
        %v1748 = vunpack.c.0.s8 %v1747
        %v1749 = vlaneseq
        %v1750 = vshrl.u32 %v1749, 7
        %v1751 = vsub.s32 %v1748, %v1750
        %v1752 = vrot.slane %v1729, %v1751
        %v1754 = vunpack.c.l.s4 1934713408
        %v1755 = vunpack.c.0.s8 %v1754
        %v1756 = vlaneseq
        %v1757 = vshrl.u32 %v1756, 7
        %v1758 = vsub.s32 %v1755, %v1757
        %v1759 = vrot.slane %v1745, %v1758
        %v1760 = vcombine.high %v1737, 0.0
        %v1761 = vcombine.high %v1744, 0.0
        %v1762 = vcombine.high %v1752, 0.0
        %v1763 = vcombine.high %v1759, 0.0
        %v1764 = vcombine.high %v283, 0.0
        %v1766 = vunpack.c.l.s4 1983009808
        %v1767 = vunpack.c.0.s8 %v1766
        %v1768 = vlaneseq
        %v1769 = vshrl.u32 %v1768, 7
        %v1770 = vsub.s32 %v1767, %v1769
        %v1771 = vrot.slane %v283, %v1770
        %v1773 = vunpack.c.l.s4 1983009808
        %v1774 = vunpack.c.0.s8 %v1773
        %v1775 = vlaneseq
        %v1776 = vshrl.u32 %v1775, 7
        %v1777 = vsub.s32 %v1774, %v1776
        %v1778 = vrot.slane %v1764, %v1777
        %v1779 = vcombine.high %v1771, 0.0
        %v1781 = vunpack.c.l.s4 1934713408
        %v1782 = vunpack.c.0.s8 %v1781
        %v1783 = vlaneseq
        %v1784 = vshrl.u32 %v1783, 7
        %v1785 = vsub.s32 %v1782, %v1784
        %v1786 = vrot.slane %v1771, %v1785
        %v1788 = vunpack.c.l.s4 1934713408
        %v1789 = vunpack.c.0.s8 %v1788
        %v1790 = vlaneseq
        %v1791 = vshrl.u32 %v1790, 7
        %v1792 = vsub.s32 %v1789, %v1791
        %v1793 = vrot.slane %v1779, %v1792
        %v1794 = vcombine.high %v1778, 0.0
        %v1796 = vunpack.c.l.s4 1934713408
        %v1797 = vunpack.c.0.s8 %v1796
        %v1798 = vlaneseq
        %v1799 = vshrl.u32 %v1798, 7
        %v1800 = vsub.s32 %v1797, %v1799
        %v1801 = vrot.slane %v1778, %v1800
        %v1803 = vunpack.c.l.s4 1934713408
        %v1804 = vunpack.c.0.s8 %v1803
        %v1805 = vlaneseq
        %v1806 = vshrl.u32 %v1805, 7
        %v1807 = vsub.s32 %v1804, %v1806
        %v1808 = vrot.slane %v1794, %v1807
        %v1809 = vcombine.high %v1786, 0.0
        %v1810 = vcombine.high %v1793, 0.0
        %v1811 = vcombine.high %v1801, 0.0
        %v1812 = vcombine.high %v1808, 0.0
        %v1813 = vcombine.high %v287, 0.0
        %v1815 = vunpack.c.l.s4 1983009808
        %v1816 = vunpack.c.0.s8 %v1815
        %v1817 = vlaneseq
        %v1818 = vshrl.u32 %v1817, 7
        %v1819 = vsub.s32 %v1816, %v1818
        %v1820 = vrot.slane %v287, %v1819
        %v1822 = vunpack.c.l.s4 1983009808
        %v1823 = vunpack.c.0.s8 %v1822
        %v1824 = vlaneseq
        %v1825 = vshrl.u32 %v1824, 7
        %v1826 = vsub.s32 %v1823, %v1825
        %v1827 = vrot.slane %v1813, %v1826
        %v1828 = vcombine.high %v1820, 0.0
        %v1830 = vunpack.c.l.s4 1934713408
        %v1831 = vunpack.c.0.s8 %v1830
        %v1832 = vlaneseq
        %v1833 = vshrl.u32 %v1832, 7
        %v1834 = vsub.s32 %v1831, %v1833
        %v1835 = vrot.slane %v1820, %v1834
        %v1837 = vunpack.c.l.s4 1934713408
        %v1838 = vunpack.c.0.s8 %v1837
        %v1839 = vlaneseq
        %v1840 = vshrl.u32 %v1839, 7
        %v1841 = vsub.s32 %v1838, %v1840
        %v1842 = vrot.slane %v1828, %v1841
        %v1843 = vcombine.high %v1827, 0.0
        %v1845 = vunpack.c.l.s4 1934713408
        %v1846 = vunpack.c.0.s8 %v1845
        %v1847 = vlaneseq
        %v1848 = vshrl.u32 %v1847, 7
        %v1849 = vsub.s32 %v1846, %v1848
        %v1850 = vrot.slane %v1827, %v1849
        %v1852 = vunpack.c.l.s4 1934713408
        %v1853 = vunpack.c.0.s8 %v1852
        %v1854 = vlaneseq
        %v1855 = vshrl.u32 %v1854, 7
        %v1856 = vsub.s32 %v1853, %v1855
        %v1857 = vrot.slane %v1843, %v1856
        %v1858 = vcombine.high %v1835, 0.0
        %v1859 = vcombine.high %v1842, 0.0
        %v1860 = vcombine.high %v1850, 0.0
        %v1861 = vcombine.high %v1857, 0.0
        %v1862 = vcombine.high %v294, 0.0
        %v1864 = vunpack.c.l.s4 1983009808
        %v1865 = vunpack.c.0.s8 %v1864
        %v1866 = vlaneseq
        %v1867 = vshrl.u32 %v1866, 7
        %v1868 = vsub.s32 %v1865, %v1867
        %v1869 = vrot.slane %v294, %v1868
        %v1871 = vunpack.c.l.s4 1983009808
        %v1872 = vunpack.c.0.s8 %v1871
        %v1873 = vlaneseq
        %v1874 = vshrl.u32 %v1873, 7
        %v1875 = vsub.s32 %v1872, %v1874
        %v1876 = vrot.slane %v1862, %v1875
        %v1877 = vcombine.high %v1869, 0.0
        %v1879 = vunpack.c.l.s4 1934713408
        %v1880 = vunpack.c.0.s8 %v1879
        %v1881 = vlaneseq
        %v1882 = vshrl.u32 %v1881, 7
        %v1883 = vsub.s32 %v1880, %v1882
        %v1884 = vrot.slane %v1869, %v1883
        %v1886 = vunpack.c.l.s4 1934713408
        %v1887 = vunpack.c.0.s8 %v1886
        %v1888 = vlaneseq
        %v1889 = vshrl.u32 %v1888, 7
        %v1890 = vsub.s32 %v1887, %v1889
        %v1891 = vrot.slane %v1877, %v1890
        %v1892 = vcombine.high %v1876, 0.0
        %v1894 = vunpack.c.l.s4 1934713408
        %v1895 = vunpack.c.0.s8 %v1894
        %v1896 = vlaneseq
        %v1897 = vshrl.u32 %v1896, 7
        %v1898 = vsub.s32 %v1895, %v1897
        %v1899 = vrot.slane %v1876, %v1898
        %v1901 = vunpack.c.l.s4 1934713408
        %v1902 = vunpack.c.0.s8 %v1901
        %v1903 = vlaneseq
        %v1904 = vshrl.u32 %v1903, 7
        %v1905 = vsub.s32 %v1902, %v1904
        %v1906 = vrot.slane %v1892, %v1905
        %v1907 = vcombine.high %v1884, 0.0
        %v1908 = vcombine.high %v1891, 0.0
        %v1909 = vcombine.high %v1899, 0.0
        %v1910 = vcombine.high %v1906, 0.0
        %v1911 = vcombine.high %v298, 0.0
        %v1913 = vunpack.c.l.s4 1983009808
        %v1914 = vunpack.c.0.s8 %v1913
        %v1915 = vlaneseq
        %v1916 = vshrl.u32 %v1915, 7
        %v1917 = vsub.s32 %v1914, %v1916
        %v1918 = vrot.slane %v298, %v1917
        %v1920 = vunpack.c.l.s4 1983009808
        %v1921 = vunpack.c.0.s8 %v1920
        %v1922 = vlaneseq
        %v1923 = vshrl.u32 %v1922, 7
        %v1924 = vsub.s32 %v1921, %v1923
        %v1925 = vrot.slane %v1911, %v1924
        %v1926 = vcombine.high %v1918, 0.0
        %v1928 = vunpack.c.l.s4 1934713408
        %v1929 = vunpack.c.0.s8 %v1928
        %v1930 = vlaneseq
        %v1931 = vshrl.u32 %v1930, 7
        %v1932 = vsub.s32 %v1929, %v1931
        %v1933 = vrot.slane %v1918, %v1932
        %v1935 = vunpack.c.l.s4 1934713408
        %v1936 = vunpack.c.0.s8 %v1935
        %v1937 = vlaneseq
        %v1938 = vshrl.u32 %v1937, 7
        %v1939 = vsub.s32 %v1936, %v1938
        %v1940 = vrot.slane %v1926, %v1939
        %v1941 = vcombine.high %v1925, 0.0
        %v1943 = vunpack.c.l.s4 1934713408
        %v1944 = vunpack.c.0.s8 %v1943
        %v1945 = vlaneseq
        %v1946 = vshrl.u32 %v1945, 7
        %v1947 = vsub.s32 %v1944, %v1946
        %v1948 = vrot.slane %v1925, %v1947
        %v1950 = vunpack.c.l.s4 1934713408
        %v1951 = vunpack.c.0.s8 %v1950
        %v1952 = vlaneseq
        %v1953 = vshrl.u32 %v1952, 7
        %v1954 = vsub.s32 %v1951, %v1953
        %v1955 = vrot.slane %v1941, %v1954
        %v1956 = vcombine.high %v1933, 0.0
        %v1957 = vcombine.high %v1940, 0.0
        %v1958 = vcombine.high %v1948, 0.0
        %v1959 = vcombine.high %v1955, 0.0
        %v1960 = vcombine.high %v305, 0.0
        %v1962 = vunpack.c.l.s4 1983009808
        %v1963 = vunpack.c.0.s8 %v1962
        %v1964 = vlaneseq
        %v1965 = vshrl.u32 %v1964, 7
        %v1966 = vsub.s32 %v1963, %v1965
        %v1967 = vrot.slane %v305, %v1966
        %v1969 = vunpack.c.l.s4 1983009808
        %v1970 = vunpack.c.0.s8 %v1969
        %v1971 = vlaneseq
        %v1972 = vshrl.u32 %v1971, 7
        %v1973 = vsub.s32 %v1970, %v1972
        %v1974 = vrot.slane %v1960, %v1973
        %v1975 = vcombine.high %v1967, 0.0
        %v1977 = vunpack.c.l.s4 1934713408
        %v1978 = vunpack.c.0.s8 %v1977
        %v1979 = vlaneseq
        %v1980 = vshrl.u32 %v1979, 7
        %v1981 = vsub.s32 %v1978, %v1980
        %v1982 = vrot.slane %v1967, %v1981
        %v1984 = vunpack.c.l.s4 1934713408
        %v1985 = vunpack.c.0.s8 %v1984
        %v1986 = vlaneseq
        %v1987 = vshrl.u32 %v1986, 7
        %v1988 = vsub.s32 %v1985, %v1987
        %v1989 = vrot.slane %v1975, %v1988
        %v1990 = vcombine.high %v1974, 0.0
        %v1992 = vunpack.c.l.s4 1934713408
        %v1993 = vunpack.c.0.s8 %v1992
        %v1994 = vlaneseq
        %v1995 = vshrl.u32 %v1994, 7
        %v1996 = vsub.s32 %v1993, %v1995
        %v1997 = vrot.slane %v1974, %v1996
        %v1999 = vunpack.c.l.s4 1934713408
        %v2000 = vunpack.c.0.s8 %v1999
        %v2001 = vlaneseq
        %v2002 = vshrl.u32 %v2001, 7
        %v2003 = vsub.s32 %v2000, %v2002
        %v2004 = vrot.slane %v1990, %v2003
        %v2005 = vcombine.high %v1982, 0.0
        %v2006 = vcombine.high %v1989, 0.0
        %v2007 = vcombine.high %v1997, 0.0
        %v2008 = vcombine.high %v2004, 0.0
        %v2009 = vcombine.high %v309, 0.0
        %v2011 = vunpack.c.l.s4 1983009808
        %v2012 = vunpack.c.0.s8 %v2011
        %v2013 = vlaneseq
        %v2014 = vshrl.u32 %v2013, 7
        %v2015 = vsub.s32 %v2012, %v2014
        %v2016 = vrot.slane %v309, %v2015
        %v2018 = vunpack.c.l.s4 1983009808
        %v2019 = vunpack.c.0.s8 %v2018
        %v2020 = vlaneseq
        %v2021 = vshrl.u32 %v2020, 7
        %v2022 = vsub.s32 %v2019, %v2021
        %v2023 = vrot.slane %v2009, %v2022
        %v2024 = vcombine.high %v2016, 0.0
        %v2026 = vunpack.c.l.s4 1934713408
        %v2027 = vunpack.c.0.s8 %v2026
        %v2028 = vlaneseq
        %v2029 = vshrl.u32 %v2028, 7
        %v2030 = vsub.s32 %v2027, %v2029
        %v2031 = vrot.slane %v2016, %v2030
        %v2033 = vunpack.c.l.s4 1934713408
        %v2034 = vunpack.c.0.s8 %v2033
        %v2035 = vlaneseq
        %v2036 = vshrl.u32 %v2035, 7
        %v2037 = vsub.s32 %v2034, %v2036
        %v2038 = vrot.slane %v2024, %v2037
        %v2039 = vcombine.high %v2023, 0.0
        %v2041 = vunpack.c.l.s4 1934713408
        %v2042 = vunpack.c.0.s8 %v2041
        %v2043 = vlaneseq
        %v2044 = vshrl.u32 %v2043, 7
        %v2045 = vsub.s32 %v2042, %v2044
        %v2046 = vrot.slane %v2023, %v2045
        %v2048 = vunpack.c.l.s4 1934713408
        %v2049 = vunpack.c.0.s8 %v2048
        %v2050 = vlaneseq
        %v2051 = vshrl.u32 %v2050, 7
        %v2052 = vsub.s32 %v2049, %v2051
        %v2053 = vrot.slane %v2039, %v2052
        %v2054 = vcombine.high %v2031, 0.0
        %v2055 = vcombine.high %v2038, 0.0
        %v2056 = vcombine.high %v2046, 0.0
        %v2057 = vcombine.high %v2053, 0.0
        %v2058 = vcombine.high %v316, 0.0
        %v2060 = vunpack.c.l.s4 1983009808
        %v2061 = vunpack.c.0.s8 %v2060
        %v2062 = vlaneseq
        %v2063 = vshrl.u32 %v2062, 7
        %v2064 = vsub.s32 %v2061, %v2063
        %v2065 = vrot.slane %v316, %v2064
        %v2067 = vunpack.c.l.s4 1983009808
        %v2068 = vunpack.c.0.s8 %v2067
        %v2069 = vlaneseq
        %v2070 = vshrl.u32 %v2069, 7
        %v2071 = vsub.s32 %v2068, %v2070
        %v2072 = vrot.slane %v2058, %v2071
        %v2073 = vcombine.high %v2065, 0.0
        %v2075 = vunpack.c.l.s4 1934713408
        %v2076 = vunpack.c.0.s8 %v2075
        %v2077 = vlaneseq
        %v2078 = vshrl.u32 %v2077, 7
        %v2079 = vsub.s32 %v2076, %v2078
        %v2080 = vrot.slane %v2065, %v2079
        %v2082 = vunpack.c.l.s4 1934713408
        %v2083 = vunpack.c.0.s8 %v2082
        %v2084 = vlaneseq
        %v2085 = vshrl.u32 %v2084, 7
        %v2086 = vsub.s32 %v2083, %v2085
        %v2087 = vrot.slane %v2073, %v2086
        %v2088 = vcombine.high %v2072, 0.0
        %v2090 = vunpack.c.l.s4 1934713408
        %v2091 = vunpack.c.0.s8 %v2090
        %v2092 = vlaneseq
        %v2093 = vshrl.u32 %v2092, 7
        %v2094 = vsub.s32 %v2091, %v2093
        %v2095 = vrot.slane %v2072, %v2094
        %v2097 = vunpack.c.l.s4 1934713408
        %v2098 = vunpack.c.0.s8 %v2097
        %v2099 = vlaneseq
        %v2100 = vshrl.u32 %v2099, 7
        %v2101 = vsub.s32 %v2098, %v2100
        %v2102 = vrot.slane %v2088, %v2101
        %v2103 = vcombine.high %v2080, 0.0
        %v2104 = vcombine.high %v2087, 0.0
        %v2105 = vcombine.high %v2095, 0.0
        %v2106 = vcombine.high %v2102, 0.0
        %v2107 = vcombine.high %v320, 0.0
        %v2109 = vunpack.c.l.s4 1983009808
        %v2110 = vunpack.c.0.s8 %v2109
        %v2111 = vlaneseq
        %v2112 = vshrl.u32 %v2111, 7
        %v2113 = vsub.s32 %v2110, %v2112
        %v2114 = vrot.slane %v320, %v2113
        %v2116 = vunpack.c.l.s4 1983009808
        %v2117 = vunpack.c.0.s8 %v2116
        %v2118 = vlaneseq
        %v2119 = vshrl.u32 %v2118, 7
        %v2120 = vsub.s32 %v2117, %v2119
        %v2121 = vrot.slane %v2107, %v2120
        %v2122 = vcombine.high %v2114, 0.0
        %v2124 = vunpack.c.l.s4 1934713408
        %v2125 = vunpack.c.0.s8 %v2124
        %v2126 = vlaneseq
        %v2127 = vshrl.u32 %v2126, 7
        %v2128 = vsub.s32 %v2125, %v2127
        %v2129 = vrot.slane %v2114, %v2128
        %v2131 = vunpack.c.l.s4 1934713408
        %v2132 = vunpack.c.0.s8 %v2131
        %v2133 = vlaneseq
        %v2134 = vshrl.u32 %v2133, 7
        %v2135 = vsub.s32 %v2132, %v2134
        %v2136 = vrot.slane %v2122, %v2135
        %v2137 = vcombine.high %v2121, 0.0
        %v2139 = vunpack.c.l.s4 1934713408
        %v2140 = vunpack.c.0.s8 %v2139
        %v2141 = vlaneseq
        %v2142 = vshrl.u32 %v2141, 7
        %v2143 = vsub.s32 %v2140, %v2142
        %v2144 = vrot.slane %v2121, %v2143
        %v2146 = vunpack.c.l.s4 1934713408
        %v2147 = vunpack.c.0.s8 %v2146
        %v2148 = vlaneseq
        %v2149 = vshrl.u32 %v2148, 7
        %v2150 = vsub.s32 %v2147, %v2149
        %v2151 = vrot.slane %v2137, %v2150
        %v2152 = vcombine.high %v2129, 0.0
        %v2153 = vcombine.high %v2136, 0.0
        %v2154 = vcombine.high %v2144, 0.0
        %v2155 = vcombine.high %v2151, 0.0
        %v2156 = vcombine.high %v327, 0.0
        %v2158 = vunpack.c.l.s4 1983009808
        %v2159 = vunpack.c.0.s8 %v2158
        %v2160 = vlaneseq
        %v2161 = vshrl.u32 %v2160, 7
        %v2162 = vsub.s32 %v2159, %v2161
        %v2163 = vrot.slane %v327, %v2162
        %v2165 = vunpack.c.l.s4 1983009808
        %v2166 = vunpack.c.0.s8 %v2165
        %v2167 = vlaneseq
        %v2168 = vshrl.u32 %v2167, 7
        %v2169 = vsub.s32 %v2166, %v2168
        %v2170 = vrot.slane %v2156, %v2169
        %v2171 = vcombine.high %v2163, 0.0
        %v2173 = vunpack.c.l.s4 1934713408
        %v2174 = vunpack.c.0.s8 %v2173
        %v2175 = vlaneseq
        %v2176 = vshrl.u32 %v2175, 7
        %v2177 = vsub.s32 %v2174, %v2176
        %v2178 = vrot.slane %v2163, %v2177
        %v2180 = vunpack.c.l.s4 1934713408
        %v2181 = vunpack.c.0.s8 %v2180
        %v2182 = vlaneseq
        %v2183 = vshrl.u32 %v2182, 7
        %v2184 = vsub.s32 %v2181, %v2183
        %v2185 = vrot.slane %v2171, %v2184
        %v2186 = vcombine.high %v2170, 0.0
        %v2188 = vunpack.c.l.s4 1934713408
        %v2189 = vunpack.c.0.s8 %v2188
        %v2190 = vlaneseq
        %v2191 = vshrl.u32 %v2190, 7
        %v2192 = vsub.s32 %v2189, %v2191
        %v2193 = vrot.slane %v2170, %v2192
        %v2195 = vunpack.c.l.s4 1934713408
        %v2196 = vunpack.c.0.s8 %v2195
        %v2197 = vlaneseq
        %v2198 = vshrl.u32 %v2197, 7
        %v2199 = vsub.s32 %v2196, %v2198
        %v2200 = vrot.slane %v2186, %v2199
        %v2201 = vcombine.high %v2178, 0.0
        %v2202 = vcombine.high %v2185, 0.0
        %v2203 = vcombine.high %v2193, 0.0
        %v2204 = vcombine.high %v2200, 0.0
        %v2205 = vcombine.high %v331, 0.0
        %v2207 = vunpack.c.l.s4 1983009808
        %v2208 = vunpack.c.0.s8 %v2207
        %v2209 = vlaneseq
        %v2210 = vshrl.u32 %v2209, 7
        %v2211 = vsub.s32 %v2208, %v2210
        %v2212 = vrot.slane %v331, %v2211
        %v2214 = vunpack.c.l.s4 1983009808
        %v2215 = vunpack.c.0.s8 %v2214
        %v2216 = vlaneseq
        %v2217 = vshrl.u32 %v2216, 7
        %v2218 = vsub.s32 %v2215, %v2217
        %v2219 = vrot.slane %v2205, %v2218
        %v2220 = vcombine.high %v2212, 0.0
        %v2222 = vunpack.c.l.s4 1934713408
        %v2223 = vunpack.c.0.s8 %v2222
        %v2224 = vlaneseq
        %v2225 = vshrl.u32 %v2224, 7
        %v2226 = vsub.s32 %v2223, %v2225
        %v2227 = vrot.slane %v2212, %v2226
        %v2229 = vunpack.c.l.s4 1934713408
        %v2230 = vunpack.c.0.s8 %v2229
        %v2231 = vlaneseq
        %v2232 = vshrl.u32 %v2231, 7
        %v2233 = vsub.s32 %v2230, %v2232
        %v2234 = vrot.slane %v2220, %v2233
        %v2235 = vcombine.high %v2219, 0.0
        %v2237 = vunpack.c.l.s4 1934713408
        %v2238 = vunpack.c.0.s8 %v2237
        %v2239 = vlaneseq
        %v2240 = vshrl.u32 %v2239, 7
        %v2241 = vsub.s32 %v2238, %v2240
        %v2242 = vrot.slane %v2219, %v2241
        %v2244 = vunpack.c.l.s4 1934713408
        %v2245 = vunpack.c.0.s8 %v2244
        %v2246 = vlaneseq
        %v2247 = vshrl.u32 %v2246, 7
        %v2248 = vsub.s32 %v2245, %v2247
        %v2249 = vrot.slane %v2235, %v2248
        %v2250 = vcombine.high %v2227, 0.0
        %v2251 = vcombine.high %v2234, 0.0
        %v2252 = vcombine.high %v2242, 0.0
        %v2253 = vcombine.high %v2249, 0.0
        %v2254 = vcombine.high %v338, 0.0
        %v2256 = vunpack.c.l.s4 1983009808
        %v2257 = vunpack.c.0.s8 %v2256
        %v2258 = vlaneseq
        %v2259 = vshrl.u32 %v2258, 7
        %v2260 = vsub.s32 %v2257, %v2259
        %v2261 = vrot.slane %v338, %v2260
        %v2263 = vunpack.c.l.s4 1983009808
        %v2264 = vunpack.c.0.s8 %v2263
        %v2265 = vlaneseq
        %v2266 = vshrl.u32 %v2265, 7
        %v2267 = vsub.s32 %v2264, %v2266
        %v2268 = vrot.slane %v2254, %v2267
        %v2269 = vcombine.high %v2261, 0.0
        %v2271 = vunpack.c.l.s4 1934713408
        %v2272 = vunpack.c.0.s8 %v2271
        %v2273 = vlaneseq
        %v2274 = vshrl.u32 %v2273, 7
        %v2275 = vsub.s32 %v2272, %v2274
        %v2276 = vrot.slane %v2261, %v2275
        %v2278 = vunpack.c.l.s4 1934713408
        %v2279 = vunpack.c.0.s8 %v2278
        %v2280 = vlaneseq
        %v2281 = vshrl.u32 %v2280, 7
        %v2282 = vsub.s32 %v2279, %v2281
        %v2283 = vrot.slane %v2269, %v2282
        %v2284 = vcombine.high %v2268, 0.0
        %v2286 = vunpack.c.l.s4 1934713408
        %v2287 = vunpack.c.0.s8 %v2286
        %v2288 = vlaneseq
        %v2289 = vshrl.u32 %v2288, 7
        %v2290 = vsub.s32 %v2287, %v2289
        %v2291 = vrot.slane %v2268, %v2290
        %v2293 = vunpack.c.l.s4 1934713408
        %v2294 = vunpack.c.0.s8 %v2293
        %v2295 = vlaneseq
        %v2296 = vshrl.u32 %v2295, 7
        %v2297 = vsub.s32 %v2294, %v2296
        %v2298 = vrot.slane %v2284, %v2297
        %v2299 = vcombine.high %v2276, 0.0
        %v2300 = vcombine.high %v2283, 0.0
        %v2301 = vcombine.high %v2291, 0.0
        %v2302 = vcombine.high %v2298, 0.0
        %v2303 = vcombine.high %v342, 0.0
        %v2305 = vunpack.c.l.s4 1983009808
        %v2306 = vunpack.c.0.s8 %v2305
        %v2307 = vlaneseq
        %v2308 = vshrl.u32 %v2307, 7
        %v2309 = vsub.s32 %v2306, %v2308
        %v2310 = vrot.slane %v342, %v2309
        %v2312 = vunpack.c.l.s4 1983009808
        %v2313 = vunpack.c.0.s8 %v2312
        %v2314 = vlaneseq
        %v2315 = vshrl.u32 %v2314, 7
        %v2316 = vsub.s32 %v2313, %v2315
        %v2317 = vrot.slane %v2303, %v2316
        %v2318 = vcombine.high %v2310, 0.0
        %v2320 = vunpack.c.l.s4 1934713408
        %v2321 = vunpack.c.0.s8 %v2320
        %v2322 = vlaneseq
        %v2323 = vshrl.u32 %v2322, 7
        %v2324 = vsub.s32 %v2321, %v2323
        %v2325 = vrot.slane %v2310, %v2324
        %v2327 = vunpack.c.l.s4 1934713408
        %v2328 = vunpack.c.0.s8 %v2327
        %v2329 = vlaneseq
        %v2330 = vshrl.u32 %v2329, 7
        %v2331 = vsub.s32 %v2328, %v2330
        %v2332 = vrot.slane %v2318, %v2331
        %v2333 = vcombine.high %v2317, 0.0
        %v2335 = vunpack.c.l.s4 1934713408
        %v2336 = vunpack.c.0.s8 %v2335
        %v2337 = vlaneseq
        %v2338 = vshrl.u32 %v2337, 7
        %v2339 = vsub.s32 %v2336, %v2338
        %v2340 = vrot.slane %v2317, %v2339
        %v2342 = vunpack.c.l.s4 1934713408
        %v2343 = vunpack.c.0.s8 %v2342
        %v2344 = vlaneseq
        %v2345 = vshrl.u32 %v2344, 7
        %v2346 = vsub.s32 %v2343, %v2345
        %v2347 = vrot.slane %v2333, %v2346
        %v2348 = vcombine.high %v2325, 0.0
        %v2349 = vcombine.high %v2332, 0.0
        %v2350 = vcombine.high %v2340, 0.0
        %v2351 = vcombine.high %v2347, 0.0
        %v2352 = vcombine.high %v349, 0.0
        %v2354 = vunpack.c.l.s4 1983009808
        %v2355 = vunpack.c.0.s8 %v2354
        %v2356 = vlaneseq
        %v2357 = vshrl.u32 %v2356, 7
        %v2358 = vsub.s32 %v2355, %v2357
        %v2359 = vrot.slane %v349, %v2358
        %v2361 = vunpack.c.l.s4 1983009808
        %v2362 = vunpack.c.0.s8 %v2361
        %v2363 = vlaneseq
        %v2364 = vshrl.u32 %v2363, 7
        %v2365 = vsub.s32 %v2362, %v2364
        %v2366 = vrot.slane %v2352, %v2365
        %v2367 = vcombine.high %v2359, 0.0
        %v2369 = vunpack.c.l.s4 1934713408
        %v2370 = vunpack.c.0.s8 %v2369
        %v2371 = vlaneseq
        %v2372 = vshrl.u32 %v2371, 7
        %v2373 = vsub.s32 %v2370, %v2372
        %v2374 = vrot.slane %v2359, %v2373
        %v2376 = vunpack.c.l.s4 1934713408
        %v2377 = vunpack.c.0.s8 %v2376
        %v2378 = vlaneseq
        %v2379 = vshrl.u32 %v2378, 7
        %v2380 = vsub.s32 %v2377, %v2379
        %v2381 = vrot.slane %v2367, %v2380
        %v2382 = vcombine.high %v2366, 0.0
        %v2384 = vunpack.c.l.s4 1934713408
        %v2385 = vunpack.c.0.s8 %v2384
        %v2386 = vlaneseq
        %v2387 = vshrl.u32 %v2386, 7
        %v2388 = vsub.s32 %v2385, %v2387
        %v2389 = vrot.slane %v2366, %v2388
        %v2391 = vunpack.c.l.s4 1934713408
        %v2392 = vunpack.c.0.s8 %v2391
        %v2393 = vlaneseq
        %v2394 = vshrl.u32 %v2393, 7
        %v2395 = vsub.s32 %v2392, %v2394
        %v2396 = vrot.slane %v2382, %v2395
        %v2397 = vcombine.high %v2374, 0.0
        %v2398 = vcombine.high %v2381, 0.0
        %v2399 = vcombine.high %v2389, 0.0
        %v2400 = vcombine.high %v2396, 0.0
        %v2401 = vcombine.high %v353, 0.0
        %v2403 = vunpack.c.l.s4 1983009808
        %v2404 = vunpack.c.0.s8 %v2403
        %v2405 = vlaneseq
        %v2406 = vshrl.u32 %v2405, 7
        %v2407 = vsub.s32 %v2404, %v2406
        %v2408 = vrot.slane %v353, %v2407
        %v2410 = vunpack.c.l.s4 1983009808
        %v2411 = vunpack.c.0.s8 %v2410
        %v2412 = vlaneseq
        %v2413 = vshrl.u32 %v2412, 7
        %v2414 = vsub.s32 %v2411, %v2413
        %v2415 = vrot.slane %v2401, %v2414
        %v2416 = vcombine.high %v2408, 0.0
        %v2418 = vunpack.c.l.s4 1934713408
        %v2419 = vunpack.c.0.s8 %v2418
        %v2420 = vlaneseq
        %v2421 = vshrl.u32 %v2420, 7
        %v2422 = vsub.s32 %v2419, %v2421
        %v2423 = vrot.slane %v2408, %v2422
        %v2425 = vunpack.c.l.s4 1934713408
        %v2426 = vunpack.c.0.s8 %v2425
        %v2427 = vlaneseq
        %v2428 = vshrl.u32 %v2427, 7
        %v2429 = vsub.s32 %v2426, %v2428
        %v2430 = vrot.slane %v2416, %v2429
        %v2431 = vcombine.high %v2415, 0.0
        %v2433 = vunpack.c.l.s4 1934713408
        %v2434 = vunpack.c.0.s8 %v2433
        %v2435 = vlaneseq
        %v2436 = vshrl.u32 %v2435, 7
        %v2437 = vsub.s32 %v2434, %v2436
        %v2438 = vrot.slane %v2415, %v2437
        %v2440 = vunpack.c.l.s4 1934713408
        %v2441 = vunpack.c.0.s8 %v2440
        %v2442 = vlaneseq
        %v2443 = vshrl.u32 %v2442, 7
        %v2444 = vsub.s32 %v2441, %v2443
        %v2445 = vrot.slane %v2431, %v2444
        %v2446 = vcombine.high %v2423, 0.0
        %v2447 = vcombine.high %v2430, 0.0
        %v2448 = vcombine.high %v2438, 0.0
        %v2449 = vcombine.high %v2445, 0.0
        %v2450 = vcombine.high %v360, 0.0
        %v2452 = vunpack.c.l.s4 1983009808
        %v2453 = vunpack.c.0.s8 %v2452
        %v2454 = vlaneseq
        %v2455 = vshrl.u32 %v2454, 7
        %v2456 = vsub.s32 %v2453, %v2455
        %v2457 = vrot.slane %v360, %v2456
        %v2459 = vunpack.c.l.s4 1983009808
        %v2460 = vunpack.c.0.s8 %v2459
        %v2461 = vlaneseq
        %v2462 = vshrl.u32 %v2461, 7
        %v2463 = vsub.s32 %v2460, %v2462
        %v2464 = vrot.slane %v2450, %v2463
        %v2465 = vcombine.high %v2457, 0.0
        %v2467 = vunpack.c.l.s4 1934713408
        %v2468 = vunpack.c.0.s8 %v2467
        %v2469 = vlaneseq
        %v2470 = vshrl.u32 %v2469, 7
        %v2471 = vsub.s32 %v2468, %v2470
        %v2472 = vrot.slane %v2457, %v2471
        %v2474 = vunpack.c.l.s4 1934713408
        %v2475 = vunpack.c.0.s8 %v2474
        %v2476 = vlaneseq
        %v2477 = vshrl.u32 %v2476, 7
        %v2478 = vsub.s32 %v2475, %v2477
        %v2479 = vrot.slane %v2465, %v2478
        %v2480 = vcombine.high %v2464, 0.0
        %v2482 = vunpack.c.l.s4 1934713408
        %v2483 = vunpack.c.0.s8 %v2482
        %v2484 = vlaneseq
        %v2485 = vshrl.u32 %v2484, 7
        %v2486 = vsub.s32 %v2483, %v2485
        %v2487 = vrot.slane %v2464, %v2486
        %v2489 = vunpack.c.l.s4 1934713408
        %v2490 = vunpack.c.0.s8 %v2489
        %v2491 = vlaneseq
        %v2492 = vshrl.u32 %v2491, 7
        %v2493 = vsub.s32 %v2490, %v2492
        %v2494 = vrot.slane %v2480, %v2493
        %v2495 = vcombine.high %v2472, 0.0
        %v2496 = vcombine.high %v2479, 0.0
        %v2497 = vcombine.high %v2487, 0.0
        %v2498 = vcombine.high %v2494, 0.0
        %v2499 = vcombine.high %v364, 0.0
        %v2501 = vunpack.c.l.s4 1983009808
        %v2502 = vunpack.c.0.s8 %v2501
        %v2503 = vlaneseq
        %v2504 = vshrl.u32 %v2503, 7
        %v2505 = vsub.s32 %v2502, %v2504
        %v2506 = vrot.slane %v364, %v2505
        %v2508 = vunpack.c.l.s4 1983009808
        %v2509 = vunpack.c.0.s8 %v2508
        %v2510 = vlaneseq
        %v2511 = vshrl.u32 %v2510, 7
        %v2512 = vsub.s32 %v2509, %v2511
        %v2513 = vrot.slane %v2499, %v2512
        %v2514 = vcombine.high %v2506, 0.0
        %v2516 = vunpack.c.l.s4 1934713408
        %v2517 = vunpack.c.0.s8 %v2516
        %v2518 = vlaneseq
        %v2519 = vshrl.u32 %v2518, 7
        %v2520 = vsub.s32 %v2517, %v2519
        %v2521 = vrot.slane %v2506, %v2520
        %v2523 = vunpack.c.l.s4 1934713408
        %v2524 = vunpack.c.0.s8 %v2523
        %v2525 = vlaneseq
        %v2526 = vshrl.u32 %v2525, 7
        %v2527 = vsub.s32 %v2524, %v2526
        %v2528 = vrot.slane %v2514, %v2527
        %v2529 = vcombine.high %v2513, 0.0
        %v2531 = vunpack.c.l.s4 1934713408
        %v2532 = vunpack.c.0.s8 %v2531
        %v2533 = vlaneseq
        %v2534 = vshrl.u32 %v2533, 7
        %v2535 = vsub.s32 %v2532, %v2534
        %v2536 = vrot.slane %v2513, %v2535
        %v2538 = vunpack.c.l.s4 1934713408
        %v2539 = vunpack.c.0.s8 %v2538
        %v2540 = vlaneseq
        %v2541 = vshrl.u32 %v2540, 7
        %v2542 = vsub.s32 %v2539, %v2541
        %v2543 = vrot.slane %v2529, %v2542
        %v2544 = vcombine.high %v2521, 0.0
        %v2545 = vcombine.high %v2528, 0.0
        %v2546 = vcombine.high %v2536, 0.0
        %v2547 = vcombine.high %v2543, 0.0
        %v2548 = vcombine.high %v371, 0.0
        %v2550 = vunpack.c.l.s4 1983009808
        %v2551 = vunpack.c.0.s8 %v2550
        %v2552 = vlaneseq
        %v2553 = vshrl.u32 %v2552, 7
        %v2554 = vsub.s32 %v2551, %v2553
        %v2555 = vrot.slane %v371, %v2554
        %v2557 = vunpack.c.l.s4 1983009808
        %v2558 = vunpack.c.0.s8 %v2557
        %v2559 = vlaneseq
        %v2560 = vshrl.u32 %v2559, 7
        %v2561 = vsub.s32 %v2558, %v2560
        %v2562 = vrot.slane %v2548, %v2561
        %v2563 = vcombine.high %v2555, 0.0
        %v2565 = vunpack.c.l.s4 1934713408
        %v2566 = vunpack.c.0.s8 %v2565
        %v2567 = vlaneseq
        %v2568 = vshrl.u32 %v2567, 7
        %v2569 = vsub.s32 %v2566, %v2568
        %v2570 = vrot.slane %v2555, %v2569
        %v2572 = vunpack.c.l.s4 1934713408
        %v2573 = vunpack.c.0.s8 %v2572
        %v2574 = vlaneseq
        %v2575 = vshrl.u32 %v2574, 7
        %v2576 = vsub.s32 %v2573, %v2575
        %v2577 = vrot.slane %v2563, %v2576
        %v2578 = vcombine.high %v2562, 0.0
        %v2580 = vunpack.c.l.s4 1934713408
        %v2581 = vunpack.c.0.s8 %v2580
        %v2582 = vlaneseq
        %v2583 = vshrl.u32 %v2582, 7
        %v2584 = vsub.s32 %v2581, %v2583
        %v2585 = vrot.slane %v2562, %v2584
        %v2587 = vunpack.c.l.s4 1934713408
        %v2588 = vunpack.c.0.s8 %v2587
        %v2589 = vlaneseq
        %v2590 = vshrl.u32 %v2589, 7
        %v2591 = vsub.s32 %v2588, %v2590
        %v2592 = vrot.slane %v2578, %v2591
        %v2593 = vcombine.high %v2570, 0.0
        %v2594 = vcombine.high %v2577, 0.0
        %v2595 = vcombine.high %v2585, 0.0
        %v2596 = vcombine.high %v2592, 0.0
        %v2597 = vcombine.high %v375, 0.0
        %v2599 = vunpack.c.l.s4 1983009808
        %v2600 = vunpack.c.0.s8 %v2599
        %v2601 = vlaneseq
        %v2602 = vshrl.u32 %v2601, 7
        %v2603 = vsub.s32 %v2600, %v2602
        %v2604 = vrot.slane %v375, %v2603
        %v2606 = vunpack.c.l.s4 1983009808
        %v2607 = vunpack.c.0.s8 %v2606
        %v2608 = vlaneseq
        %v2609 = vshrl.u32 %v2608, 7
        %v2610 = vsub.s32 %v2607, %v2609
        %v2611 = vrot.slane %v2597, %v2610
        %v2612 = vcombine.high %v2604, 0.0
        %v2614 = vunpack.c.l.s4 1934713408
        %v2615 = vunpack.c.0.s8 %v2614
        %v2616 = vlaneseq
        %v2617 = vshrl.u32 %v2616, 7
        %v2618 = vsub.s32 %v2615, %v2617
        %v2619 = vrot.slane %v2604, %v2618
        %v2621 = vunpack.c.l.s4 1934713408
        %v2622 = vunpack.c.0.s8 %v2621
        %v2623 = vlaneseq
        %v2624 = vshrl.u32 %v2623, 7
        %v2625 = vsub.s32 %v2622, %v2624
        %v2626 = vrot.slane %v2612, %v2625
        %v2627 = vcombine.high %v2611, 0.0
        %v2629 = vunpack.c.l.s4 1934713408
        %v2630 = vunpack.c.0.s8 %v2629
        %v2631 = vlaneseq
        %v2632 = vshrl.u32 %v2631, 7
        %v2633 = vsub.s32 %v2630, %v2632
        %v2634 = vrot.slane %v2611, %v2633
        %v2636 = vunpack.c.l.s4 1934713408
        %v2637 = vunpack.c.0.s8 %v2636
        %v2638 = vlaneseq
        %v2639 = vshrl.u32 %v2638, 7
        %v2640 = vsub.s32 %v2637, %v2639
        %v2641 = vrot.slane %v2627, %v2640
        %v2642 = vcombine.high %v2619, 0.0
        %v2643 = vcombine.high %v2626, 0.0
        %v2644 = vcombine.high %v2634, 0.0
        %v2645 = vcombine.high %v2641, 0.0
        %v2646 = vcombine.high %v382, 0.0
        %v2648 = vunpack.c.l.s4 1983009808
        %v2649 = vunpack.c.0.s8 %v2648
        %v2650 = vlaneseq
        %v2651 = vshrl.u32 %v2650, 7
        %v2652 = vsub.s32 %v2649, %v2651
        %v2653 = vrot.slane %v382, %v2652
        %v2655 = vunpack.c.l.s4 1983009808
        %v2656 = vunpack.c.0.s8 %v2655
        %v2657 = vlaneseq
        %v2658 = vshrl.u32 %v2657, 7
        %v2659 = vsub.s32 %v2656, %v2658
        %v2660 = vrot.slane %v2646, %v2659
        %v2661 = vcombine.high %v2653, 0.0
        %v2663 = vunpack.c.l.s4 1934713408
        %v2664 = vunpack.c.0.s8 %v2663
        %v2665 = vlaneseq
        %v2666 = vshrl.u32 %v2665, 7
        %v2667 = vsub.s32 %v2664, %v2666
        %v2668 = vrot.slane %v2653, %v2667
        %v2670 = vunpack.c.l.s4 1934713408
        %v2671 = vunpack.c.0.s8 %v2670
        %v2672 = vlaneseq
        %v2673 = vshrl.u32 %v2672, 7
        %v2674 = vsub.s32 %v2671, %v2673
        %v2675 = vrot.slane %v2661, %v2674
        %v2676 = vcombine.high %v2660, 0.0
        %v2678 = vunpack.c.l.s4 1934713408
        %v2679 = vunpack.c.0.s8 %v2678
        %v2680 = vlaneseq
        %v2681 = vshrl.u32 %v2680, 7
        %v2682 = vsub.s32 %v2679, %v2681
        %v2683 = vrot.slane %v2660, %v2682
        %v2685 = vunpack.c.l.s4 1934713408
        %v2686 = vunpack.c.0.s8 %v2685
        %v2687 = vlaneseq
        %v2688 = vshrl.u32 %v2687, 7
        %v2689 = vsub.s32 %v2686, %v2688
        %v2690 = vrot.slane %v2676, %v2689
        %v2691 = vcombine.high %v2668, 0.0
        %v2692 = vcombine.high %v2675, 0.0
        %v2693 = vcombine.high %v2683, 0.0
        %v2694 = vcombine.high %v2690, 0.0
        %v2695 = vcombine.high %v386, 0.0
        %v2697 = vunpack.c.l.s4 1983009808
        %v2698 = vunpack.c.0.s8 %v2697
        %v2699 = vlaneseq
        %v2700 = vshrl.u32 %v2699, 7
        %v2701 = vsub.s32 %v2698, %v2700
        %v2702 = vrot.slane %v386, %v2701
        %v2704 = vunpack.c.l.s4 1983009808
        %v2705 = vunpack.c.0.s8 %v2704
        %v2706 = vlaneseq
        %v2707 = vshrl.u32 %v2706, 7
        %v2708 = vsub.s32 %v2705, %v2707
        %v2709 = vrot.slane %v2695, %v2708
        %v2710 = vcombine.high %v2702, 0.0
        %v2712 = vunpack.c.l.s4 1934713408
        %v2713 = vunpack.c.0.s8 %v2712
        %v2714 = vlaneseq
        %v2715 = vshrl.u32 %v2714, 7
        %v2716 = vsub.s32 %v2713, %v2715
        %v2717 = vrot.slane %v2702, %v2716
        %v2719 = vunpack.c.l.s4 1934713408
        %v2720 = vunpack.c.0.s8 %v2719
        %v2721 = vlaneseq
        %v2722 = vshrl.u32 %v2721, 7
        %v2723 = vsub.s32 %v2720, %v2722
        %v2724 = vrot.slane %v2710, %v2723
        %v2725 = vcombine.high %v2709, 0.0
        %v2727 = vunpack.c.l.s4 1934713408
        %v2728 = vunpack.c.0.s8 %v2727
        %v2729 = vlaneseq
        %v2730 = vshrl.u32 %v2729, 7
        %v2731 = vsub.s32 %v2728, %v2730
        %v2732 = vrot.slane %v2709, %v2731
        %v2734 = vunpack.c.l.s4 1934713408
        %v2735 = vunpack.c.0.s8 %v2734
        %v2736 = vlaneseq
        %v2737 = vshrl.u32 %v2736, 7
        %v2738 = vsub.s32 %v2735, %v2737
        %v2739 = vrot.slane %v2725, %v2738
        %v2740 = vcombine.high %v2717, 0.0
        %v2741 = vcombine.high %v2724, 0.0
        %v2742 = vcombine.high %v2732, 0.0
        %v2743 = vcombine.high %v2739, 0.0
        %v2744 = vcombine.high %v393, 0.0
        %v2746 = vunpack.c.l.s4 1983009808
        %v2747 = vunpack.c.0.s8 %v2746
        %v2748 = vlaneseq
        %v2749 = vshrl.u32 %v2748, 7
        %v2750 = vsub.s32 %v2747, %v2749
        %v2751 = vrot.slane %v393, %v2750
        %v2753 = vunpack.c.l.s4 1983009808
        %v2754 = vunpack.c.0.s8 %v2753
        %v2755 = vlaneseq
        %v2756 = vshrl.u32 %v2755, 7
        %v2757 = vsub.s32 %v2754, %v2756
        %v2758 = vrot.slane %v2744, %v2757
        %v2759 = vcombine.high %v2751, 0.0
        %v2761 = vunpack.c.l.s4 1934713408
        %v2762 = vunpack.c.0.s8 %v2761
        %v2763 = vlaneseq
        %v2764 = vshrl.u32 %v2763, 7
        %v2765 = vsub.s32 %v2762, %v2764
        %v2766 = vrot.slane %v2751, %v2765
        %v2768 = vunpack.c.l.s4 1934713408
        %v2769 = vunpack.c.0.s8 %v2768
        %v2770 = vlaneseq
        %v2771 = vshrl.u32 %v2770, 7
        %v2772 = vsub.s32 %v2769, %v2771
        %v2773 = vrot.slane %v2759, %v2772
        %v2774 = vcombine.high %v2758, 0.0
        %v2776 = vunpack.c.l.s4 1934713408
        %v2777 = vunpack.c.0.s8 %v2776
        %v2778 = vlaneseq
        %v2779 = vshrl.u32 %v2778, 7
        %v2780 = vsub.s32 %v2777, %v2779
        %v2781 = vrot.slane %v2758, %v2780
        %v2783 = vunpack.c.l.s4 1934713408
        %v2784 = vunpack.c.0.s8 %v2783
        %v2785 = vlaneseq
        %v2786 = vshrl.u32 %v2785, 7
        %v2787 = vsub.s32 %v2784, %v2786
        %v2788 = vrot.slane %v2774, %v2787
        %v2789 = vcombine.high %v2766, 0.0
        %v2790 = vcombine.high %v2773, 0.0
        %v2791 = vcombine.high %v2781, 0.0
        %v2792 = vcombine.high %v2788, 0.0
        %v2793 = vcombine.high %v397, 0.0
        %v2795 = vunpack.c.l.s4 1983009808
        %v2796 = vunpack.c.0.s8 %v2795
        %v2797 = vlaneseq
        %v2798 = vshrl.u32 %v2797, 7
        %v2799 = vsub.s32 %v2796, %v2798
        %v2800 = vrot.slane %v397, %v2799
        %v2802 = vunpack.c.l.s4 1983009808
        %v2803 = vunpack.c.0.s8 %v2802
        %v2804 = vlaneseq
        %v2805 = vshrl.u32 %v2804, 7
        %v2806 = vsub.s32 %v2803, %v2805
        %v2807 = vrot.slane %v2793, %v2806
        %v2808 = vcombine.high %v2800, 0.0
        %v2810 = vunpack.c.l.s4 1934713408
        %v2811 = vunpack.c.0.s8 %v2810
        %v2812 = vlaneseq
        %v2813 = vshrl.u32 %v2812, 7
        %v2814 = vsub.s32 %v2811, %v2813
        %v2815 = vrot.slane %v2800, %v2814
        %v2817 = vunpack.c.l.s4 1934713408
        %v2818 = vunpack.c.0.s8 %v2817
        %v2819 = vlaneseq
        %v2820 = vshrl.u32 %v2819, 7
        %v2821 = vsub.s32 %v2818, %v2820
        %v2822 = vrot.slane %v2808, %v2821
        %v2823 = vcombine.high %v2807, 0.0
        %v2825 = vunpack.c.l.s4 1934713408
        %v2826 = vunpack.c.0.s8 %v2825
        %v2827 = vlaneseq
        %v2828 = vshrl.u32 %v2827, 7
        %v2829 = vsub.s32 %v2826, %v2828
        %v2830 = vrot.slane %v2807, %v2829
        %v2832 = vunpack.c.l.s4 1934713408
        %v2833 = vunpack.c.0.s8 %v2832
        %v2834 = vlaneseq
        %v2835 = vshrl.u32 %v2834, 7
        %v2836 = vsub.s32 %v2833, %v2835
        %v2837 = vrot.slane %v2823, %v2836
        %v2838 = vcombine.high %v2815, 0.0
        %v2839 = vcombine.high %v2822, 0.0
        %v2840 = vcombine.high %v2830, 0.0
        %v2841 = vcombine.high %v2837, 0.0
        %v2842 = vcombine.high %v404, 0.0
        %v2844 = vunpack.c.l.s4 1983009808
        %v2845 = vunpack.c.0.s8 %v2844
        %v2846 = vlaneseq
        %v2847 = vshrl.u32 %v2846, 7
        %v2848 = vsub.s32 %v2845, %v2847
        %v2849 = vrot.slane %v404, %v2848
        %v2851 = vunpack.c.l.s4 1983009808
        %v2852 = vunpack.c.0.s8 %v2851
        %v2853 = vlaneseq
        %v2854 = vshrl.u32 %v2853, 7
        %v2855 = vsub.s32 %v2852, %v2854
        %v2856 = vrot.slane %v2842, %v2855
        %v2857 = vcombine.high %v2849, 0.0
        %v2859 = vunpack.c.l.s4 1934713408
        %v2860 = vunpack.c.0.s8 %v2859
        %v2861 = vlaneseq
        %v2862 = vshrl.u32 %v2861, 7
        %v2863 = vsub.s32 %v2860, %v2862
        %v2864 = vrot.slane %v2849, %v2863
        %v2866 = vunpack.c.l.s4 1934713408
        %v2867 = vunpack.c.0.s8 %v2866
        %v2868 = vlaneseq
        %v2869 = vshrl.u32 %v2868, 7
        %v2870 = vsub.s32 %v2867, %v2869
        %v2871 = vrot.slane %v2857, %v2870
        %v2872 = vcombine.high %v2856, 0.0
        %v2874 = vunpack.c.l.s4 1934713408
        %v2875 = vunpack.c.0.s8 %v2874
        %v2876 = vlaneseq
        %v2877 = vshrl.u32 %v2876, 7
        %v2878 = vsub.s32 %v2875, %v2877
        %v2879 = vrot.slane %v2856, %v2878
        %v2881 = vunpack.c.l.s4 1934713408
        %v2882 = vunpack.c.0.s8 %v2881
        %v2883 = vlaneseq
        %v2884 = vshrl.u32 %v2883, 7
        %v2885 = vsub.s32 %v2882, %v2884
        %v2886 = vrot.slane %v2872, %v2885
        %v2887 = vcombine.high %v2864, 0.0
        %v2888 = vcombine.high %v2871, 0.0
        %v2889 = vcombine.high %v2879, 0.0
        %v2890 = vcombine.high %v2886, 0.0
        %v2891 = vcombine.high %v408, 0.0
        %v2893 = vunpack.c.l.s4 1983009808
        %v2894 = vunpack.c.0.s8 %v2893
        %v2895 = vlaneseq
        %v2896 = vshrl.u32 %v2895, 7
        %v2897 = vsub.s32 %v2894, %v2896
        %v2898 = vrot.slane %v408, %v2897
        %v2900 = vunpack.c.l.s4 1983009808
        %v2901 = vunpack.c.0.s8 %v2900
        %v2902 = vlaneseq
        %v2903 = vshrl.u32 %v2902, 7
        %v2904 = vsub.s32 %v2901, %v2903
        %v2905 = vrot.slane %v2891, %v2904
        %v2906 = vcombine.high %v2898, 0.0
        %v2908 = vunpack.c.l.s4 1934713408
        %v2909 = vunpack.c.0.s8 %v2908
        %v2910 = vlaneseq
        %v2911 = vshrl.u32 %v2910, 7
        %v2912 = vsub.s32 %v2909, %v2911
        %v2913 = vrot.slane %v2898, %v2912
        %v2915 = vunpack.c.l.s4 1934713408
        %v2916 = vunpack.c.0.s8 %v2915
        %v2917 = vlaneseq
        %v2918 = vshrl.u32 %v2917, 7
        %v2919 = vsub.s32 %v2916, %v2918
        %v2920 = vrot.slane %v2906, %v2919
        %v2921 = vcombine.high %v2905, 0.0
        %v2923 = vunpack.c.l.s4 1934713408
        %v2924 = vunpack.c.0.s8 %v2923
        %v2925 = vlaneseq
        %v2926 = vshrl.u32 %v2925, 7
        %v2927 = vsub.s32 %v2924, %v2926
        %v2928 = vrot.slane %v2905, %v2927
        %v2930 = vunpack.c.l.s4 1934713408
        %v2931 = vunpack.c.0.s8 %v2930
        %v2932 = vlaneseq
        %v2933 = vshrl.u32 %v2932, 7
        %v2934 = vsub.s32 %v2931, %v2933
        %v2935 = vrot.slane %v2921, %v2934
        %v2936 = vcombine.high %v2913, 0.0
        %v2937 = vcombine.high %v2920, 0.0
        %v2938 = vcombine.high %v2928, 0.0
        %v2939 = vcombine.high %v2935, 0.0
        %v2940 = vcombine.high %v415, 0.0
        %v2942 = vunpack.c.l.s4 1983009808
        %v2943 = vunpack.c.0.s8 %v2942
        %v2944 = vlaneseq
        %v2945 = vshrl.u32 %v2944, 7
        %v2946 = vsub.s32 %v2943, %v2945
        %v2947 = vrot.slane %v415, %v2946
        %v2949 = vunpack.c.l.s4 1983009808
        %v2950 = vunpack.c.0.s8 %v2949
        %v2951 = vlaneseq
        %v2952 = vshrl.u32 %v2951, 7
        %v2953 = vsub.s32 %v2950, %v2952
        %v2954 = vrot.slane %v2940, %v2953
        %v2955 = vcombine.high %v2947, 0.0
        %v2957 = vunpack.c.l.s4 1934713408
        %v2958 = vunpack.c.0.s8 %v2957
        %v2959 = vlaneseq
        %v2960 = vshrl.u32 %v2959, 7
        %v2961 = vsub.s32 %v2958, %v2960
        %v2962 = vrot.slane %v2947, %v2961
        %v2964 = vunpack.c.l.s4 1934713408
        %v2965 = vunpack.c.0.s8 %v2964
        %v2966 = vlaneseq
        %v2967 = vshrl.u32 %v2966, 7
        %v2968 = vsub.s32 %v2965, %v2967
        %v2969 = vrot.slane %v2955, %v2968
        %v2970 = vcombine.high %v2954, 0.0
        %v2972 = vunpack.c.l.s4 1934713408
        %v2973 = vunpack.c.0.s8 %v2972
        %v2974 = vlaneseq
        %v2975 = vshrl.u32 %v2974, 7
        %v2976 = vsub.s32 %v2973, %v2975
        %v2977 = vrot.slane %v2954, %v2976
        %v2979 = vunpack.c.l.s4 1934713408
        %v2980 = vunpack.c.0.s8 %v2979
        %v2981 = vlaneseq
        %v2982 = vshrl.u32 %v2981, 7
        %v2983 = vsub.s32 %v2980, %v2982
        %v2984 = vrot.slane %v2970, %v2983
        %v2985 = vcombine.high %v2962, 0.0
        %v2986 = vcombine.high %v2969, 0.0
        %v2987 = vcombine.high %v2977, 0.0
        %v2988 = vcombine.high %v2984, 0.0
        %v2989 = vcombine.high %v419, 0.0
        %v2991 = vunpack.c.l.s4 1983009808
        %v2992 = vunpack.c.0.s8 %v2991
        %v2993 = vlaneseq
        %v2994 = vshrl.u32 %v2993, 7
        %v2995 = vsub.s32 %v2992, %v2994
        %v2996 = vrot.slane %v419, %v2995
        %v2998 = vunpack.c.l.s4 1983009808
        %v2999 = vunpack.c.0.s8 %v2998
        %v3000 = vlaneseq
        %v3001 = vshrl.u32 %v3000, 7
        %v3002 = vsub.s32 %v2999, %v3001
        %v3003 = vrot.slane %v2989, %v3002
        %v3004 = vcombine.high %v2996, 0.0
        %v3006 = vunpack.c.l.s4 1934713408
        %v3007 = vunpack.c.0.s8 %v3006
        %v3008 = vlaneseq
        %v3009 = vshrl.u32 %v3008, 7
        %v3010 = vsub.s32 %v3007, %v3009
        %v3011 = vrot.slane %v2996, %v3010
        %v3013 = vunpack.c.l.s4 1934713408
        %v3014 = vunpack.c.0.s8 %v3013
        %v3015 = vlaneseq
        %v3016 = vshrl.u32 %v3015, 7
        %v3017 = vsub.s32 %v3014, %v3016
        %v3018 = vrot.slane %v3004, %v3017
        %v3019 = vcombine.high %v3003, 0.0
        %v3021 = vunpack.c.l.s4 1934713408
        %v3022 = vunpack.c.0.s8 %v3021
        %v3023 = vlaneseq
        %v3024 = vshrl.u32 %v3023, 7
        %v3025 = vsub.s32 %v3022, %v3024
        %v3026 = vrot.slane %v3003, %v3025
        %v3028 = vunpack.c.l.s4 1934713408
        %v3029 = vunpack.c.0.s8 %v3028
        %v3030 = vlaneseq
        %v3031 = vshrl.u32 %v3030, 7
        %v3032 = vsub.s32 %v3029, %v3031
        %v3033 = vrot.slane %v3019, %v3032
        %v3034 = vcombine.high %v3011, 0.0
        %v3035 = vcombine.high %v3018, 0.0
        %v3036 = vcombine.high %v3026, 0.0
        %v3037 = vcombine.high %v3033, 0.0
        %v3038 = vcombine.high %v426, 0.0
        %v3040 = vunpack.c.l.s4 1983009808
        %v3041 = vunpack.c.0.s8 %v3040
        %v3042 = vlaneseq
        %v3043 = vshrl.u32 %v3042, 7
        %v3044 = vsub.s32 %v3041, %v3043
        %v3045 = vrot.slane %v426, %v3044
        %v3047 = vunpack.c.l.s4 1983009808
        %v3048 = vunpack.c.0.s8 %v3047
        %v3049 = vlaneseq
        %v3050 = vshrl.u32 %v3049, 7
        %v3051 = vsub.s32 %v3048, %v3050
        %v3052 = vrot.slane %v3038, %v3051
        %v3053 = vcombine.high %v3045, 0.0
        %v3055 = vunpack.c.l.s4 1934713408
        %v3056 = vunpack.c.0.s8 %v3055
        %v3057 = vlaneseq
        %v3058 = vshrl.u32 %v3057, 7
        %v3059 = vsub.s32 %v3056, %v3058
        %v3060 = vrot.slane %v3045, %v3059
        %v3062 = vunpack.c.l.s4 1934713408
        %v3063 = vunpack.c.0.s8 %v3062
        %v3064 = vlaneseq
        %v3065 = vshrl.u32 %v3064, 7
        %v3066 = vsub.s32 %v3063, %v3065
        %v3067 = vrot.slane %v3053, %v3066
        %v3068 = vcombine.high %v3052, 0.0
        %v3070 = vunpack.c.l.s4 1934713408
        %v3071 = vunpack.c.0.s8 %v3070
        %v3072 = vlaneseq
        %v3073 = vshrl.u32 %v3072, 7
        %v3074 = vsub.s32 %v3071, %v3073
        %v3075 = vrot.slane %v3052, %v3074
        %v3077 = vunpack.c.l.s4 1934713408
        %v3078 = vunpack.c.0.s8 %v3077
        %v3079 = vlaneseq
        %v3080 = vshrl.u32 %v3079, 7
        %v3081 = vsub.s32 %v3078, %v3080
        %v3082 = vrot.slane %v3068, %v3081
        %v3083 = vcombine.high %v3060, 0.0
        %v3084 = vcombine.high %v3067, 0.0
        %v3085 = vcombine.high %v3075, 0.0
        %v3086 = vcombine.high %v3082, 0.0
        %v3087 = vcombine.high %v430, 0.0
        %v3089 = vunpack.c.l.s4 1983009808
        %v3090 = vunpack.c.0.s8 %v3089
        %v3091 = vlaneseq
        %v3092 = vshrl.u32 %v3091, 7
        %v3093 = vsub.s32 %v3090, %v3092
        %v3094 = vrot.slane %v430, %v3093
        %v3096 = vunpack.c.l.s4 1983009808
        %v3097 = vunpack.c.0.s8 %v3096
        %v3098 = vlaneseq
        %v3099 = vshrl.u32 %v3098, 7
        %v3100 = vsub.s32 %v3097, %v3099
        %v3101 = vrot.slane %v3087, %v3100
        %v3102 = vcombine.high %v3094, 0.0
        %v3104 = vunpack.c.l.s4 1934713408
        %v3105 = vunpack.c.0.s8 %v3104
        %v3106 = vlaneseq
        %v3107 = vshrl.u32 %v3106, 7
        %v3108 = vsub.s32 %v3105, %v3107
        %v3109 = vrot.slane %v3094, %v3108
        %v3111 = vunpack.c.l.s4 1934713408
        %v3112 = vunpack.c.0.s8 %v3111
        %v3113 = vlaneseq
        %v3114 = vshrl.u32 %v3113, 7
        %v3115 = vsub.s32 %v3112, %v3114
        %v3116 = vrot.slane %v3102, %v3115
        %v3117 = vcombine.high %v3101, 0.0
        %v3119 = vunpack.c.l.s4 1934713408
        %v3120 = vunpack.c.0.s8 %v3119
        %v3121 = vlaneseq
        %v3122 = vshrl.u32 %v3121, 7
        %v3123 = vsub.s32 %v3120, %v3122
        %v3124 = vrot.slane %v3101, %v3123
        %v3126 = vunpack.c.l.s4 1934713408
        %v3127 = vunpack.c.0.s8 %v3126
        %v3128 = vlaneseq
        %v3129 = vshrl.u32 %v3128, 7
        %v3130 = vsub.s32 %v3127, %v3129
        %v3131 = vrot.slane %v3117, %v3130
        %v3132 = vcombine.high %v3109, 0.0
        %v3133 = vcombine.high %v3116, 0.0
        %v3134 = vcombine.high %v3124, 0.0
        %v3135 = vcombine.high %v3131, 0.0
        %v3136 = vcombine.high %v437, 0.0
        %v3138 = vunpack.c.l.s4 1983009808
        %v3139 = vunpack.c.0.s8 %v3138
        %v3140 = vlaneseq
        %v3141 = vshrl.u32 %v3140, 7
        %v3142 = vsub.s32 %v3139, %v3141
        %v3143 = vrot.slane %v437, %v3142
        %v3145 = vunpack.c.l.s4 1983009808
        %v3146 = vunpack.c.0.s8 %v3145
        %v3147 = vlaneseq
        %v3148 = vshrl.u32 %v3147, 7
        %v3149 = vsub.s32 %v3146, %v3148
        %v3150 = vrot.slane %v3136, %v3149
        %v3151 = vcombine.high %v3143, 0.0
        %v3153 = vunpack.c.l.s4 1934713408
        %v3154 = vunpack.c.0.s8 %v3153
        %v3155 = vlaneseq
        %v3156 = vshrl.u32 %v3155, 7
        %v3157 = vsub.s32 %v3154, %v3156
        %v3158 = vrot.slane %v3143, %v3157
        %v3160 = vunpack.c.l.s4 1934713408
        %v3161 = vunpack.c.0.s8 %v3160
        %v3162 = vlaneseq
        %v3163 = vshrl.u32 %v3162, 7
        %v3164 = vsub.s32 %v3161, %v3163
        %v3165 = vrot.slane %v3151, %v3164
        %v3166 = vcombine.high %v3150, 0.0
        %v3168 = vunpack.c.l.s4 1934713408
        %v3169 = vunpack.c.0.s8 %v3168
        %v3170 = vlaneseq
        %v3171 = vshrl.u32 %v3170, 7
        %v3172 = vsub.s32 %v3169, %v3171
        %v3173 = vrot.slane %v3150, %v3172
        %v3175 = vunpack.c.l.s4 1934713408
        %v3176 = vunpack.c.0.s8 %v3175
        %v3177 = vlaneseq
        %v3178 = vshrl.u32 %v3177, 7
        %v3179 = vsub.s32 %v3176, %v3178
        %v3180 = vrot.slane %v3166, %v3179
        %v3181 = vcombine.high %v3158, 0.0
        %v3182 = vcombine.high %v3165, 0.0
        %v3183 = vcombine.high %v3173, 0.0
        %v3184 = vcombine.high %v3180, 0.0
        %v3185 = vcombine.high %v441, 0.0
        %v3187 = vunpack.c.l.s4 1983009808
        %v3188 = vunpack.c.0.s8 %v3187
        %v3189 = vlaneseq
        %v3190 = vshrl.u32 %v3189, 7
        %v3191 = vsub.s32 %v3188, %v3190
        %v3192 = vrot.slane %v441, %v3191
        %v3194 = vunpack.c.l.s4 1983009808
        %v3195 = vunpack.c.0.s8 %v3194
        %v3196 = vlaneseq
        %v3197 = vshrl.u32 %v3196, 7
        %v3198 = vsub.s32 %v3195, %v3197
        %v3199 = vrot.slane %v3185, %v3198
        %v3200 = vcombine.high %v3192, 0.0
        %v3202 = vunpack.c.l.s4 1934713408
        %v3203 = vunpack.c.0.s8 %v3202
        %v3204 = vlaneseq
        %v3205 = vshrl.u32 %v3204, 7
        %v3206 = vsub.s32 %v3203, %v3205
        %v3207 = vrot.slane %v3192, %v3206
        %v3209 = vunpack.c.l.s4 1934713408
        %v3210 = vunpack.c.0.s8 %v3209
        %v3211 = vlaneseq
        %v3212 = vshrl.u32 %v3211, 7
        %v3213 = vsub.s32 %v3210, %v3212
        %v3214 = vrot.slane %v3200, %v3213
        %v3215 = vcombine.high %v3199, 0.0
        %v3217 = vunpack.c.l.s4 1934713408
        %v3218 = vunpack.c.0.s8 %v3217
        %v3219 = vlaneseq
        %v3220 = vshrl.u32 %v3219, 7
        %v3221 = vsub.s32 %v3218, %v3220
        %v3222 = vrot.slane %v3199, %v3221
        %v3224 = vunpack.c.l.s4 1934713408
        %v3225 = vunpack.c.0.s8 %v3224
        %v3226 = vlaneseq
        %v3227 = vshrl.u32 %v3226, 7
        %v3228 = vsub.s32 %v3225, %v3227
        %v3229 = vrot.slane %v3215, %v3228
        %v3230 = vcombine.high %v3207, 0.0
        %v3231 = vcombine.high %v3214, 0.0
        %v3232 = vcombine.high %v3222, 0.0
        %v3233 = vcombine.high %v3229, 0.0
        %v3234 = vcombine.high %v448, 0.0
        %v3236 = vunpack.c.l.s4 1983009808
        %v3237 = vunpack.c.0.s8 %v3236
        %v3238 = vlaneseq
        %v3239 = vshrl.u32 %v3238, 7
        %v3240 = vsub.s32 %v3237, %v3239
        %v3241 = vrot.slane %v448, %v3240
        %v3243 = vunpack.c.l.s4 1983009808
        %v3244 = vunpack.c.0.s8 %v3243
        %v3245 = vlaneseq
        %v3246 = vshrl.u32 %v3245, 7
        %v3247 = vsub.s32 %v3244, %v3246
        %v3248 = vrot.slane %v3234, %v3247
        %v3249 = vcombine.high %v3241, 0.0
        %v3251 = vunpack.c.l.s4 1934713408
        %v3252 = vunpack.c.0.s8 %v3251
        %v3253 = vlaneseq
        %v3254 = vshrl.u32 %v3253, 7
        %v3255 = vsub.s32 %v3252, %v3254
        %v3256 = vrot.slane %v3241, %v3255
        %v3258 = vunpack.c.l.s4 1934713408
        %v3259 = vunpack.c.0.s8 %v3258
        %v3260 = vlaneseq
        %v3261 = vshrl.u32 %v3260, 7
        %v3262 = vsub.s32 %v3259, %v3261
        %v3263 = vrot.slane %v3249, %v3262
        %v3264 = vcombine.high %v3248, 0.0
        %v3266 = vunpack.c.l.s4 1934713408
        %v3267 = vunpack.c.0.s8 %v3266
        %v3268 = vlaneseq
        %v3269 = vshrl.u32 %v3268, 7
        %v3270 = vsub.s32 %v3267, %v3269
        %v3271 = vrot.slane %v3248, %v3270
        %v3273 = vunpack.c.l.s4 1934713408
        %v3274 = vunpack.c.0.s8 %v3273
        %v3275 = vlaneseq
        %v3276 = vshrl.u32 %v3275, 7
        %v3277 = vsub.s32 %v3274, %v3276
        %v3278 = vrot.slane %v3264, %v3277
        %v3279 = vcombine.high %v3256, 0.0
        %v3280 = vcombine.high %v3263, 0.0
        %v3281 = vcombine.high %v3271, 0.0
        %v3282 = vcombine.high %v3278, 0.0
        %v3283 = vcombine.high %v452, 0.0
        %v3285 = vunpack.c.l.s4 1983009808
        %v3286 = vunpack.c.0.s8 %v3285
        %v3287 = vlaneseq
        %v3288 = vshrl.u32 %v3287, 7
        %v3289 = vsub.s32 %v3286, %v3288
        %v3290 = vrot.slane %v452, %v3289
        %v3292 = vunpack.c.l.s4 1983009808
        %v3293 = vunpack.c.0.s8 %v3292
        %v3294 = vlaneseq
        %v3295 = vshrl.u32 %v3294, 7
        %v3296 = vsub.s32 %v3293, %v3295
        %v3297 = vrot.slane %v3283, %v3296
        %v3298 = vcombine.high %v3290, 0.0
        %v3300 = vunpack.c.l.s4 1934713408
        %v3301 = vunpack.c.0.s8 %v3300
        %v3302 = vlaneseq
        %v3303 = vshrl.u32 %v3302, 7
        %v3304 = vsub.s32 %v3301, %v3303
        %v3305 = vrot.slane %v3290, %v3304
        %v3307 = vunpack.c.l.s4 1934713408
        %v3308 = vunpack.c.0.s8 %v3307
        %v3309 = vlaneseq
        %v3310 = vshrl.u32 %v3309, 7
        %v3311 = vsub.s32 %v3308, %v3310
        %v3312 = vrot.slane %v3298, %v3311
        %v3313 = vcombine.high %v3297, 0.0
        %v3315 = vunpack.c.l.s4 1934713408
        %v3316 = vunpack.c.0.s8 %v3315
        %v3317 = vlaneseq
        %v3318 = vshrl.u32 %v3317, 7
        %v3319 = vsub.s32 %v3316, %v3318
        %v3320 = vrot.slane %v3297, %v3319
        %v3322 = vunpack.c.l.s4 1934713408
        %v3323 = vunpack.c.0.s8 %v3322
        %v3324 = vlaneseq
        %v3325 = vshrl.u32 %v3324, 7
        %v3326 = vsub.s32 %v3323, %v3325
        %v3327 = vrot.slane %v3313, %v3326
        %v3328 = vcombine.high %v3305, 0.0
        %v3329 = vcombine.high %v3312, 0.0
        %v3330 = vcombine.high %v3320, 0.0
        %v3331 = vcombine.high %v3327, 0.0
        %v3332 = vcombine.high %v459, 0.0
        %v3334 = vunpack.c.l.s4 1983009808
        %v3335 = vunpack.c.0.s8 %v3334
        %v3336 = vlaneseq
        %v3337 = vshrl.u32 %v3336, 7
        %v3338 = vsub.s32 %v3335, %v3337
        %v3339 = vrot.slane %v459, %v3338
        %v3341 = vunpack.c.l.s4 1983009808
        %v3342 = vunpack.c.0.s8 %v3341
        %v3343 = vlaneseq
        %v3344 = vshrl.u32 %v3343, 7
        %v3345 = vsub.s32 %v3342, %v3344
        %v3346 = vrot.slane %v3332, %v3345
        %v3347 = vcombine.high %v3339, 0.0
        %v3349 = vunpack.c.l.s4 1934713408
        %v3350 = vunpack.c.0.s8 %v3349
        %v3351 = vlaneseq
        %v3352 = vshrl.u32 %v3351, 7
        %v3353 = vsub.s32 %v3350, %v3352
        %v3354 = vrot.slane %v3339, %v3353
        %v3356 = vunpack.c.l.s4 1934713408
        %v3357 = vunpack.c.0.s8 %v3356
        %v3358 = vlaneseq
        %v3359 = vshrl.u32 %v3358, 7
        %v3360 = vsub.s32 %v3357, %v3359
        %v3361 = vrot.slane %v3347, %v3360
        %v3362 = vcombine.high %v3346, 0.0
        %v3364 = vunpack.c.l.s4 1934713408
        %v3365 = vunpack.c.0.s8 %v3364
        %v3366 = vlaneseq
        %v3367 = vshrl.u32 %v3366, 7
        %v3368 = vsub.s32 %v3365, %v3367
        %v3369 = vrot.slane %v3346, %v3368
        %v3371 = vunpack.c.l.s4 1934713408
        %v3372 = vunpack.c.0.s8 %v3371
        %v3373 = vlaneseq
        %v3374 = vshrl.u32 %v3373, 7
        %v3375 = vsub.s32 %v3372, %v3374
        %v3376 = vrot.slane %v3362, %v3375
        %v3377 = vcombine.high %v3354, 0.0
        %v3378 = vcombine.high %v3361, 0.0
        %v3379 = vcombine.high %v3369, 0.0
        %v3380 = vcombine.high %v3376, 0.0
        %v3381 = vcombine.high %v463, 0.0
        %v3383 = vunpack.c.l.s4 1983009808
        %v3384 = vunpack.c.0.s8 %v3383
        %v3385 = vlaneseq
        %v3386 = vshrl.u32 %v3385, 7
        %v3387 = vsub.s32 %v3384, %v3386
        %v3388 = vrot.slane %v463, %v3387
        %v3390 = vunpack.c.l.s4 1983009808
        %v3391 = vunpack.c.0.s8 %v3390
        %v3392 = vlaneseq
        %v3393 = vshrl.u32 %v3392, 7
        %v3394 = vsub.s32 %v3391, %v3393
        %v3395 = vrot.slane %v3381, %v3394
        %v3396 = vcombine.high %v3388, 0.0
        %v3398 = vunpack.c.l.s4 1934713408
        %v3399 = vunpack.c.0.s8 %v3398
        %v3400 = vlaneseq
        %v3401 = vshrl.u32 %v3400, 7
        %v3402 = vsub.s32 %v3399, %v3401
        %v3403 = vrot.slane %v3388, %v3402
        %v3405 = vunpack.c.l.s4 1934713408
        %v3406 = vunpack.c.0.s8 %v3405
        %v3407 = vlaneseq
        %v3408 = vshrl.u32 %v3407, 7
        %v3409 = vsub.s32 %v3406, %v3408
        %v3410 = vrot.slane %v3396, %v3409
        %v3411 = vcombine.high %v3395, 0.0
        %v3413 = vunpack.c.l.s4 1934713408
        %v3414 = vunpack.c.0.s8 %v3413
        %v3415 = vlaneseq
        %v3416 = vshrl.u32 %v3415, 7
        %v3417 = vsub.s32 %v3414, %v3416
        %v3418 = vrot.slane %v3395, %v3417
        %v3420 = vunpack.c.l.s4 1934713408
        %v3421 = vunpack.c.0.s8 %v3420
        %v3422 = vlaneseq
        %v3423 = vshrl.u32 %v3422, 7
        %v3424 = vsub.s32 %v3421, %v3423
        %v3425 = vrot.slane %v3411, %v3424
        %v3426 = vcombine.high %v3403, 0.0
        %v3427 = vcombine.high %v3410, 0.0
        %v3428 = vcombine.high %v3418, 0.0
        %v3429 = vcombine.high %v3425, 0.0
        %v3430 = vcombine.high %v470, 0.0
        %v3432 = vunpack.c.l.s4 1983009808
        %v3433 = vunpack.c.0.s8 %v3432
        %v3434 = vlaneseq
        %v3435 = vshrl.u32 %v3434, 7
        %v3436 = vsub.s32 %v3433, %v3435
        %v3437 = vrot.slane %v470, %v3436
        %v3439 = vunpack.c.l.s4 1983009808
        %v3440 = vunpack.c.0.s8 %v3439
        %v3441 = vlaneseq
        %v3442 = vshrl.u32 %v3441, 7
        %v3443 = vsub.s32 %v3440, %v3442
        %v3444 = vrot.slane %v3430, %v3443
        %v3445 = vcombine.high %v3437, 0.0
        %v3447 = vunpack.c.l.s4 1934713408
        %v3448 = vunpack.c.0.s8 %v3447
        %v3449 = vlaneseq
        %v3450 = vshrl.u32 %v3449, 7
        %v3451 = vsub.s32 %v3448, %v3450
        %v3452 = vrot.slane %v3437, %v3451
        %v3454 = vunpack.c.l.s4 1934713408
        %v3455 = vunpack.c.0.s8 %v3454
        %v3456 = vlaneseq
        %v3457 = vshrl.u32 %v3456, 7
        %v3458 = vsub.s32 %v3455, %v3457
        %v3459 = vrot.slane %v3445, %v3458
        %v3460 = vcombine.high %v3444, 0.0
        %v3462 = vunpack.c.l.s4 1934713408
        %v3463 = vunpack.c.0.s8 %v3462
        %v3464 = vlaneseq
        %v3465 = vshrl.u32 %v3464, 7
        %v3466 = vsub.s32 %v3463, %v3465
        %v3467 = vrot.slane %v3444, %v3466
        %v3469 = vunpack.c.l.s4 1934713408
        %v3470 = vunpack.c.0.s8 %v3469
        %v3471 = vlaneseq
        %v3472 = vshrl.u32 %v3471, 7
        %v3473 = vsub.s32 %v3470, %v3472
        %v3474 = vrot.slane %v3460, %v3473
        %v3475 = vcombine.high %v3452, 0.0
        %v3476 = vcombine.high %v3459, 0.0
        %v3477 = vcombine.high %v3467, 0.0
        %v3478 = vcombine.high %v3474, 0.0
        %v3479 = vcombine.high %v474, 0.0
        %v3481 = vunpack.c.l.s4 1983009808
        %v3482 = vunpack.c.0.s8 %v3481
        %v3483 = vlaneseq
        %v3484 = vshrl.u32 %v3483, 7
        %v3485 = vsub.s32 %v3482, %v3484
        %v3486 = vrot.slane %v474, %v3485
        %v3488 = vunpack.c.l.s4 1983009808
        %v3489 = vunpack.c.0.s8 %v3488
        %v3490 = vlaneseq
        %v3491 = vshrl.u32 %v3490, 7
        %v3492 = vsub.s32 %v3489, %v3491
        %v3493 = vrot.slane %v3479, %v3492
        %v3494 = vcombine.high %v3486, 0.0
        %v3496 = vunpack.c.l.s4 1934713408
        %v3497 = vunpack.c.0.s8 %v3496
        %v3498 = vlaneseq
        %v3499 = vshrl.u32 %v3498, 7
        %v3500 = vsub.s32 %v3497, %v3499
        %v3501 = vrot.slane %v3486, %v3500
        %v3503 = vunpack.c.l.s4 1934713408
        %v3504 = vunpack.c.0.s8 %v3503
        %v3505 = vlaneseq
        %v3506 = vshrl.u32 %v3505, 7
        %v3507 = vsub.s32 %v3504, %v3506
        %v3508 = vrot.slane %v3494, %v3507
        %v3509 = vcombine.high %v3493, 0.0
        %v3511 = vunpack.c.l.s4 1934713408
        %v3512 = vunpack.c.0.s8 %v3511
        %v3513 = vlaneseq
        %v3514 = vshrl.u32 %v3513, 7
        %v3515 = vsub.s32 %v3512, %v3514
        %v3516 = vrot.slane %v3493, %v3515
        %v3518 = vunpack.c.l.s4 1934713408
        %v3519 = vunpack.c.0.s8 %v3518
        %v3520 = vlaneseq
        %v3521 = vshrl.u32 %v3520, 7
        %v3522 = vsub.s32 %v3519, %v3521
        %v3523 = vrot.slane %v3509, %v3522
        %v3524 = vcombine.high %v3501, 0.0
        %v3525 = vcombine.high %v3508, 0.0
        %v3526 = vcombine.high %v3516, 0.0
        %v3527 = vcombine.high %v3523, 0.0
        %v3528 = vcombine.high %v481, 0.0
        %v3530 = vunpack.c.l.s4 1983009808
        %v3531 = vunpack.c.0.s8 %v3530
        %v3532 = vlaneseq
        %v3533 = vshrl.u32 %v3532, 7
        %v3534 = vsub.s32 %v3531, %v3533
        %v3535 = vrot.slane %v481, %v3534
        %v3537 = vunpack.c.l.s4 1983009808
        %v3538 = vunpack.c.0.s8 %v3537
        %v3539 = vlaneseq
        %v3540 = vshrl.u32 %v3539, 7
        %v3541 = vsub.s32 %v3538, %v3540
        %v3542 = vrot.slane %v3528, %v3541
        %v3543 = vcombine.high %v3535, 0.0
        %v3545 = vunpack.c.l.s4 1934713408
        %v3546 = vunpack.c.0.s8 %v3545
        %v3547 = vlaneseq
        %v3548 = vshrl.u32 %v3547, 7
        %v3549 = vsub.s32 %v3546, %v3548
        %v3550 = vrot.slane %v3535, %v3549
        %v3552 = vunpack.c.l.s4 1934713408
        %v3553 = vunpack.c.0.s8 %v3552
        %v3554 = vlaneseq
        %v3555 = vshrl.u32 %v3554, 7
        %v3556 = vsub.s32 %v3553, %v3555
        %v3557 = vrot.slane %v3543, %v3556
        %v3558 = vcombine.high %v3542, 0.0
        %v3560 = vunpack.c.l.s4 1934713408
        %v3561 = vunpack.c.0.s8 %v3560
        %v3562 = vlaneseq
        %v3563 = vshrl.u32 %v3562, 7
        %v3564 = vsub.s32 %v3561, %v3563
        %v3565 = vrot.slane %v3542, %v3564
        %v3567 = vunpack.c.l.s4 1934713408
        %v3568 = vunpack.c.0.s8 %v3567
        %v3569 = vlaneseq
        %v3570 = vshrl.u32 %v3569, 7
        %v3571 = vsub.s32 %v3568, %v3570
        %v3572 = vrot.slane %v3558, %v3571
        %v3573 = vcombine.high %v3550, 0.0
        %v3574 = vcombine.high %v3557, 0.0
        %v3575 = vcombine.high %v3565, 0.0
        %v3576 = vcombine.high %v3572, 0.0
        %v3577 = vcombine.high %v485, 0.0
        %v3579 = vunpack.c.l.s4 1983009808
        %v3580 = vunpack.c.0.s8 %v3579
        %v3581 = vlaneseq
        %v3582 = vshrl.u32 %v3581, 7
        %v3583 = vsub.s32 %v3580, %v3582
        %v3584 = vrot.slane %v485, %v3583
        %v3586 = vunpack.c.l.s4 1983009808
        %v3587 = vunpack.c.0.s8 %v3586
        %v3588 = vlaneseq
        %v3589 = vshrl.u32 %v3588, 7
        %v3590 = vsub.s32 %v3587, %v3589
        %v3591 = vrot.slane %v3577, %v3590
        %v3592 = vcombine.high %v3584, 0.0
        %v3594 = vunpack.c.l.s4 1934713408
        %v3595 = vunpack.c.0.s8 %v3594
        %v3596 = vlaneseq
        %v3597 = vshrl.u32 %v3596, 7
        %v3598 = vsub.s32 %v3595, %v3597
        %v3599 = vrot.slane %v3584, %v3598
        %v3601 = vunpack.c.l.s4 1934713408
        %v3602 = vunpack.c.0.s8 %v3601
        %v3603 = vlaneseq
        %v3604 = vshrl.u32 %v3603, 7
        %v3605 = vsub.s32 %v3602, %v3604
        %v3606 = vrot.slane %v3592, %v3605
        %v3607 = vcombine.high %v3591, 0.0
        %v3609 = vunpack.c.l.s4 1934713408
        %v3610 = vunpack.c.0.s8 %v3609
        %v3611 = vlaneseq
        %v3612 = vshrl.u32 %v3611, 7
        %v3613 = vsub.s32 %v3610, %v3612
        %v3614 = vrot.slane %v3591, %v3613
        %v3616 = vunpack.c.l.s4 1934713408
        %v3617 = vunpack.c.0.s8 %v3616
        %v3618 = vlaneseq
        %v3619 = vshrl.u32 %v3618, 7
        %v3620 = vsub.s32 %v3617, %v3619
        %v3621 = vrot.slane %v3607, %v3620
        %v3622 = vcombine.high %v3599, 0.0
        %v3623 = vcombine.high %v3606, 0.0
        %v3624 = vcombine.high %v3614, 0.0
        %v3625 = vcombine.high %v3621, 0.0
        %v3626 = vcombine.high %v492, 0.0
        %v3628 = vunpack.c.l.s4 1983009808
        %v3629 = vunpack.c.0.s8 %v3628
        %v3630 = vlaneseq
        %v3631 = vshrl.u32 %v3630, 7
        %v3632 = vsub.s32 %v3629, %v3631
        %v3633 = vrot.slane %v492, %v3632
        %v3635 = vunpack.c.l.s4 1983009808
        %v3636 = vunpack.c.0.s8 %v3635
        %v3637 = vlaneseq
        %v3638 = vshrl.u32 %v3637, 7
        %v3639 = vsub.s32 %v3636, %v3638
        %v3640 = vrot.slane %v3626, %v3639
        %v3641 = vcombine.high %v3633, 0.0
        %v3643 = vunpack.c.l.s4 1934713408
        %v3644 = vunpack.c.0.s8 %v3643
        %v3645 = vlaneseq
        %v3646 = vshrl.u32 %v3645, 7
        %v3647 = vsub.s32 %v3644, %v3646
        %v3648 = vrot.slane %v3633, %v3647
        %v3650 = vunpack.c.l.s4 1934713408
        %v3651 = vunpack.c.0.s8 %v3650
        %v3652 = vlaneseq
        %v3653 = vshrl.u32 %v3652, 7
        %v3654 = vsub.s32 %v3651, %v3653
        %v3655 = vrot.slane %v3641, %v3654
        %v3656 = vcombine.high %v3640, 0.0
        %v3658 = vunpack.c.l.s4 1934713408
        %v3659 = vunpack.c.0.s8 %v3658
        %v3660 = vlaneseq
        %v3661 = vshrl.u32 %v3660, 7
        %v3662 = vsub.s32 %v3659, %v3661
        %v3663 = vrot.slane %v3640, %v3662
        %v3665 = vunpack.c.l.s4 1934713408
        %v3666 = vunpack.c.0.s8 %v3665
        %v3667 = vlaneseq
        %v3668 = vshrl.u32 %v3667, 7
        %v3669 = vsub.s32 %v3666, %v3668
        %v3670 = vrot.slane %v3656, %v3669
        %v3671 = vcombine.high %v3648, 0.0
        %v3672 = vcombine.high %v3655, 0.0
        %v3673 = vcombine.high %v3663, 0.0
        %v3674 = vcombine.high %v3670, 0.0
        %v3675 = vcombine.high %v496, 0.0
        %v3677 = vunpack.c.l.s4 1983009808
        %v3678 = vunpack.c.0.s8 %v3677
        %v3679 = vlaneseq
        %v3680 = vshrl.u32 %v3679, 7
        %v3681 = vsub.s32 %v3678, %v3680
        %v3682 = vrot.slane %v496, %v3681
        %v3684 = vunpack.c.l.s4 1983009808
        %v3685 = vunpack.c.0.s8 %v3684
        %v3686 = vlaneseq
        %v3687 = vshrl.u32 %v3686, 7
        %v3688 = vsub.s32 %v3685, %v3687
        %v3689 = vrot.slane %v3675, %v3688
        %v3690 = vcombine.high %v3682, 0.0
        %v3692 = vunpack.c.l.s4 1934713408
        %v3693 = vunpack.c.0.s8 %v3692
        %v3694 = vlaneseq
        %v3695 = vshrl.u32 %v3694, 7
        %v3696 = vsub.s32 %v3693, %v3695
        %v3697 = vrot.slane %v3682, %v3696
        %v3699 = vunpack.c.l.s4 1934713408
        %v3700 = vunpack.c.0.s8 %v3699
        %v3701 = vlaneseq
        %v3702 = vshrl.u32 %v3701, 7
        %v3703 = vsub.s32 %v3700, %v3702
        %v3704 = vrot.slane %v3690, %v3703
        %v3705 = vcombine.high %v3689, 0.0
        %v3707 = vunpack.c.l.s4 1934713408
        %v3708 = vunpack.c.0.s8 %v3707
        %v3709 = vlaneseq
        %v3710 = vshrl.u32 %v3709, 7
        %v3711 = vsub.s32 %v3708, %v3710
        %v3712 = vrot.slane %v3689, %v3711
        %v3714 = vunpack.c.l.s4 1934713408
        %v3715 = vunpack.c.0.s8 %v3714
        %v3716 = vlaneseq
        %v3717 = vshrl.u32 %v3716, 7
        %v3718 = vsub.s32 %v3715, %v3717
        %v3719 = vrot.slane %v3705, %v3718
        %v3720 = vcombine.high %v3697, 0.0
        %v3721 = vcombine.high %v3704, 0.0
        %v3722 = vcombine.high %v3712, 0.0
        %v3723 = vcombine.high %v3719, 0.0
        %v3724 = vcombine.high %v503, 0.0
        %v3726 = vunpack.c.l.s4 1983009808
        %v3727 = vunpack.c.0.s8 %v3726
        %v3728 = vlaneseq
        %v3729 = vshrl.u32 %v3728, 7
        %v3730 = vsub.s32 %v3727, %v3729
        %v3731 = vrot.slane %v503, %v3730
        %v3733 = vunpack.c.l.s4 1983009808
        %v3734 = vunpack.c.0.s8 %v3733
        %v3735 = vlaneseq
        %v3736 = vshrl.u32 %v3735, 7
        %v3737 = vsub.s32 %v3734, %v3736
        %v3738 = vrot.slane %v3724, %v3737
        %v3739 = vcombine.high %v3731, 0.0
        %v3741 = vunpack.c.l.s4 1934713408
        %v3742 = vunpack.c.0.s8 %v3741
        %v3743 = vlaneseq
        %v3744 = vshrl.u32 %v3743, 7
        %v3745 = vsub.s32 %v3742, %v3744
        %v3746 = vrot.slane %v3731, %v3745
        %v3748 = vunpack.c.l.s4 1934713408
        %v3749 = vunpack.c.0.s8 %v3748
        %v3750 = vlaneseq
        %v3751 = vshrl.u32 %v3750, 7
        %v3752 = vsub.s32 %v3749, %v3751
        %v3753 = vrot.slane %v3739, %v3752
        %v3754 = vcombine.high %v3738, 0.0
        %v3756 = vunpack.c.l.s4 1934713408
        %v3757 = vunpack.c.0.s8 %v3756
        %v3758 = vlaneseq
        %v3759 = vshrl.u32 %v3758, 7
        %v3760 = vsub.s32 %v3757, %v3759
        %v3761 = vrot.slane %v3738, %v3760
        %v3763 = vunpack.c.l.s4 1934713408
        %v3764 = vunpack.c.0.s8 %v3763
        %v3765 = vlaneseq
        %v3766 = vshrl.u32 %v3765, 7
        %v3767 = vsub.s32 %v3764, %v3766
        %v3768 = vrot.slane %v3754, %v3767
        %v3769 = vcombine.high %v3746, 0.0
        %v3770 = vcombine.high %v3753, 0.0
        %v3771 = vcombine.high %v3761, 0.0
        %v3772 = vcombine.high %v3768, 0.0
        %v3773 = vcombine.high %v507, 0.0
        %v3775 = vunpack.c.l.s4 1983009808
        %v3776 = vunpack.c.0.s8 %v3775
        %v3777 = vlaneseq
        %v3778 = vshrl.u32 %v3777, 7
        %v3779 = vsub.s32 %v3776, %v3778
        %v3780 = vrot.slane %v507, %v3779
        %v3782 = vunpack.c.l.s4 1983009808
        %v3783 = vunpack.c.0.s8 %v3782
        %v3784 = vlaneseq
        %v3785 = vshrl.u32 %v3784, 7
        %v3786 = vsub.s32 %v3783, %v3785
        %v3787 = vrot.slane %v3773, %v3786
        %v3788 = vcombine.high %v3780, 0.0
        %v3790 = vunpack.c.l.s4 1934713408
        %v3791 = vunpack.c.0.s8 %v3790
        %v3792 = vlaneseq
        %v3793 = vshrl.u32 %v3792, 7
        %v3794 = vsub.s32 %v3791, %v3793
        %v3795 = vrot.slane %v3780, %v3794
        %v3797 = vunpack.c.l.s4 1934713408
        %v3798 = vunpack.c.0.s8 %v3797
        %v3799 = vlaneseq
        %v3800 = vshrl.u32 %v3799, 7
        %v3801 = vsub.s32 %v3798, %v3800
        %v3802 = vrot.slane %v3788, %v3801
        %v3803 = vcombine.high %v3787, 0.0
        %v3805 = vunpack.c.l.s4 1934713408
        %v3806 = vunpack.c.0.s8 %v3805
        %v3807 = vlaneseq
        %v3808 = vshrl.u32 %v3807, 7
        %v3809 = vsub.s32 %v3806, %v3808
        %v3810 = vrot.slane %v3787, %v3809
        %v3812 = vunpack.c.l.s4 1934713408
        %v3813 = vunpack.c.0.s8 %v3812
        %v3814 = vlaneseq
        %v3815 = vshrl.u32 %v3814, 7
        %v3816 = vsub.s32 %v3813, %v3815
        %v3817 = vrot.slane %v3803, %v3816
        %v3818 = vcombine.high %v3795, 0.0
        %v3819 = vcombine.high %v3802, 0.0
        %v3820 = vcombine.high %v3810, 0.0
        %v3821 = vcombine.high %v3817, 0.0
        %v3822 = vcombine.high %v514, 0.0
        %v3824 = vunpack.c.l.s4 1983009808
        %v3825 = vunpack.c.0.s8 %v3824
        %v3826 = vlaneseq
        %v3827 = vshrl.u32 %v3826, 7
        %v3828 = vsub.s32 %v3825, %v3827
        %v3829 = vrot.slane %v514, %v3828
        %v3831 = vunpack.c.l.s4 1983009808
        %v3832 = vunpack.c.0.s8 %v3831
        %v3833 = vlaneseq
        %v3834 = vshrl.u32 %v3833, 7
        %v3835 = vsub.s32 %v3832, %v3834
        %v3836 = vrot.slane %v3822, %v3835
        %v3837 = vcombine.high %v3829, 0.0
        %v3839 = vunpack.c.l.s4 1934713408
        %v3840 = vunpack.c.0.s8 %v3839
        %v3841 = vlaneseq
        %v3842 = vshrl.u32 %v3841, 7
        %v3843 = vsub.s32 %v3840, %v3842
        %v3844 = vrot.slane %v3829, %v3843
        %v3846 = vunpack.c.l.s4 1934713408
        %v3847 = vunpack.c.0.s8 %v3846
        %v3848 = vlaneseq
        %v3849 = vshrl.u32 %v3848, 7
        %v3850 = vsub.s32 %v3847, %v3849
        %v3851 = vrot.slane %v3837, %v3850
        %v3852 = vcombine.high %v3836, 0.0
        %v3854 = vunpack.c.l.s4 1934713408
        %v3855 = vunpack.c.0.s8 %v3854
        %v3856 = vlaneseq
        %v3857 = vshrl.u32 %v3856, 7
        %v3858 = vsub.s32 %v3855, %v3857
        %v3859 = vrot.slane %v3836, %v3858
        %v3861 = vunpack.c.l.s4 1934713408
        %v3862 = vunpack.c.0.s8 %v3861
        %v3863 = vlaneseq
        %v3864 = vshrl.u32 %v3863, 7
        %v3865 = vsub.s32 %v3862, %v3864
        %v3866 = vrot.slane %v3852, %v3865
        %v3867 = vcombine.high %v3844, 0.0
        %v3868 = vcombine.high %v3851, 0.0
        %v3869 = vcombine.high %v3859, 0.0
        %v3870 = vcombine.high %v3866, 0.0
        %v3871 = vcombine.high %v518, 0.0
        %v3873 = vunpack.c.l.s4 1983009808
        %v3874 = vunpack.c.0.s8 %v3873
        %v3875 = vlaneseq
        %v3876 = vshrl.u32 %v3875, 7
        %v3877 = vsub.s32 %v3874, %v3876
        %v3878 = vrot.slane %v518, %v3877
        %v3880 = vunpack.c.l.s4 1983009808
        %v3881 = vunpack.c.0.s8 %v3880
        %v3882 = vlaneseq
        %v3883 = vshrl.u32 %v3882, 7
        %v3884 = vsub.s32 %v3881, %v3883
        %v3885 = vrot.slane %v3871, %v3884
        %v3886 = vcombine.high %v3878, 0.0
        %v3888 = vunpack.c.l.s4 1934713408
        %v3889 = vunpack.c.0.s8 %v3888
        %v3890 = vlaneseq
        %v3891 = vshrl.u32 %v3890, 7
        %v3892 = vsub.s32 %v3889, %v3891
        %v3893 = vrot.slane %v3878, %v3892
        %v3895 = vunpack.c.l.s4 1934713408
        %v3896 = vunpack.c.0.s8 %v3895
        %v3897 = vlaneseq
        %v3898 = vshrl.u32 %v3897, 7
        %v3899 = vsub.s32 %v3896, %v3898
        %v3900 = vrot.slane %v3886, %v3899
        %v3901 = vcombine.high %v3885, 0.0
        %v3903 = vunpack.c.l.s4 1934713408
        %v3904 = vunpack.c.0.s8 %v3903
        %v3905 = vlaneseq
        %v3906 = vshrl.u32 %v3905, 7
        %v3907 = vsub.s32 %v3904, %v3906
        %v3908 = vrot.slane %v3885, %v3907
        %v3910 = vunpack.c.l.s4 1934713408
        %v3911 = vunpack.c.0.s8 %v3910
        %v3912 = vlaneseq
        %v3913 = vshrl.u32 %v3912, 7
        %v3914 = vsub.s32 %v3911, %v3913
        %v3915 = vrot.slane %v3901, %v3914
        %v3916 = vcombine.high %v3893, 0.0
        %v3917 = vcombine.high %v3900, 0.0
        %v3918 = vcombine.high %v3908, 0.0
        %v3919 = vcombine.high %v3915, 0.0
        %v3920 = vcombine.high %v525, 0.0
        %v3922 = vunpack.c.l.s4 1983009808
        %v3923 = vunpack.c.0.s8 %v3922
        %v3924 = vlaneseq
        %v3925 = vshrl.u32 %v3924, 7
        %v3926 = vsub.s32 %v3923, %v3925
        %v3927 = vrot.slane %v525, %v3926
        %v3929 = vunpack.c.l.s4 1983009808
        %v3930 = vunpack.c.0.s8 %v3929
        %v3931 = vlaneseq
        %v3932 = vshrl.u32 %v3931, 7
        %v3933 = vsub.s32 %v3930, %v3932
        %v3934 = vrot.slane %v3920, %v3933
        %v3935 = vcombine.high %v3927, 0.0
        %v3937 = vunpack.c.l.s4 1934713408
        %v3938 = vunpack.c.0.s8 %v3937
        %v3939 = vlaneseq
        %v3940 = vshrl.u32 %v3939, 7
        %v3941 = vsub.s32 %v3938, %v3940
        %v3942 = vrot.slane %v3927, %v3941
        %v3944 = vunpack.c.l.s4 1934713408
        %v3945 = vunpack.c.0.s8 %v3944
        %v3946 = vlaneseq
        %v3947 = vshrl.u32 %v3946, 7
        %v3948 = vsub.s32 %v3945, %v3947
        %v3949 = vrot.slane %v3935, %v3948
        %v3950 = vcombine.high %v3934, 0.0
        %v3952 = vunpack.c.l.s4 1934713408
        %v3953 = vunpack.c.0.s8 %v3952
        %v3954 = vlaneseq
        %v3955 = vshrl.u32 %v3954, 7
        %v3956 = vsub.s32 %v3953, %v3955
        %v3957 = vrot.slane %v3934, %v3956
        %v3959 = vunpack.c.l.s4 1934713408
        %v3960 = vunpack.c.0.s8 %v3959
        %v3961 = vlaneseq
        %v3962 = vshrl.u32 %v3961, 7
        %v3963 = vsub.s32 %v3960, %v3962
        %v3964 = vrot.slane %v3950, %v3963
        %v3965 = vcombine.high %v3942, 0.0
        %v3966 = vcombine.high %v3949, 0.0
        %v3967 = vcombine.high %v3957, 0.0
        %v3968 = vcombine.high %v3964, 0.0
        %v3969 = vcombine.high %v529, 0.0
        %v3971 = vunpack.c.l.s4 1983009808
        %v3972 = vunpack.c.0.s8 %v3971
        %v3973 = vlaneseq
        %v3974 = vshrl.u32 %v3973, 7
        %v3975 = vsub.s32 %v3972, %v3974
        %v3976 = vrot.slane %v529, %v3975
        %v3978 = vunpack.c.l.s4 1983009808
        %v3979 = vunpack.c.0.s8 %v3978
        %v3980 = vlaneseq
        %v3981 = vshrl.u32 %v3980, 7
        %v3982 = vsub.s32 %v3979, %v3981
        %v3983 = vrot.slane %v3969, %v3982
        %v3984 = vcombine.high %v3976, 0.0
        %v3986 = vunpack.c.l.s4 1934713408
        %v3987 = vunpack.c.0.s8 %v3986
        %v3988 = vlaneseq
        %v3989 = vshrl.u32 %v3988, 7
        %v3990 = vsub.s32 %v3987, %v3989
        %v3991 = vrot.slane %v3976, %v3990
        %v3993 = vunpack.c.l.s4 1934713408
        %v3994 = vunpack.c.0.s8 %v3993
        %v3995 = vlaneseq
        %v3996 = vshrl.u32 %v3995, 7
        %v3997 = vsub.s32 %v3994, %v3996
        %v3998 = vrot.slane %v3984, %v3997
        %v3999 = vcombine.high %v3983, 0.0
        %v4001 = vunpack.c.l.s4 1934713408
        %v4002 = vunpack.c.0.s8 %v4001
        %v4003 = vlaneseq
        %v4004 = vshrl.u32 %v4003, 7
        %v4005 = vsub.s32 %v4002, %v4004
        %v4006 = vrot.slane %v3983, %v4005
        %v4008 = vunpack.c.l.s4 1934713408
        %v4009 = vunpack.c.0.s8 %v4008
        %v4010 = vlaneseq
        %v4011 = vshrl.u32 %v4010, 7
        %v4012 = vsub.s32 %v4009, %v4011
        %v4013 = vrot.slane %v3999, %v4012
        %v4014 = vcombine.high %v3991, 0.0
        %v4015 = vcombine.high %v3998, 0.0
        %v4016 = vcombine.high %v4006, 0.0
        %v4017 = vcombine.high %v4013, 0.0
        %v4018 = vcombine.high %v536, 0.0
        %v4020 = vunpack.c.l.s4 1983009808
        %v4021 = vunpack.c.0.s8 %v4020
        %v4022 = vlaneseq
        %v4023 = vshrl.u32 %v4022, 7
        %v4024 = vsub.s32 %v4021, %v4023
        %v4025 = vrot.slane %v536, %v4024
        %v4027 = vunpack.c.l.s4 1983009808
        %v4028 = vunpack.c.0.s8 %v4027
        %v4029 = vlaneseq
        %v4030 = vshrl.u32 %v4029, 7
        %v4031 = vsub.s32 %v4028, %v4030
        %v4032 = vrot.slane %v4018, %v4031
        %v4033 = vcombine.high %v4025, 0.0
        %v4035 = vunpack.c.l.s4 1934713408
        %v4036 = vunpack.c.0.s8 %v4035
        %v4037 = vlaneseq
        %v4038 = vshrl.u32 %v4037, 7
        %v4039 = vsub.s32 %v4036, %v4038
        %v4040 = vrot.slane %v4025, %v4039
        %v4042 = vunpack.c.l.s4 1934713408
        %v4043 = vunpack.c.0.s8 %v4042
        %v4044 = vlaneseq
        %v4045 = vshrl.u32 %v4044, 7
        %v4046 = vsub.s32 %v4043, %v4045
        %v4047 = vrot.slane %v4033, %v4046
        %v4048 = vcombine.high %v4032, 0.0
        %v4050 = vunpack.c.l.s4 1934713408
        %v4051 = vunpack.c.0.s8 %v4050
        %v4052 = vlaneseq
        %v4053 = vshrl.u32 %v4052, 7
        %v4054 = vsub.s32 %v4051, %v4053
        %v4055 = vrot.slane %v4032, %v4054
        %v4057 = vunpack.c.l.s4 1934713408
        %v4058 = vunpack.c.0.s8 %v4057
        %v4059 = vlaneseq
        %v4060 = vshrl.u32 %v4059, 7
        %v4061 = vsub.s32 %v4058, %v4060
        %v4062 = vrot.slane %v4048, %v4061
        %v4063 = vcombine.high %v4040, 0.0
        %v4064 = vcombine.high %v4047, 0.0
        %v4065 = vcombine.high %v4055, 0.0
        %v4066 = vcombine.high %v4062, 0.0
        %v4067 = vcombine.high %v540, 0.0
        %v4069 = vunpack.c.l.s4 1983009808
        %v4070 = vunpack.c.0.s8 %v4069
        %v4071 = vlaneseq
        %v4072 = vshrl.u32 %v4071, 7
        %v4073 = vsub.s32 %v4070, %v4072
        %v4074 = vrot.slane %v540, %v4073
        %v4076 = vunpack.c.l.s4 1983009808
        %v4077 = vunpack.c.0.s8 %v4076
        %v4078 = vlaneseq
        %v4079 = vshrl.u32 %v4078, 7
        %v4080 = vsub.s32 %v4077, %v4079
        %v4081 = vrot.slane %v4067, %v4080
        %v4082 = vcombine.high %v4074, 0.0
        %v4084 = vunpack.c.l.s4 1934713408
        %v4085 = vunpack.c.0.s8 %v4084
        %v4086 = vlaneseq
        %v4087 = vshrl.u32 %v4086, 7
        %v4088 = vsub.s32 %v4085, %v4087
        %v4089 = vrot.slane %v4074, %v4088
        %v4091 = vunpack.c.l.s4 1934713408
        %v4092 = vunpack.c.0.s8 %v4091
        %v4093 = vlaneseq
        %v4094 = vshrl.u32 %v4093, 7
        %v4095 = vsub.s32 %v4092, %v4094
        %v4096 = vrot.slane %v4082, %v4095
        %v4097 = vcombine.high %v4081, 0.0
        %v4099 = vunpack.c.l.s4 1934713408
        %v4100 = vunpack.c.0.s8 %v4099
        %v4101 = vlaneseq
        %v4102 = vshrl.u32 %v4101, 7
        %v4103 = vsub.s32 %v4100, %v4102
        %v4104 = vrot.slane %v4081, %v4103
        %v4106 = vunpack.c.l.s4 1934713408
        %v4107 = vunpack.c.0.s8 %v4106
        %v4108 = vlaneseq
        %v4109 = vshrl.u32 %v4108, 7
        %v4110 = vsub.s32 %v4107, %v4109
        %v4111 = vrot.slane %v4097, %v4110
        %v4112 = vcombine.high %v4089, 0.0
        %v4113 = vcombine.high %v4096, 0.0
        %v4114 = vcombine.high %v4104, 0.0
        %v4115 = vcombine.high %v4111, 0.0
        %v4116 = vcombine.high %v547, 0.0
        %v4118 = vunpack.c.l.s4 1983009808
        %v4119 = vunpack.c.0.s8 %v4118
        %v4120 = vlaneseq
        %v4121 = vshrl.u32 %v4120, 7
        %v4122 = vsub.s32 %v4119, %v4121
        %v4123 = vrot.slane %v547, %v4122
        %v4125 = vunpack.c.l.s4 1983009808
        %v4126 = vunpack.c.0.s8 %v4125
        %v4127 = vlaneseq
        %v4128 = vshrl.u32 %v4127, 7
        %v4129 = vsub.s32 %v4126, %v4128
        %v4130 = vrot.slane %v4116, %v4129
        %v4131 = vcombine.high %v4123, 0.0
        %v4133 = vunpack.c.l.s4 1934713408
        %v4134 = vunpack.c.0.s8 %v4133
        %v4135 = vlaneseq
        %v4136 = vshrl.u32 %v4135, 7
        %v4137 = vsub.s32 %v4134, %v4136
        %v4138 = vrot.slane %v4123, %v4137
        %v4140 = vunpack.c.l.s4 1934713408
        %v4141 = vunpack.c.0.s8 %v4140
        %v4142 = vlaneseq
        %v4143 = vshrl.u32 %v4142, 7
        %v4144 = vsub.s32 %v4141, %v4143
        %v4145 = vrot.slane %v4131, %v4144
        %v4146 = vcombine.high %v4130, 0.0
        %v4148 = vunpack.c.l.s4 1934713408
        %v4149 = vunpack.c.0.s8 %v4148
        %v4150 = vlaneseq
        %v4151 = vshrl.u32 %v4150, 7
        %v4152 = vsub.s32 %v4149, %v4151
        %v4153 = vrot.slane %v4130, %v4152
        %v4155 = vunpack.c.l.s4 1934713408
        %v4156 = vunpack.c.0.s8 %v4155
        %v4157 = vlaneseq
        %v4158 = vshrl.u32 %v4157, 7
        %v4159 = vsub.s32 %v4156, %v4158
        %v4160 = vrot.slane %v4146, %v4159
        %v4161 = vcombine.high %v4138, 0.0
        %v4162 = vcombine.high %v4145, 0.0
        %v4163 = vcombine.high %v4153, 0.0
        %v4164 = vcombine.high %v4160, 0.0
        %v4165 = vcombine.high %v551, 0.0
        %v4167 = vunpack.c.l.s4 1983009808
        %v4168 = vunpack.c.0.s8 %v4167
        %v4169 = vlaneseq
        %v4170 = vshrl.u32 %v4169, 7
        %v4171 = vsub.s32 %v4168, %v4170
        %v4172 = vrot.slane %v551, %v4171
        %v4174 = vunpack.c.l.s4 1983009808
        %v4175 = vunpack.c.0.s8 %v4174
        %v4176 = vlaneseq
        %v4177 = vshrl.u32 %v4176, 7
        %v4178 = vsub.s32 %v4175, %v4177
        %v4179 = vrot.slane %v4165, %v4178
        %v4180 = vcombine.high %v4172, 0.0
        %v4182 = vunpack.c.l.s4 1934713408
        %v4183 = vunpack.c.0.s8 %v4182
        %v4184 = vlaneseq
        %v4185 = vshrl.u32 %v4184, 7
        %v4186 = vsub.s32 %v4183, %v4185
        %v4187 = vrot.slane %v4172, %v4186
        %v4189 = vunpack.c.l.s4 1934713408
        %v4190 = vunpack.c.0.s8 %v4189
        %v4191 = vlaneseq
        %v4192 = vshrl.u32 %v4191, 7
        %v4193 = vsub.s32 %v4190, %v4192
        %v4194 = vrot.slane %v4180, %v4193
        %v4195 = vcombine.high %v4179, 0.0
        %v4197 = vunpack.c.l.s4 1934713408
        %v4198 = vunpack.c.0.s8 %v4197
        %v4199 = vlaneseq
        %v4200 = vshrl.u32 %v4199, 7
        %v4201 = vsub.s32 %v4198, %v4200
        %v4202 = vrot.slane %v4179, %v4201
        %v4204 = vunpack.c.l.s4 1934713408
        %v4205 = vunpack.c.0.s8 %v4204
        %v4206 = vlaneseq
        %v4207 = vshrl.u32 %v4206, 7
        %v4208 = vsub.s32 %v4205, %v4207
        %v4209 = vrot.slane %v4195, %v4208
        %v4210 = vcombine.high %v4187, 0.0
        %v4211 = vcombine.high %v4194, 0.0
        %v4212 = vcombine.high %v4202, 0.0
        %v4213 = vcombine.high %v4209, 0.0
        %v4214 = vcombine.high %v558, 0.0
        %v4216 = vunpack.c.l.s4 1983009808
        %v4217 = vunpack.c.0.s8 %v4216
        %v4218 = vlaneseq
        %v4219 = vshrl.u32 %v4218, 7
        %v4220 = vsub.s32 %v4217, %v4219
        %v4221 = vrot.slane %v558, %v4220
        %v4223 = vunpack.c.l.s4 1983009808
        %v4224 = vunpack.c.0.s8 %v4223
        %v4225 = vlaneseq
        %v4226 = vshrl.u32 %v4225, 7
        %v4227 = vsub.s32 %v4224, %v4226
        %v4228 = vrot.slane %v4214, %v4227
        %v4229 = vcombine.high %v4221, 0.0
        %v4231 = vunpack.c.l.s4 1934713408
        %v4232 = vunpack.c.0.s8 %v4231
        %v4233 = vlaneseq
        %v4234 = vshrl.u32 %v4233, 7
        %v4235 = vsub.s32 %v4232, %v4234
        %v4236 = vrot.slane %v4221, %v4235
        %v4238 = vunpack.c.l.s4 1934713408
        %v4239 = vunpack.c.0.s8 %v4238
        %v4240 = vlaneseq
        %v4241 = vshrl.u32 %v4240, 7
        %v4242 = vsub.s32 %v4239, %v4241
        %v4243 = vrot.slane %v4229, %v4242
        %v4244 = vcombine.high %v4228, 0.0
        %v4246 = vunpack.c.l.s4 1934713408
        %v4247 = vunpack.c.0.s8 %v4246
        %v4248 = vlaneseq
        %v4249 = vshrl.u32 %v4248, 7
        %v4250 = vsub.s32 %v4247, %v4249
        %v4251 = vrot.slane %v4228, %v4250
        %v4253 = vunpack.c.l.s4 1934713408
        %v4254 = vunpack.c.0.s8 %v4253
        %v4255 = vlaneseq
        %v4256 = vshrl.u32 %v4255, 7
        %v4257 = vsub.s32 %v4254, %v4256
        %v4258 = vrot.slane %v4244, %v4257
        %v4259 = vcombine.high %v4236, 0.0
        %v4260 = vcombine.high %v4243, 0.0
        %v4261 = vcombine.high %v4251, 0.0
        %v4262 = vcombine.high %v4258, 0.0
        %v4263 = vcombine.high %v562, 0.0
        %v4265 = vunpack.c.l.s4 1983009808
        %v4266 = vunpack.c.0.s8 %v4265
        %v4267 = vlaneseq
        %v4268 = vshrl.u32 %v4267, 7
        %v4269 = vsub.s32 %v4266, %v4268
        %v4270 = vrot.slane %v562, %v4269
        %v4272 = vunpack.c.l.s4 1983009808
        %v4273 = vunpack.c.0.s8 %v4272
        %v4274 = vlaneseq
        %v4275 = vshrl.u32 %v4274, 7
        %v4276 = vsub.s32 %v4273, %v4275
        %v4277 = vrot.slane %v4263, %v4276
        %v4278 = vcombine.high %v4270, 0.0
        %v4280 = vunpack.c.l.s4 1934713408
        %v4281 = vunpack.c.0.s8 %v4280
        %v4282 = vlaneseq
        %v4283 = vshrl.u32 %v4282, 7
        %v4284 = vsub.s32 %v4281, %v4283
        %v4285 = vrot.slane %v4270, %v4284
        %v4287 = vunpack.c.l.s4 1934713408
        %v4288 = vunpack.c.0.s8 %v4287
        %v4289 = vlaneseq
        %v4290 = vshrl.u32 %v4289, 7
        %v4291 = vsub.s32 %v4288, %v4290
        %v4292 = vrot.slane %v4278, %v4291
        %v4293 = vcombine.high %v4277, 0.0
        %v4295 = vunpack.c.l.s4 1934713408
        %v4296 = vunpack.c.0.s8 %v4295
        %v4297 = vlaneseq
        %v4298 = vshrl.u32 %v4297, 7
        %v4299 = vsub.s32 %v4296, %v4298
        %v4300 = vrot.slane %v4277, %v4299
        %v4302 = vunpack.c.l.s4 1934713408
        %v4303 = vunpack.c.0.s8 %v4302
        %v4304 = vlaneseq
        %v4305 = vshrl.u32 %v4304, 7
        %v4306 = vsub.s32 %v4303, %v4305
        %v4307 = vrot.slane %v4293, %v4306
        %v4308 = vcombine.high %v4285, 0.0
        %v4309 = vcombine.high %v4292, 0.0
        %v4310 = vcombine.high %v4300, 0.0
        %v4311 = vcombine.high %v4307, 0.0
        %v4312 = vcombine.high %v569, 0.0
        %v4314 = vunpack.c.l.s4 1983009808
        %v4315 = vunpack.c.0.s8 %v4314
        %v4316 = vlaneseq
        %v4317 = vshrl.u32 %v4316, 7
        %v4318 = vsub.s32 %v4315, %v4317
        %v4319 = vrot.slane %v569, %v4318
        %v4321 = vunpack.c.l.s4 1983009808
        %v4322 = vunpack.c.0.s8 %v4321
        %v4323 = vlaneseq
        %v4324 = vshrl.u32 %v4323, 7
        %v4325 = vsub.s32 %v4322, %v4324
        %v4326 = vrot.slane %v4312, %v4325
        %v4327 = vcombine.high %v4319, 0.0
        %v4329 = vunpack.c.l.s4 1934713408
        %v4330 = vunpack.c.0.s8 %v4329
        %v4331 = vlaneseq
        %v4332 = vshrl.u32 %v4331, 7
        %v4333 = vsub.s32 %v4330, %v4332
        %v4334 = vrot.slane %v4319, %v4333
        %v4336 = vunpack.c.l.s4 1934713408
        %v4337 = vunpack.c.0.s8 %v4336
        %v4338 = vlaneseq
        %v4339 = vshrl.u32 %v4338, 7
        %v4340 = vsub.s32 %v4337, %v4339
        %v4341 = vrot.slane %v4327, %v4340
        %v4342 = vcombine.high %v4326, 0.0
        %v4344 = vunpack.c.l.s4 1934713408
        %v4345 = vunpack.c.0.s8 %v4344
        %v4346 = vlaneseq
        %v4347 = vshrl.u32 %v4346, 7
        %v4348 = vsub.s32 %v4345, %v4347
        %v4349 = vrot.slane %v4326, %v4348
        %v4351 = vunpack.c.l.s4 1934713408
        %v4352 = vunpack.c.0.s8 %v4351
        %v4353 = vlaneseq
        %v4354 = vshrl.u32 %v4353, 7
        %v4355 = vsub.s32 %v4352, %v4354
        %v4356 = vrot.slane %v4342, %v4355
        %v4357 = vcombine.high %v4334, 0.0
        %v4358 = vcombine.high %v4341, 0.0
        %v4359 = vcombine.high %v4349, 0.0
        %v4360 = vcombine.high %v4356, 0.0
        %v4361 = vcombine.high %v573, 0.0
        %v4363 = vunpack.c.l.s4 1983009808
        %v4364 = vunpack.c.0.s8 %v4363
        %v4365 = vlaneseq
        %v4366 = vshrl.u32 %v4365, 7
        %v4367 = vsub.s32 %v4364, %v4366
        %v4368 = vrot.slane %v573, %v4367
        %v4370 = vunpack.c.l.s4 1983009808
        %v4371 = vunpack.c.0.s8 %v4370
        %v4372 = vlaneseq
        %v4373 = vshrl.u32 %v4372, 7
        %v4374 = vsub.s32 %v4371, %v4373
        %v4375 = vrot.slane %v4361, %v4374
        %v4376 = vcombine.high %v4368, 0.0
        %v4378 = vunpack.c.l.s4 1934713408
        %v4379 = vunpack.c.0.s8 %v4378
        %v4380 = vlaneseq
        %v4381 = vshrl.u32 %v4380, 7
        %v4382 = vsub.s32 %v4379, %v4381
        %v4383 = vrot.slane %v4368, %v4382
        %v4385 = vunpack.c.l.s4 1934713408
        %v4386 = vunpack.c.0.s8 %v4385
        %v4387 = vlaneseq
        %v4388 = vshrl.u32 %v4387, 7
        %v4389 = vsub.s32 %v4386, %v4388
        %v4390 = vrot.slane %v4376, %v4389
        %v4391 = vcombine.high %v4375, 0.0
        %v4393 = vunpack.c.l.s4 1934713408
        %v4394 = vunpack.c.0.s8 %v4393
        %v4395 = vlaneseq
        %v4396 = vshrl.u32 %v4395, 7
        %v4397 = vsub.s32 %v4394, %v4396
        %v4398 = vrot.slane %v4375, %v4397
        %v4400 = vunpack.c.l.s4 1934713408
        %v4401 = vunpack.c.0.s8 %v4400
        %v4402 = vlaneseq
        %v4403 = vshrl.u32 %v4402, 7
        %v4404 = vsub.s32 %v4401, %v4403
        %v4405 = vrot.slane %v4391, %v4404
        %v4406 = vcombine.high %v4383, 0.0
        %v4407 = vcombine.high %v4390, 0.0
        %v4408 = vcombine.high %v4398, 0.0
        %v4409 = vcombine.high %v4405, 0.0
        %v4410 = vcombine.high %v580, 0.0
        %v4412 = vunpack.c.l.s4 1983009808
        %v4413 = vunpack.c.0.s8 %v4412
        %v4414 = vlaneseq
        %v4415 = vshrl.u32 %v4414, 7
        %v4416 = vsub.s32 %v4413, %v4415
        %v4417 = vrot.slane %v580, %v4416
        %v4419 = vunpack.c.l.s4 1983009808
        %v4420 = vunpack.c.0.s8 %v4419
        %v4421 = vlaneseq
        %v4422 = vshrl.u32 %v4421, 7
        %v4423 = vsub.s32 %v4420, %v4422
        %v4424 = vrot.slane %v4410, %v4423
        %v4425 = vcombine.high %v4417, 0.0
        %v4427 = vunpack.c.l.s4 1934713408
        %v4428 = vunpack.c.0.s8 %v4427
        %v4429 = vlaneseq
        %v4430 = vshrl.u32 %v4429, 7
        %v4431 = vsub.s32 %v4428, %v4430
        %v4432 = vrot.slane %v4417, %v4431
        %v4434 = vunpack.c.l.s4 1934713408
        %v4435 = vunpack.c.0.s8 %v4434
        %v4436 = vlaneseq
        %v4437 = vshrl.u32 %v4436, 7
        %v4438 = vsub.s32 %v4435, %v4437
        %v4439 = vrot.slane %v4425, %v4438
        %v4440 = vcombine.high %v4424, 0.0
        %v4442 = vunpack.c.l.s4 1934713408
        %v4443 = vunpack.c.0.s8 %v4442
        %v4444 = vlaneseq
        %v4445 = vshrl.u32 %v4444, 7
        %v4446 = vsub.s32 %v4443, %v4445
        %v4447 = vrot.slane %v4424, %v4446
        %v4449 = vunpack.c.l.s4 1934713408
        %v4450 = vunpack.c.0.s8 %v4449
        %v4451 = vlaneseq
        %v4452 = vshrl.u32 %v4451, 7
        %v4453 = vsub.s32 %v4450, %v4452
        %v4454 = vrot.slane %v4440, %v4453
        %v4455 = vcombine.high %v4432, 0.0
        %v4456 = vcombine.high %v4439, 0.0
        %v4457 = vcombine.high %v4447, 0.0
        %v4458 = vcombine.high %v4454, 0.0
        %v4459 = vcombine.high %v584, 0.0
        %v4461 = vunpack.c.l.s4 1983009808
        %v4462 = vunpack.c.0.s8 %v4461
        %v4463 = vlaneseq
        %v4464 = vshrl.u32 %v4463, 7
        %v4465 = vsub.s32 %v4462, %v4464
        %v4466 = vrot.slane %v584, %v4465
        %v4468 = vunpack.c.l.s4 1983009808
        %v4469 = vunpack.c.0.s8 %v4468
        %v4470 = vlaneseq
        %v4471 = vshrl.u32 %v4470, 7
        %v4472 = vsub.s32 %v4469, %v4471
        %v4473 = vrot.slane %v4459, %v4472
        %v4474 = vcombine.high %v4466, 0.0
        %v4476 = vunpack.c.l.s4 1934713408
        %v4477 = vunpack.c.0.s8 %v4476
        %v4478 = vlaneseq
        %v4479 = vshrl.u32 %v4478, 7
        %v4480 = vsub.s32 %v4477, %v4479
        %v4481 = vrot.slane %v4466, %v4480
        %v4483 = vunpack.c.l.s4 1934713408
        %v4484 = vunpack.c.0.s8 %v4483
        %v4485 = vlaneseq
        %v4486 = vshrl.u32 %v4485, 7
        %v4487 = vsub.s32 %v4484, %v4486
        %v4488 = vrot.slane %v4474, %v4487
        %v4489 = vcombine.high %v4473, 0.0
        %v4491 = vunpack.c.l.s4 1934713408
        %v4492 = vunpack.c.0.s8 %v4491
        %v4493 = vlaneseq
        %v4494 = vshrl.u32 %v4493, 7
        %v4495 = vsub.s32 %v4492, %v4494
        %v4496 = vrot.slane %v4473, %v4495
        %v4498 = vunpack.c.l.s4 1934713408
        %v4499 = vunpack.c.0.s8 %v4498
        %v4500 = vlaneseq
        %v4501 = vshrl.u32 %v4500, 7
        %v4502 = vsub.s32 %v4499, %v4501
        %v4503 = vrot.slane %v4489, %v4502
        %v4504 = vcombine.high %v4481, 0.0
        %v4505 = vcombine.high %v4488, 0.0
        %v4506 = vcombine.high %v4496, 0.0
        %v4507 = vcombine.high %v4503, 0.0
        %v4508 = vcombine.high %v591, 0.0
        %v4510 = vunpack.c.l.s4 1983009808
        %v4511 = vunpack.c.0.s8 %v4510
        %v4512 = vlaneseq
        %v4513 = vshrl.u32 %v4512, 7
        %v4514 = vsub.s32 %v4511, %v4513
        %v4515 = vrot.slane %v591, %v4514
        %v4517 = vunpack.c.l.s4 1983009808
        %v4518 = vunpack.c.0.s8 %v4517
        %v4519 = vlaneseq
        %v4520 = vshrl.u32 %v4519, 7
        %v4521 = vsub.s32 %v4518, %v4520
        %v4522 = vrot.slane %v4508, %v4521
        %v4523 = vcombine.high %v4515, 0.0
        %v4525 = vunpack.c.l.s4 1934713408
        %v4526 = vunpack.c.0.s8 %v4525
        %v4527 = vlaneseq
        %v4528 = vshrl.u32 %v4527, 7
        %v4529 = vsub.s32 %v4526, %v4528
        %v4530 = vrot.slane %v4515, %v4529
        %v4532 = vunpack.c.l.s4 1934713408
        %v4533 = vunpack.c.0.s8 %v4532
        %v4534 = vlaneseq
        %v4535 = vshrl.u32 %v4534, 7
        %v4536 = vsub.s32 %v4533, %v4535
        %v4537 = vrot.slane %v4523, %v4536
        %v4538 = vcombine.high %v4522, 0.0
        %v4540 = vunpack.c.l.s4 1934713408
        %v4541 = vunpack.c.0.s8 %v4540
        %v4542 = vlaneseq
        %v4543 = vshrl.u32 %v4542, 7
        %v4544 = vsub.s32 %v4541, %v4543
        %v4545 = vrot.slane %v4522, %v4544
        %v4547 = vunpack.c.l.s4 1934713408
        %v4548 = vunpack.c.0.s8 %v4547
        %v4549 = vlaneseq
        %v4550 = vshrl.u32 %v4549, 7
        %v4551 = vsub.s32 %v4548, %v4550
        %v4552 = vrot.slane %v4538, %v4551
        %v4553 = vcombine.high %v4530, 0.0
        %v4554 = vcombine.high %v4537, 0.0
        %v4555 = vcombine.high %v4545, 0.0
        %v4556 = vcombine.high %v4552, 0.0
        %v4557 = vcombine.high %v595, 0.0
        %v4559 = vunpack.c.l.s4 1983009808
        %v4560 = vunpack.c.0.s8 %v4559
        %v4561 = vlaneseq
        %v4562 = vshrl.u32 %v4561, 7
        %v4563 = vsub.s32 %v4560, %v4562
        %v4564 = vrot.slane %v595, %v4563
        %v4566 = vunpack.c.l.s4 1983009808
        %v4567 = vunpack.c.0.s8 %v4566
        %v4568 = vlaneseq
        %v4569 = vshrl.u32 %v4568, 7
        %v4570 = vsub.s32 %v4567, %v4569
        %v4571 = vrot.slane %v4557, %v4570
        %v4572 = vcombine.high %v4564, 0.0
        %v4574 = vunpack.c.l.s4 1934713408
        %v4575 = vunpack.c.0.s8 %v4574
        %v4576 = vlaneseq
        %v4577 = vshrl.u32 %v4576, 7
        %v4578 = vsub.s32 %v4575, %v4577
        %v4579 = vrot.slane %v4564, %v4578
        %v4581 = vunpack.c.l.s4 1934713408
        %v4582 = vunpack.c.0.s8 %v4581
        %v4583 = vlaneseq
        %v4584 = vshrl.u32 %v4583, 7
        %v4585 = vsub.s32 %v4582, %v4584
        %v4586 = vrot.slane %v4572, %v4585
        %v4587 = vcombine.high %v4571, 0.0
        %v4589 = vunpack.c.l.s4 1934713408
        %v4590 = vunpack.c.0.s8 %v4589
        %v4591 = vlaneseq
        %v4592 = vshrl.u32 %v4591, 7
        %v4593 = vsub.s32 %v4590, %v4592
        %v4594 = vrot.slane %v4571, %v4593
        %v4596 = vunpack.c.l.s4 1934713408
        %v4597 = vunpack.c.0.s8 %v4596
        %v4598 = vlaneseq
        %v4599 = vshrl.u32 %v4598, 7
        %v4600 = vsub.s32 %v4597, %v4599
        %v4601 = vrot.slane %v4587, %v4600
        %v4602 = vcombine.high %v4579, 0.0
        %v4603 = vcombine.high %v4586, 0.0
        %v4604 = vcombine.high %v4594, 0.0
        %v4605 = vcombine.high %v4601, 0.0
        %v4606 = vcombine.high %v602, 0.0
        %v4608 = vunpack.c.l.s4 1983009808
        %v4609 = vunpack.c.0.s8 %v4608
        %v4610 = vlaneseq
        %v4611 = vshrl.u32 %v4610, 7
        %v4612 = vsub.s32 %v4609, %v4611
        %v4613 = vrot.slane %v602, %v4612
        %v4615 = vunpack.c.l.s4 1983009808
        %v4616 = vunpack.c.0.s8 %v4615
        %v4617 = vlaneseq
        %v4618 = vshrl.u32 %v4617, 7
        %v4619 = vsub.s32 %v4616, %v4618
        %v4620 = vrot.slane %v4606, %v4619
        %v4621 = vcombine.high %v4613, 0.0
        %v4623 = vunpack.c.l.s4 1934713408
        %v4624 = vunpack.c.0.s8 %v4623
        %v4625 = vlaneseq
        %v4626 = vshrl.u32 %v4625, 7
        %v4627 = vsub.s32 %v4624, %v4626
        %v4628 = vrot.slane %v4613, %v4627
        %v4630 = vunpack.c.l.s4 1934713408
        %v4631 = vunpack.c.0.s8 %v4630
        %v4632 = vlaneseq
        %v4633 = vshrl.u32 %v4632, 7
        %v4634 = vsub.s32 %v4631, %v4633
        %v4635 = vrot.slane %v4621, %v4634
        %v4636 = vcombine.high %v4620, 0.0
        %v4638 = vunpack.c.l.s4 1934713408
        %v4639 = vunpack.c.0.s8 %v4638
        %v4640 = vlaneseq
        %v4641 = vshrl.u32 %v4640, 7
        %v4642 = vsub.s32 %v4639, %v4641
        %v4643 = vrot.slane %v4620, %v4642
        %v4645 = vunpack.c.l.s4 1934713408
        %v4646 = vunpack.c.0.s8 %v4645
        %v4647 = vlaneseq
        %v4648 = vshrl.u32 %v4647, 7
        %v4649 = vsub.s32 %v4646, %v4648
        %v4650 = vrot.slane %v4636, %v4649
        %v4651 = vcombine.high %v4628, 0.0
        %v4652 = vcombine.high %v4635, 0.0
        %v4653 = vcombine.high %v4643, 0.0
        %v4654 = vcombine.high %v4650, 0.0
        %v4655 = vcombine.high %v606, 0.0
        %v4657 = vunpack.c.l.s4 1983009808
        %v4658 = vunpack.c.0.s8 %v4657
        %v4659 = vlaneseq
        %v4660 = vshrl.u32 %v4659, 7
        %v4661 = vsub.s32 %v4658, %v4660
        %v4662 = vrot.slane %v606, %v4661
        %v4664 = vunpack.c.l.s4 1983009808
        %v4665 = vunpack.c.0.s8 %v4664
        %v4666 = vlaneseq
        %v4667 = vshrl.u32 %v4666, 7
        %v4668 = vsub.s32 %v4665, %v4667
        %v4669 = vrot.slane %v4655, %v4668
        %v4670 = vcombine.high %v4662, 0.0
        %v4672 = vunpack.c.l.s4 1934713408
        %v4673 = vunpack.c.0.s8 %v4672
        %v4674 = vlaneseq
        %v4675 = vshrl.u32 %v4674, 7
        %v4676 = vsub.s32 %v4673, %v4675
        %v4677 = vrot.slane %v4662, %v4676
        %v4679 = vunpack.c.l.s4 1934713408
        %v4680 = vunpack.c.0.s8 %v4679
        %v4681 = vlaneseq
        %v4682 = vshrl.u32 %v4681, 7
        %v4683 = vsub.s32 %v4680, %v4682
        %v4684 = vrot.slane %v4670, %v4683
        %v4685 = vcombine.high %v4669, 0.0
        %v4687 = vunpack.c.l.s4 1934713408
        %v4688 = vunpack.c.0.s8 %v4687
        %v4689 = vlaneseq
        %v4690 = vshrl.u32 %v4689, 7
        %v4691 = vsub.s32 %v4688, %v4690
        %v4692 = vrot.slane %v4669, %v4691
        %v4694 = vunpack.c.l.s4 1934713408
        %v4695 = vunpack.c.0.s8 %v4694
        %v4696 = vlaneseq
        %v4697 = vshrl.u32 %v4696, 7
        %v4698 = vsub.s32 %v4695, %v4697
        %v4699 = vrot.slane %v4685, %v4698
        %v4700 = vcombine.high %v4677, 0.0
        %v4701 = vcombine.high %v4684, 0.0
        %v4702 = vcombine.high %v4692, 0.0
        %v4703 = vcombine.high %v4699, 0.0
        %v4704 = vcombine.high %v613, 0.0
        %v4706 = vunpack.c.l.s4 1983009808
        %v4707 = vunpack.c.0.s8 %v4706
        %v4708 = vlaneseq
        %v4709 = vshrl.u32 %v4708, 7
        %v4710 = vsub.s32 %v4707, %v4709
        %v4711 = vrot.slane %v613, %v4710
        %v4713 = vunpack.c.l.s4 1983009808
        %v4714 = vunpack.c.0.s8 %v4713
        %v4715 = vlaneseq
        %v4716 = vshrl.u32 %v4715, 7
        %v4717 = vsub.s32 %v4714, %v4716
        %v4718 = vrot.slane %v4704, %v4717
        %v4719 = vcombine.high %v4711, 0.0
        %v4721 = vunpack.c.l.s4 1934713408
        %v4722 = vunpack.c.0.s8 %v4721
        %v4723 = vlaneseq
        %v4724 = vshrl.u32 %v4723, 7
        %v4725 = vsub.s32 %v4722, %v4724
        %v4726 = vrot.slane %v4711, %v4725
        %v4728 = vunpack.c.l.s4 1934713408
        %v4729 = vunpack.c.0.s8 %v4728
        %v4730 = vlaneseq
        %v4731 = vshrl.u32 %v4730, 7
        %v4732 = vsub.s32 %v4729, %v4731
        %v4733 = vrot.slane %v4719, %v4732
        %v4734 = vcombine.high %v4718, 0.0
        %v4736 = vunpack.c.l.s4 1934713408
        %v4737 = vunpack.c.0.s8 %v4736
        %v4738 = vlaneseq
        %v4739 = vshrl.u32 %v4738, 7
        %v4740 = vsub.s32 %v4737, %v4739
        %v4741 = vrot.slane %v4718, %v4740
        %v4743 = vunpack.c.l.s4 1934713408
        %v4744 = vunpack.c.0.s8 %v4743
        %v4745 = vlaneseq
        %v4746 = vshrl.u32 %v4745, 7
        %v4747 = vsub.s32 %v4744, %v4746
        %v4748 = vrot.slane %v4734, %v4747
        %v4749 = vcombine.high %v4726, 0.0
        %v4750 = vcombine.high %v4733, 0.0
        %v4751 = vcombine.high %v4741, 0.0
        %v4752 = vcombine.high %v4748, 0.0
        %v4753 = vcombine.high %v617, 0.0
        %v4755 = vunpack.c.l.s4 1983009808
        %v4756 = vunpack.c.0.s8 %v4755
        %v4757 = vlaneseq
        %v4758 = vshrl.u32 %v4757, 7
        %v4759 = vsub.s32 %v4756, %v4758
        %v4760 = vrot.slane %v617, %v4759
        %v4762 = vunpack.c.l.s4 1983009808
        %v4763 = vunpack.c.0.s8 %v4762
        %v4764 = vlaneseq
        %v4765 = vshrl.u32 %v4764, 7
        %v4766 = vsub.s32 %v4763, %v4765
        %v4767 = vrot.slane %v4753, %v4766
        %v4768 = vcombine.high %v4760, 0.0
        %v4770 = vunpack.c.l.s4 1934713408
        %v4771 = vunpack.c.0.s8 %v4770
        %v4772 = vlaneseq
        %v4773 = vshrl.u32 %v4772, 7
        %v4774 = vsub.s32 %v4771, %v4773
        %v4775 = vrot.slane %v4760, %v4774
        %v4777 = vunpack.c.l.s4 1934713408
        %v4778 = vunpack.c.0.s8 %v4777
        %v4779 = vlaneseq
        %v4780 = vshrl.u32 %v4779, 7
        %v4781 = vsub.s32 %v4778, %v4780
        %v4782 = vrot.slane %v4768, %v4781
        %v4783 = vcombine.high %v4767, 0.0
        %v4785 = vunpack.c.l.s4 1934713408
        %v4786 = vunpack.c.0.s8 %v4785
        %v4787 = vlaneseq
        %v4788 = vshrl.u32 %v4787, 7
        %v4789 = vsub.s32 %v4786, %v4788
        %v4790 = vrot.slane %v4767, %v4789
        %v4792 = vunpack.c.l.s4 1934713408
        %v4793 = vunpack.c.0.s8 %v4792
        %v4794 = vlaneseq
        %v4795 = vshrl.u32 %v4794, 7
        %v4796 = vsub.s32 %v4793, %v4795
        %v4797 = vrot.slane %v4783, %v4796
        %v4798 = vcombine.high %v4775, 0.0
        %v4799 = vcombine.high %v4782, 0.0
        %v4800 = vcombine.high %v4790, 0.0
        %v4801 = vcombine.high %v4797, 0.0
        %v4802 = vcombine.high %v624, 0.0
        %v4804 = vunpack.c.l.s4 1983009808
        %v4805 = vunpack.c.0.s8 %v4804
        %v4806 = vlaneseq
        %v4807 = vshrl.u32 %v4806, 7
        %v4808 = vsub.s32 %v4805, %v4807
        %v4809 = vrot.slane %v624, %v4808
        %v4811 = vunpack.c.l.s4 1983009808
        %v4812 = vunpack.c.0.s8 %v4811
        %v4813 = vlaneseq
        %v4814 = vshrl.u32 %v4813, 7
        %v4815 = vsub.s32 %v4812, %v4814
        %v4816 = vrot.slane %v4802, %v4815
        %v4817 = vcombine.high %v4809, 0.0
        %v4819 = vunpack.c.l.s4 1934713408
        %v4820 = vunpack.c.0.s8 %v4819
        %v4821 = vlaneseq
        %v4822 = vshrl.u32 %v4821, 7
        %v4823 = vsub.s32 %v4820, %v4822
        %v4824 = vrot.slane %v4809, %v4823
        %v4826 = vunpack.c.l.s4 1934713408
        %v4827 = vunpack.c.0.s8 %v4826
        %v4828 = vlaneseq
        %v4829 = vshrl.u32 %v4828, 7
        %v4830 = vsub.s32 %v4827, %v4829
        %v4831 = vrot.slane %v4817, %v4830
        %v4832 = vcombine.high %v4816, 0.0
        %v4834 = vunpack.c.l.s4 1934713408
        %v4835 = vunpack.c.0.s8 %v4834
        %v4836 = vlaneseq
        %v4837 = vshrl.u32 %v4836, 7
        %v4838 = vsub.s32 %v4835, %v4837
        %v4839 = vrot.slane %v4816, %v4838
        %v4841 = vunpack.c.l.s4 1934713408
        %v4842 = vunpack.c.0.s8 %v4841
        %v4843 = vlaneseq
        %v4844 = vshrl.u32 %v4843, 7
        %v4845 = vsub.s32 %v4842, %v4844
        %v4846 = vrot.slane %v4832, %v4845
        %v4847 = vcombine.high %v4824, 0.0
        %v4848 = vcombine.high %v4831, 0.0
        %v4849 = vcombine.high %v4839, 0.0
        %v4850 = vcombine.high %v4846, 0.0
        %v4851 = vcombine.high %v628, 0.0
        %v4853 = vunpack.c.l.s4 1983009808
        %v4854 = vunpack.c.0.s8 %v4853
        %v4855 = vlaneseq
        %v4856 = vshrl.u32 %v4855, 7
        %v4857 = vsub.s32 %v4854, %v4856
        %v4858 = vrot.slane %v628, %v4857
        %v4860 = vunpack.c.l.s4 1983009808
        %v4861 = vunpack.c.0.s8 %v4860
        %v4862 = vlaneseq
        %v4863 = vshrl.u32 %v4862, 7
        %v4864 = vsub.s32 %v4861, %v4863
        %v4865 = vrot.slane %v4851, %v4864
        %v4866 = vcombine.high %v4858, 0.0
        %v4868 = vunpack.c.l.s4 1934713408
        %v4869 = vunpack.c.0.s8 %v4868
        %v4870 = vlaneseq
        %v4871 = vshrl.u32 %v4870, 7
        %v4872 = vsub.s32 %v4869, %v4871
        %v4873 = vrot.slane %v4858, %v4872
        %v4875 = vunpack.c.l.s4 1934713408
        %v4876 = vunpack.c.0.s8 %v4875
        %v4877 = vlaneseq
        %v4878 = vshrl.u32 %v4877, 7
        %v4879 = vsub.s32 %v4876, %v4878
        %v4880 = vrot.slane %v4866, %v4879
        %v4881 = vcombine.high %v4865, 0.0
        %v4883 = vunpack.c.l.s4 1934713408
        %v4884 = vunpack.c.0.s8 %v4883
        %v4885 = vlaneseq
        %v4886 = vshrl.u32 %v4885, 7
        %v4887 = vsub.s32 %v4884, %v4886
        %v4888 = vrot.slane %v4865, %v4887
        %v4890 = vunpack.c.l.s4 1934713408
        %v4891 = vunpack.c.0.s8 %v4890
        %v4892 = vlaneseq
        %v4893 = vshrl.u32 %v4892, 7
        %v4894 = vsub.s32 %v4891, %v4893
        %v4895 = vrot.slane %v4881, %v4894
        %v4896 = vcombine.high %v4873, 0.0
        %v4897 = vcombine.high %v4880, 0.0
        %v4898 = vcombine.high %v4888, 0.0
        %v4899 = vcombine.high %v4895, 0.0
        %v4900 = vcombine.high %v635, 0.0
        %v4902 = vunpack.c.l.s4 1983009808
        %v4903 = vunpack.c.0.s8 %v4902
        %v4904 = vlaneseq
        %v4905 = vshrl.u32 %v4904, 7
        %v4906 = vsub.s32 %v4903, %v4905
        %v4907 = vrot.slane %v635, %v4906
        %v4909 = vunpack.c.l.s4 1983009808
        %v4910 = vunpack.c.0.s8 %v4909
        %v4911 = vlaneseq
        %v4912 = vshrl.u32 %v4911, 7
        %v4913 = vsub.s32 %v4910, %v4912
        %v4914 = vrot.slane %v4900, %v4913
        %v4915 = vcombine.high %v4907, 0.0
        %v4917 = vunpack.c.l.s4 1934713408
        %v4918 = vunpack.c.0.s8 %v4917
        %v4919 = vlaneseq
        %v4920 = vshrl.u32 %v4919, 7
        %v4921 = vsub.s32 %v4918, %v4920
        %v4922 = vrot.slane %v4907, %v4921
        %v4924 = vunpack.c.l.s4 1934713408
        %v4925 = vunpack.c.0.s8 %v4924
        %v4926 = vlaneseq
        %v4927 = vshrl.u32 %v4926, 7
        %v4928 = vsub.s32 %v4925, %v4927
        %v4929 = vrot.slane %v4915, %v4928
        %v4930 = vcombine.high %v4914, 0.0
        %v4932 = vunpack.c.l.s4 1934713408
        %v4933 = vunpack.c.0.s8 %v4932
        %v4934 = vlaneseq
        %v4935 = vshrl.u32 %v4934, 7
        %v4936 = vsub.s32 %v4933, %v4935
        %v4937 = vrot.slane %v4914, %v4936
        %v4939 = vunpack.c.l.s4 1934713408
        %v4940 = vunpack.c.0.s8 %v4939
        %v4941 = vlaneseq
        %v4942 = vshrl.u32 %v4941, 7
        %v4943 = vsub.s32 %v4940, %v4942
        %v4944 = vrot.slane %v4930, %v4943
        %v4945 = vcombine.high %v4922, 0.0
        %v4946 = vcombine.high %v4929, 0.0
        %v4947 = vcombine.high %v4937, 0.0
        %v4948 = vcombine.high %v4944, 0.0
        %v4949 = vcombine.high %v639, 0.0
        %v4951 = vunpack.c.l.s4 1983009808
        %v4952 = vunpack.c.0.s8 %v4951
        %v4953 = vlaneseq
        %v4954 = vshrl.u32 %v4953, 7
        %v4955 = vsub.s32 %v4952, %v4954
        %v4956 = vrot.slane %v639, %v4955
        %v4958 = vunpack.c.l.s4 1983009808
        %v4959 = vunpack.c.0.s8 %v4958
        %v4960 = vlaneseq
        %v4961 = vshrl.u32 %v4960, 7
        %v4962 = vsub.s32 %v4959, %v4961
        %v4963 = vrot.slane %v4949, %v4962
        %v4964 = vcombine.high %v4956, 0.0
        %v4966 = vunpack.c.l.s4 1934713408
        %v4967 = vunpack.c.0.s8 %v4966
        %v4968 = vlaneseq
        %v4969 = vshrl.u32 %v4968, 7
        %v4970 = vsub.s32 %v4967, %v4969
        %v4971 = vrot.slane %v4956, %v4970
        %v4973 = vunpack.c.l.s4 1934713408
        %v4974 = vunpack.c.0.s8 %v4973
        %v4975 = vlaneseq
        %v4976 = vshrl.u32 %v4975, 7
        %v4977 = vsub.s32 %v4974, %v4976
        %v4978 = vrot.slane %v4964, %v4977
        %v4979 = vcombine.high %v4963, 0.0
        %v4981 = vunpack.c.l.s4 1934713408
        %v4982 = vunpack.c.0.s8 %v4981
        %v4983 = vlaneseq
        %v4984 = vshrl.u32 %v4983, 7
        %v4985 = vsub.s32 %v4982, %v4984
        %v4986 = vrot.slane %v4963, %v4985
        %v4988 = vunpack.c.l.s4 1934713408
        %v4989 = vunpack.c.0.s8 %v4988
        %v4990 = vlaneseq
        %v4991 = vshrl.u32 %v4990, 7
        %v4992 = vsub.s32 %v4989, %v4991
        %v4993 = vrot.slane %v4979, %v4992
        %v4994 = vcombine.high %v4971, 0.0
        %v4995 = vcombine.high %v4978, 0.0
        %v4996 = vcombine.high %v4986, 0.0
        %v4997 = vcombine.high %v4993, 0.0
        %v4998 = vcombine.high %v646, 0.0
        %v5000 = vunpack.c.l.s4 1983009808
        %v5001 = vunpack.c.0.s8 %v5000
        %v5002 = vlaneseq
        %v5003 = vshrl.u32 %v5002, 7
        %v5004 = vsub.s32 %v5001, %v5003
        %v5005 = vrot.slane %v646, %v5004
        %v5007 = vunpack.c.l.s4 1983009808
        %v5008 = vunpack.c.0.s8 %v5007
        %v5009 = vlaneseq
        %v5010 = vshrl.u32 %v5009, 7
        %v5011 = vsub.s32 %v5008, %v5010
        %v5012 = vrot.slane %v4998, %v5011
        %v5013 = vcombine.high %v5005, 0.0
        %v5015 = vunpack.c.l.s4 1934713408
        %v5016 = vunpack.c.0.s8 %v5015
        %v5017 = vlaneseq
        %v5018 = vshrl.u32 %v5017, 7
        %v5019 = vsub.s32 %v5016, %v5018
        %v5020 = vrot.slane %v5005, %v5019
        %v5022 = vunpack.c.l.s4 1934713408
        %v5023 = vunpack.c.0.s8 %v5022
        %v5024 = vlaneseq
        %v5025 = vshrl.u32 %v5024, 7
        %v5026 = vsub.s32 %v5023, %v5025
        %v5027 = vrot.slane %v5013, %v5026
        %v5028 = vcombine.high %v5012, 0.0
        %v5030 = vunpack.c.l.s4 1934713408
        %v5031 = vunpack.c.0.s8 %v5030
        %v5032 = vlaneseq
        %v5033 = vshrl.u32 %v5032, 7
        %v5034 = vsub.s32 %v5031, %v5033
        %v5035 = vrot.slane %v5012, %v5034
        %v5037 = vunpack.c.l.s4 1934713408
        %v5038 = vunpack.c.0.s8 %v5037
        %v5039 = vlaneseq
        %v5040 = vshrl.u32 %v5039, 7
        %v5041 = vsub.s32 %v5038, %v5040
        %v5042 = vrot.slane %v5028, %v5041
        %v5043 = vcombine.high %v5020, 0.0
        %v5044 = vcombine.high %v5027, 0.0
        %v5045 = vcombine.high %v5035, 0.0
        %v5046 = vcombine.high %v5042, 0.0
        %v5047 = vcombine.high %v650, 0.0
        %v5049 = vunpack.c.l.s4 1983009808
        %v5050 = vunpack.c.0.s8 %v5049
        %v5051 = vlaneseq
        %v5052 = vshrl.u32 %v5051, 7
        %v5053 = vsub.s32 %v5050, %v5052
        %v5054 = vrot.slane %v650, %v5053
        %v5056 = vunpack.c.l.s4 1983009808
        %v5057 = vunpack.c.0.s8 %v5056
        %v5058 = vlaneseq
        %v5059 = vshrl.u32 %v5058, 7
        %v5060 = vsub.s32 %v5057, %v5059
        %v5061 = vrot.slane %v5047, %v5060
        %v5062 = vcombine.high %v5054, 0.0
        %v5064 = vunpack.c.l.s4 1934713408
        %v5065 = vunpack.c.0.s8 %v5064
        %v5066 = vlaneseq
        %v5067 = vshrl.u32 %v5066, 7
        %v5068 = vsub.s32 %v5065, %v5067
        %v5069 = vrot.slane %v5054, %v5068
        %v5071 = vunpack.c.l.s4 1934713408
        %v5072 = vunpack.c.0.s8 %v5071
        %v5073 = vlaneseq
        %v5074 = vshrl.u32 %v5073, 7
        %v5075 = vsub.s32 %v5072, %v5074
        %v5076 = vrot.slane %v5062, %v5075
        %v5077 = vcombine.high %v5061, 0.0
        %v5079 = vunpack.c.l.s4 1934713408
        %v5080 = vunpack.c.0.s8 %v5079
        %v5081 = vlaneseq
        %v5082 = vshrl.u32 %v5081, 7
        %v5083 = vsub.s32 %v5080, %v5082
        %v5084 = vrot.slane %v5061, %v5083
        %v5086 = vunpack.c.l.s4 1934713408
        %v5087 = vunpack.c.0.s8 %v5086
        %v5088 = vlaneseq
        %v5089 = vshrl.u32 %v5088, 7
        %v5090 = vsub.s32 %v5087, %v5089
        %v5091 = vrot.slane %v5077, %v5090
        %v5092 = vcombine.high %v5069, 0.0
        %v5093 = vcombine.high %v5076, 0.0
        %v5094 = vcombine.high %v5084, 0.0
        %v5095 = vcombine.high %v5091, 0.0
        %v5096 = vcombine.high %v657, 0.0
        %v5098 = vunpack.c.l.s4 1983009808
        %v5099 = vunpack.c.0.s8 %v5098
        %v5100 = vlaneseq
        %v5101 = vshrl.u32 %v5100, 7
        %v5102 = vsub.s32 %v5099, %v5101
        %v5103 = vrot.slane %v657, %v5102
        %v5105 = vunpack.c.l.s4 1983009808
        %v5106 = vunpack.c.0.s8 %v5105
        %v5107 = vlaneseq
        %v5108 = vshrl.u32 %v5107, 7
        %v5109 = vsub.s32 %v5106, %v5108
        %v5110 = vrot.slane %v5096, %v5109
        %v5111 = vcombine.high %v5103, 0.0
        %v5113 = vunpack.c.l.s4 1934713408
        %v5114 = vunpack.c.0.s8 %v5113
        %v5115 = vlaneseq
        %v5116 = vshrl.u32 %v5115, 7
        %v5117 = vsub.s32 %v5114, %v5116
        %v5118 = vrot.slane %v5103, %v5117
        %v5120 = vunpack.c.l.s4 1934713408
        %v5121 = vunpack.c.0.s8 %v5120
        %v5122 = vlaneseq
        %v5123 = vshrl.u32 %v5122, 7
        %v5124 = vsub.s32 %v5121, %v5123
        %v5125 = vrot.slane %v5111, %v5124
        %v5126 = vcombine.high %v5110, 0.0
        %v5128 = vunpack.c.l.s4 1934713408
        %v5129 = vunpack.c.0.s8 %v5128
        %v5130 = vlaneseq
        %v5131 = vshrl.u32 %v5130, 7
        %v5132 = vsub.s32 %v5129, %v5131
        %v5133 = vrot.slane %v5110, %v5132
        %v5135 = vunpack.c.l.s4 1934713408
        %v5136 = vunpack.c.0.s8 %v5135
        %v5137 = vlaneseq
        %v5138 = vshrl.u32 %v5137, 7
        %v5139 = vsub.s32 %v5136, %v5138
        %v5140 = vrot.slane %v5126, %v5139
        %v5141 = vcombine.high %v5118, 0.0
        %v5142 = vcombine.high %v5125, 0.0
        %v5143 = vcombine.high %v5133, 0.0
        %v5144 = vcombine.high %v5140, 0.0
        %v5145 = vcombine.high %v661, 0.0
        %v5147 = vunpack.c.l.s4 1983009808
        %v5148 = vunpack.c.0.s8 %v5147
        %v5149 = vlaneseq
        %v5150 = vshrl.u32 %v5149, 7
        %v5151 = vsub.s32 %v5148, %v5150
        %v5152 = vrot.slane %v661, %v5151
        %v5154 = vunpack.c.l.s4 1983009808
        %v5155 = vunpack.c.0.s8 %v5154
        %v5156 = vlaneseq
        %v5157 = vshrl.u32 %v5156, 7
        %v5158 = vsub.s32 %v5155, %v5157
        %v5159 = vrot.slane %v5145, %v5158
        %v5160 = vcombine.high %v5152, 0.0
        %v5162 = vunpack.c.l.s4 1934713408
        %v5163 = vunpack.c.0.s8 %v5162
        %v5164 = vlaneseq
        %v5165 = vshrl.u32 %v5164, 7
        %v5166 = vsub.s32 %v5163, %v5165
        %v5167 = vrot.slane %v5152, %v5166
        %v5169 = vunpack.c.l.s4 1934713408
        %v5170 = vunpack.c.0.s8 %v5169
        %v5171 = vlaneseq
        %v5172 = vshrl.u32 %v5171, 7
        %v5173 = vsub.s32 %v5170, %v5172
        %v5174 = vrot.slane %v5160, %v5173
        %v5175 = vcombine.high %v5159, 0.0
        %v5177 = vunpack.c.l.s4 1934713408
        %v5178 = vunpack.c.0.s8 %v5177
        %v5179 = vlaneseq
        %v5180 = vshrl.u32 %v5179, 7
        %v5181 = vsub.s32 %v5178, %v5180
        %v5182 = vrot.slane %v5159, %v5181
        %v5184 = vunpack.c.l.s4 1934713408
        %v5185 = vunpack.c.0.s8 %v5184
        %v5186 = vlaneseq
        %v5187 = vshrl.u32 %v5186, 7
        %v5188 = vsub.s32 %v5185, %v5187
        %v5189 = vrot.slane %v5175, %v5188
        %v5190 = vcombine.high %v5167, 0.0
        %v5191 = vcombine.high %v5174, 0.0
        %v5192 = vcombine.high %v5182, 0.0
        %v5193 = vcombine.high %v5189, 0.0
        %v5194 = vcombine.high %v668, 0.0
        %v5196 = vunpack.c.l.s4 1983009808
        %v5197 = vunpack.c.0.s8 %v5196
        %v5198 = vlaneseq
        %v5199 = vshrl.u32 %v5198, 7
        %v5200 = vsub.s32 %v5197, %v5199
        %v5201 = vrot.slane %v668, %v5200
        %v5203 = vunpack.c.l.s4 1983009808
        %v5204 = vunpack.c.0.s8 %v5203
        %v5205 = vlaneseq
        %v5206 = vshrl.u32 %v5205, 7
        %v5207 = vsub.s32 %v5204, %v5206
        %v5208 = vrot.slane %v5194, %v5207
        %v5209 = vcombine.high %v5201, 0.0
        %v5211 = vunpack.c.l.s4 1934713408
        %v5212 = vunpack.c.0.s8 %v5211
        %v5213 = vlaneseq
        %v5214 = vshrl.u32 %v5213, 7
        %v5215 = vsub.s32 %v5212, %v5214
        %v5216 = vrot.slane %v5201, %v5215
        %v5218 = vunpack.c.l.s4 1934713408
        %v5219 = vunpack.c.0.s8 %v5218
        %v5220 = vlaneseq
        %v5221 = vshrl.u32 %v5220, 7
        %v5222 = vsub.s32 %v5219, %v5221
        %v5223 = vrot.slane %v5209, %v5222
        %v5224 = vcombine.high %v5208, 0.0
        %v5226 = vunpack.c.l.s4 1934713408
        %v5227 = vunpack.c.0.s8 %v5226
        %v5228 = vlaneseq
        %v5229 = vshrl.u32 %v5228, 7
        %v5230 = vsub.s32 %v5227, %v5229
        %v5231 = vrot.slane %v5208, %v5230
        %v5233 = vunpack.c.l.s4 1934713408
        %v5234 = vunpack.c.0.s8 %v5233
        %v5235 = vlaneseq
        %v5236 = vshrl.u32 %v5235, 7
        %v5237 = vsub.s32 %v5234, %v5236
        %v5238 = vrot.slane %v5224, %v5237
        %v5239 = vcombine.high %v5216, 0.0
        %v5240 = vcombine.high %v5223, 0.0
        %v5241 = vcombine.high %v5231, 0.0
        %v5242 = vcombine.high %v5238, 0.0
        %v5243 = vcombine.high %v672, 0.0
        %v5245 = vunpack.c.l.s4 1983009808
        %v5246 = vunpack.c.0.s8 %v5245
        %v5247 = vlaneseq
        %v5248 = vshrl.u32 %v5247, 7
        %v5249 = vsub.s32 %v5246, %v5248
        %v5250 = vrot.slane %v672, %v5249
        %v5252 = vunpack.c.l.s4 1983009808
        %v5253 = vunpack.c.0.s8 %v5252
        %v5254 = vlaneseq
        %v5255 = vshrl.u32 %v5254, 7
        %v5256 = vsub.s32 %v5253, %v5255
        %v5257 = vrot.slane %v5243, %v5256
        %v5258 = vcombine.high %v5250, 0.0
        %v5260 = vunpack.c.l.s4 1934713408
        %v5261 = vunpack.c.0.s8 %v5260
        %v5262 = vlaneseq
        %v5263 = vshrl.u32 %v5262, 7
        %v5264 = vsub.s32 %v5261, %v5263
        %v5265 = vrot.slane %v5250, %v5264
        %v5267 = vunpack.c.l.s4 1934713408
        %v5268 = vunpack.c.0.s8 %v5267
        %v5269 = vlaneseq
        %v5270 = vshrl.u32 %v5269, 7
        %v5271 = vsub.s32 %v5268, %v5270
        %v5272 = vrot.slane %v5258, %v5271
        %v5273 = vcombine.high %v5257, 0.0
        %v5275 = vunpack.c.l.s4 1934713408
        %v5276 = vunpack.c.0.s8 %v5275
        %v5277 = vlaneseq
        %v5278 = vshrl.u32 %v5277, 7
        %v5279 = vsub.s32 %v5276, %v5278
        %v5280 = vrot.slane %v5257, %v5279
        %v5282 = vunpack.c.l.s4 1934713408
        %v5283 = vunpack.c.0.s8 %v5282
        %v5284 = vlaneseq
        %v5285 = vshrl.u32 %v5284, 7
        %v5286 = vsub.s32 %v5283, %v5285
        %v5287 = vrot.slane %v5273, %v5286
        %v5288 = vcombine.high %v5265, 0.0
        %v5289 = vcombine.high %v5272, 0.0
        %v5290 = vcombine.high %v5280, 0.0
        %v5291 = vcombine.high %v5287, 0.0
        %v5292 = vcombine.high %v679, 0.0
        %v5294 = vunpack.c.l.s4 1983009808
        %v5295 = vunpack.c.0.s8 %v5294
        %v5296 = vlaneseq
        %v5297 = vshrl.u32 %v5296, 7
        %v5298 = vsub.s32 %v5295, %v5297
        %v5299 = vrot.slane %v679, %v5298
        %v5301 = vunpack.c.l.s4 1983009808
        %v5302 = vunpack.c.0.s8 %v5301
        %v5303 = vlaneseq
        %v5304 = vshrl.u32 %v5303, 7
        %v5305 = vsub.s32 %v5302, %v5304
        %v5306 = vrot.slane %v5292, %v5305
        %v5307 = vcombine.high %v5299, 0.0
        %v5309 = vunpack.c.l.s4 1934713408
        %v5310 = vunpack.c.0.s8 %v5309
        %v5311 = vlaneseq
        %v5312 = vshrl.u32 %v5311, 7
        %v5313 = vsub.s32 %v5310, %v5312
        %v5314 = vrot.slane %v5299, %v5313
        %v5316 = vunpack.c.l.s4 1934713408
        %v5317 = vunpack.c.0.s8 %v5316
        %v5318 = vlaneseq
        %v5319 = vshrl.u32 %v5318, 7
        %v5320 = vsub.s32 %v5317, %v5319
        %v5321 = vrot.slane %v5307, %v5320
        %v5322 = vcombine.high %v5306, 0.0
        %v5324 = vunpack.c.l.s4 1934713408
        %v5325 = vunpack.c.0.s8 %v5324
        %v5326 = vlaneseq
        %v5327 = vshrl.u32 %v5326, 7
        %v5328 = vsub.s32 %v5325, %v5327
        %v5329 = vrot.slane %v5306, %v5328
        %v5331 = vunpack.c.l.s4 1934713408
        %v5332 = vunpack.c.0.s8 %v5331
        %v5333 = vlaneseq
        %v5334 = vshrl.u32 %v5333, 7
        %v5335 = vsub.s32 %v5332, %v5334
        %v5336 = vrot.slane %v5322, %v5335
        %v5337 = vcombine.high %v5314, 0.0
        %v5338 = vcombine.high %v5321, 0.0
        %v5339 = vcombine.high %v5329, 0.0
        %v5340 = vcombine.high %v5336, 0.0
        %v5341 = vcombine.high %v683, 0.0
        %v5343 = vunpack.c.l.s4 1983009808
        %v5344 = vunpack.c.0.s8 %v5343
        %v5345 = vlaneseq
        %v5346 = vshrl.u32 %v5345, 7
        %v5347 = vsub.s32 %v5344, %v5346
        %v5348 = vrot.slane %v683, %v5347
        %v5350 = vunpack.c.l.s4 1983009808
        %v5351 = vunpack.c.0.s8 %v5350
        %v5352 = vlaneseq
        %v5353 = vshrl.u32 %v5352, 7
        %v5354 = vsub.s32 %v5351, %v5353
        %v5355 = vrot.slane %v5341, %v5354
        %v5356 = vcombine.high %v5348, 0.0
        %v5358 = vunpack.c.l.s4 1934713408
        %v5359 = vunpack.c.0.s8 %v5358
        %v5360 = vlaneseq
        %v5361 = vshrl.u32 %v5360, 7
        %v5362 = vsub.s32 %v5359, %v5361
        %v5363 = vrot.slane %v5348, %v5362
        %v5365 = vunpack.c.l.s4 1934713408
        %v5366 = vunpack.c.0.s8 %v5365
        %v5367 = vlaneseq
        %v5368 = vshrl.u32 %v5367, 7
        %v5369 = vsub.s32 %v5366, %v5368
        %v5370 = vrot.slane %v5356, %v5369
        %v5371 = vcombine.high %v5355, 0.0
        %v5373 = vunpack.c.l.s4 1934713408
        %v5374 = vunpack.c.0.s8 %v5373
        %v5375 = vlaneseq
        %v5376 = vshrl.u32 %v5375, 7
        %v5377 = vsub.s32 %v5374, %v5376
        %v5378 = vrot.slane %v5355, %v5377
        %v5380 = vunpack.c.l.s4 1934713408
        %v5381 = vunpack.c.0.s8 %v5380
        %v5382 = vlaneseq
        %v5383 = vshrl.u32 %v5382, 7
        %v5384 = vsub.s32 %v5381, %v5383
        %v5385 = vrot.slane %v5371, %v5384
        %v5386 = vcombine.high %v5363, 0.0
        %v5387 = vcombine.high %v5370, 0.0
        %v5388 = vcombine.high %v5378, 0.0
        %v5389 = vcombine.high %v5385, 0.0
        %v5390 = vcombine.high %v690, 0.0
        %v5392 = vunpack.c.l.s4 1983009808
        %v5393 = vunpack.c.0.s8 %v5392
        %v5394 = vlaneseq
        %v5395 = vshrl.u32 %v5394, 7
        %v5396 = vsub.s32 %v5393, %v5395
        %v5397 = vrot.slane %v690, %v5396
        %v5399 = vunpack.c.l.s4 1983009808
        %v5400 = vunpack.c.0.s8 %v5399
        %v5401 = vlaneseq
        %v5402 = vshrl.u32 %v5401, 7
        %v5403 = vsub.s32 %v5400, %v5402
        %v5404 = vrot.slane %v5390, %v5403
        %v5405 = vcombine.high %v5397, 0.0
        %v5407 = vunpack.c.l.s4 1934713408
        %v5408 = vunpack.c.0.s8 %v5407
        %v5409 = vlaneseq
        %v5410 = vshrl.u32 %v5409, 7
        %v5411 = vsub.s32 %v5408, %v5410
        %v5412 = vrot.slane %v5397, %v5411
        %v5414 = vunpack.c.l.s4 1934713408
        %v5415 = vunpack.c.0.s8 %v5414
        %v5416 = vlaneseq
        %v5417 = vshrl.u32 %v5416, 7
        %v5418 = vsub.s32 %v5415, %v5417
        %v5419 = vrot.slane %v5405, %v5418
        %v5420 = vcombine.high %v5404, 0.0
        %v5422 = vunpack.c.l.s4 1934713408
        %v5423 = vunpack.c.0.s8 %v5422
        %v5424 = vlaneseq
        %v5425 = vshrl.u32 %v5424, 7
        %v5426 = vsub.s32 %v5423, %v5425
        %v5427 = vrot.slane %v5404, %v5426
        %v5429 = vunpack.c.l.s4 1934713408
        %v5430 = vunpack.c.0.s8 %v5429
        %v5431 = vlaneseq
        %v5432 = vshrl.u32 %v5431, 7
        %v5433 = vsub.s32 %v5430, %v5432
        %v5434 = vrot.slane %v5420, %v5433
        %v5435 = vcombine.high %v5412, 0.0
        %v5436 = vcombine.high %v5419, 0.0
        %v5437 = vcombine.high %v5427, 0.0
        %v5438 = vcombine.high %v5434, 0.0
        %v5439 = vcombine.high %v694, 0.0
        %v5441 = vunpack.c.l.s4 1983009808
        %v5442 = vunpack.c.0.s8 %v5441
        %v5443 = vlaneseq
        %v5444 = vshrl.u32 %v5443, 7
        %v5445 = vsub.s32 %v5442, %v5444
        %v5446 = vrot.slane %v694, %v5445
        %v5448 = vunpack.c.l.s4 1983009808
        %v5449 = vunpack.c.0.s8 %v5448
        %v5450 = vlaneseq
        %v5451 = vshrl.u32 %v5450, 7
        %v5452 = vsub.s32 %v5449, %v5451
        %v5453 = vrot.slane %v5439, %v5452
        %v5454 = vcombine.high %v5446, 0.0
        %v5456 = vunpack.c.l.s4 1934713408
        %v5457 = vunpack.c.0.s8 %v5456
        %v5458 = vlaneseq
        %v5459 = vshrl.u32 %v5458, 7
        %v5460 = vsub.s32 %v5457, %v5459
        %v5461 = vrot.slane %v5446, %v5460
        %v5463 = vunpack.c.l.s4 1934713408
        %v5464 = vunpack.c.0.s8 %v5463
        %v5465 = vlaneseq
        %v5466 = vshrl.u32 %v5465, 7
        %v5467 = vsub.s32 %v5464, %v5466
        %v5468 = vrot.slane %v5454, %v5467
        %v5469 = vcombine.high %v5453, 0.0
        %v5471 = vunpack.c.l.s4 1934713408
        %v5472 = vunpack.c.0.s8 %v5471
        %v5473 = vlaneseq
        %v5474 = vshrl.u32 %v5473, 7
        %v5475 = vsub.s32 %v5472, %v5474
        %v5476 = vrot.slane %v5453, %v5475
        %v5478 = vunpack.c.l.s4 1934713408
        %v5479 = vunpack.c.0.s8 %v5478
        %v5480 = vlaneseq
        %v5481 = vshrl.u32 %v5480, 7
        %v5482 = vsub.s32 %v5479, %v5481
        %v5483 = vrot.slane %v5469, %v5482
        %v5484 = vcombine.high %v5461, 0.0
        %v5485 = vcombine.high %v5468, 0.0
        %v5486 = vcombine.high %v5476, 0.0
        %v5487 = vcombine.high %v5483, 0.0
        %v5488 = vcombine.high %v701, 0.0
        %v5490 = vunpack.c.l.s4 1983009808
        %v5491 = vunpack.c.0.s8 %v5490
        %v5492 = vlaneseq
        %v5493 = vshrl.u32 %v5492, 7
        %v5494 = vsub.s32 %v5491, %v5493
        %v5495 = vrot.slane %v701, %v5494
        %v5497 = vunpack.c.l.s4 1983009808
        %v5498 = vunpack.c.0.s8 %v5497
        %v5499 = vlaneseq
        %v5500 = vshrl.u32 %v5499, 7
        %v5501 = vsub.s32 %v5498, %v5500
        %v5502 = vrot.slane %v5488, %v5501
        %v5503 = vcombine.high %v5495, 0.0
        %v5505 = vunpack.c.l.s4 1934713408
        %v5506 = vunpack.c.0.s8 %v5505
        %v5507 = vlaneseq
        %v5508 = vshrl.u32 %v5507, 7
        %v5509 = vsub.s32 %v5506, %v5508
        %v5510 = vrot.slane %v5495, %v5509
        %v5512 = vunpack.c.l.s4 1934713408
        %v5513 = vunpack.c.0.s8 %v5512
        %v5514 = vlaneseq
        %v5515 = vshrl.u32 %v5514, 7
        %v5516 = vsub.s32 %v5513, %v5515
        %v5517 = vrot.slane %v5503, %v5516
        %v5518 = vcombine.high %v5502, 0.0
        %v5520 = vunpack.c.l.s4 1934713408
        %v5521 = vunpack.c.0.s8 %v5520
        %v5522 = vlaneseq
        %v5523 = vshrl.u32 %v5522, 7
        %v5524 = vsub.s32 %v5521, %v5523
        %v5525 = vrot.slane %v5502, %v5524
        %v5527 = vunpack.c.l.s4 1934713408
        %v5528 = vunpack.c.0.s8 %v5527
        %v5529 = vlaneseq
        %v5530 = vshrl.u32 %v5529, 7
        %v5531 = vsub.s32 %v5528, %v5530
        %v5532 = vrot.slane %v5518, %v5531
        %v5533 = vcombine.high %v5510, 0.0
        %v5534 = vcombine.high %v5517, 0.0
        %v5535 = vcombine.high %v5525, 0.0
        %v5536 = vcombine.high %v5532, 0.0
        %v5537 = vcombine.high %v705, 0.0
        %v5539 = vunpack.c.l.s4 1983009808
        %v5540 = vunpack.c.0.s8 %v5539
        %v5541 = vlaneseq
        %v5542 = vshrl.u32 %v5541, 7
        %v5543 = vsub.s32 %v5540, %v5542
        %v5544 = vrot.slane %v705, %v5543
        %v5546 = vunpack.c.l.s4 1983009808
        %v5547 = vunpack.c.0.s8 %v5546
        %v5548 = vlaneseq
        %v5549 = vshrl.u32 %v5548, 7
        %v5550 = vsub.s32 %v5547, %v5549
        %v5551 = vrot.slane %v5537, %v5550
        %v5552 = vcombine.high %v5544, 0.0
        %v5554 = vunpack.c.l.s4 1934713408
        %v5555 = vunpack.c.0.s8 %v5554
        %v5556 = vlaneseq
        %v5557 = vshrl.u32 %v5556, 7
        %v5558 = vsub.s32 %v5555, %v5557
        %v5559 = vrot.slane %v5544, %v5558
        %v5561 = vunpack.c.l.s4 1934713408
        %v5562 = vunpack.c.0.s8 %v5561
        %v5563 = vlaneseq
        %v5564 = vshrl.u32 %v5563, 7
        %v5565 = vsub.s32 %v5562, %v5564
        %v5566 = vrot.slane %v5552, %v5565
        %v5567 = vcombine.high %v5551, 0.0
        %v5569 = vunpack.c.l.s4 1934713408
        %v5570 = vunpack.c.0.s8 %v5569
        %v5571 = vlaneseq
        %v5572 = vshrl.u32 %v5571, 7
        %v5573 = vsub.s32 %v5570, %v5572
        %v5574 = vrot.slane %v5551, %v5573
        %v5576 = vunpack.c.l.s4 1934713408
        %v5577 = vunpack.c.0.s8 %v5576
        %v5578 = vlaneseq
        %v5579 = vshrl.u32 %v5578, 7
        %v5580 = vsub.s32 %v5577, %v5579
        %v5581 = vrot.slane %v5567, %v5580
        %v5582 = vcombine.high %v5559, 0.0
        %v5583 = vcombine.high %v5566, 0.0
        %v5584 = vcombine.high %v5574, 0.0
        %v5585 = vcombine.high %v5581, 0.0
        %v5586 = vcombine.high %v712, 0.0
        %v5588 = vunpack.c.l.s4 1983009808
        %v5589 = vunpack.c.0.s8 %v5588
        %v5590 = vlaneseq
        %v5591 = vshrl.u32 %v5590, 7
        %v5592 = vsub.s32 %v5589, %v5591
        %v5593 = vrot.slane %v712, %v5592
        %v5595 = vunpack.c.l.s4 1983009808
        %v5596 = vunpack.c.0.s8 %v5595
        %v5597 = vlaneseq
        %v5598 = vshrl.u32 %v5597, 7
        %v5599 = vsub.s32 %v5596, %v5598
        %v5600 = vrot.slane %v5586, %v5599
        %v5601 = vcombine.high %v5593, 0.0
        %v5603 = vunpack.c.l.s4 1934713408
        %v5604 = vunpack.c.0.s8 %v5603
        %v5605 = vlaneseq
        %v5606 = vshrl.u32 %v5605, 7
        %v5607 = vsub.s32 %v5604, %v5606
        %v5608 = vrot.slane %v5593, %v5607
        %v5610 = vunpack.c.l.s4 1934713408
        %v5611 = vunpack.c.0.s8 %v5610
        %v5612 = vlaneseq
        %v5613 = vshrl.u32 %v5612, 7
        %v5614 = vsub.s32 %v5611, %v5613
        %v5615 = vrot.slane %v5601, %v5614
        %v5616 = vcombine.high %v5600, 0.0
        %v5618 = vunpack.c.l.s4 1934713408
        %v5619 = vunpack.c.0.s8 %v5618
        %v5620 = vlaneseq
        %v5621 = vshrl.u32 %v5620, 7
        %v5622 = vsub.s32 %v5619, %v5621
        %v5623 = vrot.slane %v5600, %v5622
        %v5625 = vunpack.c.l.s4 1934713408
        %v5626 = vunpack.c.0.s8 %v5625
        %v5627 = vlaneseq
        %v5628 = vshrl.u32 %v5627, 7
        %v5629 = vsub.s32 %v5626, %v5628
        %v5630 = vrot.slane %v5616, %v5629
        %v5631 = vcombine.high %v5608, 0.0
        %v5632 = vcombine.high %v5615, 0.0
        %v5633 = vcombine.high %v5623, 0.0
        %v5634 = vcombine.high %v5630, 0.0
        %v5635 = vcombine.high %v716, 0.0
        %v5637 = vunpack.c.l.s4 1983009808
        %v5638 = vunpack.c.0.s8 %v5637
        %v5639 = vlaneseq
        %v5640 = vshrl.u32 %v5639, 7
        %v5641 = vsub.s32 %v5638, %v5640
        %v5642 = vrot.slane %v716, %v5641
        %v5644 = vunpack.c.l.s4 1983009808
        %v5645 = vunpack.c.0.s8 %v5644
        %v5646 = vlaneseq
        %v5647 = vshrl.u32 %v5646, 7
        %v5648 = vsub.s32 %v5645, %v5647
        %v5649 = vrot.slane %v5635, %v5648
        %v5650 = vcombine.high %v5642, 0.0
        %v5652 = vunpack.c.l.s4 1934713408
        %v5653 = vunpack.c.0.s8 %v5652
        %v5654 = vlaneseq
        %v5655 = vshrl.u32 %v5654, 7
        %v5656 = vsub.s32 %v5653, %v5655
        %v5657 = vrot.slane %v5642, %v5656
        %v5659 = vunpack.c.l.s4 1934713408
        %v5660 = vunpack.c.0.s8 %v5659
        %v5661 = vlaneseq
        %v5662 = vshrl.u32 %v5661, 7
        %v5663 = vsub.s32 %v5660, %v5662
        %v5664 = vrot.slane %v5650, %v5663
        %v5665 = vcombine.high %v5649, 0.0
        %v5667 = vunpack.c.l.s4 1934713408
        %v5668 = vunpack.c.0.s8 %v5667
        %v5669 = vlaneseq
        %v5670 = vshrl.u32 %v5669, 7
        %v5671 = vsub.s32 %v5668, %v5670
        %v5672 = vrot.slane %v5649, %v5671
        %v5674 = vunpack.c.l.s4 1934713408
        %v5675 = vunpack.c.0.s8 %v5674
        %v5676 = vlaneseq
        %v5677 = vshrl.u32 %v5676, 7
        %v5678 = vsub.s32 %v5675, %v5677
        %v5679 = vrot.slane %v5665, %v5678
        %v5680 = vcombine.high %v5657, 0.0
        %v5681 = vcombine.high %v5664, 0.0
        %v5682 = vcombine.high %v5672, 0.0
        %v5683 = vcombine.high %v5679, 0.0
        %v5684 = vcombine.high %v723, 0.0
        %v5686 = vunpack.c.l.s4 1983009808
        %v5687 = vunpack.c.0.s8 %v5686
        %v5688 = vlaneseq
        %v5689 = vshrl.u32 %v5688, 7
        %v5690 = vsub.s32 %v5687, %v5689
        %v5691 = vrot.slane %v723, %v5690
        %v5693 = vunpack.c.l.s4 1983009808
        %v5694 = vunpack.c.0.s8 %v5693
        %v5695 = vlaneseq
        %v5696 = vshrl.u32 %v5695, 7
        %v5697 = vsub.s32 %v5694, %v5696
        %v5698 = vrot.slane %v5684, %v5697
        %v5699 = vcombine.high %v5691, 0.0
        %v5701 = vunpack.c.l.s4 1934713408
        %v5702 = vunpack.c.0.s8 %v5701
        %v5703 = vlaneseq
        %v5704 = vshrl.u32 %v5703, 7
        %v5705 = vsub.s32 %v5702, %v5704
        %v5706 = vrot.slane %v5691, %v5705
        %v5708 = vunpack.c.l.s4 1934713408
        %v5709 = vunpack.c.0.s8 %v5708
        %v5710 = vlaneseq
        %v5711 = vshrl.u32 %v5710, 7
        %v5712 = vsub.s32 %v5709, %v5711
        %v5713 = vrot.slane %v5699, %v5712
        %v5714 = vcombine.high %v5698, 0.0
        %v5716 = vunpack.c.l.s4 1934713408
        %v5717 = vunpack.c.0.s8 %v5716
        %v5718 = vlaneseq
        %v5719 = vshrl.u32 %v5718, 7
        %v5720 = vsub.s32 %v5717, %v5719
        %v5721 = vrot.slane %v5698, %v5720
        %v5723 = vunpack.c.l.s4 1934713408
        %v5724 = vunpack.c.0.s8 %v5723
        %v5725 = vlaneseq
        %v5726 = vshrl.u32 %v5725, 7
        %v5727 = vsub.s32 %v5724, %v5726
        %v5728 = vrot.slane %v5714, %v5727
        %v5729 = vcombine.high %v5706, 0.0
        %v5730 = vcombine.high %v5713, 0.0
        %v5731 = vcombine.high %v5721, 0.0
        %v5732 = vcombine.high %v5728, 0.0
        %v5733 = vcombine.high %v727, 0.0
        %v5735 = vunpack.c.l.s4 1983009808
        %v5736 = vunpack.c.0.s8 %v5735
        %v5737 = vlaneseq
        %v5738 = vshrl.u32 %v5737, 7
        %v5739 = vsub.s32 %v5736, %v5738
        %v5740 = vrot.slane %v727, %v5739
        %v5742 = vunpack.c.l.s4 1983009808
        %v5743 = vunpack.c.0.s8 %v5742
        %v5744 = vlaneseq
        %v5745 = vshrl.u32 %v5744, 7
        %v5746 = vsub.s32 %v5743, %v5745
        %v5747 = vrot.slane %v5733, %v5746
        %v5748 = vcombine.high %v5740, 0.0
        %v5750 = vunpack.c.l.s4 1934713408
        %v5751 = vunpack.c.0.s8 %v5750
        %v5752 = vlaneseq
        %v5753 = vshrl.u32 %v5752, 7
        %v5754 = vsub.s32 %v5751, %v5753
        %v5755 = vrot.slane %v5740, %v5754
        %v5757 = vunpack.c.l.s4 1934713408
        %v5758 = vunpack.c.0.s8 %v5757
        %v5759 = vlaneseq
        %v5760 = vshrl.u32 %v5759, 7
        %v5761 = vsub.s32 %v5758, %v5760
        %v5762 = vrot.slane %v5748, %v5761
        %v5763 = vcombine.high %v5747, 0.0
        %v5765 = vunpack.c.l.s4 1934713408
        %v5766 = vunpack.c.0.s8 %v5765
        %v5767 = vlaneseq
        %v5768 = vshrl.u32 %v5767, 7
        %v5769 = vsub.s32 %v5766, %v5768
        %v5770 = vrot.slane %v5747, %v5769
        %v5772 = vunpack.c.l.s4 1934713408
        %v5773 = vunpack.c.0.s8 %v5772
        %v5774 = vlaneseq
        %v5775 = vshrl.u32 %v5774, 7
        %v5776 = vsub.s32 %v5773, %v5775
        %v5777 = vrot.slane %v5763, %v5776
        %v5778 = vcombine.high %v5755, 0.0
        %v5779 = vcombine.high %v5762, 0.0
        %v5780 = vcombine.high %v5770, 0.0
        %v5781 = vcombine.high %v5777, 0.0
        %v5782 = vcombine.high %v734, 0.0
        %v5784 = vunpack.c.l.s4 1983009808
        %v5785 = vunpack.c.0.s8 %v5784
        %v5786 = vlaneseq
        %v5787 = vshrl.u32 %v5786, 7
        %v5788 = vsub.s32 %v5785, %v5787
        %v5789 = vrot.slane %v734, %v5788
        %v5791 = vunpack.c.l.s4 1983009808
        %v5792 = vunpack.c.0.s8 %v5791
        %v5793 = vlaneseq
        %v5794 = vshrl.u32 %v5793, 7
        %v5795 = vsub.s32 %v5792, %v5794
        %v5796 = vrot.slane %v5782, %v5795
        %v5797 = vcombine.high %v5789, 0.0
        %v5799 = vunpack.c.l.s4 1934713408
        %v5800 = vunpack.c.0.s8 %v5799
        %v5801 = vlaneseq
        %v5802 = vshrl.u32 %v5801, 7
        %v5803 = vsub.s32 %v5800, %v5802
        %v5804 = vrot.slane %v5789, %v5803
        %v5806 = vunpack.c.l.s4 1934713408
        %v5807 = vunpack.c.0.s8 %v5806
        %v5808 = vlaneseq
        %v5809 = vshrl.u32 %v5808, 7
        %v5810 = vsub.s32 %v5807, %v5809
        %v5811 = vrot.slane %v5797, %v5810
        %v5812 = vcombine.high %v5796, 0.0
        %v5814 = vunpack.c.l.s4 1934713408
        %v5815 = vunpack.c.0.s8 %v5814
        %v5816 = vlaneseq
        %v5817 = vshrl.u32 %v5816, 7
        %v5818 = vsub.s32 %v5815, %v5817
        %v5819 = vrot.slane %v5796, %v5818
        %v5821 = vunpack.c.l.s4 1934713408
        %v5822 = vunpack.c.0.s8 %v5821
        %v5823 = vlaneseq
        %v5824 = vshrl.u32 %v5823, 7
        %v5825 = vsub.s32 %v5822, %v5824
        %v5826 = vrot.slane %v5812, %v5825
        %v5827 = vcombine.high %v5804, 0.0
        %v5828 = vcombine.high %v5811, 0.0
        %v5829 = vcombine.high %v5819, 0.0
        %v5830 = vcombine.high %v5826, 0.0
        %v5831 = vcombine.high %v738, 0.0
        %v5833 = vunpack.c.l.s4 1983009808
        %v5834 = vunpack.c.0.s8 %v5833
        %v5835 = vlaneseq
        %v5836 = vshrl.u32 %v5835, 7
        %v5837 = vsub.s32 %v5834, %v5836
        %v5838 = vrot.slane %v738, %v5837
        %v5840 = vunpack.c.l.s4 1983009808
        %v5841 = vunpack.c.0.s8 %v5840
        %v5842 = vlaneseq
        %v5843 = vshrl.u32 %v5842, 7
        %v5844 = vsub.s32 %v5841, %v5843
        %v5845 = vrot.slane %v5831, %v5844
        %v5846 = vcombine.high %v5838, 0.0
        %v5848 = vunpack.c.l.s4 1934713408
        %v5849 = vunpack.c.0.s8 %v5848
        %v5850 = vlaneseq
        %v5851 = vshrl.u32 %v5850, 7
        %v5852 = vsub.s32 %v5849, %v5851
        %v5853 = vrot.slane %v5838, %v5852
        %v5855 = vunpack.c.l.s4 1934713408
        %v5856 = vunpack.c.0.s8 %v5855
        %v5857 = vlaneseq
        %v5858 = vshrl.u32 %v5857, 7
        %v5859 = vsub.s32 %v5856, %v5858
        %v5860 = vrot.slane %v5846, %v5859
        %v5861 = vcombine.high %v5845, 0.0
        %v5863 = vunpack.c.l.s4 1934713408
        %v5864 = vunpack.c.0.s8 %v5863
        %v5865 = vlaneseq
        %v5866 = vshrl.u32 %v5865, 7
        %v5867 = vsub.s32 %v5864, %v5866
        %v5868 = vrot.slane %v5845, %v5867
        %v5870 = vunpack.c.l.s4 1934713408
        %v5871 = vunpack.c.0.s8 %v5870
        %v5872 = vlaneseq
        %v5873 = vshrl.u32 %v5872, 7
        %v5874 = vsub.s32 %v5871, %v5873
        %v5875 = vrot.slane %v5861, %v5874
        %v5876 = vcombine.high %v5853, 0.0
        %v5877 = vcombine.high %v5860, 0.0
        %v5878 = vcombine.high %v5868, 0.0
        %v5879 = vcombine.high %v5875, 0.0
        %v5880 = vcombine.high %v745, 0.0
        %v5882 = vunpack.c.l.s4 1983009808
        %v5883 = vunpack.c.0.s8 %v5882
        %v5884 = vlaneseq
        %v5885 = vshrl.u32 %v5884, 7
        %v5886 = vsub.s32 %v5883, %v5885
        %v5887 = vrot.slane %v745, %v5886
        %v5889 = vunpack.c.l.s4 1983009808
        %v5890 = vunpack.c.0.s8 %v5889
        %v5891 = vlaneseq
        %v5892 = vshrl.u32 %v5891, 7
        %v5893 = vsub.s32 %v5890, %v5892
        %v5894 = vrot.slane %v5880, %v5893
        %v5895 = vcombine.high %v5887, 0.0
        %v5897 = vunpack.c.l.s4 1934713408
        %v5898 = vunpack.c.0.s8 %v5897
        %v5899 = vlaneseq
        %v5900 = vshrl.u32 %v5899, 7
        %v5901 = vsub.s32 %v5898, %v5900
        %v5902 = vrot.slane %v5887, %v5901
        %v5904 = vunpack.c.l.s4 1934713408
        %v5905 = vunpack.c.0.s8 %v5904
        %v5906 = vlaneseq
        %v5907 = vshrl.u32 %v5906, 7
        %v5908 = vsub.s32 %v5905, %v5907
        %v5909 = vrot.slane %v5895, %v5908
        %v5910 = vcombine.high %v5894, 0.0
        %v5912 = vunpack.c.l.s4 1934713408
        %v5913 = vunpack.c.0.s8 %v5912
        %v5914 = vlaneseq
        %v5915 = vshrl.u32 %v5914, 7
        %v5916 = vsub.s32 %v5913, %v5915
        %v5917 = vrot.slane %v5894, %v5916
        %v5919 = vunpack.c.l.s4 1934713408
        %v5920 = vunpack.c.0.s8 %v5919
        %v5921 = vlaneseq
        %v5922 = vshrl.u32 %v5921, 7
        %v5923 = vsub.s32 %v5920, %v5922
        %v5924 = vrot.slane %v5910, %v5923
        %v5925 = vcombine.high %v5902, 0.0
        %v5926 = vcombine.high %v5909, 0.0
        %v5927 = vcombine.high %v5917, 0.0
        %v5928 = vcombine.high %v5924, 0.0
        %v5929 = vcombine.high %v749, 0.0
        %v5931 = vunpack.c.l.s4 1983009808
        %v5932 = vunpack.c.0.s8 %v5931
        %v5933 = vlaneseq
        %v5934 = vshrl.u32 %v5933, 7
        %v5935 = vsub.s32 %v5932, %v5934
        %v5936 = vrot.slane %v749, %v5935
        %v5938 = vunpack.c.l.s4 1983009808
        %v5939 = vunpack.c.0.s8 %v5938
        %v5940 = vlaneseq
        %v5941 = vshrl.u32 %v5940, 7
        %v5942 = vsub.s32 %v5939, %v5941
        %v5943 = vrot.slane %v5929, %v5942
        %v5944 = vcombine.high %v5936, 0.0
        %v5946 = vunpack.c.l.s4 1934713408
        %v5947 = vunpack.c.0.s8 %v5946
        %v5948 = vlaneseq
        %v5949 = vshrl.u32 %v5948, 7
        %v5950 = vsub.s32 %v5947, %v5949
        %v5951 = vrot.slane %v5936, %v5950
        %v5953 = vunpack.c.l.s4 1934713408
        %v5954 = vunpack.c.0.s8 %v5953
        %v5955 = vlaneseq
        %v5956 = vshrl.u32 %v5955, 7
        %v5957 = vsub.s32 %v5954, %v5956
        %v5958 = vrot.slane %v5944, %v5957
        %v5959 = vcombine.high %v5943, 0.0
        %v5961 = vunpack.c.l.s4 1934713408
        %v5962 = vunpack.c.0.s8 %v5961
        %v5963 = vlaneseq
        %v5964 = vshrl.u32 %v5963, 7
        %v5965 = vsub.s32 %v5962, %v5964
        %v5966 = vrot.slane %v5943, %v5965
        %v5968 = vunpack.c.l.s4 1934713408
        %v5969 = vunpack.c.0.s8 %v5968
        %v5970 = vlaneseq
        %v5971 = vshrl.u32 %v5970, 7
        %v5972 = vsub.s32 %v5969, %v5971
        %v5973 = vrot.slane %v5959, %v5972
        %v5974 = vcombine.high %v5951, 0.0
        %v5975 = vcombine.high %v5958, 0.0
        %v5976 = vcombine.high %v5966, 0.0
        %v5977 = vcombine.high %v5973, 0.0
        %v5978 = vcombine.high %v756, 0.0
        %v5980 = vunpack.c.l.s4 1983009808
        %v5981 = vunpack.c.0.s8 %v5980
        %v5982 = vlaneseq
        %v5983 = vshrl.u32 %v5982, 7
        %v5984 = vsub.s32 %v5981, %v5983
        %v5985 = vrot.slane %v756, %v5984
        %v5987 = vunpack.c.l.s4 1983009808
        %v5988 = vunpack.c.0.s8 %v5987
        %v5989 = vlaneseq
        %v5990 = vshrl.u32 %v5989, 7
        %v5991 = vsub.s32 %v5988, %v5990
        %v5992 = vrot.slane %v5978, %v5991
        %v5993 = vcombine.high %v5985, 0.0
        %v5995 = vunpack.c.l.s4 1934713408
        %v5996 = vunpack.c.0.s8 %v5995
        %v5997 = vlaneseq
        %v5998 = vshrl.u32 %v5997, 7
        %v5999 = vsub.s32 %v5996, %v5998
        %v6000 = vrot.slane %v5985, %v5999
        %v6002 = vunpack.c.l.s4 1934713408
        %v6003 = vunpack.c.0.s8 %v6002
        %v6004 = vlaneseq
        %v6005 = vshrl.u32 %v6004, 7
        %v6006 = vsub.s32 %v6003, %v6005
        %v6007 = vrot.slane %v5993, %v6006
        %v6008 = vcombine.high %v5992, 0.0
        %v6010 = vunpack.c.l.s4 1934713408
        %v6011 = vunpack.c.0.s8 %v6010
        %v6012 = vlaneseq
        %v6013 = vshrl.u32 %v6012, 7
        %v6014 = vsub.s32 %v6011, %v6013
        %v6015 = vrot.slane %v5992, %v6014
        %v6017 = vunpack.c.l.s4 1934713408
        %v6018 = vunpack.c.0.s8 %v6017
        %v6019 = vlaneseq
        %v6020 = vshrl.u32 %v6019, 7
        %v6021 = vsub.s32 %v6018, %v6020
        %v6022 = vrot.slane %v6008, %v6021
        %v6023 = vcombine.high %v6000, 0.0
        %v6024 = vcombine.high %v6007, 0.0
        %v6025 = vcombine.high %v6015, 0.0
        %v6026 = vcombine.high %v6022, 0.0
        %v6027 = vcombine.high %v760, 0.0
        %v6029 = vunpack.c.l.s4 1983009808
        %v6030 = vunpack.c.0.s8 %v6029
        %v6031 = vlaneseq
        %v6032 = vshrl.u32 %v6031, 7
        %v6033 = vsub.s32 %v6030, %v6032
        %v6034 = vrot.slane %v760, %v6033
        %v6036 = vunpack.c.l.s4 1983009808
        %v6037 = vunpack.c.0.s8 %v6036
        %v6038 = vlaneseq
        %v6039 = vshrl.u32 %v6038, 7
        %v6040 = vsub.s32 %v6037, %v6039
        %v6041 = vrot.slane %v6027, %v6040
        %v6042 = vcombine.high %v6034, 0.0
        %v6044 = vunpack.c.l.s4 1934713408
        %v6045 = vunpack.c.0.s8 %v6044
        %v6046 = vlaneseq
        %v6047 = vshrl.u32 %v6046, 7
        %v6048 = vsub.s32 %v6045, %v6047
        %v6049 = vrot.slane %v6034, %v6048
        %v6051 = vunpack.c.l.s4 1934713408
        %v6052 = vunpack.c.0.s8 %v6051
        %v6053 = vlaneseq
        %v6054 = vshrl.u32 %v6053, 7
        %v6055 = vsub.s32 %v6052, %v6054
        %v6056 = vrot.slane %v6042, %v6055
        %v6057 = vcombine.high %v6041, 0.0
        %v6059 = vunpack.c.l.s4 1934713408
        %v6060 = vunpack.c.0.s8 %v6059
        %v6061 = vlaneseq
        %v6062 = vshrl.u32 %v6061, 7
        %v6063 = vsub.s32 %v6060, %v6062
        %v6064 = vrot.slane %v6041, %v6063
        %v6066 = vunpack.c.l.s4 1934713408
        %v6067 = vunpack.c.0.s8 %v6066
        %v6068 = vlaneseq
        %v6069 = vshrl.u32 %v6068, 7
        %v6070 = vsub.s32 %v6067, %v6069
        %v6071 = vrot.slane %v6057, %v6070
        %v6072 = vcombine.high %v6049, 0.0
        %v6073 = vcombine.high %v6056, 0.0
        %v6074 = vcombine.high %v6064, 0.0
        %v6075 = vcombine.high %v6071, 0.0
        %v6076 = vcombine.high %v767, 0.0
        %v6078 = vunpack.c.l.s4 1983009808
        %v6079 = vunpack.c.0.s8 %v6078
        %v6080 = vlaneseq
        %v6081 = vshrl.u32 %v6080, 7
        %v6082 = vsub.s32 %v6079, %v6081
        %v6083 = vrot.slane %v767, %v6082
        %v6085 = vunpack.c.l.s4 1983009808
        %v6086 = vunpack.c.0.s8 %v6085
        %v6087 = vlaneseq
        %v6088 = vshrl.u32 %v6087, 7
        %v6089 = vsub.s32 %v6086, %v6088
        %v6090 = vrot.slane %v6076, %v6089
        %v6091 = vcombine.high %v6083, 0.0
        %v6093 = vunpack.c.l.s4 1934713408
        %v6094 = vunpack.c.0.s8 %v6093
        %v6095 = vlaneseq
        %v6096 = vshrl.u32 %v6095, 7
        %v6097 = vsub.s32 %v6094, %v6096
        %v6098 = vrot.slane %v6083, %v6097
        %v6100 = vunpack.c.l.s4 1934713408
        %v6101 = vunpack.c.0.s8 %v6100
        %v6102 = vlaneseq
        %v6103 = vshrl.u32 %v6102, 7
        %v6104 = vsub.s32 %v6101, %v6103
        %v6105 = vrot.slane %v6091, %v6104
        %v6106 = vcombine.high %v6090, 0.0
        %v6108 = vunpack.c.l.s4 1934713408
        %v6109 = vunpack.c.0.s8 %v6108
        %v6110 = vlaneseq
        %v6111 = vshrl.u32 %v6110, 7
        %v6112 = vsub.s32 %v6109, %v6111
        %v6113 = vrot.slane %v6090, %v6112
        %v6115 = vunpack.c.l.s4 1934713408
        %v6116 = vunpack.c.0.s8 %v6115
        %v6117 = vlaneseq
        %v6118 = vshrl.u32 %v6117, 7
        %v6119 = vsub.s32 %v6116, %v6118
        %v6120 = vrot.slane %v6106, %v6119
        %v6121 = vcombine.high %v6098, 0.0
        %v6122 = vcombine.high %v6105, 0.0
        %v6123 = vcombine.high %v6113, 0.0
        %v6124 = vcombine.high %v6120, 0.0
        %v6125 = vcombine.high %v771, 0.0
        %v6127 = vunpack.c.l.s4 1983009808
        %v6128 = vunpack.c.0.s8 %v6127
        %v6129 = vlaneseq
        %v6130 = vshrl.u32 %v6129, 7
        %v6131 = vsub.s32 %v6128, %v6130
        %v6132 = vrot.slane %v771, %v6131
        %v6134 = vunpack.c.l.s4 1983009808
        %v6135 = vunpack.c.0.s8 %v6134
        %v6136 = vlaneseq
        %v6137 = vshrl.u32 %v6136, 7
        %v6138 = vsub.s32 %v6135, %v6137
        %v6139 = vrot.slane %v6125, %v6138
        %v6140 = vcombine.high %v6132, 0.0
        %v6142 = vunpack.c.l.s4 1934713408
        %v6143 = vunpack.c.0.s8 %v6142
        %v6144 = vlaneseq
        %v6145 = vshrl.u32 %v6144, 7
        %v6146 = vsub.s32 %v6143, %v6145
        %v6147 = vrot.slane %v6132, %v6146
        %v6149 = vunpack.c.l.s4 1934713408
        %v6150 = vunpack.c.0.s8 %v6149
        %v6151 = vlaneseq
        %v6152 = vshrl.u32 %v6151, 7
        %v6153 = vsub.s32 %v6150, %v6152
        %v6154 = vrot.slane %v6140, %v6153
        %v6155 = vcombine.high %v6139, 0.0
        %v6157 = vunpack.c.l.s4 1934713408
        %v6158 = vunpack.c.0.s8 %v6157
        %v6159 = vlaneseq
        %v6160 = vshrl.u32 %v6159, 7
        %v6161 = vsub.s32 %v6158, %v6160
        %v6162 = vrot.slane %v6139, %v6161
        %v6164 = vunpack.c.l.s4 1934713408
        %v6165 = vunpack.c.0.s8 %v6164
        %v6166 = vlaneseq
        %v6167 = vshrl.u32 %v6166, 7
        %v6168 = vsub.s32 %v6165, %v6167
        %v6169 = vrot.slane %v6155, %v6168
        %v6170 = vcombine.high %v6147, 0.0
        %v6171 = vcombine.high %v6154, 0.0
        %v6172 = vcombine.high %v6162, 0.0
        %v6173 = vcombine.high %v6169, 0.0
        %v6174 = vcombine.high %v778, 0.0
        %v6176 = vunpack.c.l.s4 1983009808
        %v6177 = vunpack.c.0.s8 %v6176
        %v6178 = vlaneseq
        %v6179 = vshrl.u32 %v6178, 7
        %v6180 = vsub.s32 %v6177, %v6179
        %v6181 = vrot.slane %v778, %v6180
        %v6183 = vunpack.c.l.s4 1983009808
        %v6184 = vunpack.c.0.s8 %v6183
        %v6185 = vlaneseq
        %v6186 = vshrl.u32 %v6185, 7
        %v6187 = vsub.s32 %v6184, %v6186
        %v6188 = vrot.slane %v6174, %v6187
        %v6189 = vcombine.high %v6181, 0.0
        %v6191 = vunpack.c.l.s4 1934713408
        %v6192 = vunpack.c.0.s8 %v6191
        %v6193 = vlaneseq
        %v6194 = vshrl.u32 %v6193, 7
        %v6195 = vsub.s32 %v6192, %v6194
        %v6196 = vrot.slane %v6181, %v6195
        %v6198 = vunpack.c.l.s4 1934713408
        %v6199 = vunpack.c.0.s8 %v6198
        %v6200 = vlaneseq
        %v6201 = vshrl.u32 %v6200, 7
        %v6202 = vsub.s32 %v6199, %v6201
        %v6203 = vrot.slane %v6189, %v6202
        %v6204 = vcombine.high %v6188, 0.0
        %v6206 = vunpack.c.l.s4 1934713408
        %v6207 = vunpack.c.0.s8 %v6206
        %v6208 = vlaneseq
        %v6209 = vshrl.u32 %v6208, 7
        %v6210 = vsub.s32 %v6207, %v6209
        %v6211 = vrot.slane %v6188, %v6210
        %v6213 = vunpack.c.l.s4 1934713408
        %v6214 = vunpack.c.0.s8 %v6213
        %v6215 = vlaneseq
        %v6216 = vshrl.u32 %v6215, 7
        %v6217 = vsub.s32 %v6214, %v6216
        %v6218 = vrot.slane %v6204, %v6217
        %v6219 = vcombine.high %v6196, 0.0
        %v6220 = vcombine.high %v6203, 0.0
        %v6221 = vcombine.high %v6211, 0.0
        %v6222 = vcombine.high %v6218, 0.0
        %v6223 = vcombine.high %v782, 0.0
        %v6225 = vunpack.c.l.s4 1983009808
        %v6226 = vunpack.c.0.s8 %v6225
        %v6227 = vlaneseq
        %v6228 = vshrl.u32 %v6227, 7
        %v6229 = vsub.s32 %v6226, %v6228
        %v6230 = vrot.slane %v782, %v6229
        %v6232 = vunpack.c.l.s4 1983009808
        %v6233 = vunpack.c.0.s8 %v6232
        %v6234 = vlaneseq
        %v6235 = vshrl.u32 %v6234, 7
        %v6236 = vsub.s32 %v6233, %v6235
        %v6237 = vrot.slane %v6223, %v6236
        %v6238 = vcombine.high %v6230, 0.0
        %v6240 = vunpack.c.l.s4 1934713408
        %v6241 = vunpack.c.0.s8 %v6240
        %v6242 = vlaneseq
        %v6243 = vshrl.u32 %v6242, 7
        %v6244 = vsub.s32 %v6241, %v6243
        %v6245 = vrot.slane %v6230, %v6244
        %v6247 = vunpack.c.l.s4 1934713408
        %v6248 = vunpack.c.0.s8 %v6247
        %v6249 = vlaneseq
        %v6250 = vshrl.u32 %v6249, 7
        %v6251 = vsub.s32 %v6248, %v6250
        %v6252 = vrot.slane %v6238, %v6251
        %v6253 = vcombine.high %v6237, 0.0
        %v6255 = vunpack.c.l.s4 1934713408
        %v6256 = vunpack.c.0.s8 %v6255
        %v6257 = vlaneseq
        %v6258 = vshrl.u32 %v6257, 7
        %v6259 = vsub.s32 %v6256, %v6258
        %v6260 = vrot.slane %v6237, %v6259
        %v6262 = vunpack.c.l.s4 1934713408
        %v6263 = vunpack.c.0.s8 %v6262
        %v6264 = vlaneseq
        %v6265 = vshrl.u32 %v6264, 7
        %v6266 = vsub.s32 %v6263, %v6265
        %v6267 = vrot.slane %v6253, %v6266
        %v6268 = vcombine.high %v6245, 0.0
        %v6269 = vcombine.high %v6252, 0.0
        %v6270 = vcombine.high %v6260, 0.0
        %v6271 = vcombine.high %v6267, 0.0
        %v6272 = vcombine.high %v789, 0.0
        %v6274 = vunpack.c.l.s4 1983009808
        %v6275 = vunpack.c.0.s8 %v6274
        %v6276 = vlaneseq
        %v6277 = vshrl.u32 %v6276, 7
        %v6278 = vsub.s32 %v6275, %v6277
        %v6279 = vrot.slane %v789, %v6278
        %v6281 = vunpack.c.l.s4 1983009808
        %v6282 = vunpack.c.0.s8 %v6281
        %v6283 = vlaneseq
        %v6284 = vshrl.u32 %v6283, 7
        %v6285 = vsub.s32 %v6282, %v6284
        %v6286 = vrot.slane %v6272, %v6285
        %v6287 = vcombine.high %v6279, 0.0
        %v6289 = vunpack.c.l.s4 1934713408
        %v6290 = vunpack.c.0.s8 %v6289
        %v6291 = vlaneseq
        %v6292 = vshrl.u32 %v6291, 7
        %v6293 = vsub.s32 %v6290, %v6292
        %v6294 = vrot.slane %v6279, %v6293
        %v6296 = vunpack.c.l.s4 1934713408
        %v6297 = vunpack.c.0.s8 %v6296
        %v6298 = vlaneseq
        %v6299 = vshrl.u32 %v6298, 7
        %v6300 = vsub.s32 %v6297, %v6299
        %v6301 = vrot.slane %v6287, %v6300
        %v6302 = vcombine.high %v6286, 0.0
        %v6304 = vunpack.c.l.s4 1934713408
        %v6305 = vunpack.c.0.s8 %v6304
        %v6306 = vlaneseq
        %v6307 = vshrl.u32 %v6306, 7
        %v6308 = vsub.s32 %v6305, %v6307
        %v6309 = vrot.slane %v6286, %v6308
        %v6311 = vunpack.c.l.s4 1934713408
        %v6312 = vunpack.c.0.s8 %v6311
        %v6313 = vlaneseq
        %v6314 = vshrl.u32 %v6313, 7
        %v6315 = vsub.s32 %v6312, %v6314
        %v6316 = vrot.slane %v6302, %v6315
        %v6317 = vcombine.high %v6294, 0.0
        %v6318 = vcombine.high %v6301, 0.0
        %v6319 = vcombine.high %v6309, 0.0
        %v6320 = vcombine.high %v6316, 0.0
        %v6321 = vcombine.high %v793, 0.0
        %v6323 = vunpack.c.l.s4 1983009808
        %v6324 = vunpack.c.0.s8 %v6323
        %v6325 = vlaneseq
        %v6326 = vshrl.u32 %v6325, 7
        %v6327 = vsub.s32 %v6324, %v6326
        %v6328 = vrot.slane %v793, %v6327
        %v6330 = vunpack.c.l.s4 1983009808
        %v6331 = vunpack.c.0.s8 %v6330
        %v6332 = vlaneseq
        %v6333 = vshrl.u32 %v6332, 7
        %v6334 = vsub.s32 %v6331, %v6333
        %v6335 = vrot.slane %v6321, %v6334
        %v6336 = vcombine.high %v6328, 0.0
        %v6338 = vunpack.c.l.s4 1934713408
        %v6339 = vunpack.c.0.s8 %v6338
        %v6340 = vlaneseq
        %v6341 = vshrl.u32 %v6340, 7
        %v6342 = vsub.s32 %v6339, %v6341
        %v6343 = vrot.slane %v6328, %v6342
        %v6345 = vunpack.c.l.s4 1934713408
        %v6346 = vunpack.c.0.s8 %v6345
        %v6347 = vlaneseq
        %v6348 = vshrl.u32 %v6347, 7
        %v6349 = vsub.s32 %v6346, %v6348
        %v6350 = vrot.slane %v6336, %v6349
        %v6351 = vcombine.high %v6335, 0.0
        %v6353 = vunpack.c.l.s4 1934713408
        %v6354 = vunpack.c.0.s8 %v6353
        %v6355 = vlaneseq
        %v6356 = vshrl.u32 %v6355, 7
        %v6357 = vsub.s32 %v6354, %v6356
        %v6358 = vrot.slane %v6335, %v6357
        %v6360 = vunpack.c.l.s4 1934713408
        %v6361 = vunpack.c.0.s8 %v6360
        %v6362 = vlaneseq
        %v6363 = vshrl.u32 %v6362, 7
        %v6364 = vsub.s32 %v6361, %v6363
        %v6365 = vrot.slane %v6351, %v6364
        %v6366 = vcombine.high %v6343, 0.0
        %v6367 = vcombine.high %v6350, 0.0
        %v6368 = vcombine.high %v6358, 0.0
        %v6369 = vcombine.high %v6365, 0.0
        %v6370 = vcombine.high %v800, 0.0
        %v6372 = vunpack.c.l.s4 1983009808
        %v6373 = vunpack.c.0.s8 %v6372
        %v6374 = vlaneseq
        %v6375 = vshrl.u32 %v6374, 7
        %v6376 = vsub.s32 %v6373, %v6375
        %v6377 = vrot.slane %v800, %v6376
        %v6379 = vunpack.c.l.s4 1983009808
        %v6380 = vunpack.c.0.s8 %v6379
        %v6381 = vlaneseq
        %v6382 = vshrl.u32 %v6381, 7
        %v6383 = vsub.s32 %v6380, %v6382
        %v6384 = vrot.slane %v6370, %v6383
        %v6385 = vcombine.high %v6377, 0.0
        %v6387 = vunpack.c.l.s4 1934713408
        %v6388 = vunpack.c.0.s8 %v6387
        %v6389 = vlaneseq
        %v6390 = vshrl.u32 %v6389, 7
        %v6391 = vsub.s32 %v6388, %v6390
        %v6392 = vrot.slane %v6377, %v6391
        %v6394 = vunpack.c.l.s4 1934713408
        %v6395 = vunpack.c.0.s8 %v6394
        %v6396 = vlaneseq
        %v6397 = vshrl.u32 %v6396, 7
        %v6398 = vsub.s32 %v6395, %v6397
        %v6399 = vrot.slane %v6385, %v6398
        %v6400 = vcombine.high %v6384, 0.0
        %v6402 = vunpack.c.l.s4 1934713408
        %v6403 = vunpack.c.0.s8 %v6402
        %v6404 = vlaneseq
        %v6405 = vshrl.u32 %v6404, 7
        %v6406 = vsub.s32 %v6403, %v6405
        %v6407 = vrot.slane %v6384, %v6406
        %v6409 = vunpack.c.l.s4 1934713408
        %v6410 = vunpack.c.0.s8 %v6409
        %v6411 = vlaneseq
        %v6412 = vshrl.u32 %v6411, 7
        %v6413 = vsub.s32 %v6410, %v6412
        %v6414 = vrot.slane %v6400, %v6413
        %v6415 = vcombine.high %v6392, 0.0
        %v6416 = vcombine.high %v6399, 0.0
        %v6417 = vcombine.high %v6407, 0.0
        %v6418 = vcombine.high %v6414, 0.0
        %v6419 = vcombine.high %v804, 0.0
        %v6421 = vunpack.c.l.s4 1983009808
        %v6422 = vunpack.c.0.s8 %v6421
        %v6423 = vlaneseq
        %v6424 = vshrl.u32 %v6423, 7
        %v6425 = vsub.s32 %v6422, %v6424
        %v6426 = vrot.slane %v804, %v6425
        %v6428 = vunpack.c.l.s4 1983009808
        %v6429 = vunpack.c.0.s8 %v6428
        %v6430 = vlaneseq
        %v6431 = vshrl.u32 %v6430, 7
        %v6432 = vsub.s32 %v6429, %v6431
        %v6433 = vrot.slane %v6419, %v6432
        %v6434 = vcombine.high %v6426, 0.0
        %v6436 = vunpack.c.l.s4 1934713408
        %v6437 = vunpack.c.0.s8 %v6436
        %v6438 = vlaneseq
        %v6439 = vshrl.u32 %v6438, 7
        %v6440 = vsub.s32 %v6437, %v6439
        %v6441 = vrot.slane %v6426, %v6440
        %v6443 = vunpack.c.l.s4 1934713408
        %v6444 = vunpack.c.0.s8 %v6443
        %v6445 = vlaneseq
        %v6446 = vshrl.u32 %v6445, 7
        %v6447 = vsub.s32 %v6444, %v6446
        %v6448 = vrot.slane %v6434, %v6447
        %v6449 = vcombine.high %v6433, 0.0
        %v6451 = vunpack.c.l.s4 1934713408
        %v6452 = vunpack.c.0.s8 %v6451
        %v6453 = vlaneseq
        %v6454 = vshrl.u32 %v6453, 7
        %v6455 = vsub.s32 %v6452, %v6454
        %v6456 = vrot.slane %v6433, %v6455
        %v6458 = vunpack.c.l.s4 1934713408
        %v6459 = vunpack.c.0.s8 %v6458
        %v6460 = vlaneseq
        %v6461 = vshrl.u32 %v6460, 7
        %v6462 = vsub.s32 %v6459, %v6461
        %v6463 = vrot.slane %v6449, %v6462
        %v6464 = vcombine.high %v6441, 0.0
        %v6465 = vcombine.high %v6448, 0.0
        %v6466 = vcombine.high %v6456, 0.0
        %v6467 = vcombine.high %v6463, 0.0
        %v6468 = vcombine.high %v811, 0.0
        %v6470 = vunpack.c.l.s4 1983009808
        %v6471 = vunpack.c.0.s8 %v6470
        %v6472 = vlaneseq
        %v6473 = vshrl.u32 %v6472, 7
        %v6474 = vsub.s32 %v6471, %v6473
        %v6475 = vrot.slane %v811, %v6474
        %v6477 = vunpack.c.l.s4 1983009808
        %v6478 = vunpack.c.0.s8 %v6477
        %v6479 = vlaneseq
        %v6480 = vshrl.u32 %v6479, 7
        %v6481 = vsub.s32 %v6478, %v6480
        %v6482 = vrot.slane %v6468, %v6481
        %v6483 = vcombine.high %v6475, 0.0
        %v6485 = vunpack.c.l.s4 1934713408
        %v6486 = vunpack.c.0.s8 %v6485
        %v6487 = vlaneseq
        %v6488 = vshrl.u32 %v6487, 7
        %v6489 = vsub.s32 %v6486, %v6488
        %v6490 = vrot.slane %v6475, %v6489
        %v6492 = vunpack.c.l.s4 1934713408
        %v6493 = vunpack.c.0.s8 %v6492
        %v6494 = vlaneseq
        %v6495 = vshrl.u32 %v6494, 7
        %v6496 = vsub.s32 %v6493, %v6495
        %v6497 = vrot.slane %v6483, %v6496
        %v6498 = vcombine.high %v6482, 0.0
        %v6500 = vunpack.c.l.s4 1934713408
        %v6501 = vunpack.c.0.s8 %v6500
        %v6502 = vlaneseq
        %v6503 = vshrl.u32 %v6502, 7
        %v6504 = vsub.s32 %v6501, %v6503
        %v6505 = vrot.slane %v6482, %v6504
        %v6507 = vunpack.c.l.s4 1934713408
        %v6508 = vunpack.c.0.s8 %v6507
        %v6509 = vlaneseq
        %v6510 = vshrl.u32 %v6509, 7
        %v6511 = vsub.s32 %v6508, %v6510
        %v6512 = vrot.slane %v6498, %v6511
        %v6513 = vcombine.high %v6490, 0.0
        %v6514 = vcombine.high %v6497, 0.0
        %v6515 = vcombine.high %v6505, 0.0
        %v6516 = vcombine.high %v6512, 0.0
        %v6517 = vcombine.high %v815, 0.0
        %v6519 = vunpack.c.l.s4 1983009808
        %v6520 = vunpack.c.0.s8 %v6519
        %v6521 = vlaneseq
        %v6522 = vshrl.u32 %v6521, 7
        %v6523 = vsub.s32 %v6520, %v6522
        %v6524 = vrot.slane %v815, %v6523
        %v6526 = vunpack.c.l.s4 1983009808
        %v6527 = vunpack.c.0.s8 %v6526
        %v6528 = vlaneseq
        %v6529 = vshrl.u32 %v6528, 7
        %v6530 = vsub.s32 %v6527, %v6529
        %v6531 = vrot.slane %v6517, %v6530
        %v6532 = vcombine.high %v6524, 0.0
        %v6534 = vunpack.c.l.s4 1934713408
        %v6535 = vunpack.c.0.s8 %v6534
        %v6536 = vlaneseq
        %v6537 = vshrl.u32 %v6536, 7
        %v6538 = vsub.s32 %v6535, %v6537
        %v6539 = vrot.slane %v6524, %v6538
        %v6541 = vunpack.c.l.s4 1934713408
        %v6542 = vunpack.c.0.s8 %v6541
        %v6543 = vlaneseq
        %v6544 = vshrl.u32 %v6543, 7
        %v6545 = vsub.s32 %v6542, %v6544
        %v6546 = vrot.slane %v6532, %v6545
        %v6547 = vcombine.high %v6531, 0.0
        %v6549 = vunpack.c.l.s4 1934713408
        %v6550 = vunpack.c.0.s8 %v6549
        %v6551 = vlaneseq
        %v6552 = vshrl.u32 %v6551, 7
        %v6553 = vsub.s32 %v6550, %v6552
        %v6554 = vrot.slane %v6531, %v6553
        %v6556 = vunpack.c.l.s4 1934713408
        %v6557 = vunpack.c.0.s8 %v6556
        %v6558 = vlaneseq
        %v6559 = vshrl.u32 %v6558, 7
        %v6560 = vsub.s32 %v6557, %v6559
        %v6561 = vrot.slane %v6547, %v6560
        %v6562 = vcombine.high %v6539, 0.0
        %v6563 = vcombine.high %v6546, 0.0
        %v6564 = vcombine.high %v6554, 0.0
        %v6565 = vcombine.high %v6561, 0.0
        %v6566 = vcombine.high %v822, 0.0
        %v6568 = vunpack.c.l.s4 1983009808
        %v6569 = vunpack.c.0.s8 %v6568
        %v6570 = vlaneseq
        %v6571 = vshrl.u32 %v6570, 7
        %v6572 = vsub.s32 %v6569, %v6571
        %v6573 = vrot.slane %v822, %v6572
        %v6575 = vunpack.c.l.s4 1983009808
        %v6576 = vunpack.c.0.s8 %v6575
        %v6577 = vlaneseq
        %v6578 = vshrl.u32 %v6577, 7
        %v6579 = vsub.s32 %v6576, %v6578
        %v6580 = vrot.slane %v6566, %v6579
        %v6581 = vcombine.high %v6573, 0.0
        %v6583 = vunpack.c.l.s4 1934713408
        %v6584 = vunpack.c.0.s8 %v6583
        %v6585 = vlaneseq
        %v6586 = vshrl.u32 %v6585, 7
        %v6587 = vsub.s32 %v6584, %v6586
        %v6588 = vrot.slane %v6573, %v6587
        %v6590 = vunpack.c.l.s4 1934713408
        %v6591 = vunpack.c.0.s8 %v6590
        %v6592 = vlaneseq
        %v6593 = vshrl.u32 %v6592, 7
        %v6594 = vsub.s32 %v6591, %v6593
        %v6595 = vrot.slane %v6581, %v6594
        %v6596 = vcombine.high %v6580, 0.0
        %v6598 = vunpack.c.l.s4 1934713408
        %v6599 = vunpack.c.0.s8 %v6598
        %v6600 = vlaneseq
        %v6601 = vshrl.u32 %v6600, 7
        %v6602 = vsub.s32 %v6599, %v6601
        %v6603 = vrot.slane %v6580, %v6602
        %v6605 = vunpack.c.l.s4 1934713408
        %v6606 = vunpack.c.0.s8 %v6605
        %v6607 = vlaneseq
        %v6608 = vshrl.u32 %v6607, 7
        %v6609 = vsub.s32 %v6606, %v6608
        %v6610 = vrot.slane %v6596, %v6609
        %v6611 = vcombine.high %v6588, 0.0
        %v6612 = vcombine.high %v6595, 0.0
        %v6613 = vcombine.high %v6603, 0.0
        %v6614 = vcombine.high %v6610, 0.0
        %v6615 = vcombine.high %v826, 0.0
        %v6617 = vunpack.c.l.s4 1983009808
        %v6618 = vunpack.c.0.s8 %v6617
        %v6619 = vlaneseq
        %v6620 = vshrl.u32 %v6619, 7
        %v6621 = vsub.s32 %v6618, %v6620
        %v6622 = vrot.slane %v826, %v6621
        %v6624 = vunpack.c.l.s4 1983009808
        %v6625 = vunpack.c.0.s8 %v6624
        %v6626 = vlaneseq
        %v6627 = vshrl.u32 %v6626, 7
        %v6628 = vsub.s32 %v6625, %v6627
        %v6629 = vrot.slane %v6615, %v6628
        %v6630 = vcombine.high %v6622, 0.0
        %v6632 = vunpack.c.l.s4 1934713408
        %v6633 = vunpack.c.0.s8 %v6632
        %v6634 = vlaneseq
        %v6635 = vshrl.u32 %v6634, 7
        %v6636 = vsub.s32 %v6633, %v6635
        %v6637 = vrot.slane %v6622, %v6636
        %v6639 = vunpack.c.l.s4 1934713408
        %v6640 = vunpack.c.0.s8 %v6639
        %v6641 = vlaneseq
        %v6642 = vshrl.u32 %v6641, 7
        %v6643 = vsub.s32 %v6640, %v6642
        %v6644 = vrot.slane %v6630, %v6643
        %v6645 = vcombine.high %v6629, 0.0
        %v6647 = vunpack.c.l.s4 1934713408
        %v6648 = vunpack.c.0.s8 %v6647
        %v6649 = vlaneseq
        %v6650 = vshrl.u32 %v6649, 7
        %v6651 = vsub.s32 %v6648, %v6650
        %v6652 = vrot.slane %v6629, %v6651
        %v6654 = vunpack.c.l.s4 1934713408
        %v6655 = vunpack.c.0.s8 %v6654
        %v6656 = vlaneseq
        %v6657 = vshrl.u32 %v6656, 7
        %v6658 = vsub.s32 %v6655, %v6657
        %v6659 = vrot.slane %v6645, %v6658
        %v6660 = vcombine.high %v6637, 0.0
        %v6661 = vcombine.high %v6644, 0.0
        %v6662 = vcombine.high %v6652, 0.0
        %v6663 = vcombine.high %v6659, 0.0
        %v6664 = vcombine.high %v833, 0.0
        %v6666 = vunpack.c.l.s4 1983009808
        %v6667 = vunpack.c.0.s8 %v6666
        %v6668 = vlaneseq
        %v6669 = vshrl.u32 %v6668, 7
        %v6670 = vsub.s32 %v6667, %v6669
        %v6671 = vrot.slane %v833, %v6670
        %v6673 = vunpack.c.l.s4 1983009808
        %v6674 = vunpack.c.0.s8 %v6673
        %v6675 = vlaneseq
        %v6676 = vshrl.u32 %v6675, 7
        %v6677 = vsub.s32 %v6674, %v6676
        %v6678 = vrot.slane %v6664, %v6677
        %v6679 = vcombine.high %v6671, 0.0
        %v6681 = vunpack.c.l.s4 1934713408
        %v6682 = vunpack.c.0.s8 %v6681
        %v6683 = vlaneseq
        %v6684 = vshrl.u32 %v6683, 7
        %v6685 = vsub.s32 %v6682, %v6684
        %v6686 = vrot.slane %v6671, %v6685
        %v6688 = vunpack.c.l.s4 1934713408
        %v6689 = vunpack.c.0.s8 %v6688
        %v6690 = vlaneseq
        %v6691 = vshrl.u32 %v6690, 7
        %v6692 = vsub.s32 %v6689, %v6691
        %v6693 = vrot.slane %v6679, %v6692
        %v6694 = vcombine.high %v6678, 0.0
        %v6696 = vunpack.c.l.s4 1934713408
        %v6697 = vunpack.c.0.s8 %v6696
        %v6698 = vlaneseq
        %v6699 = vshrl.u32 %v6698, 7
        %v6700 = vsub.s32 %v6697, %v6699
        %v6701 = vrot.slane %v6678, %v6700
        %v6703 = vunpack.c.l.s4 1934713408
        %v6704 = vunpack.c.0.s8 %v6703
        %v6705 = vlaneseq
        %v6706 = vshrl.u32 %v6705, 7
        %v6707 = vsub.s32 %v6704, %v6706
        %v6708 = vrot.slane %v6694, %v6707
        %v6709 = vcombine.high %v6686, 0.0
        %v6710 = vcombine.high %v6693, 0.0
        %v6711 = vcombine.high %v6701, 0.0
        %v6712 = vcombine.high %v6708, 0.0
        %v6713 = vcombine.high %v837, 0.0
        %v6715 = vunpack.c.l.s4 1983009808
        %v6716 = vunpack.c.0.s8 %v6715
        %v6717 = vlaneseq
        %v6718 = vshrl.u32 %v6717, 7
        %v6719 = vsub.s32 %v6716, %v6718
        %v6720 = vrot.slane %v837, %v6719
        %v6722 = vunpack.c.l.s4 1983009808
        %v6723 = vunpack.c.0.s8 %v6722
        %v6724 = vlaneseq
        %v6725 = vshrl.u32 %v6724, 7
        %v6726 = vsub.s32 %v6723, %v6725
        %v6727 = vrot.slane %v6713, %v6726
        %v6728 = vcombine.high %v6720, 0.0
        %v6730 = vunpack.c.l.s4 1934713408
        %v6731 = vunpack.c.0.s8 %v6730
        %v6732 = vlaneseq
        %v6733 = vshrl.u32 %v6732, 7
        %v6734 = vsub.s32 %v6731, %v6733
        %v6735 = vrot.slane %v6720, %v6734
        %v6737 = vunpack.c.l.s4 1934713408
        %v6738 = vunpack.c.0.s8 %v6737
        %v6739 = vlaneseq
        %v6740 = vshrl.u32 %v6739, 7
        %v6741 = vsub.s32 %v6738, %v6740
        %v6742 = vrot.slane %v6728, %v6741
        %v6743 = vcombine.high %v6727, 0.0
        %v6745 = vunpack.c.l.s4 1934713408
        %v6746 = vunpack.c.0.s8 %v6745
        %v6747 = vlaneseq
        %v6748 = vshrl.u32 %v6747, 7
        %v6749 = vsub.s32 %v6746, %v6748
        %v6750 = vrot.slane %v6727, %v6749
        %v6752 = vunpack.c.l.s4 1934713408
        %v6753 = vunpack.c.0.s8 %v6752
        %v6754 = vlaneseq
        %v6755 = vshrl.u32 %v6754, 7
        %v6756 = vsub.s32 %v6753, %v6755
        %v6757 = vrot.slane %v6743, %v6756
        %v6758 = vcombine.high %v6735, 0.0
        %v6759 = vcombine.high %v6742, 0.0
        %v6760 = vcombine.high %v6750, 0.0
        %v6761 = vcombine.high %v6757, 0.0
        %v6762 = vcombine.high %v844, 0.0
        %v6764 = vunpack.c.l.s4 1983009808
        %v6765 = vunpack.c.0.s8 %v6764
        %v6766 = vlaneseq
        %v6767 = vshrl.u32 %v6766, 7
        %v6768 = vsub.s32 %v6765, %v6767
        %v6769 = vrot.slane %v844, %v6768
        %v6771 = vunpack.c.l.s4 1983009808
        %v6772 = vunpack.c.0.s8 %v6771
        %v6773 = vlaneseq
        %v6774 = vshrl.u32 %v6773, 7
        %v6775 = vsub.s32 %v6772, %v6774
        %v6776 = vrot.slane %v6762, %v6775
        %v6777 = vcombine.high %v6769, 0.0
        %v6779 = vunpack.c.l.s4 1934713408
        %v6780 = vunpack.c.0.s8 %v6779
        %v6781 = vlaneseq
        %v6782 = vshrl.u32 %v6781, 7
        %v6783 = vsub.s32 %v6780, %v6782
        %v6784 = vrot.slane %v6769, %v6783
        %v6786 = vunpack.c.l.s4 1934713408
        %v6787 = vunpack.c.0.s8 %v6786
        %v6788 = vlaneseq
        %v6789 = vshrl.u32 %v6788, 7
        %v6790 = vsub.s32 %v6787, %v6789
        %v6791 = vrot.slane %v6777, %v6790
        %v6792 = vcombine.high %v6776, 0.0
        %v6794 = vunpack.c.l.s4 1934713408
        %v6795 = vunpack.c.0.s8 %v6794
        %v6796 = vlaneseq
        %v6797 = vshrl.u32 %v6796, 7
        %v6798 = vsub.s32 %v6795, %v6797
        %v6799 = vrot.slane %v6776, %v6798
        %v6801 = vunpack.c.l.s4 1934713408
        %v6802 = vunpack.c.0.s8 %v6801
        %v6803 = vlaneseq
        %v6804 = vshrl.u32 %v6803, 7
        %v6805 = vsub.s32 %v6802, %v6804
        %v6806 = vrot.slane %v6792, %v6805
        %v6807 = vcombine.high %v6784, 0.0
        %v6808 = vcombine.high %v6791, 0.0
        %v6809 = vcombine.high %v6799, 0.0
        %v6810 = vcombine.high %v6806, 0.0
        %v6811 = vcombine.high %v848, 0.0
        %v6813 = vunpack.c.l.s4 1983009808
        %v6814 = vunpack.c.0.s8 %v6813
        %v6815 = vlaneseq
        %v6816 = vshrl.u32 %v6815, 7
        %v6817 = vsub.s32 %v6814, %v6816
        %v6818 = vrot.slane %v848, %v6817
        %v6820 = vunpack.c.l.s4 1983009808
        %v6821 = vunpack.c.0.s8 %v6820
        %v6822 = vlaneseq
        %v6823 = vshrl.u32 %v6822, 7
        %v6824 = vsub.s32 %v6821, %v6823
        %v6825 = vrot.slane %v6811, %v6824
        %v6826 = vcombine.high %v6818, 0.0
        %v6828 = vunpack.c.l.s4 1934713408
        %v6829 = vunpack.c.0.s8 %v6828
        %v6830 = vlaneseq
        %v6831 = vshrl.u32 %v6830, 7
        %v6832 = vsub.s32 %v6829, %v6831
        %v6833 = vrot.slane %v6818, %v6832
        %v6835 = vunpack.c.l.s4 1934713408
        %v6836 = vunpack.c.0.s8 %v6835
        %v6837 = vlaneseq
        %v6838 = vshrl.u32 %v6837, 7
        %v6839 = vsub.s32 %v6836, %v6838
        %v6840 = vrot.slane %v6826, %v6839
        %v6841 = vcombine.high %v6825, 0.0
        %v6843 = vunpack.c.l.s4 1934713408
        %v6844 = vunpack.c.0.s8 %v6843
        %v6845 = vlaneseq
        %v6846 = vshrl.u32 %v6845, 7
        %v6847 = vsub.s32 %v6844, %v6846
        %v6848 = vrot.slane %v6825, %v6847
        %v6850 = vunpack.c.l.s4 1934713408
        %v6851 = vunpack.c.0.s8 %v6850
        %v6852 = vlaneseq
        %v6853 = vshrl.u32 %v6852, 7
        %v6854 = vsub.s32 %v6851, %v6853
        %v6855 = vrot.slane %v6841, %v6854
        %v6856 = vcombine.high %v6833, 0.0
        %v6857 = vcombine.high %v6840, 0.0
        %v6858 = vcombine.high %v6848, 0.0
        %v6859 = vcombine.high %v6855, 0.0
        %v6860 = vcombine.high %v855, 0.0
        %v6862 = vunpack.c.l.s4 1983009808
        %v6863 = vunpack.c.0.s8 %v6862
        %v6864 = vlaneseq
        %v6865 = vshrl.u32 %v6864, 7
        %v6866 = vsub.s32 %v6863, %v6865
        %v6867 = vrot.slane %v855, %v6866
        %v6869 = vunpack.c.l.s4 1983009808
        %v6870 = vunpack.c.0.s8 %v6869
        %v6871 = vlaneseq
        %v6872 = vshrl.u32 %v6871, 7
        %v6873 = vsub.s32 %v6870, %v6872
        %v6874 = vrot.slane %v6860, %v6873
        %v6875 = vcombine.high %v6867, 0.0
        %v6877 = vunpack.c.l.s4 1934713408
        %v6878 = vunpack.c.0.s8 %v6877
        %v6879 = vlaneseq
        %v6880 = vshrl.u32 %v6879, 7
        %v6881 = vsub.s32 %v6878, %v6880
        %v6882 = vrot.slane %v6867, %v6881
        %v6884 = vunpack.c.l.s4 1934713408
        %v6885 = vunpack.c.0.s8 %v6884
        %v6886 = vlaneseq
        %v6887 = vshrl.u32 %v6886, 7
        %v6888 = vsub.s32 %v6885, %v6887
        %v6889 = vrot.slane %v6875, %v6888
        %v6890 = vcombine.high %v6874, 0.0
        %v6892 = vunpack.c.l.s4 1934713408
        %v6893 = vunpack.c.0.s8 %v6892
        %v6894 = vlaneseq
        %v6895 = vshrl.u32 %v6894, 7
        %v6896 = vsub.s32 %v6893, %v6895
        %v6897 = vrot.slane %v6874, %v6896
        %v6899 = vunpack.c.l.s4 1934713408
        %v6900 = vunpack.c.0.s8 %v6899
        %v6901 = vlaneseq
        %v6902 = vshrl.u32 %v6901, 7
        %v6903 = vsub.s32 %v6900, %v6902
        %v6904 = vrot.slane %v6890, %v6903
        %v6905 = vcombine.high %v6882, 0.0
        %v6906 = vcombine.high %v6889, 0.0
        %v6907 = vcombine.high %v6897, 0.0
        %v6908 = vcombine.high %v6904, 0.0
        %v6909 = vcombine.high %v859, 0.0
        %v6911 = vunpack.c.l.s4 1983009808
        %v6912 = vunpack.c.0.s8 %v6911
        %v6913 = vlaneseq
        %v6914 = vshrl.u32 %v6913, 7
        %v6915 = vsub.s32 %v6912, %v6914
        %v6916 = vrot.slane %v859, %v6915
        %v6918 = vunpack.c.l.s4 1983009808
        %v6919 = vunpack.c.0.s8 %v6918
        %v6920 = vlaneseq
        %v6921 = vshrl.u32 %v6920, 7
        %v6922 = vsub.s32 %v6919, %v6921
        %v6923 = vrot.slane %v6909, %v6922
        %v6924 = vcombine.high %v6916, 0.0
        %v6926 = vunpack.c.l.s4 1934713408
        %v6927 = vunpack.c.0.s8 %v6926
        %v6928 = vlaneseq
        %v6929 = vshrl.u32 %v6928, 7
        %v6930 = vsub.s32 %v6927, %v6929
        %v6931 = vrot.slane %v6916, %v6930
        %v6933 = vunpack.c.l.s4 1934713408
        %v6934 = vunpack.c.0.s8 %v6933
        %v6935 = vlaneseq
        %v6936 = vshrl.u32 %v6935, 7
        %v6937 = vsub.s32 %v6934, %v6936
        %v6938 = vrot.slane %v6924, %v6937
        %v6939 = vcombine.high %v6923, 0.0
        %v6941 = vunpack.c.l.s4 1934713408
        %v6942 = vunpack.c.0.s8 %v6941
        %v6943 = vlaneseq
        %v6944 = vshrl.u32 %v6943, 7
        %v6945 = vsub.s32 %v6942, %v6944
        %v6946 = vrot.slane %v6923, %v6945
        %v6948 = vunpack.c.l.s4 1934713408
        %v6949 = vunpack.c.0.s8 %v6948
        %v6950 = vlaneseq
        %v6951 = vshrl.u32 %v6950, 7
        %v6952 = vsub.s32 %v6949, %v6951
        %v6953 = vrot.slane %v6939, %v6952
        %v6954 = vcombine.high %v6931, 0.0
        %v6955 = vcombine.high %v6938, 0.0
        %v6956 = vcombine.high %v6946, 0.0
        %v6957 = vcombine.high %v6953, 0.0
        %v6958 = vcombine.high %v866, 0.0
        %v6960 = vunpack.c.l.s4 1983009808
        %v6961 = vunpack.c.0.s8 %v6960
        %v6962 = vlaneseq
        %v6963 = vshrl.u32 %v6962, 7
        %v6964 = vsub.s32 %v6961, %v6963
        %v6965 = vrot.slane %v866, %v6964
        %v6967 = vunpack.c.l.s4 1983009808
        %v6968 = vunpack.c.0.s8 %v6967
        %v6969 = vlaneseq
        %v6970 = vshrl.u32 %v6969, 7
        %v6971 = vsub.s32 %v6968, %v6970
        %v6972 = vrot.slane %v6958, %v6971
        %v6973 = vcombine.high %v6965, 0.0
        %v6975 = vunpack.c.l.s4 1934713408
        %v6976 = vunpack.c.0.s8 %v6975
        %v6977 = vlaneseq
        %v6978 = vshrl.u32 %v6977, 7
        %v6979 = vsub.s32 %v6976, %v6978
        %v6980 = vrot.slane %v6965, %v6979
        %v6982 = vunpack.c.l.s4 1934713408
        %v6983 = vunpack.c.0.s8 %v6982
        %v6984 = vlaneseq
        %v6985 = vshrl.u32 %v6984, 7
        %v6986 = vsub.s32 %v6983, %v6985
        %v6987 = vrot.slane %v6973, %v6986
        %v6988 = vcombine.high %v6972, 0.0
        %v6990 = vunpack.c.l.s4 1934713408
        %v6991 = vunpack.c.0.s8 %v6990
        %v6992 = vlaneseq
        %v6993 = vshrl.u32 %v6992, 7
        %v6994 = vsub.s32 %v6991, %v6993
        %v6995 = vrot.slane %v6972, %v6994
        %v6997 = vunpack.c.l.s4 1934713408
        %v6998 = vunpack.c.0.s8 %v6997
        %v6999 = vlaneseq
        %v7000 = vshrl.u32 %v6999, 7
        %v7001 = vsub.s32 %v6998, %v7000
        %v7002 = vrot.slane %v6988, %v7001
        %v7003 = vcombine.high %v6980, 0.0
        %v7004 = vcombine.high %v6987, 0.0
        %v7005 = vcombine.high %v6995, 0.0
        %v7006 = vcombine.high %v7002, 0.0
        %v7007 = vcombine.high %v870, 0.0
        %v7009 = vunpack.c.l.s4 1983009808
        %v7010 = vunpack.c.0.s8 %v7009
        %v7011 = vlaneseq
        %v7012 = vshrl.u32 %v7011, 7
        %v7013 = vsub.s32 %v7010, %v7012
        %v7014 = vrot.slane %v870, %v7013
        %v7016 = vunpack.c.l.s4 1983009808
        %v7017 = vunpack.c.0.s8 %v7016
        %v7018 = vlaneseq
        %v7019 = vshrl.u32 %v7018, 7
        %v7020 = vsub.s32 %v7017, %v7019
        %v7021 = vrot.slane %v7007, %v7020
        %v7022 = vcombine.high %v7014, 0.0
        %v7024 = vunpack.c.l.s4 1934713408
        %v7025 = vunpack.c.0.s8 %v7024
        %v7026 = vlaneseq
        %v7027 = vshrl.u32 %v7026, 7
        %v7028 = vsub.s32 %v7025, %v7027
        %v7029 = vrot.slane %v7014, %v7028
        %v7031 = vunpack.c.l.s4 1934713408
        %v7032 = vunpack.c.0.s8 %v7031
        %v7033 = vlaneseq
        %v7034 = vshrl.u32 %v7033, 7
        %v7035 = vsub.s32 %v7032, %v7034
        %v7036 = vrot.slane %v7022, %v7035
        %v7037 = vcombine.high %v7021, 0.0
        %v7039 = vunpack.c.l.s4 1934713408
        %v7040 = vunpack.c.0.s8 %v7039
        %v7041 = vlaneseq
        %v7042 = vshrl.u32 %v7041, 7
        %v7043 = vsub.s32 %v7040, %v7042
        %v7044 = vrot.slane %v7021, %v7043
        %v7046 = vunpack.c.l.s4 1934713408
        %v7047 = vunpack.c.0.s8 %v7046
        %v7048 = vlaneseq
        %v7049 = vshrl.u32 %v7048, 7
        %v7050 = vsub.s32 %v7047, %v7049
        %v7051 = vrot.slane %v7037, %v7050
        %v7052 = vcombine.high %v7029, 0.0
        %v7053 = vcombine.high %v7036, 0.0
        %v7054 = vcombine.high %v7044, 0.0
        %v7055 = vcombine.high %v7051, 0.0
        %v7056 = vcombine.high %v877, 0.0
        %v7058 = vunpack.c.l.s4 1983009808
        %v7059 = vunpack.c.0.s8 %v7058
        %v7060 = vlaneseq
        %v7061 = vshrl.u32 %v7060, 7
        %v7062 = vsub.s32 %v7059, %v7061
        %v7063 = vrot.slane %v877, %v7062
        %v7065 = vunpack.c.l.s4 1983009808
        %v7066 = vunpack.c.0.s8 %v7065
        %v7067 = vlaneseq
        %v7068 = vshrl.u32 %v7067, 7
        %v7069 = vsub.s32 %v7066, %v7068
        %v7070 = vrot.slane %v7056, %v7069
        %v7071 = vcombine.high %v7063, 0.0
        %v7073 = vunpack.c.l.s4 1934713408
        %v7074 = vunpack.c.0.s8 %v7073
        %v7075 = vlaneseq
        %v7076 = vshrl.u32 %v7075, 7
        %v7077 = vsub.s32 %v7074, %v7076
        %v7078 = vrot.slane %v7063, %v7077
        %v7080 = vunpack.c.l.s4 1934713408
        %v7081 = vunpack.c.0.s8 %v7080
        %v7082 = vlaneseq
        %v7083 = vshrl.u32 %v7082, 7
        %v7084 = vsub.s32 %v7081, %v7083
        %v7085 = vrot.slane %v7071, %v7084
        %v7086 = vcombine.high %v7070, 0.0
        %v7088 = vunpack.c.l.s4 1934713408
        %v7089 = vunpack.c.0.s8 %v7088
        %v7090 = vlaneseq
        %v7091 = vshrl.u32 %v7090, 7
        %v7092 = vsub.s32 %v7089, %v7091
        %v7093 = vrot.slane %v7070, %v7092
        %v7095 = vunpack.c.l.s4 1934713408
        %v7096 = vunpack.c.0.s8 %v7095
        %v7097 = vlaneseq
        %v7098 = vshrl.u32 %v7097, 7
        %v7099 = vsub.s32 %v7096, %v7098
        %v7100 = vrot.slane %v7086, %v7099
        %v7101 = vcombine.high %v7078, 0.0
        %v7102 = vcombine.high %v7085, 0.0
        %v7103 = vcombine.high %v7093, 0.0
        %v7104 = vcombine.high %v7100, 0.0
        %v7105 = vcombine.high %v881, 0.0
        %v7107 = vunpack.c.l.s4 1983009808
        %v7108 = vunpack.c.0.s8 %v7107
        %v7109 = vlaneseq
        %v7110 = vshrl.u32 %v7109, 7
        %v7111 = vsub.s32 %v7108, %v7110
        %v7112 = vrot.slane %v881, %v7111
        %v7114 = vunpack.c.l.s4 1983009808
        %v7115 = vunpack.c.0.s8 %v7114
        %v7116 = vlaneseq
        %v7117 = vshrl.u32 %v7116, 7
        %v7118 = vsub.s32 %v7115, %v7117
        %v7119 = vrot.slane %v7105, %v7118
        %v7120 = vcombine.high %v7112, 0.0
        %v7122 = vunpack.c.l.s4 1934713408
        %v7123 = vunpack.c.0.s8 %v7122
        %v7124 = vlaneseq
        %v7125 = vshrl.u32 %v7124, 7
        %v7126 = vsub.s32 %v7123, %v7125
        %v7127 = vrot.slane %v7112, %v7126
        %v7129 = vunpack.c.l.s4 1934713408
        %v7130 = vunpack.c.0.s8 %v7129
        %v7131 = vlaneseq
        %v7132 = vshrl.u32 %v7131, 7
        %v7133 = vsub.s32 %v7130, %v7132
        %v7134 = vrot.slane %v7120, %v7133
        %v7135 = vcombine.high %v7119, 0.0
        %v7137 = vunpack.c.l.s4 1934713408
        %v7138 = vunpack.c.0.s8 %v7137
        %v7139 = vlaneseq
        %v7140 = vshrl.u32 %v7139, 7
        %v7141 = vsub.s32 %v7138, %v7140
        %v7142 = vrot.slane %v7119, %v7141
        %v7144 = vunpack.c.l.s4 1934713408
        %v7145 = vunpack.c.0.s8 %v7144
        %v7146 = vlaneseq
        %v7147 = vshrl.u32 %v7146, 7
        %v7148 = vsub.s32 %v7145, %v7147
        %v7149 = vrot.slane %v7135, %v7148
        %v7150 = vcombine.high %v7127, 0.0
        %v7151 = vcombine.high %v7134, 0.0
        %v7152 = vcombine.high %v7142, 0.0
        %v7153 = vcombine.high %v7149, 0.0
        %7218 = vrot.lane.b32.xlu0 %v927, 2
        %v7219 = vpop.permute.xlu0 %7218
        %7220 = vrot.lane.b32.xlu0 %v1025, 2
        %v7221 = vpop.permute.xlu0 %7220
        %7222 = vrot.lane.b32.xlu0 %v1123, 2
        %v7223 = vpop.permute.xlu0 %7222
        %7224 = vrot.lane.b32.xlu0 %v1221, 2
        %v7225 = vpop.permute.xlu0 %7224
        %7226 = vrot.lane.b32.xlu0 %v1319, 2
        %v7227 = vpop.permute.xlu0 %7226
        %7228 = vrot.lane.b32.xlu0 %v1417, 2
        %v7229 = vpop.permute.xlu0 %7228
        %7230 = vrot.lane.b32.xlu0 %v1515, 2
        %v7231 = vpop.permute.xlu0 %7230
        %7232 = vrot.lane.b32.xlu0 %v1613, 2
        %v7233 = vpop.permute.xlu0 %7232
        %7234 = vrot.lane.b32.xlu0 %v1711, 2
        %v7235 = vpop.permute.xlu0 %7234
        %7236 = vrot.lane.b32.xlu0 %v1809, 2
        %v7237 = vpop.permute.xlu0 %7236
        %7238 = vrot.lane.b32.xlu0 %v1907, 2
        %v7239 = vpop.permute.xlu0 %7238
        %7240 = vrot.lane.b32.xlu0 %v2005, 2
        %v7241 = vpop.permute.xlu0 %7240
        %7242 = vrot.lane.b32.xlu0 %v2103, 2
        %v7243 = vpop.permute.xlu0 %7242
        %7244 = vrot.lane.b32.xlu0 %v2201, 2
        %v7245 = vpop.permute.xlu0 %7244
        %7246 = vrot.lane.b32.xlu0 %v2299, 2
        %v7247 = vpop.permute.xlu0 %7246
        %7248 = vrot.lane.b32.xlu0 %v2397, 2
        %v7249 = vpop.permute.xlu0 %7248
        %7250 = vrot.lane.b32.xlu0 %v2495, 2
        %v7251 = vpop.permute.xlu0 %7250
        %7252 = vrot.lane.b32.xlu0 %v2593, 2
        %v7253 = vpop.permute.xlu0 %7252
        %7254 = vrot.lane.b32.xlu0 %v2691, 2
        %v7255 = vpop.permute.xlu0 %7254
        %7256 = vrot.lane.b32.xlu0 %v2789, 2
        %v7257 = vpop.permute.xlu0 %7256
        %7258 = vrot.lane.b32.xlu0 %v2887, 2
        %v7259 = vpop.permute.xlu0 %7258
        %7260 = vrot.lane.b32.xlu0 %v2985, 2
        %v7261 = vpop.permute.xlu0 %7260
        %7262 = vrot.lane.b32.xlu0 %v3083, 2
        %v7263 = vpop.permute.xlu0 %7262
        %7264 = vrot.lane.b32.xlu0 %v3181, 2
        %v7265 = vpop.permute.xlu0 %7264
        %7266 = vrot.lane.b32.xlu0 %v3279, 2
        %v7267 = vpop.permute.xlu0 %7266
        %7268 = vrot.lane.b32.xlu0 %v3377, 2
        %v7269 = vpop.permute.xlu0 %7268
        %7270 = vrot.lane.b32.xlu0 %v3475, 2
        %v7271 = vpop.permute.xlu0 %7270
        %7272 = vrot.lane.b32.xlu0 %v3573, 2
        %v7273 = vpop.permute.xlu0 %7272
        %7274 = vrot.lane.b32.xlu0 %v3671, 2
        %v7275 = vpop.permute.xlu0 %7274
        %7276 = vrot.lane.b32.xlu0 %v3769, 2
        %v7277 = vpop.permute.xlu0 %7276
        %7278 = vrot.lane.b32.xlu0 %v3867, 2
        %v7279 = vpop.permute.xlu0 %7278
        %7280 = vrot.lane.b32.xlu0 %v3965, 2
        %v7281 = vpop.permute.xlu0 %7280
        %7282 = vrot.lane.b32.xlu0 %v4063, 2
        %v7283 = vpop.permute.xlu0 %7282
        %7284 = vrot.lane.b32.xlu0 %v4161, 2
        %v7285 = vpop.permute.xlu0 %7284
        %7286 = vrot.lane.b32.xlu0 %v4259, 2
        %v7287 = vpop.permute.xlu0 %7286
        %7288 = vrot.lane.b32.xlu0 %v4357, 2
        %v7289 = vpop.permute.xlu0 %7288
        %7290 = vrot.lane.b32.xlu0 %v4455, 2
        %v7291 = vpop.permute.xlu0 %7290
        %7292 = vrot.lane.b32.xlu0 %v4553, 2
        %v7293 = vpop.permute.xlu0 %7292
        %7294 = vrot.lane.b32.xlu0 %v4651, 2
        %v7295 = vpop.permute.xlu0 %7294
        %7296 = vrot.lane.b32.xlu0 %v4749, 2
        %v7297 = vpop.permute.xlu0 %7296
        %7298 = vrot.lane.b32.xlu0 %v4847, 2
        %v7299 = vpop.permute.xlu0 %7298
        %7300 = vrot.lane.b32.xlu0 %v4945, 2
        %v7301 = vpop.permute.xlu0 %7300
        %7302 = vrot.lane.b32.xlu0 %v5043, 2
        %v7303 = vpop.permute.xlu0 %7302
        %7304 = vrot.lane.b32.xlu0 %v5141, 2
        %v7305 = vpop.permute.xlu0 %7304
        %7306 = vrot.lane.b32.xlu0 %v5239, 2
        %v7307 = vpop.permute.xlu0 %7306
        %7308 = vrot.lane.b32.xlu0 %v5337, 2
        %v7309 = vpop.permute.xlu0 %7308
        %7310 = vrot.lane.b32.xlu0 %v5435, 2
        %v7311 = vpop.permute.xlu0 %7310
        %7312 = vrot.lane.b32.xlu0 %v5533, 2
        %v7313 = vpop.permute.xlu0 %7312
        %7314 = vrot.lane.b32.xlu0 %v5631, 2
        %v7315 = vpop.permute.xlu0 %7314
        %7316 = vrot.lane.b32.xlu0 %v5729, 2
        %v7317 = vpop.permute.xlu0 %7316
        %7318 = vrot.lane.b32.xlu0 %v5827, 2
        %v7319 = vpop.permute.xlu0 %7318
        %7320 = vrot.lane.b32.xlu0 %v5925, 2
        %v7321 = vpop.permute.xlu0 %7320
        %7322 = vrot.lane.b32.xlu0 %v6023, 2
        %v7323 = vpop.permute.xlu0 %7322
        %7324 = vrot.lane.b32.xlu0 %v6121, 2
        %v7325 = vpop.permute.xlu0 %7324
        %7326 = vrot.lane.b32.xlu0 %v6219, 2
        %v7327 = vpop.permute.xlu0 %7326
        %7328 = vrot.lane.b32.xlu0 %v6317, 2
        %v7329 = vpop.permute.xlu0 %7328
        %7330 = vrot.lane.b32.xlu0 %v6415, 2
        %v7331 = vpop.permute.xlu0 %7330
        %7332 = vrot.lane.b32.xlu0 %v6513, 2
        %v7333 = vpop.permute.xlu0 %7332
        %7334 = vrot.lane.b32.xlu0 %v6611, 2
        %v7335 = vpop.permute.xlu0 %7334
        %7336 = vrot.lane.b32.xlu0 %v6709, 2
        %v7337 = vpop.permute.xlu0 %7336
        %7338 = vrot.lane.b32.xlu0 %v6807, 2
        %v7339 = vpop.permute.xlu0 %7338
        %7340 = vrot.lane.b32.xlu0 %v6905, 2
        %v7341 = vpop.permute.xlu0 %7340
        %7342 = vrot.lane.b32.xlu0 %v7003, 2
        %v7343 = vpop.permute.xlu0 %7342
        %7344 = vrot.lane.b32.xlu0 %v7101, 2
        %v7345 = vpop.permute.xlu0 %7344
        %7474 = vrot.lane.b32.xlu0 %v911, 4
        %v7475 = vpop.permute.xlu0 %7474
        %7476 = vrot.lane.b32.xlu0 %v1009, 4
        %v7477 = vpop.permute.xlu0 %7476
        %7478 = vrot.lane.b32.xlu0 %v1107, 4
        %v7479 = vpop.permute.xlu0 %7478
        %7480 = vrot.lane.b32.xlu0 %v1205, 4
        %v7481 = vpop.permute.xlu0 %7480
        %7482 = vrot.lane.b32.xlu0 %v1303, 4
        %v7483 = vpop.permute.xlu0 %7482
        %7484 = vrot.lane.b32.xlu0 %v1401, 4
        %v7485 = vpop.permute.xlu0 %7484
        %7486 = vrot.lane.b32.xlu0 %v1499, 4
        %v7487 = vpop.permute.xlu0 %7486
        %7488 = vrot.lane.b32.xlu0 %v1597, 4
        %v7489 = vpop.permute.xlu0 %7488
        %7490 = vrot.lane.b32.xlu0 %v1695, 4
        %v7491 = vpop.permute.xlu0 %7490
        %7492 = vrot.lane.b32.xlu0 %v1793, 4
        %v7493 = vpop.permute.xlu0 %7492
        %7494 = vrot.lane.b32.xlu0 %v1891, 4
        %v7495 = vpop.permute.xlu0 %7494
        %7496 = vrot.lane.b32.xlu0 %v1989, 4
        %v7497 = vpop.permute.xlu0 %7496
        %7498 = vrot.lane.b32.xlu0 %v2087, 4
        %v7499 = vpop.permute.xlu0 %7498
        %7500 = vrot.lane.b32.xlu0 %v2185, 4
        %v7501 = vpop.permute.xlu0 %7500
        %7502 = vrot.lane.b32.xlu0 %v2283, 4
        %v7503 = vpop.permute.xlu0 %7502
        %7504 = vrot.lane.b32.xlu0 %v2381, 4
        %v7505 = vpop.permute.xlu0 %7504
        %7506 = vrot.lane.b32.xlu0 %v2479, 4
        %v7507 = vpop.permute.xlu0 %7506
        %7508 = vrot.lane.b32.xlu0 %v2577, 4
        %v7509 = vpop.permute.xlu0 %7508
        %7510 = vrot.lane.b32.xlu0 %v2675, 4
        %v7511 = vpop.permute.xlu0 %7510
        %7512 = vrot.lane.b32.xlu0 %v2773, 4
        %v7513 = vpop.permute.xlu0 %7512
        %7514 = vrot.lane.b32.xlu0 %v2871, 4
        %v7515 = vpop.permute.xlu0 %7514
        %7516 = vrot.lane.b32.xlu0 %v2969, 4
        %v7517 = vpop.permute.xlu0 %7516
        %7518 = vrot.lane.b32.xlu0 %v3067, 4
        %v7519 = vpop.permute.xlu0 %7518
        %7520 = vrot.lane.b32.xlu0 %v3165, 4
        %v7521 = vpop.permute.xlu0 %7520
        %7522 = vrot.lane.b32.xlu0 %v3263, 4
        %v7523 = vpop.permute.xlu0 %7522
        %7524 = vrot.lane.b32.xlu0 %v3361, 4
        %v7525 = vpop.permute.xlu0 %7524
        %7526 = vrot.lane.b32.xlu0 %v3459, 4
        %v7527 = vpop.permute.xlu0 %7526
        %7528 = vrot.lane.b32.xlu0 %v3557, 4
        %v7529 = vpop.permute.xlu0 %7528
        %7530 = vrot.lane.b32.xlu0 %v3655, 4
        %v7531 = vpop.permute.xlu0 %7530
        %7532 = vrot.lane.b32.xlu0 %v3753, 4
        %v7533 = vpop.permute.xlu0 %7532
        %7534 = vrot.lane.b32.xlu0 %v3851, 4
        %v7535 = vpop.permute.xlu0 %7534
        %7536 = vrot.lane.b32.xlu0 %v3949, 4
        %v7537 = vpop.permute.xlu0 %7536
        %7538 = vrot.lane.b32.xlu0 %v4047, 4
        %v7539 = vpop.permute.xlu0 %7538
        %7540 = vrot.lane.b32.xlu0 %v4145, 4
        %v7541 = vpop.permute.xlu0 %7540
        %7542 = vrot.lane.b32.xlu0 %v4243, 4
        %v7543 = vpop.permute.xlu0 %7542
        %7544 = vrot.lane.b32.xlu0 %v4341, 4
        %v7545 = vpop.permute.xlu0 %7544
        %7546 = vrot.lane.b32.xlu0 %v4439, 4
        %v7547 = vpop.permute.xlu0 %7546
        %7548 = vrot.lane.b32.xlu0 %v4537, 4
        %v7549 = vpop.permute.xlu0 %7548
        %7550 = vrot.lane.b32.xlu0 %v4635, 4
        %v7551 = vpop.permute.xlu0 %7550
        %7552 = vrot.lane.b32.xlu0 %v4733, 4
        %v7553 = vpop.permute.xlu0 %7552
        %7554 = vrot.lane.b32.xlu0 %v4831, 4
        %v7555 = vpop.permute.xlu0 %7554
        %7556 = vrot.lane.b32.xlu0 %v4929, 4
        %v7557 = vpop.permute.xlu0 %7556
        %7558 = vrot.lane.b32.xlu0 %v5027, 4
        %v7559 = vpop.permute.xlu0 %7558
        %7560 = vrot.lane.b32.xlu0 %v5125, 4
        %v7561 = vpop.permute.xlu0 %7560
        %7562 = vrot.lane.b32.xlu0 %v5223, 4
        %v7563 = vpop.permute.xlu0 %7562
        %7564 = vrot.lane.b32.xlu0 %v5321, 4
        %v7565 = vpop.permute.xlu0 %7564
        %7566 = vrot.lane.b32.xlu0 %v5419, 4
        %v7567 = vpop.permute.xlu0 %7566
        %7568 = vrot.lane.b32.xlu0 %v5517, 4
        %v7569 = vpop.permute.xlu0 %7568
        %7570 = vrot.lane.b32.xlu0 %v5615, 4
        %v7571 = vpop.permute.xlu0 %7570
        %7572 = vrot.lane.b32.xlu0 %v5713, 4
        %v7573 = vpop.permute.xlu0 %7572
        %7574 = vrot.lane.b32.xlu0 %v5811, 4
        %v7575 = vpop.permute.xlu0 %7574
        %7576 = vrot.lane.b32.xlu0 %v5909, 4
        %v7577 = vpop.permute.xlu0 %7576
        %7578 = vrot.lane.b32.xlu0 %v6007, 4
        %v7579 = vpop.permute.xlu0 %7578
        %7580 = vrot.lane.b32.xlu0 %v6105, 4
        %v7581 = vpop.permute.xlu0 %7580
        %7582 = vrot.lane.b32.xlu0 %v6203, 4
        %v7583 = vpop.permute.xlu0 %7582
        %7584 = vrot.lane.b32.xlu0 %v6301, 4
        %v7585 = vpop.permute.xlu0 %7584
        %7586 = vrot.lane.b32.xlu0 %v6399, 4
        %v7587 = vpop.permute.xlu0 %7586
        %7588 = vrot.lane.b32.xlu0 %v6497, 4
        %v7589 = vpop.permute.xlu0 %7588
        %7590 = vrot.lane.b32.xlu0 %v6595, 4
        %v7591 = vpop.permute.xlu0 %7590
        %7592 = vrot.lane.b32.xlu0 %v6693, 4
        %v7593 = vpop.permute.xlu0 %7592
        %7594 = vrot.lane.b32.xlu0 %v6791, 4
        %v7595 = vpop.permute.xlu0 %7594
        %7596 = vrot.lane.b32.xlu0 %v6889, 4
        %v7597 = vpop.permute.xlu0 %7596
        %7598 = vrot.lane.b32.xlu0 %v6987, 4
        %v7599 = vpop.permute.xlu0 %7598
        %7600 = vrot.lane.b32.xlu0 %v7085, 4
        %v7601 = vpop.permute.xlu0 %7600
        %7730 = vrot.lane.b32.xlu0 %v928, 6
        %v7731 = vpop.permute.xlu0 %7730
        %7732 = vrot.lane.b32.xlu0 %v1026, 6
        %v7733 = vpop.permute.xlu0 %7732
        %7734 = vrot.lane.b32.xlu0 %v1124, 6
        %v7735 = vpop.permute.xlu0 %7734
        %7736 = vrot.lane.b32.xlu0 %v1222, 6
        %v7737 = vpop.permute.xlu0 %7736
        %7738 = vrot.lane.b32.xlu0 %v1320, 6
        %v7739 = vpop.permute.xlu0 %7738
        %7740 = vrot.lane.b32.xlu0 %v1418, 6
        %v7741 = vpop.permute.xlu0 %7740
        %7742 = vrot.lane.b32.xlu0 %v1516, 6
        %v7743 = vpop.permute.xlu0 %7742
        %7744 = vrot.lane.b32.xlu0 %v1614, 6
        %v7745 = vpop.permute.xlu0 %7744
        %7746 = vrot.lane.b32.xlu0 %v1712, 6
        %v7747 = vpop.permute.xlu0 %7746
        %7748 = vrot.lane.b32.xlu0 %v1810, 6
        %v7749 = vpop.permute.xlu0 %7748
        %7750 = vrot.lane.b32.xlu0 %v1908, 6
        %v7751 = vpop.permute.xlu0 %7750
        %7752 = vrot.lane.b32.xlu0 %v2006, 6
        %v7753 = vpop.permute.xlu0 %7752
        %7754 = vrot.lane.b32.xlu0 %v2104, 6
        %v7755 = vpop.permute.xlu0 %7754
        %7756 = vrot.lane.b32.xlu0 %v2202, 6
        %v7757 = vpop.permute.xlu0 %7756
        %7758 = vrot.lane.b32.xlu0 %v2300, 6
        %v7759 = vpop.permute.xlu0 %7758
        %7760 = vrot.lane.b32.xlu0 %v2398, 6
        %v7761 = vpop.permute.xlu0 %7760
        %7762 = vrot.lane.b32.xlu0 %v2496, 6
        %v7763 = vpop.permute.xlu0 %7762
        %7764 = vrot.lane.b32.xlu0 %v2594, 6
        %v7765 = vpop.permute.xlu0 %7764
        %7766 = vrot.lane.b32.xlu0 %v2692, 6
        %v7767 = vpop.permute.xlu0 %7766
        %7768 = vrot.lane.b32.xlu0 %v2790, 6
        %v7769 = vpop.permute.xlu0 %7768
        %7770 = vrot.lane.b32.xlu0 %v2888, 6
        %v7771 = vpop.permute.xlu0 %7770
        %7772 = vrot.lane.b32.xlu0 %v2986, 6
        %v7773 = vpop.permute.xlu0 %7772
        %7774 = vrot.lane.b32.xlu0 %v3084, 6
        %v7775 = vpop.permute.xlu0 %7774
        %7776 = vrot.lane.b32.xlu0 %v3182, 6
        %v7777 = vpop.permute.xlu0 %7776
        %7778 = vrot.lane.b32.xlu0 %v3280, 6
        %v7779 = vpop.permute.xlu0 %7778
        %7780 = vrot.lane.b32.xlu0 %v3378, 6
        %v7781 = vpop.permute.xlu0 %7780
        %7782 = vrot.lane.b32.xlu0 %v3476, 6
        %v7783 = vpop.permute.xlu0 %7782
        %7784 = vrot.lane.b32.xlu0 %v3574, 6
        %v7785 = vpop.permute.xlu0 %7784
        %7786 = vrot.lane.b32.xlu0 %v3672, 6
        %v7787 = vpop.permute.xlu0 %7786
        %7788 = vrot.lane.b32.xlu0 %v3770, 6
        %v7789 = vpop.permute.xlu0 %7788
        %7790 = vrot.lane.b32.xlu0 %v3868, 6
        %v7791 = vpop.permute.xlu0 %7790
        %7792 = vrot.lane.b32.xlu0 %v3966, 6
        %v7793 = vpop.permute.xlu0 %7792
        %7794 = vrot.lane.b32.xlu0 %v4064, 6
        %v7795 = vpop.permute.xlu0 %7794
        %7796 = vrot.lane.b32.xlu0 %v4162, 6
        %v7797 = vpop.permute.xlu0 %7796
        %7798 = vrot.lane.b32.xlu0 %v4260, 6
        %v7799 = vpop.permute.xlu0 %7798
        %7800 = vrot.lane.b32.xlu0 %v4358, 6
        %v7801 = vpop.permute.xlu0 %7800
        %7802 = vrot.lane.b32.xlu0 %v4456, 6
        %v7803 = vpop.permute.xlu0 %7802
        %7804 = vrot.lane.b32.xlu0 %v4554, 6
        %v7805 = vpop.permute.xlu0 %7804
        %7806 = vrot.lane.b32.xlu0 %v4652, 6
        %v7807 = vpop.permute.xlu0 %7806
        %7808 = vrot.lane.b32.xlu0 %v4750, 6
        %v7809 = vpop.permute.xlu0 %7808
        %7810 = vrot.lane.b32.xlu0 %v4848, 6
        %v7811 = vpop.permute.xlu0 %7810
        %7812 = vrot.lane.b32.xlu0 %v4946, 6
        %v7813 = vpop.permute.xlu0 %7812
        %7814 = vrot.lane.b32.xlu0 %v5044, 6
        %v7815 = vpop.permute.xlu0 %7814
        %7816 = vrot.lane.b32.xlu0 %v5142, 6
        %v7817 = vpop.permute.xlu0 %7816
        %7818 = vrot.lane.b32.xlu0 %v5240, 6
        %v7819 = vpop.permute.xlu0 %7818
        %7820 = vrot.lane.b32.xlu0 %v5338, 6
        %v7821 = vpop.permute.xlu0 %7820
        %7822 = vrot.lane.b32.xlu0 %v5436, 6
        %v7823 = vpop.permute.xlu0 %7822
        %7824 = vrot.lane.b32.xlu0 %v5534, 6
        %v7825 = vpop.permute.xlu0 %7824
        %7826 = vrot.lane.b32.xlu0 %v5632, 6
        %v7827 = vpop.permute.xlu0 %7826
        %7828 = vrot.lane.b32.xlu0 %v5730, 6
        %v7829 = vpop.permute.xlu0 %7828
        %7830 = vrot.lane.b32.xlu0 %v5828, 6
        %v7831 = vpop.permute.xlu0 %7830
        %7832 = vrot.lane.b32.xlu0 %v5926, 6
        %v7833 = vpop.permute.xlu0 %7832
        %7834 = vrot.lane.b32.xlu0 %v6024, 6
        %v7835 = vpop.permute.xlu0 %7834
        %7836 = vrot.lane.b32.xlu0 %v6122, 6
        %v7837 = vpop.permute.xlu0 %7836
        %7838 = vrot.lane.b32.xlu0 %v6220, 6
        %v7839 = vpop.permute.xlu0 %7838
        %7840 = vrot.lane.b32.xlu0 %v6318, 6
        %v7841 = vpop.permute.xlu0 %7840
        %7842 = vrot.lane.b32.xlu0 %v6416, 6
        %v7843 = vpop.permute.xlu0 %7842
        %7844 = vrot.lane.b32.xlu0 %v6514, 6
        %v7845 = vpop.permute.xlu0 %7844
        %7846 = vrot.lane.b32.xlu0 %v6612, 6
        %v7847 = vpop.permute.xlu0 %7846
        %7848 = vrot.lane.b32.xlu0 %v6710, 6
        %v7849 = vpop.permute.xlu0 %7848
        %7850 = vrot.lane.b32.xlu0 %v6808, 6
        %v7851 = vpop.permute.xlu0 %7850
        %7852 = vrot.lane.b32.xlu0 %v6906, 6
        %v7853 = vpop.permute.xlu0 %7852
        %7854 = vrot.lane.b32.xlu0 %v7004, 6
        %v7855 = vpop.permute.xlu0 %7854
        %7856 = vrot.lane.b32.xlu0 %v7102, 6
        %v7857 = vpop.permute.xlu0 %7856
        %7986 = vrot.lane.b32.xlu0 %v919, 8
        %v7987 = vpop.permute.xlu0 %7986
        %7988 = vrot.lane.b32.xlu0 %v1017, 8
        %v7989 = vpop.permute.xlu0 %7988
        %7990 = vrot.lane.b32.xlu0 %v1115, 8
        %v7991 = vpop.permute.xlu0 %7990
        %7992 = vrot.lane.b32.xlu0 %v1213, 8
        %v7993 = vpop.permute.xlu0 %7992
        %7994 = vrot.lane.b32.xlu0 %v1311, 8
        %v7995 = vpop.permute.xlu0 %7994
        %7996 = vrot.lane.b32.xlu0 %v1409, 8
        %v7997 = vpop.permute.xlu0 %7996
        %7998 = vrot.lane.b32.xlu0 %v1507, 8
        %v7999 = vpop.permute.xlu0 %7998
        %8000 = vrot.lane.b32.xlu0 %v1605, 8
        %v8001 = vpop.permute.xlu0 %8000
        %8002 = vrot.lane.b32.xlu0 %v1703, 8
        %v8003 = vpop.permute.xlu0 %8002
        %8004 = vrot.lane.b32.xlu0 %v1801, 8
        %v8005 = vpop.permute.xlu0 %8004
        %8006 = vrot.lane.b32.xlu0 %v1899, 8
        %v8007 = vpop.permute.xlu0 %8006
        %8008 = vrot.lane.b32.xlu0 %v1997, 8
        %v8009 = vpop.permute.xlu0 %8008
        %8010 = vrot.lane.b32.xlu0 %v2095, 8
        %v8011 = vpop.permute.xlu0 %8010
        %8012 = vrot.lane.b32.xlu0 %v2193, 8
        %v8013 = vpop.permute.xlu0 %8012
        %8014 = vrot.lane.b32.xlu0 %v2291, 8
        %v8015 = vpop.permute.xlu0 %8014
        %8016 = vrot.lane.b32.xlu0 %v2389, 8
        %v8017 = vpop.permute.xlu0 %8016
        %8018 = vrot.lane.b32.xlu0 %v2487, 8
        %v8019 = vpop.permute.xlu0 %8018
        %8020 = vrot.lane.b32.xlu0 %v2585, 8
        %v8021 = vpop.permute.xlu0 %8020
        %8022 = vrot.lane.b32.xlu0 %v2683, 8
        %v8023 = vpop.permute.xlu0 %8022
        %8024 = vrot.lane.b32.xlu0 %v2781, 8
        %v8025 = vpop.permute.xlu0 %8024
        %8026 = vrot.lane.b32.xlu0 %v2879, 8
        %v8027 = vpop.permute.xlu0 %8026
        %8028 = vrot.lane.b32.xlu0 %v2977, 8
        %v8029 = vpop.permute.xlu0 %8028
        %8030 = vrot.lane.b32.xlu0 %v3075, 8
        %v8031 = vpop.permute.xlu0 %8030
        %8032 = vrot.lane.b32.xlu0 %v3173, 8
        %v8033 = vpop.permute.xlu0 %8032
        %8034 = vrot.lane.b32.xlu0 %v3271, 8
        %v8035 = vpop.permute.xlu0 %8034
        %8036 = vrot.lane.b32.xlu0 %v3369, 8
        %v8037 = vpop.permute.xlu0 %8036
        %8038 = vrot.lane.b32.xlu0 %v3467, 8
        %v8039 = vpop.permute.xlu0 %8038
        %8040 = vrot.lane.b32.xlu0 %v3565, 8
        %v8041 = vpop.permute.xlu0 %8040
        %8042 = vrot.lane.b32.xlu0 %v3663, 8
        %v8043 = vpop.permute.xlu0 %8042
        %8044 = vrot.lane.b32.xlu0 %v3761, 8
        %v8045 = vpop.permute.xlu0 %8044
        %8046 = vrot.lane.b32.xlu0 %v3859, 8
        %v8047 = vpop.permute.xlu0 %8046
        %8048 = vrot.lane.b32.xlu0 %v3957, 8
        %v8049 = vpop.permute.xlu0 %8048
        %8050 = vrot.lane.b32.xlu0 %v4055, 8
        %v8051 = vpop.permute.xlu0 %8050
        %8052 = vrot.lane.b32.xlu0 %v4153, 8
        %v8053 = vpop.permute.xlu0 %8052
        %8054 = vrot.lane.b32.xlu0 %v4251, 8
        %v8055 = vpop.permute.xlu0 %8054
        %8056 = vrot.lane.b32.xlu0 %v4349, 8
        %v8057 = vpop.permute.xlu0 %8056
        %8058 = vrot.lane.b32.xlu0 %v4447, 8
        %v8059 = vpop.permute.xlu0 %8058
        %8060 = vrot.lane.b32.xlu0 %v4545, 8
        %v8061 = vpop.permute.xlu0 %8060
        %8062 = vrot.lane.b32.xlu0 %v4643, 8
        %v8063 = vpop.permute.xlu0 %8062
        %8064 = vrot.lane.b32.xlu0 %v4741, 8
        %v8065 = vpop.permute.xlu0 %8064
        %8066 = vrot.lane.b32.xlu0 %v4839, 8
        %v8067 = vpop.permute.xlu0 %8066
        %8068 = vrot.lane.b32.xlu0 %v4937, 8
        %v8069 = vpop.permute.xlu0 %8068
        %8070 = vrot.lane.b32.xlu0 %v5035, 8
        %v8071 = vpop.permute.xlu0 %8070
        %8072 = vrot.lane.b32.xlu0 %v5133, 8
        %v8073 = vpop.permute.xlu0 %8072
        %8074 = vrot.lane.b32.xlu0 %v5231, 8
        %v8075 = vpop.permute.xlu0 %8074
        %8076 = vrot.lane.b32.xlu0 %v5329, 8
        %v8077 = vpop.permute.xlu0 %8076
        %8078 = vrot.lane.b32.xlu0 %v5427, 8
        %v8079 = vpop.permute.xlu0 %8078
        %8080 = vrot.lane.b32.xlu0 %v5525, 8
        %v8081 = vpop.permute.xlu0 %8080
        %8082 = vrot.lane.b32.xlu0 %v5623, 8
        %v8083 = vpop.permute.xlu0 %8082
        %8084 = vrot.lane.b32.xlu0 %v5721, 8
        %v8085 = vpop.permute.xlu0 %8084
        %8086 = vrot.lane.b32.xlu0 %v5819, 8
        %v8087 = vpop.permute.xlu0 %8086
        %8088 = vrot.lane.b32.xlu0 %v5917, 8
        %v8089 = vpop.permute.xlu0 %8088
        %8090 = vrot.lane.b32.xlu0 %v6015, 8
        %v8091 = vpop.permute.xlu0 %8090
        %8092 = vrot.lane.b32.xlu0 %v6113, 8
        %v8093 = vpop.permute.xlu0 %8092
        %8094 = vrot.lane.b32.xlu0 %v6211, 8
        %v8095 = vpop.permute.xlu0 %8094
        %8096 = vrot.lane.b32.xlu0 %v6309, 8
        %v8097 = vpop.permute.xlu0 %8096
        %8098 = vrot.lane.b32.xlu0 %v6407, 8
        %v8099 = vpop.permute.xlu0 %8098
        %8100 = vrot.lane.b32.xlu0 %v6505, 8
        %v8101 = vpop.permute.xlu0 %8100
        %8102 = vrot.lane.b32.xlu0 %v6603, 8
        %v8103 = vpop.permute.xlu0 %8102
        %8104 = vrot.lane.b32.xlu0 %v6701, 8
        %v8105 = vpop.permute.xlu0 %8104
        %8106 = vrot.lane.b32.xlu0 %v6799, 8
        %v8107 = vpop.permute.xlu0 %8106
        %8108 = vrot.lane.b32.xlu0 %v6897, 8
        %v8109 = vpop.permute.xlu0 %8108
        %8110 = vrot.lane.b32.xlu0 %v6995, 8
        %v8111 = vpop.permute.xlu0 %8110
        %8112 = vrot.lane.b32.xlu0 %v7093, 8
        %v8113 = vpop.permute.xlu0 %8112
        %8242 = vrot.lane.b32.xlu0 %v929, 10
        %v8243 = vpop.permute.xlu0 %8242
        %8244 = vrot.lane.b32.xlu0 %v1027, 10
        %v8245 = vpop.permute.xlu0 %8244
        %8246 = vrot.lane.b32.xlu0 %v1125, 10
        %v8247 = vpop.permute.xlu0 %8246
        %8248 = vrot.lane.b32.xlu0 %v1223, 10
        %v8249 = vpop.permute.xlu0 %8248
        %8250 = vrot.lane.b32.xlu0 %v1321, 10
        %v8251 = vpop.permute.xlu0 %8250
        %8252 = vrot.lane.b32.xlu0 %v1419, 10
        %v8253 = vpop.permute.xlu0 %8252
        %8254 = vrot.lane.b32.xlu0 %v1517, 10
        %v8255 = vpop.permute.xlu0 %8254
        %8256 = vrot.lane.b32.xlu0 %v1615, 10
        %v8257 = vpop.permute.xlu0 %8256
        %8258 = vrot.lane.b32.xlu0 %v1713, 10
        %v8259 = vpop.permute.xlu0 %8258
        %8260 = vrot.lane.b32.xlu0 %v1811, 10
        %v8261 = vpop.permute.xlu0 %8260
        %8262 = vrot.lane.b32.xlu0 %v1909, 10
        %v8263 = vpop.permute.xlu0 %8262
        %8264 = vrot.lane.b32.xlu0 %v2007, 10
        %v8265 = vpop.permute.xlu0 %8264
        %8266 = vrot.lane.b32.xlu0 %v2105, 10
        %v8267 = vpop.permute.xlu0 %8266
        %8268 = vrot.lane.b32.xlu0 %v2203, 10
        %v8269 = vpop.permute.xlu0 %8268
        %8270 = vrot.lane.b32.xlu0 %v2301, 10
        %v8271 = vpop.permute.xlu0 %8270
        %8272 = vrot.lane.b32.xlu0 %v2399, 10
        %v8273 = vpop.permute.xlu0 %8272
        %8274 = vrot.lane.b32.xlu0 %v2497, 10
        %v8275 = vpop.permute.xlu0 %8274
        %8276 = vrot.lane.b32.xlu0 %v2595, 10
        %v8277 = vpop.permute.xlu0 %8276
        %8278 = vrot.lane.b32.xlu0 %v2693, 10
        %v8279 = vpop.permute.xlu0 %8278
        %8280 = vrot.lane.b32.xlu0 %v2791, 10
        %v8281 = vpop.permute.xlu0 %8280
        %8282 = vrot.lane.b32.xlu0 %v2889, 10
        %v8283 = vpop.permute.xlu0 %8282
        %8284 = vrot.lane.b32.xlu0 %v2987, 10
        %v8285 = vpop.permute.xlu0 %8284
        %8286 = vrot.lane.b32.xlu0 %v3085, 10
        %v8287 = vpop.permute.xlu0 %8286
        %8288 = vrot.lane.b32.xlu0 %v3183, 10
        %v8289 = vpop.permute.xlu0 %8288
        %8290 = vrot.lane.b32.xlu0 %v3281, 10
        %v8291 = vpop.permute.xlu0 %8290
        %8292 = vrot.lane.b32.xlu0 %v3379, 10
        %v8293 = vpop.permute.xlu0 %8292
        %8294 = vrot.lane.b32.xlu0 %v3477, 10
        %v8295 = vpop.permute.xlu0 %8294
        %8296 = vrot.lane.b32.xlu0 %v3575, 10
        %v8297 = vpop.permute.xlu0 %8296
        %8298 = vrot.lane.b32.xlu0 %v3673, 10
        %v8299 = vpop.permute.xlu0 %8298
        %8300 = vrot.lane.b32.xlu0 %v3771, 10
        %v8301 = vpop.permute.xlu0 %8300
        %8302 = vrot.lane.b32.xlu0 %v3869, 10
        %v8303 = vpop.permute.xlu0 %8302
        %8304 = vrot.lane.b32.xlu0 %v3967, 10
        %v8305 = vpop.permute.xlu0 %8304
        %8306 = vrot.lane.b32.xlu0 %v4065, 10
        %v8307 = vpop.permute.xlu0 %8306
        %8308 = vrot.lane.b32.xlu0 %v4163, 10
        %v8309 = vpop.permute.xlu0 %8308
        %8310 = vrot.lane.b32.xlu0 %v4261, 10
        %v8311 = vpop.permute.xlu0 %8310
        %8312 = vrot.lane.b32.xlu0 %v4359, 10
        %v8313 = vpop.permute.xlu0 %8312
        %8314 = vrot.lane.b32.xlu0 %v4457, 10
        %v8315 = vpop.permute.xlu0 %8314
        %8316 = vrot.lane.b32.xlu0 %v4555, 10
        %v8317 = vpop.permute.xlu0 %8316
        %8318 = vrot.lane.b32.xlu0 %v4653, 10
        %v8319 = vpop.permute.xlu0 %8318
        %8320 = vrot.lane.b32.xlu0 %v4751, 10
        %v8321 = vpop.permute.xlu0 %8320
        %8322 = vrot.lane.b32.xlu0 %v4849, 10
        %v8323 = vpop.permute.xlu0 %8322
        %8324 = vrot.lane.b32.xlu0 %v4947, 10
        %v8325 = vpop.permute.xlu0 %8324
        %8326 = vrot.lane.b32.xlu0 %v5045, 10
        %v8327 = vpop.permute.xlu0 %8326
        %8328 = vrot.lane.b32.xlu0 %v5143, 10
        %v8329 = vpop.permute.xlu0 %8328
        %8330 = vrot.lane.b32.xlu0 %v5241, 10
        %v8331 = vpop.permute.xlu0 %8330
        %8332 = vrot.lane.b32.xlu0 %v5339, 10
        %v8333 = vpop.permute.xlu0 %8332
        %8334 = vrot.lane.b32.xlu0 %v5437, 10
        %v8335 = vpop.permute.xlu0 %8334
        %8336 = vrot.lane.b32.xlu0 %v5535, 10
        %v8337 = vpop.permute.xlu0 %8336
        %8338 = vrot.lane.b32.xlu0 %v5633, 10
        %v8339 = vpop.permute.xlu0 %8338
        %8340 = vrot.lane.b32.xlu0 %v5731, 10
        %v8341 = vpop.permute.xlu0 %8340
        %8342 = vrot.lane.b32.xlu0 %v5829, 10
        %v8343 = vpop.permute.xlu0 %8342
        %8344 = vrot.lane.b32.xlu0 %v5927, 10
        %v8345 = vpop.permute.xlu0 %8344
        %8346 = vrot.lane.b32.xlu0 %v6025, 10
        %v8347 = vpop.permute.xlu0 %8346
        %8348 = vrot.lane.b32.xlu0 %v6123, 10
        %v8349 = vpop.permute.xlu0 %8348
        %8350 = vrot.lane.b32.xlu0 %v6221, 10
        %v8351 = vpop.permute.xlu0 %8350
        %8352 = vrot.lane.b32.xlu0 %v6319, 10
        %v8353 = vpop.permute.xlu0 %8352
        %8354 = vrot.lane.b32.xlu0 %v6417, 10
        %v8355 = vpop.permute.xlu0 %8354
        %8356 = vrot.lane.b32.xlu0 %v6515, 10
        %v8357 = vpop.permute.xlu0 %8356
        %8358 = vrot.lane.b32.xlu0 %v6613, 10
        %v8359 = vpop.permute.xlu0 %8358
        %8360 = vrot.lane.b32.xlu0 %v6711, 10
        %v8361 = vpop.permute.xlu0 %8360
        %8362 = vrot.lane.b32.xlu0 %v6809, 10
        %v8363 = vpop.permute.xlu0 %8362
        %8364 = vrot.lane.b32.xlu0 %v6907, 10
        %v8365 = vpop.permute.xlu0 %8364
        %8366 = vrot.lane.b32.xlu0 %v7005, 10
        %v8367 = vpop.permute.xlu0 %8366
        %8368 = vrot.lane.b32.xlu0 %v7103, 10
        %v8369 = vpop.permute.xlu0 %8368
        %8498 = vrot.lane.b32.xlu0 %v926, 12
        %v8499 = vpop.permute.xlu0 %8498
        %8500 = vrot.lane.b32.xlu0 %v1024, 12
        %v8501 = vpop.permute.xlu0 %8500
        %8502 = vrot.lane.b32.xlu0 %v1122, 12
        %v8503 = vpop.permute.xlu0 %8502
        %8504 = vrot.lane.b32.xlu0 %v1220, 12
        %v8505 = vpop.permute.xlu0 %8504
        %8506 = vrot.lane.b32.xlu0 %v1318, 12
        %v8507 = vpop.permute.xlu0 %8506
        %8508 = vrot.lane.b32.xlu0 %v1416, 12
        %v8509 = vpop.permute.xlu0 %8508
        %8510 = vrot.lane.b32.xlu0 %v1514, 12
        %v8511 = vpop.permute.xlu0 %8510
        %8512 = vrot.lane.b32.xlu0 %v1612, 12
        %v8513 = vpop.permute.xlu0 %8512
        %8514 = vrot.lane.b32.xlu0 %v1710, 12
        %v8515 = vpop.permute.xlu0 %8514
        %8516 = vrot.lane.b32.xlu0 %v1808, 12
        %v8517 = vpop.permute.xlu0 %8516
        %8518 = vrot.lane.b32.xlu0 %v1906, 12
        %v8519 = vpop.permute.xlu0 %8518
        %8520 = vrot.lane.b32.xlu0 %v2004, 12
        %v8521 = vpop.permute.xlu0 %8520
        %8522 = vrot.lane.b32.xlu0 %v2102, 12
        %v8523 = vpop.permute.xlu0 %8522
        %8524 = vrot.lane.b32.xlu0 %v2200, 12
        %v8525 = vpop.permute.xlu0 %8524
        %8526 = vrot.lane.b32.xlu0 %v2298, 12
        %v8527 = vpop.permute.xlu0 %8526
        %8528 = vrot.lane.b32.xlu0 %v2396, 12
        %v8529 = vpop.permute.xlu0 %8528
        %8530 = vrot.lane.b32.xlu0 %v2494, 12
        %v8531 = vpop.permute.xlu0 %8530
        %8532 = vrot.lane.b32.xlu0 %v2592, 12
        %v8533 = vpop.permute.xlu0 %8532
        %8534 = vrot.lane.b32.xlu0 %v2690, 12
        %v8535 = vpop.permute.xlu0 %8534
        %8536 = vrot.lane.b32.xlu0 %v2788, 12
        %v8537 = vpop.permute.xlu0 %8536
        %8538 = vrot.lane.b32.xlu0 %v2886, 12
        %v8539 = vpop.permute.xlu0 %8538
        %8540 = vrot.lane.b32.xlu0 %v2984, 12
        %v8541 = vpop.permute.xlu0 %8540
        %8542 = vrot.lane.b32.xlu0 %v3082, 12
        %v8543 = vpop.permute.xlu0 %8542
        %8544 = vrot.lane.b32.xlu0 %v3180, 12
        %v8545 = vpop.permute.xlu0 %8544
        %8546 = vrot.lane.b32.xlu0 %v3278, 12
        %v8547 = vpop.permute.xlu0 %8546
        %8548 = vrot.lane.b32.xlu0 %v3376, 12
        %v8549 = vpop.permute.xlu0 %8548
        %8550 = vrot.lane.b32.xlu0 %v3474, 12
        %v8551 = vpop.permute.xlu0 %8550
        %8552 = vrot.lane.b32.xlu0 %v3572, 12
        %v8553 = vpop.permute.xlu0 %8552
        %8554 = vrot.lane.b32.xlu0 %v3670, 12
        %v8555 = vpop.permute.xlu0 %8554
        %8556 = vrot.lane.b32.xlu0 %v3768, 12
        %v8557 = vpop.permute.xlu0 %8556
        %8558 = vrot.lane.b32.xlu0 %v3866, 12
        %v8559 = vpop.permute.xlu0 %8558
        %8560 = vrot.lane.b32.xlu0 %v3964, 12
        %v8561 = vpop.permute.xlu0 %8560
        %8562 = vrot.lane.b32.xlu0 %v4062, 12
        %v8563 = vpop.permute.xlu0 %8562
        %8564 = vrot.lane.b32.xlu0 %v4160, 12
        %v8565 = vpop.permute.xlu0 %8564
        %8566 = vrot.lane.b32.xlu0 %v4258, 12
        %v8567 = vpop.permute.xlu0 %8566
        %8568 = vrot.lane.b32.xlu0 %v4356, 12
        %v8569 = vpop.permute.xlu0 %8568
        %8570 = vrot.lane.b32.xlu0 %v4454, 12
        %v8571 = vpop.permute.xlu0 %8570
        %8572 = vrot.lane.b32.xlu0 %v4552, 12
        %v8573 = vpop.permute.xlu0 %8572
        %8574 = vrot.lane.b32.xlu0 %v4650, 12
        %v8575 = vpop.permute.xlu0 %8574
        %8576 = vrot.lane.b32.xlu0 %v4748, 12
        %v8577 = vpop.permute.xlu0 %8576
        %8578 = vrot.lane.b32.xlu0 %v4846, 12
        %v8579 = vpop.permute.xlu0 %8578
        %8580 = vrot.lane.b32.xlu0 %v4944, 12
        %v8581 = vpop.permute.xlu0 %8580
        %8582 = vrot.lane.b32.xlu0 %v5042, 12
        %v8583 = vpop.permute.xlu0 %8582
        %8584 = vrot.lane.b32.xlu0 %v5140, 12
        %v8585 = vpop.permute.xlu0 %8584
        %8586 = vrot.lane.b32.xlu0 %v5238, 12
        %v8587 = vpop.permute.xlu0 %8586
        %8588 = vrot.lane.b32.xlu0 %v5336, 12
        %v8589 = vpop.permute.xlu0 %8588
        %8590 = vrot.lane.b32.xlu0 %v5434, 12
        %v8591 = vpop.permute.xlu0 %8590
        %8592 = vrot.lane.b32.xlu0 %v5532, 12
        %v8593 = vpop.permute.xlu0 %8592
        %8594 = vrot.lane.b32.xlu0 %v5630, 12
        %v8595 = vpop.permute.xlu0 %8594
        %8596 = vrot.lane.b32.xlu0 %v5728, 12
        %v8597 = vpop.permute.xlu0 %8596
        %8598 = vrot.lane.b32.xlu0 %v5826, 12
        %v8599 = vpop.permute.xlu0 %8598
        %8600 = vrot.lane.b32.xlu0 %v5924, 12
        %v8601 = vpop.permute.xlu0 %8600
        %8602 = vrot.lane.b32.xlu0 %v6022, 12
        %v8603 = vpop.permute.xlu0 %8602
        %8604 = vrot.lane.b32.xlu0 %v6120, 12
        %v8605 = vpop.permute.xlu0 %8604
        %8606 = vrot.lane.b32.xlu0 %v6218, 12
        %v8607 = vpop.permute.xlu0 %8606
        %8608 = vrot.lane.b32.xlu0 %v6316, 12
        %v8609 = vpop.permute.xlu0 %8608
        %8610 = vrot.lane.b32.xlu0 %v6414, 12
        %v8611 = vpop.permute.xlu0 %8610
        %8612 = vrot.lane.b32.xlu0 %v6512, 12
        %v8613 = vpop.permute.xlu0 %8612
        %8614 = vrot.lane.b32.xlu0 %v6610, 12
        %v8615 = vpop.permute.xlu0 %8614
        %8616 = vrot.lane.b32.xlu0 %v6708, 12
        %v8617 = vpop.permute.xlu0 %8616
        %8618 = vrot.lane.b32.xlu0 %v6806, 12
        %v8619 = vpop.permute.xlu0 %8618
        %8620 = vrot.lane.b32.xlu0 %v6904, 12
        %v8621 = vpop.permute.xlu0 %8620
        %8622 = vrot.lane.b32.xlu0 %v7002, 12
        %v8623 = vpop.permute.xlu0 %8622
        %8624 = vrot.lane.b32.xlu0 %v7100, 12
        %v8625 = vpop.permute.xlu0 %8624
        %8754 = vrot.lane.b32.xlu0 %v930, 14
        %v8755 = vpop.permute.xlu0 %8754
        %8756 = vrot.lane.b32.xlu0 %v1028, 14
        %v8757 = vpop.permute.xlu0 %8756
        %8758 = vrot.lane.b32.xlu0 %v1126, 14
        %v8759 = vpop.permute.xlu0 %8758
        %8760 = vrot.lane.b32.xlu0 %v1224, 14
        %v8761 = vpop.permute.xlu0 %8760
        %8762 = vrot.lane.b32.xlu0 %v1322, 14
        %v8763 = vpop.permute.xlu0 %8762
        %8764 = vrot.lane.b32.xlu0 %v1420, 14
        %v8765 = vpop.permute.xlu0 %8764
        %8766 = vrot.lane.b32.xlu0 %v1518, 14
        %v8767 = vpop.permute.xlu0 %8766
        %8768 = vrot.lane.b32.xlu0 %v1616, 14
        %v8769 = vpop.permute.xlu0 %8768
        %8770 = vrot.lane.b32.xlu0 %v1714, 14
        %v8771 = vpop.permute.xlu0 %8770
        %8772 = vrot.lane.b32.xlu0 %v1812, 14
        %v8773 = vpop.permute.xlu0 %8772
        %8774 = vrot.lane.b32.xlu0 %v1910, 14
        %v8775 = vpop.permute.xlu0 %8774
        %8776 = vrot.lane.b32.xlu0 %v2008, 14
        %v8777 = vpop.permute.xlu0 %8776
        %8778 = vrot.lane.b32.xlu0 %v2106, 14
        %v8779 = vpop.permute.xlu0 %8778
        %8780 = vrot.lane.b32.xlu0 %v2204, 14
        %v8781 = vpop.permute.xlu0 %8780
        %8782 = vrot.lane.b32.xlu0 %v2302, 14
        %v8783 = vpop.permute.xlu0 %8782
        %8784 = vrot.lane.b32.xlu0 %v2400, 14
        %v8785 = vpop.permute.xlu0 %8784
        %8786 = vrot.lane.b32.xlu0 %v2498, 14
        %v8787 = vpop.permute.xlu0 %8786
        %8788 = vrot.lane.b32.xlu0 %v2596, 14
        %v8789 = vpop.permute.xlu0 %8788
        %8790 = vrot.lane.b32.xlu0 %v2694, 14
        %v8791 = vpop.permute.xlu0 %8790
        %8792 = vrot.lane.b32.xlu0 %v2792, 14
        %v8793 = vpop.permute.xlu0 %8792
        %8794 = vrot.lane.b32.xlu0 %v2890, 14
        %v8795 = vpop.permute.xlu0 %8794
        %8796 = vrot.lane.b32.xlu0 %v2988, 14
        %v8797 = vpop.permute.xlu0 %8796
        %8798 = vrot.lane.b32.xlu0 %v3086, 14
        %v8799 = vpop.permute.xlu0 %8798
        %8800 = vrot.lane.b32.xlu0 %v3184, 14
        %v8801 = vpop.permute.xlu0 %8800
        %8802 = vrot.lane.b32.xlu0 %v3282, 14
        %v8803 = vpop.permute.xlu0 %8802
        %8804 = vrot.lane.b32.xlu0 %v3380, 14
        %v8805 = vpop.permute.xlu0 %8804
        %8806 = vrot.lane.b32.xlu0 %v3478, 14
        %v8807 = vpop.permute.xlu0 %8806
        %8808 = vrot.lane.b32.xlu0 %v3576, 14
        %v8809 = vpop.permute.xlu0 %8808
        %8810 = vrot.lane.b32.xlu0 %v3674, 14
        %v8811 = vpop.permute.xlu0 %8810
        %8812 = vrot.lane.b32.xlu0 %v3772, 14
        %v8813 = vpop.permute.xlu0 %8812
        %8814 = vrot.lane.b32.xlu0 %v3870, 14
        %v8815 = vpop.permute.xlu0 %8814
        %8816 = vrot.lane.b32.xlu0 %v3968, 14
        %v8817 = vpop.permute.xlu0 %8816
        %8818 = vrot.lane.b32.xlu0 %v4066, 14
        %v8819 = vpop.permute.xlu0 %8818
        %8820 = vrot.lane.b32.xlu0 %v4164, 14
        %v8821 = vpop.permute.xlu0 %8820
        %8822 = vrot.lane.b32.xlu0 %v4262, 14
        %v8823 = vpop.permute.xlu0 %8822
        %8824 = vrot.lane.b32.xlu0 %v4360, 14
        %v8825 = vpop.permute.xlu0 %8824
        %8826 = vrot.lane.b32.xlu0 %v4458, 14
        %v8827 = vpop.permute.xlu0 %8826
        %8828 = vrot.lane.b32.xlu0 %v4556, 14
        %v8829 = vpop.permute.xlu0 %8828
        %8830 = vrot.lane.b32.xlu0 %v4654, 14
        %v8831 = vpop.permute.xlu0 %8830
        %8832 = vrot.lane.b32.xlu0 %v4752, 14
        %v8833 = vpop.permute.xlu0 %8832
        %8834 = vrot.lane.b32.xlu0 %v4850, 14
        %v8835 = vpop.permute.xlu0 %8834
        %8836 = vrot.lane.b32.xlu0 %v4948, 14
        %v8837 = vpop.permute.xlu0 %8836
        %8838 = vrot.lane.b32.xlu0 %v5046, 14
        %v8839 = vpop.permute.xlu0 %8838
        %8840 = vrot.lane.b32.xlu0 %v5144, 14
        %v8841 = vpop.permute.xlu0 %8840
        %8842 = vrot.lane.b32.xlu0 %v5242, 14
        %v8843 = vpop.permute.xlu0 %8842
        %8844 = vrot.lane.b32.xlu0 %v5340, 14
        %v8845 = vpop.permute.xlu0 %8844
        %8846 = vrot.lane.b32.xlu0 %v5438, 14
        %v8847 = vpop.permute.xlu0 %8846
        %8848 = vrot.lane.b32.xlu0 %v5536, 14
        %v8849 = vpop.permute.xlu0 %8848
        %8850 = vrot.lane.b32.xlu0 %v5634, 14
        %v8851 = vpop.permute.xlu0 %8850
        %8852 = vrot.lane.b32.xlu0 %v5732, 14
        %v8853 = vpop.permute.xlu0 %8852
        %8854 = vrot.lane.b32.xlu0 %v5830, 14
        %v8855 = vpop.permute.xlu0 %8854
        %8856 = vrot.lane.b32.xlu0 %v5928, 14
        %v8857 = vpop.permute.xlu0 %8856
        %8858 = vrot.lane.b32.xlu0 %v6026, 14
        %v8859 = vpop.permute.xlu0 %8858
        %8860 = vrot.lane.b32.xlu0 %v6124, 14
        %v8861 = vpop.permute.xlu0 %8860
        %8862 = vrot.lane.b32.xlu0 %v6222, 14
        %v8863 = vpop.permute.xlu0 %8862
        %8864 = vrot.lane.b32.xlu0 %v6320, 14
        %v8865 = vpop.permute.xlu0 %8864
        %8866 = vrot.lane.b32.xlu0 %v6418, 14
        %v8867 = vpop.permute.xlu0 %8866
        %8868 = vrot.lane.b32.xlu0 %v6516, 14
        %v8869 = vpop.permute.xlu0 %8868
        %8870 = vrot.lane.b32.xlu0 %v6614, 14
        %v8871 = vpop.permute.xlu0 %8870
        %8872 = vrot.lane.b32.xlu0 %v6712, 14
        %v8873 = vpop.permute.xlu0 %8872
        %8874 = vrot.lane.b32.xlu0 %v6810, 14
        %v8875 = vpop.permute.xlu0 %8874
        %8876 = vrot.lane.b32.xlu0 %v6908, 14
        %v8877 = vpop.permute.xlu0 %8876
        %8878 = vrot.lane.b32.xlu0 %v7006, 14
        %v8879 = vpop.permute.xlu0 %8878
        %8880 = vrot.lane.b32.xlu0 %v7104, 14
        %v8881 = vpop.permute.xlu0 %8880
        %9010 = vrot.lane.b32.xlu0 %v953, 16
        %v9011 = vpop.permute.xlu0 %9010
        %9012 = vrot.lane.b32.xlu0 %v1051, 16
        %v9013 = vpop.permute.xlu0 %9012
        %9014 = vrot.lane.b32.xlu0 %v1149, 16
        %v9015 = vpop.permute.xlu0 %9014
        %9016 = vrot.lane.b32.xlu0 %v1247, 16
        %v9017 = vpop.permute.xlu0 %9016
        %9018 = vrot.lane.b32.xlu0 %v1345, 16
        %v9019 = vpop.permute.xlu0 %9018
        %9020 = vrot.lane.b32.xlu0 %v1443, 16
        %v9021 = vpop.permute.xlu0 %9020
        %9022 = vrot.lane.b32.xlu0 %v1541, 16
        %v9023 = vpop.permute.xlu0 %9022
        %9024 = vrot.lane.b32.xlu0 %v1639, 16
        %v9025 = vpop.permute.xlu0 %9024
        %9026 = vrot.lane.b32.xlu0 %v1737, 16
        %v9027 = vpop.permute.xlu0 %9026
        %9028 = vrot.lane.b32.xlu0 %v1835, 16
        %v9029 = vpop.permute.xlu0 %9028
        %9030 = vrot.lane.b32.xlu0 %v1933, 16
        %v9031 = vpop.permute.xlu0 %9030
        %9032 = vrot.lane.b32.xlu0 %v2031, 16
        %v9033 = vpop.permute.xlu0 %9032
        %9034 = vrot.lane.b32.xlu0 %v2129, 16
        %v9035 = vpop.permute.xlu0 %9034
        %9036 = vrot.lane.b32.xlu0 %v2227, 16
        %v9037 = vpop.permute.xlu0 %9036
        %9038 = vrot.lane.b32.xlu0 %v2325, 16
        %v9039 = vpop.permute.xlu0 %9038
        %9040 = vrot.lane.b32.xlu0 %v2423, 16
        %v9041 = vpop.permute.xlu0 %9040
        %9042 = vrot.lane.b32.xlu0 %v2521, 16
        %v9043 = vpop.permute.xlu0 %9042
        %9044 = vrot.lane.b32.xlu0 %v2619, 16
        %v9045 = vpop.permute.xlu0 %9044
        %9046 = vrot.lane.b32.xlu0 %v2717, 16
        %v9047 = vpop.permute.xlu0 %9046
        %9048 = vrot.lane.b32.xlu0 %v2815, 16
        %v9049 = vpop.permute.xlu0 %9048
        %9050 = vrot.lane.b32.xlu0 %v2913, 16
        %v9051 = vpop.permute.xlu0 %9050
        %9052 = vrot.lane.b32.xlu0 %v3011, 16
        %v9053 = vpop.permute.xlu0 %9052
        %9054 = vrot.lane.b32.xlu0 %v3109, 16
        %v9055 = vpop.permute.xlu0 %9054
        %9056 = vrot.lane.b32.xlu0 %v3207, 16
        %v9057 = vpop.permute.xlu0 %9056
        %9058 = vrot.lane.b32.xlu0 %v3305, 16
        %v9059 = vpop.permute.xlu0 %9058
        %9060 = vrot.lane.b32.xlu0 %v3403, 16
        %v9061 = vpop.permute.xlu0 %9060
        %9062 = vrot.lane.b32.xlu0 %v3501, 16
        %v9063 = vpop.permute.xlu0 %9062
        %9064 = vrot.lane.b32.xlu0 %v3599, 16
        %v9065 = vpop.permute.xlu0 %9064
        %9066 = vrot.lane.b32.xlu0 %v3697, 16
        %v9067 = vpop.permute.xlu0 %9066
        %9068 = vrot.lane.b32.xlu0 %v3795, 16
        %v9069 = vpop.permute.xlu0 %9068
        %9070 = vrot.lane.b32.xlu0 %v3893, 16
        %v9071 = vpop.permute.xlu0 %9070
        %9072 = vrot.lane.b32.xlu0 %v3991, 16
        %v9073 = vpop.permute.xlu0 %9072
        %9074 = vrot.lane.b32.xlu0 %v4089, 16
        %v9075 = vpop.permute.xlu0 %9074
        %9076 = vrot.lane.b32.xlu0 %v4187, 16
        %v9077 = vpop.permute.xlu0 %9076
        %9078 = vrot.lane.b32.xlu0 %v4285, 16
        %v9079 = vpop.permute.xlu0 %9078
        %9080 = vrot.lane.b32.xlu0 %v4383, 16
        %v9081 = vpop.permute.xlu0 %9080
        %9082 = vrot.lane.b32.xlu0 %v4481, 16
        %v9083 = vpop.permute.xlu0 %9082
        %9084 = vrot.lane.b32.xlu0 %v4579, 16
        %v9085 = vpop.permute.xlu0 %9084
        %9086 = vrot.lane.b32.xlu0 %v4677, 16
        %v9087 = vpop.permute.xlu0 %9086
        %9088 = vrot.lane.b32.xlu0 %v4775, 16
        %v9089 = vpop.permute.xlu0 %9088
        %9090 = vrot.lane.b32.xlu0 %v4873, 16
        %v9091 = vpop.permute.xlu0 %9090
        %9092 = vrot.lane.b32.xlu0 %v4971, 16
        %v9093 = vpop.permute.xlu0 %9092
        %9094 = vrot.lane.b32.xlu0 %v5069, 16
        %v9095 = vpop.permute.xlu0 %9094
        %9096 = vrot.lane.b32.xlu0 %v5167, 16
        %v9097 = vpop.permute.xlu0 %9096
        %9098 = vrot.lane.b32.xlu0 %v5265, 16
        %v9099 = vpop.permute.xlu0 %9098
        %9100 = vrot.lane.b32.xlu0 %v5363, 16
        %v9101 = vpop.permute.xlu0 %9100
        %9102 = vrot.lane.b32.xlu0 %v5461, 16
        %v9103 = vpop.permute.xlu0 %9102
        %9104 = vrot.lane.b32.xlu0 %v5559, 16
        %v9105 = vpop.permute.xlu0 %9104
        %9106 = vrot.lane.b32.xlu0 %v5657, 16
        %v9107 = vpop.permute.xlu0 %9106
        %9108 = vrot.lane.b32.xlu0 %v5755, 16
        %v9109 = vpop.permute.xlu0 %9108
        %9110 = vrot.lane.b32.xlu0 %v5853, 16
        %v9111 = vpop.permute.xlu0 %9110
        %9112 = vrot.lane.b32.xlu0 %v5951, 16
        %v9113 = vpop.permute.xlu0 %9112
        %9114 = vrot.lane.b32.xlu0 %v6049, 16
        %v9115 = vpop.permute.xlu0 %9114
        %9116 = vrot.lane.b32.xlu0 %v6147, 16
        %v9117 = vpop.permute.xlu0 %9116
        %9118 = vrot.lane.b32.xlu0 %v6245, 16
        %v9119 = vpop.permute.xlu0 %9118
        %9120 = vrot.lane.b32.xlu0 %v6343, 16
        %v9121 = vpop.permute.xlu0 %9120
        %9122 = vrot.lane.b32.xlu0 %v6441, 16
        %v9123 = vpop.permute.xlu0 %9122
        %9124 = vrot.lane.b32.xlu0 %v6539, 16
        %v9125 = vpop.permute.xlu0 %9124
        %9126 = vrot.lane.b32.xlu0 %v6637, 16
        %v9127 = vpop.permute.xlu0 %9126
        %9128 = vrot.lane.b32.xlu0 %v6735, 16
        %v9129 = vpop.permute.xlu0 %9128
        %9130 = vrot.lane.b32.xlu0 %v6833, 16
        %v9131 = vpop.permute.xlu0 %9130
        %9132 = vrot.lane.b32.xlu0 %v6931, 16
        %v9133 = vpop.permute.xlu0 %9132
        %9134 = vrot.lane.b32.xlu0 %v7029, 16
        %v9135 = vpop.permute.xlu0 %9134
        %9136 = vrot.lane.b32.xlu0 %v7127, 16
        %v9137 = vpop.permute.xlu0 %9136
        %9266 = vrot.lane.b32.xlu0 %v976, 18
        %v9267 = vpop.permute.xlu0 %9266
        %9268 = vrot.lane.b32.xlu0 %v1074, 18
        %v9269 = vpop.permute.xlu0 %9268
        %9270 = vrot.lane.b32.xlu0 %v1172, 18
        %v9271 = vpop.permute.xlu0 %9270
        %9272 = vrot.lane.b32.xlu0 %v1270, 18
        %v9273 = vpop.permute.xlu0 %9272
        %9274 = vrot.lane.b32.xlu0 %v1368, 18
        %v9275 = vpop.permute.xlu0 %9274
        %9276 = vrot.lane.b32.xlu0 %v1466, 18
        %v9277 = vpop.permute.xlu0 %9276
        %9278 = vrot.lane.b32.xlu0 %v1564, 18
        %v9279 = vpop.permute.xlu0 %9278
        %9280 = vrot.lane.b32.xlu0 %v1662, 18
        %v9281 = vpop.permute.xlu0 %9280
        %9282 = vrot.lane.b32.xlu0 %v1760, 18
        %v9283 = vpop.permute.xlu0 %9282
        %9284 = vrot.lane.b32.xlu0 %v1858, 18
        %v9285 = vpop.permute.xlu0 %9284
        %9286 = vrot.lane.b32.xlu0 %v1956, 18
        %v9287 = vpop.permute.xlu0 %9286
        %9288 = vrot.lane.b32.xlu0 %v2054, 18
        %v9289 = vpop.permute.xlu0 %9288
        %9290 = vrot.lane.b32.xlu0 %v2152, 18
        %v9291 = vpop.permute.xlu0 %9290
        %9292 = vrot.lane.b32.xlu0 %v2250, 18
        %v9293 = vpop.permute.xlu0 %9292
        %9294 = vrot.lane.b32.xlu0 %v2348, 18
        %v9295 = vpop.permute.xlu0 %9294
        %9296 = vrot.lane.b32.xlu0 %v2446, 18
        %v9297 = vpop.permute.xlu0 %9296
        %9298 = vrot.lane.b32.xlu0 %v2544, 18
        %v9299 = vpop.permute.xlu0 %9298
        %9300 = vrot.lane.b32.xlu0 %v2642, 18
        %v9301 = vpop.permute.xlu0 %9300
        %9302 = vrot.lane.b32.xlu0 %v2740, 18
        %v9303 = vpop.permute.xlu0 %9302
        %9304 = vrot.lane.b32.xlu0 %v2838, 18
        %v9305 = vpop.permute.xlu0 %9304
        %9306 = vrot.lane.b32.xlu0 %v2936, 18
        %v9307 = vpop.permute.xlu0 %9306
        %9308 = vrot.lane.b32.xlu0 %v3034, 18
        %v9309 = vpop.permute.xlu0 %9308
        %9310 = vrot.lane.b32.xlu0 %v3132, 18
        %v9311 = vpop.permute.xlu0 %9310
        %9312 = vrot.lane.b32.xlu0 %v3230, 18
        %v9313 = vpop.permute.xlu0 %9312
        %9314 = vrot.lane.b32.xlu0 %v3328, 18
        %v9315 = vpop.permute.xlu0 %9314
        %9316 = vrot.lane.b32.xlu0 %v3426, 18
        %v9317 = vpop.permute.xlu0 %9316
        %9318 = vrot.lane.b32.xlu0 %v3524, 18
        %v9319 = vpop.permute.xlu0 %9318
        %9320 = vrot.lane.b32.xlu0 %v3622, 18
        %v9321 = vpop.permute.xlu0 %9320
        %9322 = vrot.lane.b32.xlu0 %v3720, 18
        %v9323 = vpop.permute.xlu0 %9322
        %9324 = vrot.lane.b32.xlu0 %v3818, 18
        %v9325 = vpop.permute.xlu0 %9324
        %9326 = vrot.lane.b32.xlu0 %v3916, 18
        %v9327 = vpop.permute.xlu0 %9326
        %9328 = vrot.lane.b32.xlu0 %v4014, 18
        %v9329 = vpop.permute.xlu0 %9328
        %9330 = vrot.lane.b32.xlu0 %v4112, 18
        %v9331 = vpop.permute.xlu0 %9330
        %9332 = vrot.lane.b32.xlu0 %v4210, 18
        %v9333 = vpop.permute.xlu0 %9332
        %9334 = vrot.lane.b32.xlu0 %v4308, 18
        %v9335 = vpop.permute.xlu0 %9334
        %9336 = vrot.lane.b32.xlu0 %v4406, 18
        %v9337 = vpop.permute.xlu0 %9336
        %9338 = vrot.lane.b32.xlu0 %v4504, 18
        %v9339 = vpop.permute.xlu0 %9338
        %9340 = vrot.lane.b32.xlu0 %v4602, 18
        %v9341 = vpop.permute.xlu0 %9340
        %9342 = vrot.lane.b32.xlu0 %v4700, 18
        %v9343 = vpop.permute.xlu0 %9342
        %9344 = vrot.lane.b32.xlu0 %v4798, 18
        %v9345 = vpop.permute.xlu0 %9344
        %9346 = vrot.lane.b32.xlu0 %v4896, 18
        %v9347 = vpop.permute.xlu0 %9346
        %9348 = vrot.lane.b32.xlu0 %v4994, 18
        %v9349 = vpop.permute.xlu0 %9348
        %9350 = vrot.lane.b32.xlu0 %v5092, 18
        %v9351 = vpop.permute.xlu0 %9350
        %9352 = vrot.lane.b32.xlu0 %v5190, 18
        %v9353 = vpop.permute.xlu0 %9352
        %9354 = vrot.lane.b32.xlu0 %v5288, 18
        %v9355 = vpop.permute.xlu0 %9354
        %9356 = vrot.lane.b32.xlu0 %v5386, 18
        %v9357 = vpop.permute.xlu0 %9356
        %9358 = vrot.lane.b32.xlu0 %v5484, 18
        %v9359 = vpop.permute.xlu0 %9358
        %9360 = vrot.lane.b32.xlu0 %v5582, 18
        %v9361 = vpop.permute.xlu0 %9360
        %9362 = vrot.lane.b32.xlu0 %v5680, 18
        %v9363 = vpop.permute.xlu0 %9362
        %9364 = vrot.lane.b32.xlu0 %v5778, 18
        %v9365 = vpop.permute.xlu0 %9364
        %9366 = vrot.lane.b32.xlu0 %v5876, 18
        %v9367 = vpop.permute.xlu0 %9366
        %9368 = vrot.lane.b32.xlu0 %v5974, 18
        %v9369 = vpop.permute.xlu0 %9368
        %9370 = vrot.lane.b32.xlu0 %v6072, 18
        %v9371 = vpop.permute.xlu0 %9370
        %9372 = vrot.lane.b32.xlu0 %v6170, 18
        %v9373 = vpop.permute.xlu0 %9372
        %9374 = vrot.lane.b32.xlu0 %v6268, 18
        %v9375 = vpop.permute.xlu0 %9374
        %9376 = vrot.lane.b32.xlu0 %v6366, 18
        %v9377 = vpop.permute.xlu0 %9376
        %9378 = vrot.lane.b32.xlu0 %v6464, 18
        %v9379 = vpop.permute.xlu0 %9378
        %9380 = vrot.lane.b32.xlu0 %v6562, 18
        %v9381 = vpop.permute.xlu0 %9380
        %9382 = vrot.lane.b32.xlu0 %v6660, 18
        %v9383 = vpop.permute.xlu0 %9382
        %9384 = vrot.lane.b32.xlu0 %v6758, 18
        %v9385 = vpop.permute.xlu0 %9384
        %9386 = vrot.lane.b32.xlu0 %v6856, 18
        %v9387 = vpop.permute.xlu0 %9386
        %9388 = vrot.lane.b32.xlu0 %v6954, 18
        %v9389 = vpop.permute.xlu0 %9388
        %9390 = vrot.lane.b32.xlu0 %v7052, 18
        %v9391 = vpop.permute.xlu0 %9390
        %9392 = vrot.lane.b32.xlu0 %v7150, 18
        %v9393 = vpop.permute.xlu0 %9392
        %9522 = vrot.lane.b32.xlu0 %v960, 20
        %v9523 = vpop.permute.xlu0 %9522
        %9524 = vrot.lane.b32.xlu0 %v1058, 20
        %v9525 = vpop.permute.xlu0 %9524
        %9526 = vrot.lane.b32.xlu0 %v1156, 20
        %v9527 = vpop.permute.xlu0 %9526
        %9528 = vrot.lane.b32.xlu0 %v1254, 20
        %v9529 = vpop.permute.xlu0 %9528
        %9530 = vrot.lane.b32.xlu0 %v1352, 20
        %v9531 = vpop.permute.xlu0 %9530
        %9532 = vrot.lane.b32.xlu0 %v1450, 20
        %v9533 = vpop.permute.xlu0 %9532
        %9534 = vrot.lane.b32.xlu0 %v1548, 20
        %v9535 = vpop.permute.xlu0 %9534
        %9536 = vrot.lane.b32.xlu0 %v1646, 20
        %v9537 = vpop.permute.xlu0 %9536
        %9538 = vrot.lane.b32.xlu0 %v1744, 20
        %v9539 = vpop.permute.xlu0 %9538
        %9540 = vrot.lane.b32.xlu0 %v1842, 20
        %v9541 = vpop.permute.xlu0 %9540
        %9542 = vrot.lane.b32.xlu0 %v1940, 20
        %v9543 = vpop.permute.xlu0 %9542
        %9544 = vrot.lane.b32.xlu0 %v2038, 20
        %v9545 = vpop.permute.xlu0 %9544
        %9546 = vrot.lane.b32.xlu0 %v2136, 20
        %v9547 = vpop.permute.xlu0 %9546
        %9548 = vrot.lane.b32.xlu0 %v2234, 20
        %v9549 = vpop.permute.xlu0 %9548
        %9550 = vrot.lane.b32.xlu0 %v2332, 20
        %v9551 = vpop.permute.xlu0 %9550
        %9552 = vrot.lane.b32.xlu0 %v2430, 20
        %v9553 = vpop.permute.xlu0 %9552
        %9554 = vrot.lane.b32.xlu0 %v2528, 20
        %v9555 = vpop.permute.xlu0 %9554
        %9556 = vrot.lane.b32.xlu0 %v2626, 20
        %v9557 = vpop.permute.xlu0 %9556
        %9558 = vrot.lane.b32.xlu0 %v2724, 20
        %v9559 = vpop.permute.xlu0 %9558
        %9560 = vrot.lane.b32.xlu0 %v2822, 20
        %v9561 = vpop.permute.xlu0 %9560
        %9562 = vrot.lane.b32.xlu0 %v2920, 20
        %v9563 = vpop.permute.xlu0 %9562
        %9564 = vrot.lane.b32.xlu0 %v3018, 20
        %v9565 = vpop.permute.xlu0 %9564
        %9566 = vrot.lane.b32.xlu0 %v3116, 20
        %v9567 = vpop.permute.xlu0 %9566
        %9568 = vrot.lane.b32.xlu0 %v3214, 20
        %v9569 = vpop.permute.xlu0 %9568
        %9570 = vrot.lane.b32.xlu0 %v3312, 20
        %v9571 = vpop.permute.xlu0 %9570
        %9572 = vrot.lane.b32.xlu0 %v3410, 20
        %v9573 = vpop.permute.xlu0 %9572
        %9574 = vrot.lane.b32.xlu0 %v3508, 20
        %v9575 = vpop.permute.xlu0 %9574
        %9576 = vrot.lane.b32.xlu0 %v3606, 20
        %v9577 = vpop.permute.xlu0 %9576
        %9578 = vrot.lane.b32.xlu0 %v3704, 20
        %v9579 = vpop.permute.xlu0 %9578
        %9580 = vrot.lane.b32.xlu0 %v3802, 20
        %v9581 = vpop.permute.xlu0 %9580
        %9582 = vrot.lane.b32.xlu0 %v3900, 20
        %v9583 = vpop.permute.xlu0 %9582
        %9584 = vrot.lane.b32.xlu0 %v3998, 20
        %v9585 = vpop.permute.xlu0 %9584
        %9586 = vrot.lane.b32.xlu0 %v4096, 20
        %v9587 = vpop.permute.xlu0 %9586
        %9588 = vrot.lane.b32.xlu0 %v4194, 20
        %v9589 = vpop.permute.xlu0 %9588
        %9590 = vrot.lane.b32.xlu0 %v4292, 20
        %v9591 = vpop.permute.xlu0 %9590
        %9592 = vrot.lane.b32.xlu0 %v4390, 20
        %v9593 = vpop.permute.xlu0 %9592
        %9594 = vrot.lane.b32.xlu0 %v4488, 20
        %v9595 = vpop.permute.xlu0 %9594
        %9596 = vrot.lane.b32.xlu0 %v4586, 20
        %v9597 = vpop.permute.xlu0 %9596
        %9598 = vrot.lane.b32.xlu0 %v4684, 20
        %v9599 = vpop.permute.xlu0 %9598
        %9600 = vrot.lane.b32.xlu0 %v4782, 20
        %v9601 = vpop.permute.xlu0 %9600
        %9602 = vrot.lane.b32.xlu0 %v4880, 20
        %v9603 = vpop.permute.xlu0 %9602
        %9604 = vrot.lane.b32.xlu0 %v4978, 20
        %v9605 = vpop.permute.xlu0 %9604
        %9606 = vrot.lane.b32.xlu0 %v5076, 20
        %v9607 = vpop.permute.xlu0 %9606
        %9608 = vrot.lane.b32.xlu0 %v5174, 20
        %v9609 = vpop.permute.xlu0 %9608
        %9610 = vrot.lane.b32.xlu0 %v5272, 20
        %v9611 = vpop.permute.xlu0 %9610
        %9612 = vrot.lane.b32.xlu0 %v5370, 20
        %v9613 = vpop.permute.xlu0 %9612
        %9614 = vrot.lane.b32.xlu0 %v5468, 20
        %v9615 = vpop.permute.xlu0 %9614
        %9616 = vrot.lane.b32.xlu0 %v5566, 20
        %v9617 = vpop.permute.xlu0 %9616
        %9618 = vrot.lane.b32.xlu0 %v5664, 20
        %v9619 = vpop.permute.xlu0 %9618
        %9620 = vrot.lane.b32.xlu0 %v5762, 20
        %v9621 = vpop.permute.xlu0 %9620
        %9622 = vrot.lane.b32.xlu0 %v5860, 20
        %v9623 = vpop.permute.xlu0 %9622
        %9624 = vrot.lane.b32.xlu0 %v5958, 20
        %v9625 = vpop.permute.xlu0 %9624
        %9626 = vrot.lane.b32.xlu0 %v6056, 20
        %v9627 = vpop.permute.xlu0 %9626
        %9628 = vrot.lane.b32.xlu0 %v6154, 20
        %v9629 = vpop.permute.xlu0 %9628
        %9630 = vrot.lane.b32.xlu0 %v6252, 20
        %v9631 = vpop.permute.xlu0 %9630
        %9632 = vrot.lane.b32.xlu0 %v6350, 20
        %v9633 = vpop.permute.xlu0 %9632
        %9634 = vrot.lane.b32.xlu0 %v6448, 20
        %v9635 = vpop.permute.xlu0 %9634
        %9636 = vrot.lane.b32.xlu0 %v6546, 20
        %v9637 = vpop.permute.xlu0 %9636
        %9638 = vrot.lane.b32.xlu0 %v6644, 20
        %v9639 = vpop.permute.xlu0 %9638
        %9640 = vrot.lane.b32.xlu0 %v6742, 20
        %v9641 = vpop.permute.xlu0 %9640
        %9642 = vrot.lane.b32.xlu0 %v6840, 20
        %v9643 = vpop.permute.xlu0 %9642
        %9644 = vrot.lane.b32.xlu0 %v6938, 20
        %v9645 = vpop.permute.xlu0 %9644
        %9646 = vrot.lane.b32.xlu0 %v7036, 20
        %v9647 = vpop.permute.xlu0 %9646
        %9648 = vrot.lane.b32.xlu0 %v7134, 20
        %v9649 = vpop.permute.xlu0 %9648
        %9778 = vrot.lane.b32.xlu0 %v977, 22
        %v9779 = vpop.permute.xlu0 %9778
        %9780 = vrot.lane.b32.xlu0 %v1075, 22
        %v9781 = vpop.permute.xlu0 %9780
        %9782 = vrot.lane.b32.xlu0 %v1173, 22
        %v9783 = vpop.permute.xlu0 %9782
        %9784 = vrot.lane.b32.xlu0 %v1271, 22
        %v9785 = vpop.permute.xlu0 %9784
        %9786 = vrot.lane.b32.xlu0 %v1369, 22
        %v9787 = vpop.permute.xlu0 %9786
        %9788 = vrot.lane.b32.xlu0 %v1467, 22
        %v9789 = vpop.permute.xlu0 %9788
        %9790 = vrot.lane.b32.xlu0 %v1565, 22
        %v9791 = vpop.permute.xlu0 %9790
        %9792 = vrot.lane.b32.xlu0 %v1663, 22
        %v9793 = vpop.permute.xlu0 %9792
        %9794 = vrot.lane.b32.xlu0 %v1761, 22
        %v9795 = vpop.permute.xlu0 %9794
        %9796 = vrot.lane.b32.xlu0 %v1859, 22
        %v9797 = vpop.permute.xlu0 %9796
        %9798 = vrot.lane.b32.xlu0 %v1957, 22
        %v9799 = vpop.permute.xlu0 %9798
        %9800 = vrot.lane.b32.xlu0 %v2055, 22
        %v9801 = vpop.permute.xlu0 %9800
        %9802 = vrot.lane.b32.xlu0 %v2153, 22
        %v9803 = vpop.permute.xlu0 %9802
        %9804 = vrot.lane.b32.xlu0 %v2251, 22
        %v9805 = vpop.permute.xlu0 %9804
        %9806 = vrot.lane.b32.xlu0 %v2349, 22
        %v9807 = vpop.permute.xlu0 %9806
        %9808 = vrot.lane.b32.xlu0 %v2447, 22
        %v9809 = vpop.permute.xlu0 %9808
        %9810 = vrot.lane.b32.xlu0 %v2545, 22
        %v9811 = vpop.permute.xlu0 %9810
        %9812 = vrot.lane.b32.xlu0 %v2643, 22
        %v9813 = vpop.permute.xlu0 %9812
        %9814 = vrot.lane.b32.xlu0 %v2741, 22
        %v9815 = vpop.permute.xlu0 %9814
        %9816 = vrot.lane.b32.xlu0 %v2839, 22
        %v9817 = vpop.permute.xlu0 %9816
        %9818 = vrot.lane.b32.xlu0 %v2937, 22
        %v9819 = vpop.permute.xlu0 %9818
        %9820 = vrot.lane.b32.xlu0 %v3035, 22
        %v9821 = vpop.permute.xlu0 %9820
        %9822 = vrot.lane.b32.xlu0 %v3133, 22
        %v9823 = vpop.permute.xlu0 %9822
        %9824 = vrot.lane.b32.xlu0 %v3231, 22
        %v9825 = vpop.permute.xlu0 %9824
        %9826 = vrot.lane.b32.xlu0 %v3329, 22
        %v9827 = vpop.permute.xlu0 %9826
        %9828 = vrot.lane.b32.xlu0 %v3427, 22
        %v9829 = vpop.permute.xlu0 %9828
        %9830 = vrot.lane.b32.xlu0 %v3525, 22
        %v9831 = vpop.permute.xlu0 %9830
        %9832 = vrot.lane.b32.xlu0 %v3623, 22
        %v9833 = vpop.permute.xlu0 %9832
        %9834 = vrot.lane.b32.xlu0 %v3721, 22
        %v9835 = vpop.permute.xlu0 %9834
        %9836 = vrot.lane.b32.xlu0 %v3819, 22
        %v9837 = vpop.permute.xlu0 %9836
        %9838 = vrot.lane.b32.xlu0 %v3917, 22
        %v9839 = vpop.permute.xlu0 %9838
        %9840 = vrot.lane.b32.xlu0 %v4015, 22
        %v9841 = vpop.permute.xlu0 %9840
        %9842 = vrot.lane.b32.xlu0 %v4113, 22
        %v9843 = vpop.permute.xlu0 %9842
        %9844 = vrot.lane.b32.xlu0 %v4211, 22
        %v9845 = vpop.permute.xlu0 %9844
        %9846 = vrot.lane.b32.xlu0 %v4309, 22
        %v9847 = vpop.permute.xlu0 %9846
        %9848 = vrot.lane.b32.xlu0 %v4407, 22
        %v9849 = vpop.permute.xlu0 %9848
        %9850 = vrot.lane.b32.xlu0 %v4505, 22
        %v9851 = vpop.permute.xlu0 %9850
        %9852 = vrot.lane.b32.xlu0 %v4603, 22
        %v9853 = vpop.permute.xlu0 %9852
        %9854 = vrot.lane.b32.xlu0 %v4701, 22
        %v9855 = vpop.permute.xlu0 %9854
        %9856 = vrot.lane.b32.xlu0 %v4799, 22
        %v9857 = vpop.permute.xlu0 %9856
        %9858 = vrot.lane.b32.xlu0 %v4897, 22
        %v9859 = vpop.permute.xlu0 %9858
        %9860 = vrot.lane.b32.xlu0 %v4995, 22
        %v9861 = vpop.permute.xlu0 %9860
        %9862 = vrot.lane.b32.xlu0 %v5093, 22
        %v9863 = vpop.permute.xlu0 %9862
        %9864 = vrot.lane.b32.xlu0 %v5191, 22
        %v9865 = vpop.permute.xlu0 %9864
        %9866 = vrot.lane.b32.xlu0 %v5289, 22
        %v9867 = vpop.permute.xlu0 %9866
        %9868 = vrot.lane.b32.xlu0 %v5387, 22
        %v9869 = vpop.permute.xlu0 %9868
        %9870 = vrot.lane.b32.xlu0 %v5485, 22
        %v9871 = vpop.permute.xlu0 %9870
        %9872 = vrot.lane.b32.xlu0 %v5583, 22
        %v9873 = vpop.permute.xlu0 %9872
        %9874 = vrot.lane.b32.xlu0 %v5681, 22
        %v9875 = vpop.permute.xlu0 %9874
        %9876 = vrot.lane.b32.xlu0 %v5779, 22
        %v9877 = vpop.permute.xlu0 %9876
        %9878 = vrot.lane.b32.xlu0 %v5877, 22
        %v9879 = vpop.permute.xlu0 %9878
        %9880 = vrot.lane.b32.xlu0 %v5975, 22
        %v9881 = vpop.permute.xlu0 %9880
        %9882 = vrot.lane.b32.xlu0 %v6073, 22
        %v9883 = vpop.permute.xlu0 %9882
        %9884 = vrot.lane.b32.xlu0 %v6171, 22
        %v9885 = vpop.permute.xlu0 %9884
        %9886 = vrot.lane.b32.xlu0 %v6269, 22
        %v9887 = vpop.permute.xlu0 %9886
        %9888 = vrot.lane.b32.xlu0 %v6367, 22
        %v9889 = vpop.permute.xlu0 %9888
        %9890 = vrot.lane.b32.xlu0 %v6465, 22
        %v9891 = vpop.permute.xlu0 %9890
        %9892 = vrot.lane.b32.xlu0 %v6563, 22
        %v9893 = vpop.permute.xlu0 %9892
        %9894 = vrot.lane.b32.xlu0 %v6661, 22
        %v9895 = vpop.permute.xlu0 %9894
        %9896 = vrot.lane.b32.xlu0 %v6759, 22
        %v9897 = vpop.permute.xlu0 %9896
        %9898 = vrot.lane.b32.xlu0 %v6857, 22
        %v9899 = vpop.permute.xlu0 %9898
        %9900 = vrot.lane.b32.xlu0 %v6955, 22
        %v9901 = vpop.permute.xlu0 %9900
        %9902 = vrot.lane.b32.xlu0 %v7053, 22
        %v9903 = vpop.permute.xlu0 %9902
        %9904 = vrot.lane.b32.xlu0 %v7151, 22
        %v9905 = vpop.permute.xlu0 %9904
        %10034 = vrot.lane.b32.xlu0 %v968, 24
        %v10035 = vpop.permute.xlu0 %10034
        %10036 = vrot.lane.b32.xlu0 %v1066, 24
        %v10037 = vpop.permute.xlu0 %10036
        %10038 = vrot.lane.b32.xlu0 %v1164, 24
        %v10039 = vpop.permute.xlu0 %10038
        %10040 = vrot.lane.b32.xlu0 %v1262, 24
        %v10041 = vpop.permute.xlu0 %10040
        %10042 = vrot.lane.b32.xlu0 %v1360, 24
        %v10043 = vpop.permute.xlu0 %10042
        %10044 = vrot.lane.b32.xlu0 %v1458, 24
        %v10045 = vpop.permute.xlu0 %10044
        %10046 = vrot.lane.b32.xlu0 %v1556, 24
        %v10047 = vpop.permute.xlu0 %10046
        %10048 = vrot.lane.b32.xlu0 %v1654, 24
        %v10049 = vpop.permute.xlu0 %10048
        %10050 = vrot.lane.b32.xlu0 %v1752, 24
        %v10051 = vpop.permute.xlu0 %10050
        %10052 = vrot.lane.b32.xlu0 %v1850, 24
        %v10053 = vpop.permute.xlu0 %10052
        %10054 = vrot.lane.b32.xlu0 %v1948, 24
        %v10055 = vpop.permute.xlu0 %10054
        %10056 = vrot.lane.b32.xlu0 %v2046, 24
        %v10057 = vpop.permute.xlu0 %10056
        %10058 = vrot.lane.b32.xlu0 %v2144, 24
        %v10059 = vpop.permute.xlu0 %10058
        %10060 = vrot.lane.b32.xlu0 %v2242, 24
        %v10061 = vpop.permute.xlu0 %10060
        %10062 = vrot.lane.b32.xlu0 %v2340, 24
        %v10063 = vpop.permute.xlu0 %10062
        %10064 = vrot.lane.b32.xlu0 %v2438, 24
        %v10065 = vpop.permute.xlu0 %10064
        %10066 = vrot.lane.b32.xlu0 %v2536, 24
        %v10067 = vpop.permute.xlu0 %10066
        %10068 = vrot.lane.b32.xlu0 %v2634, 24
        %v10069 = vpop.permute.xlu0 %10068
        %10070 = vrot.lane.b32.xlu0 %v2732, 24
        %v10071 = vpop.permute.xlu0 %10070
        %10072 = vrot.lane.b32.xlu0 %v2830, 24
        %v10073 = vpop.permute.xlu0 %10072
        %10074 = vrot.lane.b32.xlu0 %v2928, 24
        %v10075 = vpop.permute.xlu0 %10074
        %10076 = vrot.lane.b32.xlu0 %v3026, 24
        %v10077 = vpop.permute.xlu0 %10076
        %10078 = vrot.lane.b32.xlu0 %v3124, 24
        %v10079 = vpop.permute.xlu0 %10078
        %10080 = vrot.lane.b32.xlu0 %v3222, 24
        %v10081 = vpop.permute.xlu0 %10080
        %10082 = vrot.lane.b32.xlu0 %v3320, 24
        %v10083 = vpop.permute.xlu0 %10082
        %10084 = vrot.lane.b32.xlu0 %v3418, 24
        %v10085 = vpop.permute.xlu0 %10084
        %10086 = vrot.lane.b32.xlu0 %v3516, 24
        %v10087 = vpop.permute.xlu0 %10086
        %10088 = vrot.lane.b32.xlu0 %v3614, 24
        %v10089 = vpop.permute.xlu0 %10088
        %10090 = vrot.lane.b32.xlu0 %v3712, 24
        %v10091 = vpop.permute.xlu0 %10090
        %10092 = vrot.lane.b32.xlu0 %v3810, 24
        %v10093 = vpop.permute.xlu0 %10092
        %10094 = vrot.lane.b32.xlu0 %v3908, 24
        %v10095 = vpop.permute.xlu0 %10094
        %10096 = vrot.lane.b32.xlu0 %v4006, 24
        %v10097 = vpop.permute.xlu0 %10096
        %10098 = vrot.lane.b32.xlu0 %v4104, 24
        %v10099 = vpop.permute.xlu0 %10098
        %10100 = vrot.lane.b32.xlu0 %v4202, 24
        %v10101 = vpop.permute.xlu0 %10100
        %10102 = vrot.lane.b32.xlu0 %v4300, 24
        %v10103 = vpop.permute.xlu0 %10102
        %10104 = vrot.lane.b32.xlu0 %v4398, 24
        %v10105 = vpop.permute.xlu0 %10104
        %10106 = vrot.lane.b32.xlu0 %v4496, 24
        %v10107 = vpop.permute.xlu0 %10106
        %10108 = vrot.lane.b32.xlu0 %v4594, 24
        %v10109 = vpop.permute.xlu0 %10108
        %10110 = vrot.lane.b32.xlu0 %v4692, 24
        %v10111 = vpop.permute.xlu0 %10110
        %10112 = vrot.lane.b32.xlu0 %v4790, 24
        %v10113 = vpop.permute.xlu0 %10112
        %10114 = vrot.lane.b32.xlu0 %v4888, 24
        %v10115 = vpop.permute.xlu0 %10114
        %10116 = vrot.lane.b32.xlu0 %v4986, 24
        %v10117 = vpop.permute.xlu0 %10116
        %10118 = vrot.lane.b32.xlu0 %v5084, 24
        %v10119 = vpop.permute.xlu0 %10118
        %10120 = vrot.lane.b32.xlu0 %v5182, 24
        %v10121 = vpop.permute.xlu0 %10120
        %10122 = vrot.lane.b32.xlu0 %v5280, 24
        %v10123 = vpop.permute.xlu0 %10122
        %10124 = vrot.lane.b32.xlu0 %v5378, 24
        %v10125 = vpop.permute.xlu0 %10124
        %10126 = vrot.lane.b32.xlu0 %v5476, 24
        %v10127 = vpop.permute.xlu0 %10126
        %10128 = vrot.lane.b32.xlu0 %v5574, 24
        %v10129 = vpop.permute.xlu0 %10128
        %10130 = vrot.lane.b32.xlu0 %v5672, 24
        %v10131 = vpop.permute.xlu0 %10130
        %10132 = vrot.lane.b32.xlu0 %v5770, 24
        %v10133 = vpop.permute.xlu0 %10132
        %10134 = vrot.lane.b32.xlu0 %v5868, 24
        %v10135 = vpop.permute.xlu0 %10134
        %10136 = vrot.lane.b32.xlu0 %v5966, 24
        %v10137 = vpop.permute.xlu0 %10136
        %10138 = vrot.lane.b32.xlu0 %v6064, 24
        %v10139 = vpop.permute.xlu0 %10138
        %10140 = vrot.lane.b32.xlu0 %v6162, 24
        %v10141 = vpop.permute.xlu0 %10140
        %10142 = vrot.lane.b32.xlu0 %v6260, 24
        %v10143 = vpop.permute.xlu0 %10142
        %10144 = vrot.lane.b32.xlu0 %v6358, 24
        %v10145 = vpop.permute.xlu0 %10144
        %10146 = vrot.lane.b32.xlu0 %v6456, 24
        %v10147 = vpop.permute.xlu0 %10146
        %10148 = vrot.lane.b32.xlu0 %v6554, 24
        %v10149 = vpop.permute.xlu0 %10148
        %10150 = vrot.lane.b32.xlu0 %v6652, 24
        %v10151 = vpop.permute.xlu0 %10150
        %10152 = vrot.lane.b32.xlu0 %v6750, 24
        %v10153 = vpop.permute.xlu0 %10152
        %10154 = vrot.lane.b32.xlu0 %v6848, 24
        %v10155 = vpop.permute.xlu0 %10154
        %10156 = vrot.lane.b32.xlu0 %v6946, 24
        %v10157 = vpop.permute.xlu0 %10156
        %10158 = vrot.lane.b32.xlu0 %v7044, 24
        %v10159 = vpop.permute.xlu0 %10158
        %10160 = vrot.lane.b32.xlu0 %v7142, 24
        %v10161 = vpop.permute.xlu0 %10160
        %10290 = vrot.lane.b32.xlu0 %v978, 26
        %v10291 = vpop.permute.xlu0 %10290
        %10292 = vrot.lane.b32.xlu0 %v1076, 26
        %v10293 = vpop.permute.xlu0 %10292
        %10294 = vrot.lane.b32.xlu0 %v1174, 26
        %v10295 = vpop.permute.xlu0 %10294
        %10296 = vrot.lane.b32.xlu0 %v1272, 26
        %v10297 = vpop.permute.xlu0 %10296
        %10298 = vrot.lane.b32.xlu0 %v1370, 26
        %v10299 = vpop.permute.xlu0 %10298
        %10300 = vrot.lane.b32.xlu0 %v1468, 26
        %v10301 = vpop.permute.xlu0 %10300
        %10302 = vrot.lane.b32.xlu0 %v1566, 26
        %v10303 = vpop.permute.xlu0 %10302
        %10304 = vrot.lane.b32.xlu0 %v1664, 26
        %v10305 = vpop.permute.xlu0 %10304
        %10306 = vrot.lane.b32.xlu0 %v1762, 26
        %v10307 = vpop.permute.xlu0 %10306
        %10308 = vrot.lane.b32.xlu0 %v1860, 26
        %v10309 = vpop.permute.xlu0 %10308
        %10310 = vrot.lane.b32.xlu0 %v1958, 26
        %v10311 = vpop.permute.xlu0 %10310
        %10312 = vrot.lane.b32.xlu0 %v2056, 26
        %v10313 = vpop.permute.xlu0 %10312
        %10314 = vrot.lane.b32.xlu0 %v2154, 26
        %v10315 = vpop.permute.xlu0 %10314
        %10316 = vrot.lane.b32.xlu0 %v2252, 26
        %v10317 = vpop.permute.xlu0 %10316
        %10318 = vrot.lane.b32.xlu0 %v2350, 26
        %v10319 = vpop.permute.xlu0 %10318
        %10320 = vrot.lane.b32.xlu0 %v2448, 26
        %v10321 = vpop.permute.xlu0 %10320
        %10322 = vrot.lane.b32.xlu0 %v2546, 26
        %v10323 = vpop.permute.xlu0 %10322
        %10324 = vrot.lane.b32.xlu0 %v2644, 26
        %v10325 = vpop.permute.xlu0 %10324
        %10326 = vrot.lane.b32.xlu0 %v2742, 26
        %v10327 = vpop.permute.xlu0 %10326
        %10328 = vrot.lane.b32.xlu0 %v2840, 26
        %v10329 = vpop.permute.xlu0 %10328
        %10330 = vrot.lane.b32.xlu0 %v2938, 26
        %v10331 = vpop.permute.xlu0 %10330
        %10332 = vrot.lane.b32.xlu0 %v3036, 26
        %v10333 = vpop.permute.xlu0 %10332
        %10334 = vrot.lane.b32.xlu0 %v3134, 26
        %v10335 = vpop.permute.xlu0 %10334
        %10336 = vrot.lane.b32.xlu0 %v3232, 26
        %v10337 = vpop.permute.xlu0 %10336
        %10338 = vrot.lane.b32.xlu0 %v3330, 26
        %v10339 = vpop.permute.xlu0 %10338
        %10340 = vrot.lane.b32.xlu0 %v3428, 26
        %v10341 = vpop.permute.xlu0 %10340
        %10342 = vrot.lane.b32.xlu0 %v3526, 26
        %v10343 = vpop.permute.xlu0 %10342
        %10344 = vrot.lane.b32.xlu0 %v3624, 26
        %v10345 = vpop.permute.xlu0 %10344
        %10346 = vrot.lane.b32.xlu0 %v3722, 26
        %v10347 = vpop.permute.xlu0 %10346
        %10348 = vrot.lane.b32.xlu0 %v3820, 26
        %v10349 = vpop.permute.xlu0 %10348
        %10350 = vrot.lane.b32.xlu0 %v3918, 26
        %v10351 = vpop.permute.xlu0 %10350
        %10352 = vrot.lane.b32.xlu0 %v4016, 26
        %v10353 = vpop.permute.xlu0 %10352
        %10354 = vrot.lane.b32.xlu0 %v4114, 26
        %v10355 = vpop.permute.xlu0 %10354
        %10356 = vrot.lane.b32.xlu0 %v4212, 26
        %v10357 = vpop.permute.xlu0 %10356
        %10358 = vrot.lane.b32.xlu0 %v4310, 26
        %v10359 = vpop.permute.xlu0 %10358
        %10360 = vrot.lane.b32.xlu0 %v4408, 26
        %v10361 = vpop.permute.xlu0 %10360
        %10362 = vrot.lane.b32.xlu0 %v4506, 26
        %v10363 = vpop.permute.xlu0 %10362
        %10364 = vrot.lane.b32.xlu0 %v4604, 26
        %v10365 = vpop.permute.xlu0 %10364
        %10366 = vrot.lane.b32.xlu0 %v4702, 26
        %v10367 = vpop.permute.xlu0 %10366
        %10368 = vrot.lane.b32.xlu0 %v4800, 26
        %v10369 = vpop.permute.xlu0 %10368
        %10370 = vrot.lane.b32.xlu0 %v4898, 26
        %v10371 = vpop.permute.xlu0 %10370
        %10372 = vrot.lane.b32.xlu0 %v4996, 26
        %v10373 = vpop.permute.xlu0 %10372
        %10374 = vrot.lane.b32.xlu0 %v5094, 26
        %v10375 = vpop.permute.xlu0 %10374
        %10376 = vrot.lane.b32.xlu0 %v5192, 26
        %v10377 = vpop.permute.xlu0 %10376
        %10378 = vrot.lane.b32.xlu0 %v5290, 26
        %v10379 = vpop.permute.xlu0 %10378
        %10380 = vrot.lane.b32.xlu0 %v5388, 26
        %v10381 = vpop.permute.xlu0 %10380
        %10382 = vrot.lane.b32.xlu0 %v5486, 26
        %v10383 = vpop.permute.xlu0 %10382
        %10384 = vrot.lane.b32.xlu0 %v5584, 26
        %v10385 = vpop.permute.xlu0 %10384
        %10386 = vrot.lane.b32.xlu0 %v5682, 26
        %v10387 = vpop.permute.xlu0 %10386
        %10388 = vrot.lane.b32.xlu0 %v5780, 26
        %v10389 = vpop.permute.xlu0 %10388
        %10390 = vrot.lane.b32.xlu0 %v5878, 26
        %v10391 = vpop.permute.xlu0 %10390
        %10392 = vrot.lane.b32.xlu0 %v5976, 26
        %v10393 = vpop.permute.xlu0 %10392
        %10394 = vrot.lane.b32.xlu0 %v6074, 26
        %v10395 = vpop.permute.xlu0 %10394
        %10396 = vrot.lane.b32.xlu0 %v6172, 26
        %v10397 = vpop.permute.xlu0 %10396
        %10398 = vrot.lane.b32.xlu0 %v6270, 26
        %v10399 = vpop.permute.xlu0 %10398
        %10400 = vrot.lane.b32.xlu0 %v6368, 26
        %v10401 = vpop.permute.xlu0 %10400
        %10402 = vrot.lane.b32.xlu0 %v6466, 26
        %v10403 = vpop.permute.xlu0 %10402
        %10404 = vrot.lane.b32.xlu0 %v6564, 26
        %v10405 = vpop.permute.xlu0 %10404
        %10406 = vrot.lane.b32.xlu0 %v6662, 26
        %v10407 = vpop.permute.xlu0 %10406
        %10408 = vrot.lane.b32.xlu0 %v6760, 26
        %v10409 = vpop.permute.xlu0 %10408
        %10410 = vrot.lane.b32.xlu0 %v6858, 26
        %v10411 = vpop.permute.xlu0 %10410
        %10412 = vrot.lane.b32.xlu0 %v6956, 26
        %v10413 = vpop.permute.xlu0 %10412
        %10414 = vrot.lane.b32.xlu0 %v7054, 26
        %v10415 = vpop.permute.xlu0 %10414
        %10416 = vrot.lane.b32.xlu0 %v7152, 26
        %v10417 = vpop.permute.xlu0 %10416
        %10546 = vrot.lane.b32.xlu0 %v975, 28
        %v10547 = vpop.permute.xlu0 %10546
        %10548 = vrot.lane.b32.xlu0 %v1073, 28
        %v10549 = vpop.permute.xlu0 %10548
        %10550 = vrot.lane.b32.xlu0 %v1171, 28
        %v10551 = vpop.permute.xlu0 %10550
        %10552 = vrot.lane.b32.xlu0 %v1269, 28
        %v10553 = vpop.permute.xlu0 %10552
        %10554 = vrot.lane.b32.xlu0 %v1367, 28
        %v10555 = vpop.permute.xlu0 %10554
        %10556 = vrot.lane.b32.xlu0 %v1465, 28
        %v10557 = vpop.permute.xlu0 %10556
        %10558 = vrot.lane.b32.xlu0 %v1563, 28
        %v10559 = vpop.permute.xlu0 %10558
        %10560 = vrot.lane.b32.xlu0 %v1661, 28
        %v10561 = vpop.permute.xlu0 %10560
        %10562 = vrot.lane.b32.xlu0 %v1759, 28
        %v10563 = vpop.permute.xlu0 %10562
        %10564 = vrot.lane.b32.xlu0 %v1857, 28
        %v10565 = vpop.permute.xlu0 %10564
        %10566 = vrot.lane.b32.xlu0 %v1955, 28
        %v10567 = vpop.permute.xlu0 %10566
        %10568 = vrot.lane.b32.xlu0 %v2053, 28
        %v10569 = vpop.permute.xlu0 %10568
        %10570 = vrot.lane.b32.xlu0 %v2151, 28
        %v10571 = vpop.permute.xlu0 %10570
        %10572 = vrot.lane.b32.xlu0 %v2249, 28
        %v10573 = vpop.permute.xlu0 %10572
        %10574 = vrot.lane.b32.xlu0 %v2347, 28
        %v10575 = vpop.permute.xlu0 %10574
        %10576 = vrot.lane.b32.xlu0 %v2445, 28
        %v10577 = vpop.permute.xlu0 %10576
        %10578 = vrot.lane.b32.xlu0 %v2543, 28
        %v10579 = vpop.permute.xlu0 %10578
        %10580 = vrot.lane.b32.xlu0 %v2641, 28
        %v10581 = vpop.permute.xlu0 %10580
        %10582 = vrot.lane.b32.xlu0 %v2739, 28
        %v10583 = vpop.permute.xlu0 %10582
        %10584 = vrot.lane.b32.xlu0 %v2837, 28
        %v10585 = vpop.permute.xlu0 %10584
        %10586 = vrot.lane.b32.xlu0 %v2935, 28
        %v10587 = vpop.permute.xlu0 %10586
        %10588 = vrot.lane.b32.xlu0 %v3033, 28
        %v10589 = vpop.permute.xlu0 %10588
        %10590 = vrot.lane.b32.xlu0 %v3131, 28
        %v10591 = vpop.permute.xlu0 %10590
        %10592 = vrot.lane.b32.xlu0 %v3229, 28
        %v10593 = vpop.permute.xlu0 %10592
        %10594 = vrot.lane.b32.xlu0 %v3327, 28
        %v10595 = vpop.permute.xlu0 %10594
        %10596 = vrot.lane.b32.xlu0 %v3425, 28
        %v10597 = vpop.permute.xlu0 %10596
        %10598 = vrot.lane.b32.xlu0 %v3523, 28
        %v10599 = vpop.permute.xlu0 %10598
        %10600 = vrot.lane.b32.xlu0 %v3621, 28
        %v10601 = vpop.permute.xlu0 %10600
        %10602 = vrot.lane.b32.xlu0 %v3719, 28
        %v10603 = vpop.permute.xlu0 %10602
        %10604 = vrot.lane.b32.xlu0 %v3817, 28
        %v10605 = vpop.permute.xlu0 %10604
        %10606 = vrot.lane.b32.xlu0 %v3915, 28
        %v10607 = vpop.permute.xlu0 %10606
        %10608 = vrot.lane.b32.xlu0 %v4013, 28
        %v10609 = vpop.permute.xlu0 %10608
        %10610 = vrot.lane.b32.xlu0 %v4111, 28
        %v10611 = vpop.permute.xlu0 %10610
        %10612 = vrot.lane.b32.xlu0 %v4209, 28
        %v10613 = vpop.permute.xlu0 %10612
        %10614 = vrot.lane.b32.xlu0 %v4307, 28
        %v10615 = vpop.permute.xlu0 %10614
        %10616 = vrot.lane.b32.xlu0 %v4405, 28
        %v10617 = vpop.permute.xlu0 %10616
        %10618 = vrot.lane.b32.xlu0 %v4503, 28
        %v10619 = vpop.permute.xlu0 %10618
        %10620 = vrot.lane.b32.xlu0 %v4601, 28
        %v10621 = vpop.permute.xlu0 %10620
        %10622 = vrot.lane.b32.xlu0 %v4699, 28
        %v10623 = vpop.permute.xlu0 %10622
        %10624 = vrot.lane.b32.xlu0 %v4797, 28
        %v10625 = vpop.permute.xlu0 %10624
        %10626 = vrot.lane.b32.xlu0 %v4895, 28
        %v10627 = vpop.permute.xlu0 %10626
        %10628 = vrot.lane.b32.xlu0 %v4993, 28
        %v10629 = vpop.permute.xlu0 %10628
        %10630 = vrot.lane.b32.xlu0 %v5091, 28
        %v10631 = vpop.permute.xlu0 %10630
        %10632 = vrot.lane.b32.xlu0 %v5189, 28
        %v10633 = vpop.permute.xlu0 %10632
        %10634 = vrot.lane.b32.xlu0 %v5287, 28
        %v10635 = vpop.permute.xlu0 %10634
        %10636 = vrot.lane.b32.xlu0 %v5385, 28
        %v10637 = vpop.permute.xlu0 %10636
        %10638 = vrot.lane.b32.xlu0 %v5483, 28
        %v10639 = vpop.permute.xlu0 %10638
        %10640 = vrot.lane.b32.xlu0 %v5581, 28
        %v10641 = vpop.permute.xlu0 %10640
        %10642 = vrot.lane.b32.xlu0 %v5679, 28
        %v10643 = vpop.permute.xlu0 %10642
        %10644 = vrot.lane.b32.xlu0 %v5777, 28
        %v10645 = vpop.permute.xlu0 %10644
        %10646 = vrot.lane.b32.xlu0 %v5875, 28
        %v10647 = vpop.permute.xlu0 %10646
        %10648 = vrot.lane.b32.xlu0 %v5973, 28
        %v10649 = vpop.permute.xlu0 %10648
        %10650 = vrot.lane.b32.xlu0 %v6071, 28
        %v10651 = vpop.permute.xlu0 %10650
        %10652 = vrot.lane.b32.xlu0 %v6169, 28
        %v10653 = vpop.permute.xlu0 %10652
        %10654 = vrot.lane.b32.xlu0 %v6267, 28
        %v10655 = vpop.permute.xlu0 %10654
        %10656 = vrot.lane.b32.xlu0 %v6365, 28
        %v10657 = vpop.permute.xlu0 %10656
        %10658 = vrot.lane.b32.xlu0 %v6463, 28
        %v10659 = vpop.permute.xlu0 %10658
        %10660 = vrot.lane.b32.xlu0 %v6561, 28
        %v10661 = vpop.permute.xlu0 %10660
        %10662 = vrot.lane.b32.xlu0 %v6659, 28
        %v10663 = vpop.permute.xlu0 %10662
        %10664 = vrot.lane.b32.xlu0 %v6757, 28
        %v10665 = vpop.permute.xlu0 %10664
        %10666 = vrot.lane.b32.xlu0 %v6855, 28
        %v10667 = vpop.permute.xlu0 %10666
        %10668 = vrot.lane.b32.xlu0 %v6953, 28
        %v10669 = vpop.permute.xlu0 %10668
        %10670 = vrot.lane.b32.xlu0 %v7051, 28
        %v10671 = vpop.permute.xlu0 %10670
        %10672 = vrot.lane.b32.xlu0 %v7149, 28
        %v10673 = vpop.permute.xlu0 %10672
        %10802 = vrot.lane.b32.xlu0 %v979, 30
        %v10803 = vpop.permute.xlu0 %10802
        %10804 = vrot.lane.b32.xlu0 %v1077, 30
        %v10805 = vpop.permute.xlu0 %10804
        %10806 = vrot.lane.b32.xlu0 %v1175, 30
        %v10807 = vpop.permute.xlu0 %10806
        %10808 = vrot.lane.b32.xlu0 %v1273, 30
        %v10809 = vpop.permute.xlu0 %10808
        %10810 = vrot.lane.b32.xlu0 %v1371, 30
        %v10811 = vpop.permute.xlu0 %10810
        %10812 = vrot.lane.b32.xlu0 %v1469, 30
        %v10813 = vpop.permute.xlu0 %10812
        %10814 = vrot.lane.b32.xlu0 %v1567, 30
        %v10815 = vpop.permute.xlu0 %10814
        %10816 = vrot.lane.b32.xlu0 %v1665, 30
        %v10817 = vpop.permute.xlu0 %10816
        %10818 = vrot.lane.b32.xlu0 %v1763, 30
        %v10819 = vpop.permute.xlu0 %10818
        %10820 = vrot.lane.b32.xlu0 %v1861, 30
        %v10821 = vpop.permute.xlu0 %10820
        %10822 = vrot.lane.b32.xlu0 %v1959, 30
        %v10823 = vpop.permute.xlu0 %10822
        %10824 = vrot.lane.b32.xlu0 %v2057, 30
        %v10825 = vpop.permute.xlu0 %10824
        %10826 = vrot.lane.b32.xlu0 %v2155, 30
        %v10827 = vpop.permute.xlu0 %10826
        %10828 = vrot.lane.b32.xlu0 %v2253, 30
        %v10829 = vpop.permute.xlu0 %10828
        %10830 = vrot.lane.b32.xlu0 %v2351, 30
        %v10831 = vpop.permute.xlu0 %10830
        %10832 = vrot.lane.b32.xlu0 %v2449, 30
        %v10833 = vpop.permute.xlu0 %10832
        %10834 = vrot.lane.b32.xlu0 %v2547, 30
        %v10835 = vpop.permute.xlu0 %10834
        %10836 = vrot.lane.b32.xlu0 %v2645, 30
        %v10837 = vpop.permute.xlu0 %10836
        %10838 = vrot.lane.b32.xlu0 %v2743, 30
        %v10839 = vpop.permute.xlu0 %10838
        %10840 = vrot.lane.b32.xlu0 %v2841, 30
        %v10841 = vpop.permute.xlu0 %10840
        %10842 = vrot.lane.b32.xlu0 %v2939, 30
        %v10843 = vpop.permute.xlu0 %10842
        %10844 = vrot.lane.b32.xlu0 %v3037, 30
        %v10845 = vpop.permute.xlu0 %10844
        %10846 = vrot.lane.b32.xlu0 %v3135, 30
        %v10847 = vpop.permute.xlu0 %10846
        %10848 = vrot.lane.b32.xlu0 %v3233, 30
        %v10849 = vpop.permute.xlu0 %10848
        %10850 = vrot.lane.b32.xlu0 %v3331, 30
        %v10851 = vpop.permute.xlu0 %10850
        %10852 = vrot.lane.b32.xlu0 %v3429, 30
        %v10853 = vpop.permute.xlu0 %10852
        %10854 = vrot.lane.b32.xlu0 %v3527, 30
        %v10855 = vpop.permute.xlu0 %10854
        %10856 = vrot.lane.b32.xlu0 %v3625, 30
        %v10857 = vpop.permute.xlu0 %10856
        %10858 = vrot.lane.b32.xlu0 %v3723, 30
        %v10859 = vpop.permute.xlu0 %10858
        %10860 = vrot.lane.b32.xlu0 %v3821, 30
        %v10861 = vpop.permute.xlu0 %10860
        %10862 = vrot.lane.b32.xlu0 %v3919, 30
        %v10863 = vpop.permute.xlu0 %10862
        %10864 = vrot.lane.b32.xlu0 %v4017, 30
        %v10865 = vpop.permute.xlu0 %10864
        %10866 = vrot.lane.b32.xlu0 %v4115, 30
        %v10867 = vpop.permute.xlu0 %10866
        %10868 = vrot.lane.b32.xlu0 %v4213, 30
        %v10869 = vpop.permute.xlu0 %10868
        %10870 = vrot.lane.b32.xlu0 %v4311, 30
        %v10871 = vpop.permute.xlu0 %10870
        %10872 = vrot.lane.b32.xlu0 %v4409, 30
        %v10873 = vpop.permute.xlu0 %10872
        %10874 = vrot.lane.b32.xlu0 %v4507, 30
        %v10875 = vpop.permute.xlu0 %10874
        %10876 = vrot.lane.b32.xlu0 %v4605, 30
        %v10877 = vpop.permute.xlu0 %10876
        %10878 = vrot.lane.b32.xlu0 %v4703, 30
        %v10879 = vpop.permute.xlu0 %10878
        %10880 = vrot.lane.b32.xlu0 %v4801, 30
        %v10881 = vpop.permute.xlu0 %10880
        %10882 = vrot.lane.b32.xlu0 %v4899, 30
        %v10883 = vpop.permute.xlu0 %10882
        %10884 = vrot.lane.b32.xlu0 %v4997, 30
        %v10885 = vpop.permute.xlu0 %10884
        %10886 = vrot.lane.b32.xlu0 %v5095, 30
        %v10887 = vpop.permute.xlu0 %10886
        %10888 = vrot.lane.b32.xlu0 %v5193, 30
        %v10889 = vpop.permute.xlu0 %10888
        %10890 = vrot.lane.b32.xlu0 %v5291, 30
        %v10891 = vpop.permute.xlu0 %10890
        %10892 = vrot.lane.b32.xlu0 %v5389, 30
        %v10893 = vpop.permute.xlu0 %10892
        %10894 = vrot.lane.b32.xlu0 %v5487, 30
        %v10895 = vpop.permute.xlu0 %10894
        %10896 = vrot.lane.b32.xlu0 %v5585, 30
        %v10897 = vpop.permute.xlu0 %10896
        %10898 = vrot.lane.b32.xlu0 %v5683, 30
        %v10899 = vpop.permute.xlu0 %10898
        %10900 = vrot.lane.b32.xlu0 %v5781, 30
        %v10901 = vpop.permute.xlu0 %10900
        %10902 = vrot.lane.b32.xlu0 %v5879, 30
        %v10903 = vpop.permute.xlu0 %10902
        %10904 = vrot.lane.b32.xlu0 %v5977, 30
        %v10905 = vpop.permute.xlu0 %10904
        %10906 = vrot.lane.b32.xlu0 %v6075, 30
        %v10907 = vpop.permute.xlu0 %10906
        %10908 = vrot.lane.b32.xlu0 %v6173, 30
        %v10909 = vpop.permute.xlu0 %10908
        %10910 = vrot.lane.b32.xlu0 %v6271, 30
        %v10911 = vpop.permute.xlu0 %10910
        %10912 = vrot.lane.b32.xlu0 %v6369, 30
        %v10913 = vpop.permute.xlu0 %10912
        %10914 = vrot.lane.b32.xlu0 %v6467, 30
        %v10915 = vpop.permute.xlu0 %10914
        %10916 = vrot.lane.b32.xlu0 %v6565, 30
        %v10917 = vpop.permute.xlu0 %10916
        %10918 = vrot.lane.b32.xlu0 %v6663, 30
        %v10919 = vpop.permute.xlu0 %10918
        %10920 = vrot.lane.b32.xlu0 %v6761, 30
        %v10921 = vpop.permute.xlu0 %10920
        %10922 = vrot.lane.b32.xlu0 %v6859, 30
        %v10923 = vpop.permute.xlu0 %10922
        %10924 = vrot.lane.b32.xlu0 %v6957, 30
        %v10925 = vpop.permute.xlu0 %10924
        %10926 = vrot.lane.b32.xlu0 %v7055, 30
        %v10927 = vpop.permute.xlu0 %10926
        %10928 = vrot.lane.b32.xlu0 %v7153, 30
        %v10929 = vpop.permute.xlu0 %10928
        %vm10994 = vcmask 15360
        %v10995 = vsel %vm10994, %v904, %v7219
        %v10996 = vsel %vm10994, %v1002, %v7221
        %v10997 = vsel %vm10994, %v1100, %v7223
        %v10998 = vsel %vm10994, %v1198, %v7225
        %v10999 = vsel %vm10994, %v1296, %v7227
        %v11000 = vsel %vm10994, %v1394, %v7229
        %v11001 = vsel %vm10994, %v1492, %v7231
        %v11002 = vsel %vm10994, %v1590, %v7233
        %v11003 = vsel %vm10994, %v1688, %v7235
        %v11004 = vsel %vm10994, %v1786, %v7237
        %v11005 = vsel %vm10994, %v1884, %v7239
        %v11006 = vsel %vm10994, %v1982, %v7241
        %v11007 = vsel %vm10994, %v2080, %v7243
        %v11008 = vsel %vm10994, %v2178, %v7245
        %v11009 = vsel %vm10994, %v2276, %v7247
        %v11010 = vsel %vm10994, %v2374, %v7249
        %v11011 = vsel %vm10994, %v2472, %v7251
        %v11012 = vsel %vm10994, %v2570, %v7253
        %v11013 = vsel %vm10994, %v2668, %v7255
        %v11014 = vsel %vm10994, %v2766, %v7257
        %v11015 = vsel %vm10994, %v2864, %v7259
        %v11016 = vsel %vm10994, %v2962, %v7261
        %v11017 = vsel %vm10994, %v3060, %v7263
        %v11018 = vsel %vm10994, %v3158, %v7265
        %v11019 = vsel %vm10994, %v3256, %v7267
        %v11020 = vsel %vm10994, %v3354, %v7269
        %v11021 = vsel %vm10994, %v3452, %v7271
        %v11022 = vsel %vm10994, %v3550, %v7273
        %v11023 = vsel %vm10994, %v3648, %v7275
        %v11024 = vsel %vm10994, %v3746, %v7277
        %v11025 = vsel %vm10994, %v3844, %v7279
        %v11026 = vsel %vm10994, %v3942, %v7281
        %v11027 = vsel %vm10994, %v4040, %v7283
        %v11028 = vsel %vm10994, %v4138, %v7285
        %v11029 = vsel %vm10994, %v4236, %v7287
        %v11030 = vsel %vm10994, %v4334, %v7289
        %v11031 = vsel %vm10994, %v4432, %v7291
        %v11032 = vsel %vm10994, %v4530, %v7293
        %v11033 = vsel %vm10994, %v4628, %v7295
        %v11034 = vsel %vm10994, %v4726, %v7297
        %v11035 = vsel %vm10994, %v4824, %v7299
        %v11036 = vsel %vm10994, %v4922, %v7301
        %v11037 = vsel %vm10994, %v5020, %v7303
        %v11038 = vsel %vm10994, %v5118, %v7305
        %v11039 = vsel %vm10994, %v5216, %v7307
        %v11040 = vsel %vm10994, %v5314, %v7309
        %v11041 = vsel %vm10994, %v5412, %v7311
        %v11042 = vsel %vm10994, %v5510, %v7313
        %v11043 = vsel %vm10994, %v5608, %v7315
        %v11044 = vsel %vm10994, %v5706, %v7317
        %v11045 = vsel %vm10994, %v5804, %v7319
        %v11046 = vsel %vm10994, %v5902, %v7321
        %v11047 = vsel %vm10994, %v6000, %v7323
        %v11048 = vsel %vm10994, %v6098, %v7325
        %v11049 = vsel %vm10994, %v6196, %v7327
        %v11050 = vsel %vm10994, %v6294, %v7329
        %v11051 = vsel %vm10994, %v6392, %v7331
        %v11052 = vsel %vm10994, %v6490, %v7333
        %v11053 = vsel %vm10994, %v6588, %v7335
        %v11054 = vsel %vm10994, %v6686, %v7337
        %v11055 = vsel %vm10994, %v6784, %v7339
        %v11056 = vsel %vm10994, %v6882, %v7341
        %v11057 = vsel %vm10994, %v6980, %v7343
        %v11058 = vsel %vm10994, %v7078, %v7345
        %vm11059 = vcmask 31744
        %v11060 = vsel %vm11059, %v10995, %v7475
        %v11061 = vsel %vm11059, %v10996, %v7477
        %v11062 = vsel %vm11059, %v10997, %v7479
        %v11063 = vsel %vm11059, %v10998, %v7481
        %v11064 = vsel %vm11059, %v10999, %v7483
        %v11065 = vsel %vm11059, %v11000, %v7485
        %v11066 = vsel %vm11059, %v11001, %v7487
        %v11067 = vsel %vm11059, %v11002, %v7489
        %v11068 = vsel %vm11059, %v11003, %v7491
        %v11069 = vsel %vm11059, %v11004, %v7493
        %v11070 = vsel %vm11059, %v11005, %v7495
        %v11071 = vsel %vm11059, %v11006, %v7497
        %v11072 = vsel %vm11059, %v11007, %v7499
        %v11073 = vsel %vm11059, %v11008, %v7501
        %v11074 = vsel %vm11059, %v11009, %v7503
        %v11075 = vsel %vm11059, %v11010, %v7505
        %v11076 = vsel %vm11059, %v11011, %v7507
        %v11077 = vsel %vm11059, %v11012, %v7509
        %v11078 = vsel %vm11059, %v11013, %v7511
        %v11079 = vsel %vm11059, %v11014, %v7513
        %v11080 = vsel %vm11059, %v11015, %v7515
        %v11081 = vsel %vm11059, %v11016, %v7517
        %v11082 = vsel %vm11059, %v11017, %v7519
        %v11083 = vsel %vm11059, %v11018, %v7521
        %v11084 = vsel %vm11059, %v11019, %v7523
        %v11085 = vsel %vm11059, %v11020, %v7525
        %v11086 = vsel %vm11059, %v11021, %v7527
        %v11087 = vsel %vm11059, %v11022, %v7529
        %v11088 = vsel %vm11059, %v11023, %v7531
        %v11089 = vsel %vm11059, %v11024, %v7533
        %v11090 = vsel %vm11059, %v11025, %v7535
        %v11091 = vsel %vm11059, %v11026, %v7537
        %v11092 = vsel %vm11059, %v11027, %v7539
        %v11093 = vsel %vm11059, %v11028, %v7541
        %v11094 = vsel %vm11059, %v11029, %v7543
        %v11095 = vsel %vm11059, %v11030, %v7545
        %v11096 = vsel %vm11059, %v11031, %v7547
        %v11097 = vsel %vm11059, %v11032, %v7549
        %v11098 = vsel %vm11059, %v11033, %v7551
        %v11099 = vsel %vm11059, %v11034, %v7553
        %v11100 = vsel %vm11059, %v11035, %v7555
        %v11101 = vsel %vm11059, %v11036, %v7557
        %v11102 = vsel %vm11059, %v11037, %v7559
        %v11103 = vsel %vm11059, %v11038, %v7561
        %v11104 = vsel %vm11059, %v11039, %v7563
        %v11105 = vsel %vm11059, %v11040, %v7565
        %v11106 = vsel %vm11059, %v11041, %v7567
        %v11107 = vsel %vm11059, %v11042, %v7569
        %v11108 = vsel %vm11059, %v11043, %v7571
        %v11109 = vsel %vm11059, %v11044, %v7573
        %v11110 = vsel %vm11059, %v11045, %v7575
        %v11111 = vsel %vm11059, %v11046, %v7577
        %v11112 = vsel %vm11059, %v11047, %v7579
        %v11113 = vsel %vm11059, %v11048, %v7581
        %v11114 = vsel %vm11059, %v11049, %v7583
        %v11115 = vsel %vm11059, %v11050, %v7585
        %v11116 = vsel %vm11059, %v11051, %v7587
        %v11117 = vsel %vm11059, %v11052, %v7589
        %v11118 = vsel %vm11059, %v11053, %v7591
        %v11119 = vsel %vm11059, %v11054, %v7593
        %v11120 = vsel %vm11059, %v11055, %v7595
        %v11121 = vsel %vm11059, %v11056, %v7597
        %v11122 = vsel %vm11059, %v11057, %v7599
        %v11123 = vsel %vm11059, %v11058, %v7601
        %vm11124 = vcmask 48128
        %v11125 = vsel %vm11124, %v11060, %v7731
        %v11126 = vsel %vm11124, %v11061, %v7733
        %v11127 = vsel %vm11124, %v11062, %v7735
        %v11128 = vsel %vm11124, %v11063, %v7737
        %v11129 = vsel %vm11124, %v11064, %v7739
        %v11130 = vsel %vm11124, %v11065, %v7741
        %v11131 = vsel %vm11124, %v11066, %v7743
        %v11132 = vsel %vm11124, %v11067, %v7745
        %v11133 = vsel %vm11124, %v11068, %v7747
        %v11134 = vsel %vm11124, %v11069, %v7749
        %v11135 = vsel %vm11124, %v11070, %v7751
        %v11136 = vsel %vm11124, %v11071, %v7753
        %v11137 = vsel %vm11124, %v11072, %v7755
        %v11138 = vsel %vm11124, %v11073, %v7757
        %v11139 = vsel %vm11124, %v11074, %v7759
        %v11140 = vsel %vm11124, %v11075, %v7761
        %v11141 = vsel %vm11124, %v11076, %v7763
        %v11142 = vsel %vm11124, %v11077, %v7765
        %v11143 = vsel %vm11124, %v11078, %v7767
        %v11144 = vsel %vm11124, %v11079, %v7769
        %v11145 = vsel %vm11124, %v11080, %v7771
        %v11146 = vsel %vm11124, %v11081, %v7773
        %v11147 = vsel %vm11124, %v11082, %v7775
        %v11148 = vsel %vm11124, %v11083, %v7777
        %v11149 = vsel %vm11124, %v11084, %v7779
        %v11150 = vsel %vm11124, %v11085, %v7781
        %v11151 = vsel %vm11124, %v11086, %v7783
        %v11152 = vsel %vm11124, %v11087, %v7785
        %v11153 = vsel %vm11124, %v11088, %v7787
        %v11154 = vsel %vm11124, %v11089, %v7789
        %v11155 = vsel %vm11124, %v11090, %v7791
        %v11156 = vsel %vm11124, %v11091, %v7793
        %v11157 = vsel %vm11124, %v11092, %v7795
        %v11158 = vsel %vm11124, %v11093, %v7797
        %v11159 = vsel %vm11124, %v11094, %v7799
        %v11160 = vsel %vm11124, %v11095, %v7801
        %v11161 = vsel %vm11124, %v11096, %v7803
        %v11162 = vsel %vm11124, %v11097, %v7805
        %v11163 = vsel %vm11124, %v11098, %v7807
        %v11164 = vsel %vm11124, %v11099, %v7809
        %v11165 = vsel %vm11124, %v11100, %v7811
        %v11166 = vsel %vm11124, %v11101, %v7813
        %v11167 = vsel %vm11124, %v11102, %v7815
        %v11168 = vsel %vm11124, %v11103, %v7817
        %v11169 = vsel %vm11124, %v11104, %v7819
        %v11170 = vsel %vm11124, %v11105, %v7821
        %v11171 = vsel %vm11124, %v11106, %v7823
        %v11172 = vsel %vm11124, %v11107, %v7825
        %v11173 = vsel %vm11124, %v11108, %v7827
        %v11174 = vsel %vm11124, %v11109, %v7829
        %v11175 = vsel %vm11124, %v11110, %v7831
        %v11176 = vsel %vm11124, %v11111, %v7833
        %v11177 = vsel %vm11124, %v11112, %v7835
        %v11178 = vsel %vm11124, %v11113, %v7837
        %v11179 = vsel %vm11124, %v11114, %v7839
        %v11180 = vsel %vm11124, %v11115, %v7841
        %v11181 = vsel %vm11124, %v11116, %v7843
        %v11182 = vsel %vm11124, %v11117, %v7845
        %v11183 = vsel %vm11124, %v11118, %v7847
        %v11184 = vsel %vm11124, %v11119, %v7849
        %v11185 = vsel %vm11124, %v11120, %v7851
        %v11186 = vsel %vm11124, %v11121, %v7853
        %v11187 = vsel %vm11124, %v11122, %v7855
        %v11188 = vsel %vm11124, %v11123, %v7857
        %vm11189 = vcmask 64512
        %v11190 = vsel %vm11189, %v11125, %v7987
        %v11191 = vsel %vm11189, %v11126, %v7989
        %v11192 = vsel %vm11189, %v11127, %v7991
        %v11193 = vsel %vm11189, %v11128, %v7993
        %v11194 = vsel %vm11189, %v11129, %v7995
        %v11195 = vsel %vm11189, %v11130, %v7997
        %v11196 = vsel %vm11189, %v11131, %v7999
        %v11197 = vsel %vm11189, %v11132, %v8001
        %v11198 = vsel %vm11189, %v11133, %v8003
        %v11199 = vsel %vm11189, %v11134, %v8005
        %v11200 = vsel %vm11189, %v11135, %v8007
        %v11201 = vsel %vm11189, %v11136, %v8009
        %v11202 = vsel %vm11189, %v11137, %v8011
        %v11203 = vsel %vm11189, %v11138, %v8013
        %v11204 = vsel %vm11189, %v11139, %v8015
        %v11205 = vsel %vm11189, %v11140, %v8017
        %v11206 = vsel %vm11189, %v11141, %v8019
        %v11207 = vsel %vm11189, %v11142, %v8021
        %v11208 = vsel %vm11189, %v11143, %v8023
        %v11209 = vsel %vm11189, %v11144, %v8025
        %v11210 = vsel %vm11189, %v11145, %v8027
        %v11211 = vsel %vm11189, %v11146, %v8029
        %v11212 = vsel %vm11189, %v11147, %v8031
        %v11213 = vsel %vm11189, %v11148, %v8033
        %v11214 = vsel %vm11189, %v11149, %v8035
        %v11215 = vsel %vm11189, %v11150, %v8037
        %v11216 = vsel %vm11189, %v11151, %v8039
        %v11217 = vsel %vm11189, %v11152, %v8041
        %v11218 = vsel %vm11189, %v11153, %v8043
        %v11219 = vsel %vm11189, %v11154, %v8045
        %v11220 = vsel %vm11189, %v11155, %v8047
        %v11221 = vsel %vm11189, %v11156, %v8049
        %v11222 = vsel %vm11189, %v11157, %v8051
        %v11223 = vsel %vm11189, %v11158, %v8053
        %v11224 = vsel %vm11189, %v11159, %v8055
        %v11225 = vsel %vm11189, %v11160, %v8057
        %v11226 = vsel %vm11189, %v11161, %v8059
        %v11227 = vsel %vm11189, %v11162, %v8061
        %v11228 = vsel %vm11189, %v11163, %v8063
        %v11229 = vsel %vm11189, %v11164, %v8065
        %v11230 = vsel %vm11189, %v11165, %v8067
        %v11231 = vsel %vm11189, %v11166, %v8069
        %v11232 = vsel %vm11189, %v11167, %v8071
        %v11233 = vsel %vm11189, %v11168, %v8073
        %v11234 = vsel %vm11189, %v11169, %v8075
        %v11235 = vsel %vm11189, %v11170, %v8077
        %v11236 = vsel %vm11189, %v11171, %v8079
        %v11237 = vsel %vm11189, %v11172, %v8081
        %v11238 = vsel %vm11189, %v11173, %v8083
        %v11239 = vsel %vm11189, %v11174, %v8085
        %v11240 = vsel %vm11189, %v11175, %v8087
        %v11241 = vsel %vm11189, %v11176, %v8089
        %v11242 = vsel %vm11189, %v11177, %v8091
        %v11243 = vsel %vm11189, %v11178, %v8093
        %v11244 = vsel %vm11189, %v11179, %v8095
        %v11245 = vsel %vm11189, %v11180, %v8097
        %v11246 = vsel %vm11189, %v11181, %v8099
        %v11247 = vsel %vm11189, %v11182, %v8101
        %v11248 = vsel %vm11189, %v11183, %v8103
        %v11249 = vsel %vm11189, %v11184, %v8105
        %v11250 = vsel %vm11189, %v11185, %v8107
        %v11251 = vsel %vm11189, %v11186, %v8109
        %v11252 = vsel %vm11189, %v11187, %v8111
        %v11253 = vsel %vm11189, %v11188, %v8113
        %vm11254 = vcmask 80896
        %v11255 = vsel %vm11254, %v11190, %v8243
        %v11256 = vsel %vm11254, %v11191, %v8245
        %v11257 = vsel %vm11254, %v11192, %v8247
        %v11258 = vsel %vm11254, %v11193, %v8249
        %v11259 = vsel %vm11254, %v11194, %v8251
        %v11260 = vsel %vm11254, %v11195, %v8253
        %v11261 = vsel %vm11254, %v11196, %v8255
        %v11262 = vsel %vm11254, %v11197, %v8257
        %v11263 = vsel %vm11254, %v11198, %v8259
        %v11264 = vsel %vm11254, %v11199, %v8261
        %v11265 = vsel %vm11254, %v11200, %v8263
        %v11266 = vsel %vm11254, %v11201, %v8265
        %v11267 = vsel %vm11254, %v11202, %v8267
        %v11268 = vsel %vm11254, %v11203, %v8269
        %v11269 = vsel %vm11254, %v11204, %v8271
        %v11270 = vsel %vm11254, %v11205, %v8273
        %v11271 = vsel %vm11254, %v11206, %v8275
        %v11272 = vsel %vm11254, %v11207, %v8277
        %v11273 = vsel %vm11254, %v11208, %v8279
        %v11274 = vsel %vm11254, %v11209, %v8281
        %v11275 = vsel %vm11254, %v11210, %v8283
        %v11276 = vsel %vm11254, %v11211, %v8285
        %v11277 = vsel %vm11254, %v11212, %v8287
        %v11278 = vsel %vm11254, %v11213, %v8289
        %v11279 = vsel %vm11254, %v11214, %v8291
        %v11280 = vsel %vm11254, %v11215, %v8293
        %v11281 = vsel %vm11254, %v11216, %v8295
        %v11282 = vsel %vm11254, %v11217, %v8297
        %v11283 = vsel %vm11254, %v11218, %v8299
        %v11284 = vsel %vm11254, %v11219, %v8301
        %v11285 = vsel %vm11254, %v11220, %v8303
        %v11286 = vsel %vm11254, %v11221, %v8305
        %v11287 = vsel %vm11254, %v11222, %v8307
        %v11288 = vsel %vm11254, %v11223, %v8309
        %v11289 = vsel %vm11254, %v11224, %v8311
        %v11290 = vsel %vm11254, %v11225, %v8313
        %v11291 = vsel %vm11254, %v11226, %v8315
        %v11292 = vsel %vm11254, %v11227, %v8317
        %v11293 = vsel %vm11254, %v11228, %v8319
        %v11294 = vsel %vm11254, %v11229, %v8321
        %v11295 = vsel %vm11254, %v11230, %v8323
        %v11296 = vsel %vm11254, %v11231, %v8325
        %v11297 = vsel %vm11254, %v11232, %v8327
        %v11298 = vsel %vm11254, %v11233, %v8329
        %v11299 = vsel %vm11254, %v11234, %v8331
        %v11300 = vsel %vm11254, %v11235, %v8333
        %v11301 = vsel %vm11254, %v11236, %v8335
        %v11302 = vsel %vm11254, %v11237, %v8337
        %v11303 = vsel %vm11254, %v11238, %v8339
        %v11304 = vsel %vm11254, %v11239, %v8341
        %v11305 = vsel %vm11254, %v11240, %v8343
        %v11306 = vsel %vm11254, %v11241, %v8345
        %v11307 = vsel %vm11254, %v11242, %v8347
        %v11308 = vsel %vm11254, %v11243, %v8349
        %v11309 = vsel %vm11254, %v11244, %v8351
        %v11310 = vsel %vm11254, %v11245, %v8353
        %v11311 = vsel %vm11254, %v11246, %v8355
        %v11312 = vsel %vm11254, %v11247, %v8357
        %v11313 = vsel %vm11254, %v11248, %v8359
        %v11314 = vsel %vm11254, %v11249, %v8361
        %v11315 = vsel %vm11254, %v11250, %v8363
        %v11316 = vsel %vm11254, %v11251, %v8365
        %v11317 = vsel %vm11254, %v11252, %v8367
        %v11318 = vsel %vm11254, %v11253, %v8369
        %vm11319 = vcmask 97280
        %v11320 = vsel %vm11319, %v11255, %v8499
        %v11321 = vsel %vm11319, %v11256, %v8501
        %v11322 = vsel %vm11319, %v11257, %v8503
        %v11323 = vsel %vm11319, %v11258, %v8505
        %v11324 = vsel %vm11319, %v11259, %v8507
        %v11325 = vsel %vm11319, %v11260, %v8509
        %v11326 = vsel %vm11319, %v11261, %v8511
        %v11327 = vsel %vm11319, %v11262, %v8513
        %v11328 = vsel %vm11319, %v11263, %v8515
        %v11329 = vsel %vm11319, %v11264, %v8517
        %v11330 = vsel %vm11319, %v11265, %v8519
        %v11331 = vsel %vm11319, %v11266, %v8521
        %v11332 = vsel %vm11319, %v11267, %v8523
        %v11333 = vsel %vm11319, %v11268, %v8525
        %v11334 = vsel %vm11319, %v11269, %v8527
        %v11335 = vsel %vm11319, %v11270, %v8529
        %v11336 = vsel %vm11319, %v11271, %v8531
        %v11337 = vsel %vm11319, %v11272, %v8533
        %v11338 = vsel %vm11319, %v11273, %v8535
        %v11339 = vsel %vm11319, %v11274, %v8537
        %v11340 = vsel %vm11319, %v11275, %v8539
        %v11341 = vsel %vm11319, %v11276, %v8541
        %v11342 = vsel %vm11319, %v11277, %v8543
        %v11343 = vsel %vm11319, %v11278, %v8545
        %v11344 = vsel %vm11319, %v11279, %v8547
        %v11345 = vsel %vm11319, %v11280, %v8549
        %v11346 = vsel %vm11319, %v11281, %v8551
        %v11347 = vsel %vm11319, %v11282, %v8553
        %v11348 = vsel %vm11319, %v11283, %v8555
        %v11349 = vsel %vm11319, %v11284, %v8557
        %v11350 = vsel %vm11319, %v11285, %v8559
        %v11351 = vsel %vm11319, %v11286, %v8561
        %v11352 = vsel %vm11319, %v11287, %v8563
        %v11353 = vsel %vm11319, %v11288, %v8565
        %v11354 = vsel %vm11319, %v11289, %v8567
        %v11355 = vsel %vm11319, %v11290, %v8569
        %v11356 = vsel %vm11319, %v11291, %v8571
        %v11357 = vsel %vm11319, %v11292, %v8573
        %v11358 = vsel %vm11319, %v11293, %v8575
        %v11359 = vsel %vm11319, %v11294, %v8577
        %v11360 = vsel %vm11319, %v11295, %v8579
        %v11361 = vsel %vm11319, %v11296, %v8581
        %v11362 = vsel %vm11319, %v11297, %v8583
        %v11363 = vsel %vm11319, %v11298, %v8585
        %v11364 = vsel %vm11319, %v11299, %v8587
        %v11365 = vsel %vm11319, %v11300, %v8589
        %v11366 = vsel %vm11319, %v11301, %v8591
        %v11367 = vsel %vm11319, %v11302, %v8593
        %v11368 = vsel %vm11319, %v11303, %v8595
        %v11369 = vsel %vm11319, %v11304, %v8597
        %v11370 = vsel %vm11319, %v11305, %v8599
        %v11371 = vsel %vm11319, %v11306, %v8601
        %v11372 = vsel %vm11319, %v11307, %v8603
        %v11373 = vsel %vm11319, %v11308, %v8605
        %v11374 = vsel %vm11319, %v11309, %v8607
        %v11375 = vsel %vm11319, %v11310, %v8609
        %v11376 = vsel %vm11319, %v11311, %v8611
        %v11377 = vsel %vm11319, %v11312, %v8613
        %v11378 = vsel %vm11319, %v11313, %v8615
        %v11379 = vsel %vm11319, %v11314, %v8617
        %v11380 = vsel %vm11319, %v11315, %v8619
        %v11381 = vsel %vm11319, %v11316, %v8621
        %v11382 = vsel %vm11319, %v11317, %v8623
        %v11383 = vsel %vm11319, %v11318, %v8625
        %vm11384 = vcmask 113664
        %v11385 = vsel %vm11384, %v11320, %v8755
        %v11386 = vsel %vm11384, %v11321, %v8757
        %v11387 = vsel %vm11384, %v11322, %v8759
        %v11388 = vsel %vm11384, %v11323, %v8761
        %v11389 = vsel %vm11384, %v11324, %v8763
        %v11390 = vsel %vm11384, %v11325, %v8765
        %v11391 = vsel %vm11384, %v11326, %v8767
        %v11392 = vsel %vm11384, %v11327, %v8769
        %v11393 = vsel %vm11384, %v11328, %v8771
        %v11394 = vsel %vm11384, %v11329, %v8773
        %v11395 = vsel %vm11384, %v11330, %v8775
        %v11396 = vsel %vm11384, %v11331, %v8777
        %v11397 = vsel %vm11384, %v11332, %v8779
        %v11398 = vsel %vm11384, %v11333, %v8781
        %v11399 = vsel %vm11384, %v11334, %v8783
        %v11400 = vsel %vm11384, %v11335, %v8785
        %v11401 = vsel %vm11384, %v11336, %v8787
        %v11402 = vsel %vm11384, %v11337, %v8789
        %v11403 = vsel %vm11384, %v11338, %v8791
        %v11404 = vsel %vm11384, %v11339, %v8793
        %v11405 = vsel %vm11384, %v11340, %v8795
        %v11406 = vsel %vm11384, %v11341, %v8797
        %v11407 = vsel %vm11384, %v11342, %v8799
        %v11408 = vsel %vm11384, %v11343, %v8801
        %v11409 = vsel %vm11384, %v11344, %v8803
        %v11410 = vsel %vm11384, %v11345, %v8805
        %v11411 = vsel %vm11384, %v11346, %v8807
        %v11412 = vsel %vm11384, %v11347, %v8809
        %v11413 = vsel %vm11384, %v11348, %v8811
        %v11414 = vsel %vm11384, %v11349, %v8813
        %v11415 = vsel %vm11384, %v11350, %v8815
        %v11416 = vsel %vm11384, %v11351, %v8817
        %v11417 = vsel %vm11384, %v11352, %v8819
        %v11418 = vsel %vm11384, %v11353, %v8821
        %v11419 = vsel %vm11384, %v11354, %v8823
        %v11420 = vsel %vm11384, %v11355, %v8825
        %v11421 = vsel %vm11384, %v11356, %v8827
        %v11422 = vsel %vm11384, %v11357, %v8829
        %v11423 = vsel %vm11384, %v11358, %v8831
        %v11424 = vsel %vm11384, %v11359, %v8833
        %v11425 = vsel %vm11384, %v11360, %v8835
        %v11426 = vsel %vm11384, %v11361, %v8837
        %v11427 = vsel %vm11384, %v11362, %v8839
        %v11428 = vsel %vm11384, %v11363, %v8841
        %v11429 = vsel %vm11384, %v11364, %v8843
        %v11430 = vsel %vm11384, %v11365, %v8845
        %v11431 = vsel %vm11384, %v11366, %v8847
        %v11432 = vsel %vm11384, %v11367, %v8849
        %v11433 = vsel %vm11384, %v11368, %v8851
        %v11434 = vsel %vm11384, %v11369, %v8853
        %v11435 = vsel %vm11384, %v11370, %v8855
        %v11436 = vsel %vm11384, %v11371, %v8857
        %v11437 = vsel %vm11384, %v11372, %v8859
        %v11438 = vsel %vm11384, %v11373, %v8861
        %v11439 = vsel %vm11384, %v11374, %v8863
        %v11440 = vsel %vm11384, %v11375, %v8865
        %v11441 = vsel %vm11384, %v11376, %v8867
        %v11442 = vsel %vm11384, %v11377, %v8869
        %v11443 = vsel %vm11384, %v11378, %v8871
        %v11444 = vsel %vm11384, %v11379, %v8873
        %v11445 = vsel %vm11384, %v11380, %v8875
        %v11446 = vsel %vm11384, %v11381, %v8877
        %v11447 = vsel %vm11384, %v11382, %v8879
        %v11448 = vsel %vm11384, %v11383, %v8881
        %vm11449 = vcmask 130048
        %v11450 = vsel %vm11449, %v11385, %v9011
        %v11451 = vsel %vm11449, %v11386, %v9013
        %v11452 = vsel %vm11449, %v11387, %v9015
        %v11453 = vsel %vm11449, %v11388, %v9017
        %v11454 = vsel %vm11449, %v11389, %v9019
        %v11455 = vsel %vm11449, %v11390, %v9021
        %v11456 = vsel %vm11449, %v11391, %v9023
        %v11457 = vsel %vm11449, %v11392, %v9025
        %v11458 = vsel %vm11449, %v11393, %v9027
        %v11459 = vsel %vm11449, %v11394, %v9029
        %v11460 = vsel %vm11449, %v11395, %v9031
        %v11461 = vsel %vm11449, %v11396, %v9033
        %v11462 = vsel %vm11449, %v11397, %v9035
        %v11463 = vsel %vm11449, %v11398, %v9037
        %v11464 = vsel %vm11449, %v11399, %v9039
        %v11465 = vsel %vm11449, %v11400, %v9041
        %v11466 = vsel %vm11449, %v11401, %v9043
        %v11467 = vsel %vm11449, %v11402, %v9045
        %v11468 = vsel %vm11449, %v11403, %v9047
        %v11469 = vsel %vm11449, %v11404, %v9049
        %v11470 = vsel %vm11449, %v11405, %v9051
        %v11471 = vsel %vm11449, %v11406, %v9053
        %v11472 = vsel %vm11449, %v11407, %v9055
        %v11473 = vsel %vm11449, %v11408, %v9057
        %v11474 = vsel %vm11449, %v11409, %v9059
        %v11475 = vsel %vm11449, %v11410, %v9061
        %v11476 = vsel %vm11449, %v11411, %v9063
        %v11477 = vsel %vm11449, %v11412, %v9065
        %v11478 = vsel %vm11449, %v11413, %v9067
        %v11479 = vsel %vm11449, %v11414, %v9069
        %v11480 = vsel %vm11449, %v11415, %v9071
        %v11481 = vsel %vm11449, %v11416, %v9073
        %v11482 = vsel %vm11449, %v11417, %v9075
        %v11483 = vsel %vm11449, %v11418, %v9077
        %v11484 = vsel %vm11449, %v11419, %v9079
        %v11485 = vsel %vm11449, %v11420, %v9081
        %v11486 = vsel %vm11449, %v11421, %v9083
        %v11487 = vsel %vm11449, %v11422, %v9085
        %v11488 = vsel %vm11449, %v11423, %v9087
        %v11489 = vsel %vm11449, %v11424, %v9089
        %v11490 = vsel %vm11449, %v11425, %v9091
        %v11491 = vsel %vm11449, %v11426, %v9093
        %v11492 = vsel %vm11449, %v11427, %v9095
        %v11493 = vsel %vm11449, %v11428, %v9097
        %v11494 = vsel %vm11449, %v11429, %v9099
        %v11495 = vsel %vm11449, %v11430, %v9101
        %v11496 = vsel %vm11449, %v11431, %v9103
        %v11497 = vsel %vm11449, %v11432, %v9105
        %v11498 = vsel %vm11449, %v11433, %v9107
        %v11499 = vsel %vm11449, %v11434, %v9109
        %v11500 = vsel %vm11449, %v11435, %v9111
        %v11501 = vsel %vm11449, %v11436, %v9113
        %v11502 = vsel %vm11449, %v11437, %v9115
        %v11503 = vsel %vm11449, %v11438, %v9117
        %v11504 = vsel %vm11449, %v11439, %v9119
        %v11505 = vsel %vm11449, %v11440, %v9121
        %v11506 = vsel %vm11449, %v11441, %v9123
        %v11507 = vsel %vm11449, %v11442, %v9125
        %v11508 = vsel %vm11449, %v11443, %v9127
        %v11509 = vsel %vm11449, %v11444, %v9129
        %v11510 = vsel %vm11449, %v11445, %v9131
        %v11511 = vsel %vm11449, %v11446, %v9133
        %v11512 = vsel %vm11449, %v11447, %v9135
        %v11513 = vsel %vm11449, %v11448, %v9137
        %vm11514 = vcmask 146432
        %v11515 = vsel %vm11514, %v11450, %v9267
        %v11516 = vsel %vm11514, %v11451, %v9269
        %v11517 = vsel %vm11514, %v11452, %v9271
        %v11518 = vsel %vm11514, %v11453, %v9273
        %v11519 = vsel %vm11514, %v11454, %v9275
        %v11520 = vsel %vm11514, %v11455, %v9277
        %v11521 = vsel %vm11514, %v11456, %v9279
        %v11522 = vsel %vm11514, %v11457, %v9281
        %v11523 = vsel %vm11514, %v11458, %v9283
        %v11524 = vsel %vm11514, %v11459, %v9285
        %v11525 = vsel %vm11514, %v11460, %v9287
        %v11526 = vsel %vm11514, %v11461, %v9289
        %v11527 = vsel %vm11514, %v11462, %v9291
        %v11528 = vsel %vm11514, %v11463, %v9293
        %v11529 = vsel %vm11514, %v11464, %v9295
        %v11530 = vsel %vm11514, %v11465, %v9297
        %v11531 = vsel %vm11514, %v11466, %v9299
        %v11532 = vsel %vm11514, %v11467, %v9301
        %v11533 = vsel %vm11514, %v11468, %v9303
        %v11534 = vsel %vm11514, %v11469, %v9305
        %v11535 = vsel %vm11514, %v11470, %v9307
        %v11536 = vsel %vm11514, %v11471, %v9309
        %v11537 = vsel %vm11514, %v11472, %v9311
        %v11538 = vsel %vm11514, %v11473, %v9313
        %v11539 = vsel %vm11514, %v11474, %v9315
        %v11540 = vsel %vm11514, %v11475, %v9317
        %v11541 = vsel %vm11514, %v11476, %v9319
        %v11542 = vsel %vm11514, %v11477, %v9321
        %v11543 = vsel %vm11514, %v11478, %v9323
        %v11544 = vsel %vm11514, %v11479, %v9325
        %v11545 = vsel %vm11514, %v11480, %v9327
        %v11546 = vsel %vm11514, %v11481, %v9329
        %v11547 = vsel %vm11514, %v11482, %v9331
        %v11548 = vsel %vm11514, %v11483, %v9333
        %v11549 = vsel %vm11514, %v11484, %v9335
        %v11550 = vsel %vm11514, %v11485, %v9337
        %v11551 = vsel %vm11514, %v11486, %v9339
        %v11552 = vsel %vm11514, %v11487, %v9341
        %v11553 = vsel %vm11514, %v11488, %v9343
        %v11554 = vsel %vm11514, %v11489, %v9345
        %v11555 = vsel %vm11514, %v11490, %v9347
        %v11556 = vsel %vm11514, %v11491, %v9349
        %v11557 = vsel %vm11514, %v11492, %v9351
        %v11558 = vsel %vm11514, %v11493, %v9353
        %v11559 = vsel %vm11514, %v11494, %v9355
        %v11560 = vsel %vm11514, %v11495, %v9357
        %v11561 = vsel %vm11514, %v11496, %v9359
        %v11562 = vsel %vm11514, %v11497, %v9361
        %v11563 = vsel %vm11514, %v11498, %v9363
        %v11564 = vsel %vm11514, %v11499, %v9365
        %v11565 = vsel %vm11514, %v11500, %v9367
        %v11566 = vsel %vm11514, %v11501, %v9369
        %v11567 = vsel %vm11514, %v11502, %v9371
        %v11568 = vsel %vm11514, %v11503, %v9373
        %v11569 = vsel %vm11514, %v11504, %v9375
        %v11570 = vsel %vm11514, %v11505, %v9377
        %v11571 = vsel %vm11514, %v11506, %v9379
        %v11572 = vsel %vm11514, %v11507, %v9381
        %v11573 = vsel %vm11514, %v11508, %v9383
        %v11574 = vsel %vm11514, %v11509, %v9385
        %v11575 = vsel %vm11514, %v11510, %v9387
        %v11576 = vsel %vm11514, %v11511, %v9389
        %v11577 = vsel %vm11514, %v11512, %v9391
        %v11578 = vsel %vm11514, %v11513, %v9393
        %vm11579 = vcmask 162816
        %v11580 = vsel %vm11579, %v11515, %v9523
        %v11581 = vsel %vm11579, %v11516, %v9525
        %v11582 = vsel %vm11579, %v11517, %v9527
        %v11583 = vsel %vm11579, %v11518, %v9529
        %v11584 = vsel %vm11579, %v11519, %v9531
        %v11585 = vsel %vm11579, %v11520, %v9533
        %v11586 = vsel %vm11579, %v11521, %v9535
        %v11587 = vsel %vm11579, %v11522, %v9537
        %v11588 = vsel %vm11579, %v11523, %v9539
        %v11589 = vsel %vm11579, %v11524, %v9541
        %v11590 = vsel %vm11579, %v11525, %v9543
        %v11591 = vsel %vm11579, %v11526, %v9545
        %v11592 = vsel %vm11579, %v11527, %v9547
        %v11593 = vsel %vm11579, %v11528, %v9549
        %v11594 = vsel %vm11579, %v11529, %v9551
        %v11595 = vsel %vm11579, %v11530, %v9553
        %v11596 = vsel %vm11579, %v11531, %v9555
        %v11597 = vsel %vm11579, %v11532, %v9557
        %v11598 = vsel %vm11579, %v11533, %v9559
        %v11599 = vsel %vm11579, %v11534, %v9561
        %v11600 = vsel %vm11579, %v11535, %v9563
        %v11601 = vsel %vm11579, %v11536, %v9565
        %v11602 = vsel %vm11579, %v11537, %v9567
        %v11603 = vsel %vm11579, %v11538, %v9569
        %v11604 = vsel %vm11579, %v11539, %v9571
        %v11605 = vsel %vm11579, %v11540, %v9573
        %v11606 = vsel %vm11579, %v11541, %v9575
        %v11607 = vsel %vm11579, %v11542, %v9577
        %v11608 = vsel %vm11579, %v11543, %v9579
        %v11609 = vsel %vm11579, %v11544, %v9581
        %v11610 = vsel %vm11579, %v11545, %v9583
        %v11611 = vsel %vm11579, %v11546, %v9585
        %v11612 = vsel %vm11579, %v11547, %v9587
        %v11613 = vsel %vm11579, %v11548, %v9589
        %v11614 = vsel %vm11579, %v11549, %v9591
        %v11615 = vsel %vm11579, %v11550, %v9593
        %v11616 = vsel %vm11579, %v11551, %v9595
        %v11617 = vsel %vm11579, %v11552, %v9597
        %v11618 = vsel %vm11579, %v11553, %v9599
        %v11619 = vsel %vm11579, %v11554, %v9601
        %v11620 = vsel %vm11579, %v11555, %v9603
        %v11621 = vsel %vm11579, %v11556, %v9605
        %v11622 = vsel %vm11579, %v11557, %v9607
        %v11623 = vsel %vm11579, %v11558, %v9609
        %v11624 = vsel %vm11579, %v11559, %v9611
        %v11625 = vsel %vm11579, %v11560, %v9613
        %v11626 = vsel %vm11579, %v11561, %v9615
        %v11627 = vsel %vm11579, %v11562, %v9617
        %v11628 = vsel %vm11579, %v11563, %v9619
        %v11629 = vsel %vm11579, %v11564, %v9621
        %v11630 = vsel %vm11579, %v11565, %v9623
        %v11631 = vsel %vm11579, %v11566, %v9625
        %v11632 = vsel %vm11579, %v11567, %v9627
        %v11633 = vsel %vm11579, %v11568, %v9629
        %v11634 = vsel %vm11579, %v11569, %v9631
        %v11635 = vsel %vm11579, %v11570, %v9633
        %v11636 = vsel %vm11579, %v11571, %v9635
        %v11637 = vsel %vm11579, %v11572, %v9637
        %v11638 = vsel %vm11579, %v11573, %v9639
        %v11639 = vsel %vm11579, %v11574, %v9641
        %v11640 = vsel %vm11579, %v11575, %v9643
        %v11641 = vsel %vm11579, %v11576, %v9645
        %v11642 = vsel %vm11579, %v11577, %v9647
        %v11643 = vsel %vm11579, %v11578, %v9649
        %vm11644 = vcmask 179200
        %v11645 = vsel %vm11644, %v11580, %v9779
        %v11646 = vsel %vm11644, %v11581, %v9781
        %v11647 = vsel %vm11644, %v11582, %v9783
        %v11648 = vsel %vm11644, %v11583, %v9785
        %v11649 = vsel %vm11644, %v11584, %v9787
        %v11650 = vsel %vm11644, %v11585, %v9789
        %v11651 = vsel %vm11644, %v11586, %v9791
        %v11652 = vsel %vm11644, %v11587, %v9793
        %v11653 = vsel %vm11644, %v11588, %v9795
        %v11654 = vsel %vm11644, %v11589, %v9797
        %v11655 = vsel %vm11644, %v11590, %v9799
        %v11656 = vsel %vm11644, %v11591, %v9801
        %v11657 = vsel %vm11644, %v11592, %v9803
        %v11658 = vsel %vm11644, %v11593, %v9805
        %v11659 = vsel %vm11644, %v11594, %v9807
        %v11660 = vsel %vm11644, %v11595, %v9809
        %v11661 = vsel %vm11644, %v11596, %v9811
        %v11662 = vsel %vm11644, %v11597, %v9813
        %v11663 = vsel %vm11644, %v11598, %v9815
        %v11664 = vsel %vm11644, %v11599, %v9817
        %v11665 = vsel %vm11644, %v11600, %v9819
        %v11666 = vsel %vm11644, %v11601, %v9821
        %v11667 = vsel %vm11644, %v11602, %v9823
        %v11668 = vsel %vm11644, %v11603, %v9825
        %v11669 = vsel %vm11644, %v11604, %v9827
        %v11670 = vsel %vm11644, %v11605, %v9829
        %v11671 = vsel %vm11644, %v11606, %v9831
        %v11672 = vsel %vm11644, %v11607, %v9833
        %v11673 = vsel %vm11644, %v11608, %v9835
        %v11674 = vsel %vm11644, %v11609, %v9837
        %v11675 = vsel %vm11644, %v11610, %v9839
        %v11676 = vsel %vm11644, %v11611, %v9841
        %v11677 = vsel %vm11644, %v11612, %v9843
        %v11678 = vsel %vm11644, %v11613, %v9845
        %v11679 = vsel %vm11644, %v11614, %v9847
        %v11680 = vsel %vm11644, %v11615, %v9849
        %v11681 = vsel %vm11644, %v11616, %v9851
        %v11682 = vsel %vm11644, %v11617, %v9853
        %v11683 = vsel %vm11644, %v11618, %v9855
        %v11684 = vsel %vm11644, %v11619, %v9857
        %v11685 = vsel %vm11644, %v11620, %v9859
        %v11686 = vsel %vm11644, %v11621, %v9861
        %v11687 = vsel %vm11644, %v11622, %v9863
        %v11688 = vsel %vm11644, %v11623, %v9865
        %v11689 = vsel %vm11644, %v11624, %v9867
        %v11690 = vsel %vm11644, %v11625, %v9869
        %v11691 = vsel %vm11644, %v11626, %v9871
        %v11692 = vsel %vm11644, %v11627, %v9873
        %v11693 = vsel %vm11644, %v11628, %v9875
        %v11694 = vsel %vm11644, %v11629, %v9877
        %v11695 = vsel %vm11644, %v11630, %v9879
        %v11696 = vsel %vm11644, %v11631, %v9881
        %v11697 = vsel %vm11644, %v11632, %v9883
        %v11698 = vsel %vm11644, %v11633, %v9885
        %v11699 = vsel %vm11644, %v11634, %v9887
        %v11700 = vsel %vm11644, %v11635, %v9889
        %v11701 = vsel %vm11644, %v11636, %v9891
        %v11702 = vsel %vm11644, %v11637, %v9893
        %v11703 = vsel %vm11644, %v11638, %v9895
        %v11704 = vsel %vm11644, %v11639, %v9897
        %v11705 = vsel %vm11644, %v11640, %v9899
        %v11706 = vsel %vm11644, %v11641, %v9901
        %v11707 = vsel %vm11644, %v11642, %v9903
        %v11708 = vsel %vm11644, %v11643, %v9905
        %vm11709 = vcmask 195584
        %v11710 = vsel %vm11709, %v11645, %v10035
        %v11711 = vsel %vm11709, %v11646, %v10037
        %v11712 = vsel %vm11709, %v11647, %v10039
        %v11713 = vsel %vm11709, %v11648, %v10041
        %v11714 = vsel %vm11709, %v11649, %v10043
        %v11715 = vsel %vm11709, %v11650, %v10045
        %v11716 = vsel %vm11709, %v11651, %v10047
        %v11717 = vsel %vm11709, %v11652, %v10049
        %v11718 = vsel %vm11709, %v11653, %v10051
        %v11719 = vsel %vm11709, %v11654, %v10053
        %v11720 = vsel %vm11709, %v11655, %v10055
        %v11721 = vsel %vm11709, %v11656, %v10057
        %v11722 = vsel %vm11709, %v11657, %v10059
        %v11723 = vsel %vm11709, %v11658, %v10061
        %v11724 = vsel %vm11709, %v11659, %v10063
        %v11725 = vsel %vm11709, %v11660, %v10065
        %v11726 = vsel %vm11709, %v11661, %v10067
        %v11727 = vsel %vm11709, %v11662, %v10069
        %v11728 = vsel %vm11709, %v11663, %v10071
        %v11729 = vsel %vm11709, %v11664, %v10073
        %v11730 = vsel %vm11709, %v11665, %v10075
        %v11731 = vsel %vm11709, %v11666, %v10077
        %v11732 = vsel %vm11709, %v11667, %v10079
        %v11733 = vsel %vm11709, %v11668, %v10081
        %v11734 = vsel %vm11709, %v11669, %v10083
        %v11735 = vsel %vm11709, %v11670, %v10085
        %v11736 = vsel %vm11709, %v11671, %v10087
        %v11737 = vsel %vm11709, %v11672, %v10089
        %v11738 = vsel %vm11709, %v11673, %v10091
        %v11739 = vsel %vm11709, %v11674, %v10093
        %v11740 = vsel %vm11709, %v11675, %v10095
        %v11741 = vsel %vm11709, %v11676, %v10097
        %v11742 = vsel %vm11709, %v11677, %v10099
        %v11743 = vsel %vm11709, %v11678, %v10101
        %v11744 = vsel %vm11709, %v11679, %v10103
        %v11745 = vsel %vm11709, %v11680, %v10105
        %v11746 = vsel %vm11709, %v11681, %v10107
        %v11747 = vsel %vm11709, %v11682, %v10109
        %v11748 = vsel %vm11709, %v11683, %v10111
        %v11749 = vsel %vm11709, %v11684, %v10113
        %v11750 = vsel %vm11709, %v11685, %v10115
        %v11751 = vsel %vm11709, %v11686, %v10117
        %v11752 = vsel %vm11709, %v11687, %v10119
        %v11753 = vsel %vm11709, %v11688, %v10121
        %v11754 = vsel %vm11709, %v11689, %v10123
        %v11755 = vsel %vm11709, %v11690, %v10125
        %v11756 = vsel %vm11709, %v11691, %v10127
        %v11757 = vsel %vm11709, %v11692, %v10129
        %v11758 = vsel %vm11709, %v11693, %v10131
        %v11759 = vsel %vm11709, %v11694, %v10133
        %v11760 = vsel %vm11709, %v11695, %v10135
        %v11761 = vsel %vm11709, %v11696, %v10137
        %v11762 = vsel %vm11709, %v11697, %v10139
        %v11763 = vsel %vm11709, %v11698, %v10141
        %v11764 = vsel %vm11709, %v11699, %v10143
        %v11765 = vsel %vm11709, %v11700, %v10145
        %v11766 = vsel %vm11709, %v11701, %v10147
        %v11767 = vsel %vm11709, %v11702, %v10149
        %v11768 = vsel %vm11709, %v11703, %v10151
        %v11769 = vsel %vm11709, %v11704, %v10153
        %v11770 = vsel %vm11709, %v11705, %v10155
        %v11771 = vsel %vm11709, %v11706, %v10157
        %v11772 = vsel %vm11709, %v11707, %v10159
        %v11773 = vsel %vm11709, %v11708, %v10161
        %vm11774 = vcmask 211968
        %v11775 = vsel %vm11774, %v11710, %v10291
        %v11776 = vsel %vm11774, %v11711, %v10293
        %v11777 = vsel %vm11774, %v11712, %v10295
        %v11778 = vsel %vm11774, %v11713, %v10297
        %v11779 = vsel %vm11774, %v11714, %v10299
        %v11780 = vsel %vm11774, %v11715, %v10301
        %v11781 = vsel %vm11774, %v11716, %v10303
        %v11782 = vsel %vm11774, %v11717, %v10305
        %v11783 = vsel %vm11774, %v11718, %v10307
        %v11784 = vsel %vm11774, %v11719, %v10309
        %v11785 = vsel %vm11774, %v11720, %v10311
        %v11786 = vsel %vm11774, %v11721, %v10313
        %v11787 = vsel %vm11774, %v11722, %v10315
        %v11788 = vsel %vm11774, %v11723, %v10317
        %v11789 = vsel %vm11774, %v11724, %v10319
        %v11790 = vsel %vm11774, %v11725, %v10321
        %v11791 = vsel %vm11774, %v11726, %v10323
        %v11792 = vsel %vm11774, %v11727, %v10325
        %v11793 = vsel %vm11774, %v11728, %v10327
        %v11794 = vsel %vm11774, %v11729, %v10329
        %v11795 = vsel %vm11774, %v11730, %v10331
        %v11796 = vsel %vm11774, %v11731, %v10333
        %v11797 = vsel %vm11774, %v11732, %v10335
        %v11798 = vsel %vm11774, %v11733, %v10337
        %v11799 = vsel %vm11774, %v11734, %v10339
        %v11800 = vsel %vm11774, %v11735, %v10341
        %v11801 = vsel %vm11774, %v11736, %v10343
        %v11802 = vsel %vm11774, %v11737, %v10345
        %v11803 = vsel %vm11774, %v11738, %v10347
        %v11804 = vsel %vm11774, %v11739, %v10349
        %v11805 = vsel %vm11774, %v11740, %v10351
        %v11806 = vsel %vm11774, %v11741, %v10353
        %v11807 = vsel %vm11774, %v11742, %v10355
        %v11808 = vsel %vm11774, %v11743, %v10357
        %v11809 = vsel %vm11774, %v11744, %v10359
        %v11810 = vsel %vm11774, %v11745, %v10361
        %v11811 = vsel %vm11774, %v11746, %v10363
        %v11812 = vsel %vm11774, %v11747, %v10365
        %v11813 = vsel %vm11774, %v11748, %v10367
        %v11814 = vsel %vm11774, %v11749, %v10369
        %v11815 = vsel %vm11774, %v11750, %v10371
        %v11816 = vsel %vm11774, %v11751, %v10373
        %v11817 = vsel %vm11774, %v11752, %v10375
        %v11818 = vsel %vm11774, %v11753, %v10377
        %v11819 = vsel %vm11774, %v11754, %v10379
        %v11820 = vsel %vm11774, %v11755, %v10381
        %v11821 = vsel %vm11774, %v11756, %v10383
        %v11822 = vsel %vm11774, %v11757, %v10385
        %v11823 = vsel %vm11774, %v11758, %v10387
        %v11824 = vsel %vm11774, %v11759, %v10389
        %v11825 = vsel %vm11774, %v11760, %v10391
        %v11826 = vsel %vm11774, %v11761, %v10393
        %v11827 = vsel %vm11774, %v11762, %v10395
        %v11828 = vsel %vm11774, %v11763, %v10397
        %v11829 = vsel %vm11774, %v11764, %v10399
        %v11830 = vsel %vm11774, %v11765, %v10401
        %v11831 = vsel %vm11774, %v11766, %v10403
        %v11832 = vsel %vm11774, %v11767, %v10405
        %v11833 = vsel %vm11774, %v11768, %v10407
        %v11834 = vsel %vm11774, %v11769, %v10409
        %v11835 = vsel %vm11774, %v11770, %v10411
        %v11836 = vsel %vm11774, %v11771, %v10413
        %v11837 = vsel %vm11774, %v11772, %v10415
        %v11838 = vsel %vm11774, %v11773, %v10417
        %vm11839 = vcmask 228352
        %v11840 = vsel %vm11839, %v11775, %v10547
        %v11841 = vsel %vm11839, %v11776, %v10549
        %v11842 = vsel %vm11839, %v11777, %v10551
        %v11843 = vsel %vm11839, %v11778, %v10553
        %v11844 = vsel %vm11839, %v11779, %v10555
        %v11845 = vsel %vm11839, %v11780, %v10557
        %v11846 = vsel %vm11839, %v11781, %v10559
        %v11847 = vsel %vm11839, %v11782, %v10561
        %v11848 = vsel %vm11839, %v11783, %v10563
        %v11849 = vsel %vm11839, %v11784, %v10565
        %v11850 = vsel %vm11839, %v11785, %v10567
        %v11851 = vsel %vm11839, %v11786, %v10569
        %v11852 = vsel %vm11839, %v11787, %v10571
        %v11853 = vsel %vm11839, %v11788, %v10573
        %v11854 = vsel %vm11839, %v11789, %v10575
        %v11855 = vsel %vm11839, %v11790, %v10577
        %v11856 = vsel %vm11839, %v11791, %v10579
        %v11857 = vsel %vm11839, %v11792, %v10581
        %v11858 = vsel %vm11839, %v11793, %v10583
        %v11859 = vsel %vm11839, %v11794, %v10585
        %v11860 = vsel %vm11839, %v11795, %v10587
        %v11861 = vsel %vm11839, %v11796, %v10589
        %v11862 = vsel %vm11839, %v11797, %v10591
        %v11863 = vsel %vm11839, %v11798, %v10593
        %v11864 = vsel %vm11839, %v11799, %v10595
        %v11865 = vsel %vm11839, %v11800, %v10597
        %v11866 = vsel %vm11839, %v11801, %v10599
        %v11867 = vsel %vm11839, %v11802, %v10601
        %v11868 = vsel %vm11839, %v11803, %v10603
        %v11869 = vsel %vm11839, %v11804, %v10605
        %v11870 = vsel %vm11839, %v11805, %v10607
        %v11871 = vsel %vm11839, %v11806, %v10609
        %v11872 = vsel %vm11839, %v11807, %v10611
        %v11873 = vsel %vm11839, %v11808, %v10613
        %v11874 = vsel %vm11839, %v11809, %v10615
        %v11875 = vsel %vm11839, %v11810, %v10617
        %v11876 = vsel %vm11839, %v11811, %v10619
        %v11877 = vsel %vm11839, %v11812, %v10621
        %v11878 = vsel %vm11839, %v11813, %v10623
        %v11879 = vsel %vm11839, %v11814, %v10625
        %v11880 = vsel %vm11839, %v11815, %v10627
        %v11881 = vsel %vm11839, %v11816, %v10629
        %v11882 = vsel %vm11839, %v11817, %v10631
        %v11883 = vsel %vm11839, %v11818, %v10633
        %v11884 = vsel %vm11839, %v11819, %v10635
        %v11885 = vsel %vm11839, %v11820, %v10637
        %v11886 = vsel %vm11839, %v11821, %v10639
        %v11887 = vsel %vm11839, %v11822, %v10641
        %v11888 = vsel %vm11839, %v11823, %v10643
        %v11889 = vsel %vm11839, %v11824, %v10645
        %v11890 = vsel %vm11839, %v11825, %v10647
        %v11891 = vsel %vm11839, %v11826, %v10649
        %v11892 = vsel %vm11839, %v11827, %v10651
        %v11893 = vsel %vm11839, %v11828, %v10653
        %v11894 = vsel %vm11839, %v11829, %v10655
        %v11895 = vsel %vm11839, %v11830, %v10657
        %v11896 = vsel %vm11839, %v11831, %v10659
        %v11897 = vsel %vm11839, %v11832, %v10661
        %v11898 = vsel %vm11839, %v11833, %v10663
        %v11899 = vsel %vm11839, %v11834, %v10665
        %v11900 = vsel %vm11839, %v11835, %v10667
        %v11901 = vsel %vm11839, %v11836, %v10669
        %v11902 = vsel %vm11839, %v11837, %v10671
        %v11903 = vsel %vm11839, %v11838, %v10673
        %vm11904 = vcmask 244736
        %v11905 = vsel %vm11904, %v11840, %v10803
        %v11906 = vsel %vm11904, %v11841, %v10805
        %v11907 = vsel %vm11904, %v11842, %v10807
        %v11908 = vsel %vm11904, %v11843, %v10809
        %v11909 = vsel %vm11904, %v11844, %v10811
        %v11910 = vsel %vm11904, %v11845, %v10813
        %v11911 = vsel %vm11904, %v11846, %v10815
        %v11912 = vsel %vm11904, %v11847, %v10817
        %v11913 = vsel %vm11904, %v11848, %v10819
        %v11914 = vsel %vm11904, %v11849, %v10821
        %v11915 = vsel %vm11904, %v11850, %v10823
        %v11916 = vsel %vm11904, %v11851, %v10825
        %v11917 = vsel %vm11904, %v11852, %v10827
        %v11918 = vsel %vm11904, %v11853, %v10829
        %v11919 = vsel %vm11904, %v11854, %v10831
        %v11920 = vsel %vm11904, %v11855, %v10833
        %v11921 = vsel %vm11904, %v11856, %v10835
        %v11922 = vsel %vm11904, %v11857, %v10837
        %v11923 = vsel %vm11904, %v11858, %v10839
        %v11924 = vsel %vm11904, %v11859, %v10841
        %v11925 = vsel %vm11904, %v11860, %v10843
        %v11926 = vsel %vm11904, %v11861, %v10845
        %v11927 = vsel %vm11904, %v11862, %v10847
        %v11928 = vsel %vm11904, %v11863, %v10849
        %v11929 = vsel %vm11904, %v11864, %v10851
        %v11930 = vsel %vm11904, %v11865, %v10853
        %v11931 = vsel %vm11904, %v11866, %v10855
        %v11932 = vsel %vm11904, %v11867, %v10857
        %v11933 = vsel %vm11904, %v11868, %v10859
        %v11934 = vsel %vm11904, %v11869, %v10861
        %v11935 = vsel %vm11904, %v11870, %v10863
        %v11936 = vsel %vm11904, %v11871, %v10865
        %v11937 = vsel %vm11904, %v11872, %v10867
        %v11938 = vsel %vm11904, %v11873, %v10869
        %v11939 = vsel %vm11904, %v11874, %v10871
        %v11940 = vsel %vm11904, %v11875, %v10873
        %v11941 = vsel %vm11904, %v11876, %v10875
        %v11942 = vsel %vm11904, %v11877, %v10877
        %v11943 = vsel %vm11904, %v11878, %v10879
        %v11944 = vsel %vm11904, %v11879, %v10881
        %v11945 = vsel %vm11904, %v11880, %v10883
        %v11946 = vsel %vm11904, %v11881, %v10885
        %v11947 = vsel %vm11904, %v11882, %v10887
        %v11948 = vsel %vm11904, %v11883, %v10889
        %v11949 = vsel %vm11904, %v11884, %v10891
        %v11950 = vsel %vm11904, %v11885, %v10893
        %v11951 = vsel %vm11904, %v11886, %v10895
        %v11952 = vsel %vm11904, %v11887, %v10897
        %v11953 = vsel %vm11904, %v11888, %v10899
        %v11954 = vsel %vm11904, %v11889, %v10901
        %v11955 = vsel %vm11904, %v11890, %v10903
        %v11956 = vsel %vm11904, %v11891, %v10905
        %v11957 = vsel %vm11904, %v11892, %v10907
        %v11958 = vsel %vm11904, %v11893, %v10909
        %v11959 = vsel %vm11904, %v11894, %v10911
        %v11960 = vsel %vm11904, %v11895, %v10913
        %v11961 = vsel %vm11904, %v11896, %v10915
        %v11962 = vsel %vm11904, %v11897, %v10917
        %v11963 = vsel %vm11904, %v11898, %v10919
        %v11964 = vsel %vm11904, %v11899, %v10921
        %v11965 = vsel %vm11904, %v11900, %v10923
        %v11966 = vsel %vm11904, %v11901, %v10925
        %v11967 = vsel %vm11904, %v11902, %v10927
        %v11968 = vsel %vm11904, %v11903, %v10929
        %v11969 = vlaneseq
        %v11970 = vshrl.u32 %v11969, 7
        %v11971 = vsub.s32 0, %v11970
        %v11972 = vrot.slane %v11905, %v11971
        %v11973 = vlaneseq
        %v11974 = vshrl.u32 %v11973, 7
        %v11975 = vsub.s32 0, %v11974
        %v11976 = vrot.slane %v11906, %v11975
        %v11977 = vlaneseq
        %v11978 = vshrl.u32 %v11977, 7
        %v11979 = vsub.s32 0, %v11978
        %v11980 = vrot.slane %v11907, %v11979
        %v11981 = vlaneseq
        %v11982 = vshrl.u32 %v11981, 7
        %v11983 = vsub.s32 0, %v11982
        %v11984 = vrot.slane %v11908, %v11983
        %v11985 = vlaneseq
        %v11986 = vshrl.u32 %v11985, 7
        %v11987 = vsub.s32 0, %v11986
        %v11988 = vrot.slane %v11909, %v11987
        %v11989 = vlaneseq
        %v11990 = vshrl.u32 %v11989, 7
        %v11991 = vsub.s32 0, %v11990
        %v11992 = vrot.slane %v11910, %v11991
        %v11993 = vlaneseq
        %v11994 = vshrl.u32 %v11993, 7
        %v11995 = vsub.s32 0, %v11994
        %v11996 = vrot.slane %v11911, %v11995
        %v11997 = vlaneseq
        %v11998 = vshrl.u32 %v11997, 7
        %v11999 = vsub.s32 0, %v11998
        %v12000 = vrot.slane %v11912, %v11999
        %v12001 = vlaneseq
        %v12002 = vshrl.u32 %v12001, 7
        %v12003 = vsub.s32 0, %v12002
        %v12004 = vrot.slane %v11913, %v12003
        %v12005 = vlaneseq
        %v12006 = vshrl.u32 %v12005, 7
        %v12007 = vsub.s32 0, %v12006
        %v12008 = vrot.slane %v11914, %v12007
        %v12009 = vlaneseq
        %v12010 = vshrl.u32 %v12009, 7
        %v12011 = vsub.s32 0, %v12010
        %v12012 = vrot.slane %v11915, %v12011
        %v12013 = vlaneseq
        %v12014 = vshrl.u32 %v12013, 7
        %v12015 = vsub.s32 0, %v12014
        %v12016 = vrot.slane %v11916, %v12015
        %v12017 = vlaneseq
        %v12018 = vshrl.u32 %v12017, 7
        %v12019 = vsub.s32 0, %v12018
        %v12020 = vrot.slane %v11917, %v12019
        %v12021 = vlaneseq
        %v12022 = vshrl.u32 %v12021, 7
        %v12023 = vsub.s32 0, %v12022
        %v12024 = vrot.slane %v11918, %v12023
        %v12025 = vlaneseq
        %v12026 = vshrl.u32 %v12025, 7
        %v12027 = vsub.s32 0, %v12026
        %v12028 = vrot.slane %v11919, %v12027
        %v12029 = vlaneseq
        %v12030 = vshrl.u32 %v12029, 7
        %v12031 = vsub.s32 0, %v12030
        %v12032 = vrot.slane %v11920, %v12031
        %v12033 = vlaneseq
        %v12034 = vshrl.u32 %v12033, 7
        %v12035 = vsub.s32 0, %v12034
        %v12036 = vrot.slane %v11921, %v12035
        %v12037 = vlaneseq
        %v12038 = vshrl.u32 %v12037, 7
        %v12039 = vsub.s32 0, %v12038
        %v12040 = vrot.slane %v11922, %v12039
        %v12041 = vlaneseq
        %v12042 = vshrl.u32 %v12041, 7
        %v12043 = vsub.s32 0, %v12042
        %v12044 = vrot.slane %v11923, %v12043
        %v12045 = vlaneseq
        %v12046 = vshrl.u32 %v12045, 7
        %v12047 = vsub.s32 0, %v12046
        %v12048 = vrot.slane %v11924, %v12047
        %v12049 = vlaneseq
        %v12050 = vshrl.u32 %v12049, 7
        %v12051 = vsub.s32 0, %v12050
        %v12052 = vrot.slane %v11925, %v12051
        %v12053 = vlaneseq
        %v12054 = vshrl.u32 %v12053, 7
        %v12055 = vsub.s32 0, %v12054
        %v12056 = vrot.slane %v11926, %v12055
        %v12057 = vlaneseq
        %v12058 = vshrl.u32 %v12057, 7
        %v12059 = vsub.s32 0, %v12058
        %v12060 = vrot.slane %v11927, %v12059
        %v12061 = vlaneseq
        %v12062 = vshrl.u32 %v12061, 7
        %v12063 = vsub.s32 0, %v12062
        %v12064 = vrot.slane %v11928, %v12063
        %v12065 = vlaneseq
        %v12066 = vshrl.u32 %v12065, 7
        %v12067 = vsub.s32 0, %v12066
        %v12068 = vrot.slane %v11929, %v12067
        %v12069 = vlaneseq
        %v12070 = vshrl.u32 %v12069, 7
        %v12071 = vsub.s32 0, %v12070
        %v12072 = vrot.slane %v11930, %v12071
        %v12073 = vlaneseq
        %v12074 = vshrl.u32 %v12073, 7
        %v12075 = vsub.s32 0, %v12074
        %v12076 = vrot.slane %v11931, %v12075
        %v12077 = vlaneseq
        %v12078 = vshrl.u32 %v12077, 7
        %v12079 = vsub.s32 0, %v12078
        %v12080 = vrot.slane %v11932, %v12079
        %v12081 = vlaneseq
        %v12082 = vshrl.u32 %v12081, 7
        %v12083 = vsub.s32 0, %v12082
        %v12084 = vrot.slane %v11933, %v12083
        %v12085 = vlaneseq
        %v12086 = vshrl.u32 %v12085, 7
        %v12087 = vsub.s32 0, %v12086
        %v12088 = vrot.slane %v11934, %v12087
        %v12089 = vlaneseq
        %v12090 = vshrl.u32 %v12089, 7
        %v12091 = vsub.s32 0, %v12090
        %v12092 = vrot.slane %v11935, %v12091
        %v12093 = vlaneseq
        %v12094 = vshrl.u32 %v12093, 7
        %v12095 = vsub.s32 0, %v12094
        %v12096 = vrot.slane %v11936, %v12095
        %v12097 = vlaneseq
        %v12098 = vshrl.u32 %v12097, 7
        %v12099 = vsub.s32 0, %v12098
        %v12100 = vrot.slane %v11937, %v12099
        %v12101 = vlaneseq
        %v12102 = vshrl.u32 %v12101, 7
        %v12103 = vsub.s32 0, %v12102
        %v12104 = vrot.slane %v11938, %v12103
        %v12105 = vlaneseq
        %v12106 = vshrl.u32 %v12105, 7
        %v12107 = vsub.s32 0, %v12106
        %v12108 = vrot.slane %v11939, %v12107
        %v12109 = vlaneseq
        %v12110 = vshrl.u32 %v12109, 7
        %v12111 = vsub.s32 0, %v12110
        %v12112 = vrot.slane %v11940, %v12111
        %v12113 = vlaneseq
        %v12114 = vshrl.u32 %v12113, 7
        %v12115 = vsub.s32 0, %v12114
        %v12116 = vrot.slane %v11941, %v12115
        %v12117 = vlaneseq
        %v12118 = vshrl.u32 %v12117, 7
        %v12119 = vsub.s32 0, %v12118
        %v12120 = vrot.slane %v11942, %v12119
        %v12121 = vlaneseq
        %v12122 = vshrl.u32 %v12121, 7
        %v12123 = vsub.s32 0, %v12122
        %v12124 = vrot.slane %v11943, %v12123
        %v12125 = vlaneseq
        %v12126 = vshrl.u32 %v12125, 7
        %v12127 = vsub.s32 0, %v12126
        %v12128 = vrot.slane %v11944, %v12127
        %v12129 = vlaneseq
        %v12130 = vshrl.u32 %v12129, 7
        %v12131 = vsub.s32 0, %v12130
        %v12132 = vrot.slane %v11945, %v12131
        %v12133 = vlaneseq
        %v12134 = vshrl.u32 %v12133, 7
        %v12135 = vsub.s32 0, %v12134
        %v12136 = vrot.slane %v11946, %v12135
        %v12137 = vlaneseq
        %v12138 = vshrl.u32 %v12137, 7
        %v12139 = vsub.s32 0, %v12138
        %v12140 = vrot.slane %v11947, %v12139
        %v12141 = vlaneseq
        %v12142 = vshrl.u32 %v12141, 7
        %v12143 = vsub.s32 0, %v12142
        %v12144 = vrot.slane %v11948, %v12143
        %v12145 = vlaneseq
        %v12146 = vshrl.u32 %v12145, 7
        %v12147 = vsub.s32 0, %v12146
        %v12148 = vrot.slane %v11949, %v12147
        %v12149 = vlaneseq
        %v12150 = vshrl.u32 %v12149, 7
        %v12151 = vsub.s32 0, %v12150
        %v12152 = vrot.slane %v11950, %v12151
        %v12153 = vlaneseq
        %v12154 = vshrl.u32 %v12153, 7
        %v12155 = vsub.s32 0, %v12154
        %v12156 = vrot.slane %v11951, %v12155
        %v12157 = vlaneseq
        %v12158 = vshrl.u32 %v12157, 7
        %v12159 = vsub.s32 0, %v12158
        %v12160 = vrot.slane %v11952, %v12159
        %v12161 = vlaneseq
        %v12162 = vshrl.u32 %v12161, 7
        %v12163 = vsub.s32 0, %v12162
        %v12164 = vrot.slane %v11953, %v12163
        %v12165 = vlaneseq
        %v12166 = vshrl.u32 %v12165, 7
        %v12167 = vsub.s32 0, %v12166
        %v12168 = vrot.slane %v11954, %v12167
        %v12169 = vlaneseq
        %v12170 = vshrl.u32 %v12169, 7
        %v12171 = vsub.s32 0, %v12170
        %v12172 = vrot.slane %v11955, %v12171
        %v12173 = vlaneseq
        %v12174 = vshrl.u32 %v12173, 7
        %v12175 = vsub.s32 0, %v12174
        %v12176 = vrot.slane %v11956, %v12175
        %v12177 = vlaneseq
        %v12178 = vshrl.u32 %v12177, 7
        %v12179 = vsub.s32 0, %v12178
        %v12180 = vrot.slane %v11957, %v12179
        %v12181 = vlaneseq
        %v12182 = vshrl.u32 %v12181, 7
        %v12183 = vsub.s32 0, %v12182
        %v12184 = vrot.slane %v11958, %v12183
        %v12185 = vlaneseq
        %v12186 = vshrl.u32 %v12185, 7
        %v12187 = vsub.s32 0, %v12186
        %v12188 = vrot.slane %v11959, %v12187
        %v12189 = vlaneseq
        %v12190 = vshrl.u32 %v12189, 7
        %v12191 = vsub.s32 0, %v12190
        %v12192 = vrot.slane %v11960, %v12191
        %v12193 = vlaneseq
        %v12194 = vshrl.u32 %v12193, 7
        %v12195 = vsub.s32 0, %v12194
        %v12196 = vrot.slane %v11961, %v12195
        %v12197 = vlaneseq
        %v12198 = vshrl.u32 %v12197, 7
        %v12199 = vsub.s32 0, %v12198
        %v12200 = vrot.slane %v11962, %v12199
        %v12201 = vlaneseq
        %v12202 = vshrl.u32 %v12201, 7
        %v12203 = vsub.s32 0, %v12202
        %v12204 = vrot.slane %v11963, %v12203
        %v12205 = vlaneseq
        %v12206 = vshrl.u32 %v12205, 7
        %v12207 = vsub.s32 0, %v12206
        %v12208 = vrot.slane %v11964, %v12207
        %v12209 = vlaneseq
        %v12210 = vshrl.u32 %v12209, 7
        %v12211 = vsub.s32 0, %v12210
        %v12212 = vrot.slane %v11965, %v12211
        %v12213 = vlaneseq
        %v12214 = vshrl.u32 %v12213, 7
        %v12215 = vsub.s32 0, %v12214
        %v12216 = vrot.slane %v11966, %v12215
        %v12217 = vlaneseq
        %v12218 = vshrl.u32 %v12217, 7
        %v12219 = vsub.s32 0, %v12218
        %v12220 = vrot.slane %v11967, %v12219
        %v12221 = vlaneseq
        %v12222 = vshrl.u32 %v12221, 7
        %v12223 = vsub.s32 0, %v12222
        %v12224 = vrot.slane %v11968, %v12223
        %v12289 = vcombine.low %v11972, %v11976
        %v12290 = vcombine.low %v11980, %v11984
        %v12292 = vunpack.c.l.s4 1983009808
        %v12293 = vunpack.c.0.s8 %v12292
        %v12294 = vlaneseq
        %v12295 = vshrl.u32 %v12294, 7
        %v12296 = vsub.s32 %v12293, %v12295
        %v12297 = vrot.slane %v12289, %v12296
        %v12299 = vunpack.c.l.s4 1983009808
        %v12300 = vunpack.c.0.s8 %v12299
        %v12301 = vlaneseq
        %v12302 = vshrl.u32 %v12301, 7
        %v12303 = vsub.s32 %v12300, %v12302
        %v12304 = vrot.slane %v12290, %v12303
        %v12305 = vcombine.low %v12297, %v12304
        %v12306 = vcombine.low %v11988, %v11992
        %v12307 = vcombine.low %v11996, %v12000
        %v12309 = vunpack.c.l.s4 1983009808
        %v12310 = vunpack.c.0.s8 %v12309
        %v12311 = vlaneseq
        %v12312 = vshrl.u32 %v12311, 7
        %v12313 = vsub.s32 %v12310, %v12312
        %v12314 = vrot.slane %v12306, %v12313
        %v12316 = vunpack.c.l.s4 1983009808
        %v12317 = vunpack.c.0.s8 %v12316
        %v12318 = vlaneseq
        %v12319 = vshrl.u32 %v12318, 7
        %v12320 = vsub.s32 %v12317, %v12319
        %v12321 = vrot.slane %v12307, %v12320
        %v12322 = vcombine.low %v12314, %v12321
        %v12323 = vcombine.low %v12004, %v12008
        %v12324 = vcombine.low %v12012, %v12016
        %v12326 = vunpack.c.l.s4 1983009808
        %v12327 = vunpack.c.0.s8 %v12326
        %v12328 = vlaneseq
        %v12329 = vshrl.u32 %v12328, 7
        %v12330 = vsub.s32 %v12327, %v12329
        %v12331 = vrot.slane %v12323, %v12330
        %v12333 = vunpack.c.l.s4 1983009808
        %v12334 = vunpack.c.0.s8 %v12333
        %v12335 = vlaneseq
        %v12336 = vshrl.u32 %v12335, 7
        %v12337 = vsub.s32 %v12334, %v12336
        %v12338 = vrot.slane %v12324, %v12337
        %v12339 = vcombine.low %v12331, %v12338
        %v12340 = vcombine.low %v12020, %v12024
        %v12341 = vcombine.low %v12028, %v12032
        %v12343 = vunpack.c.l.s4 1983009808
        %v12344 = vunpack.c.0.s8 %v12343
        %v12345 = vlaneseq
        %v12346 = vshrl.u32 %v12345, 7
        %v12347 = vsub.s32 %v12344, %v12346
        %v12348 = vrot.slane %v12340, %v12347
        %v12350 = vunpack.c.l.s4 1983009808
        %v12351 = vunpack.c.0.s8 %v12350
        %v12352 = vlaneseq
        %v12353 = vshrl.u32 %v12352, 7
        %v12354 = vsub.s32 %v12351, %v12353
        %v12355 = vrot.slane %v12341, %v12354
        %v12356 = vcombine.low %v12348, %v12355
        %v12357 = vcombine.low %v12036, %v12040
        %v12358 = vcombine.low %v12044, %v12048
        %v12360 = vunpack.c.l.s4 1983009808
        %v12361 = vunpack.c.0.s8 %v12360
        %v12362 = vlaneseq
        %v12363 = vshrl.u32 %v12362, 7
        %v12364 = vsub.s32 %v12361, %v12363
        %v12365 = vrot.slane %v12357, %v12364
        %v12367 = vunpack.c.l.s4 1983009808
        %v12368 = vunpack.c.0.s8 %v12367
        %v12369 = vlaneseq
        %v12370 = vshrl.u32 %v12369, 7
        %v12371 = vsub.s32 %v12368, %v12370
        %v12372 = vrot.slane %v12358, %v12371
        %v12373 = vcombine.low %v12365, %v12372
        %v12374 = vcombine.low %v12052, %v12056
        %v12375 = vcombine.low %v12060, %v12064
        %v12377 = vunpack.c.l.s4 1983009808
        %v12378 = vunpack.c.0.s8 %v12377
        %v12379 = vlaneseq
        %v12380 = vshrl.u32 %v12379, 7
        %v12381 = vsub.s32 %v12378, %v12380
        %v12382 = vrot.slane %v12374, %v12381
        %v12384 = vunpack.c.l.s4 1983009808
        %v12385 = vunpack.c.0.s8 %v12384
        %v12386 = vlaneseq
        %v12387 = vshrl.u32 %v12386, 7
        %v12388 = vsub.s32 %v12385, %v12387
        %v12389 = vrot.slane %v12375, %v12388
        %v12390 = vcombine.low %v12382, %v12389
        %v12391 = vcombine.low %v12068, %v12072
        %v12392 = vcombine.low %v12076, %v12080
        %v12394 = vunpack.c.l.s4 1983009808
        %v12395 = vunpack.c.0.s8 %v12394
        %v12396 = vlaneseq
        %v12397 = vshrl.u32 %v12396, 7
        %v12398 = vsub.s32 %v12395, %v12397
        %v12399 = vrot.slane %v12391, %v12398
        %v12401 = vunpack.c.l.s4 1983009808
        %v12402 = vunpack.c.0.s8 %v12401
        %v12403 = vlaneseq
        %v12404 = vshrl.u32 %v12403, 7
        %v12405 = vsub.s32 %v12402, %v12404
        %v12406 = vrot.slane %v12392, %v12405
        %v12407 = vcombine.low %v12399, %v12406
        %v12408 = vcombine.low %v12084, %v12088
        %v12409 = vcombine.low %v12092, %v12096
        %v12411 = vunpack.c.l.s4 1983009808
        %v12412 = vunpack.c.0.s8 %v12411
        %v12413 = vlaneseq
        %v12414 = vshrl.u32 %v12413, 7
        %v12415 = vsub.s32 %v12412, %v12414
        %v12416 = vrot.slane %v12408, %v12415
        %v12418 = vunpack.c.l.s4 1983009808
        %v12419 = vunpack.c.0.s8 %v12418
        %v12420 = vlaneseq
        %v12421 = vshrl.u32 %v12420, 7
        %v12422 = vsub.s32 %v12419, %v12421
        %v12423 = vrot.slane %v12409, %v12422
        %v12424 = vcombine.low %v12416, %v12423
        %v12425 = vcombine.low %v12100, %v12104
        %v12426 = vcombine.low %v12108, %v12112
        %v12428 = vunpack.c.l.s4 1983009808
        %v12429 = vunpack.c.0.s8 %v12428
        %v12430 = vlaneseq
        %v12431 = vshrl.u32 %v12430, 7
        %v12432 = vsub.s32 %v12429, %v12431
        %v12433 = vrot.slane %v12425, %v12432
        %v12435 = vunpack.c.l.s4 1983009808
        %v12436 = vunpack.c.0.s8 %v12435
        %v12437 = vlaneseq
        %v12438 = vshrl.u32 %v12437, 7
        %v12439 = vsub.s32 %v12436, %v12438
        %v12440 = vrot.slane %v12426, %v12439
        %v12441 = vcombine.low %v12433, %v12440
        %v12442 = vcombine.low %v12116, %v12120
        %v12443 = vcombine.low %v12124, %v12128
        %v12445 = vunpack.c.l.s4 1983009808
        %v12446 = vunpack.c.0.s8 %v12445
        %v12447 = vlaneseq
        %v12448 = vshrl.u32 %v12447, 7
        %v12449 = vsub.s32 %v12446, %v12448
        %v12450 = vrot.slane %v12442, %v12449
        %v12452 = vunpack.c.l.s4 1983009808
        %v12453 = vunpack.c.0.s8 %v12452
        %v12454 = vlaneseq
        %v12455 = vshrl.u32 %v12454, 7
        %v12456 = vsub.s32 %v12453, %v12455
        %v12457 = vrot.slane %v12443, %v12456
        %v12458 = vcombine.low %v12450, %v12457
        %v12459 = vcombine.low %v12132, %v12136
        %v12460 = vcombine.low %v12140, %v12144
        %v12462 = vunpack.c.l.s4 1983009808
        %v12463 = vunpack.c.0.s8 %v12462
        %v12464 = vlaneseq
        %v12465 = vshrl.u32 %v12464, 7
        %v12466 = vsub.s32 %v12463, %v12465
        %v12467 = vrot.slane %v12459, %v12466
        %v12469 = vunpack.c.l.s4 1983009808
        %v12470 = vunpack.c.0.s8 %v12469
        %v12471 = vlaneseq
        %v12472 = vshrl.u32 %v12471, 7
        %v12473 = vsub.s32 %v12470, %v12472
        %v12474 = vrot.slane %v12460, %v12473
        %v12475 = vcombine.low %v12467, %v12474
        %v12476 = vcombine.low %v12148, %v12152
        %v12477 = vcombine.low %v12156, %v12160
        %v12479 = vunpack.c.l.s4 1983009808
        %v12480 = vunpack.c.0.s8 %v12479
        %v12481 = vlaneseq
        %v12482 = vshrl.u32 %v12481, 7
        %v12483 = vsub.s32 %v12480, %v12482
        %v12484 = vrot.slane %v12476, %v12483
        %v12486 = vunpack.c.l.s4 1983009808
        %v12487 = vunpack.c.0.s8 %v12486
        %v12488 = vlaneseq
        %v12489 = vshrl.u32 %v12488, 7
        %v12490 = vsub.s32 %v12487, %v12489
        %v12491 = vrot.slane %v12477, %v12490
        %v12492 = vcombine.low %v12484, %v12491
        %v12493 = vcombine.low %v12164, %v12168
        %v12494 = vcombine.low %v12172, %v12176
        %v12496 = vunpack.c.l.s4 1983009808
        %v12497 = vunpack.c.0.s8 %v12496
        %v12498 = vlaneseq
        %v12499 = vshrl.u32 %v12498, 7
        %v12500 = vsub.s32 %v12497, %v12499
        %v12501 = vrot.slane %v12493, %v12500
        %v12503 = vunpack.c.l.s4 1983009808
        %v12504 = vunpack.c.0.s8 %v12503
        %v12505 = vlaneseq
        %v12506 = vshrl.u32 %v12505, 7
        %v12507 = vsub.s32 %v12504, %v12506
        %v12508 = vrot.slane %v12494, %v12507
        %v12509 = vcombine.low %v12501, %v12508
        %v12510 = vcombine.low %v12180, %v12184
        %v12511 = vcombine.low %v12188, %v12192
        %v12513 = vunpack.c.l.s4 1983009808
        %v12514 = vunpack.c.0.s8 %v12513
        %v12515 = vlaneseq
        %v12516 = vshrl.u32 %v12515, 7
        %v12517 = vsub.s32 %v12514, %v12516
        %v12518 = vrot.slane %v12510, %v12517
        %v12520 = vunpack.c.l.s4 1983009808
        %v12521 = vunpack.c.0.s8 %v12520
        %v12522 = vlaneseq
        %v12523 = vshrl.u32 %v12522, 7
        %v12524 = vsub.s32 %v12521, %v12523
        %v12525 = vrot.slane %v12511, %v12524
        %v12526 = vcombine.low %v12518, %v12525
        %v12527 = vcombine.low %v12196, %v12200
        %v12528 = vcombine.low %v12204, %v12208
        %v12530 = vunpack.c.l.s4 1983009808
        %v12531 = vunpack.c.0.s8 %v12530
        %v12532 = vlaneseq
        %v12533 = vshrl.u32 %v12532, 7
        %v12534 = vsub.s32 %v12531, %v12533
        %v12535 = vrot.slane %v12527, %v12534
        %v12537 = vunpack.c.l.s4 1983009808
        %v12538 = vunpack.c.0.s8 %v12537
        %v12539 = vlaneseq
        %v12540 = vshrl.u32 %v12539, 7
        %v12541 = vsub.s32 %v12538, %v12540
        %v12542 = vrot.slane %v12528, %v12541
        %v12543 = vcombine.low %v12535, %v12542
        %v12544 = vcombine.low %v12212, %v12216
        %v12545 = vcombine.low %v12220, %v12224
        %v12547 = vunpack.c.l.s4 1983009808
        %v12548 = vunpack.c.0.s8 %v12547
        %v12549 = vlaneseq
        %v12550 = vshrl.u32 %v12549, 7
        %v12551 = vsub.s32 %v12548, %v12550
        %v12552 = vrot.slane %v12544, %v12551
        %v12554 = vunpack.c.l.s4 1983009808
        %v12555 = vunpack.c.0.s8 %v12554
        %v12556 = vlaneseq
        %v12557 = vshrl.u32 %v12556, 7
        %v12558 = vsub.s32 %v12555, %v12557
        %v12559 = vrot.slane %v12545, %v12558
        %v12560 = vcombine.low %v12552, %v12559
        %vm12577 = vcmask 261120
        %12578 = vst.msk [vmem:[%s165] sm:$0xff] %vm12577, %v12305
        %12579 = vst.msk [vmem:[%s165 + $0x8] sm:$0xff] %vm12577, %v12322
        %12580 = vst.msk [vmem:[%s165 + $0x10] sm:$0xff] %vm12577, %v12339
        %12581 = vst.msk [vmem:[%s165 + $0x18] sm:$0xff] %vm12577, %v12356
        %12582 = vst.msk [vmem:[%s165 + $0x20] sm:$0xff] %vm12577, %v12373
        %12583 = vst.msk [vmem:[%s165 + $0x28] sm:$0xff] %vm12577, %v12390
        %12584 = vst.msk [vmem:[%s165 + $0x30] sm:$0xff] %vm12577, %v12407
        %12585 = vst.msk [vmem:[%s165 + $0x38] sm:$0xff] %vm12577, %v12424
        %12586 = vst.msk [vmem:[%s165 + $0x40] sm:$0xff] %vm12577, %v12441
        %12587 = vst.msk [vmem:[%s165 + $0x48] sm:$0xff] %vm12577, %v12458
        %12588 = vst.msk [vmem:[%s165 + $0x50] sm:$0xff] %vm12577, %v12475
        %12589 = vst.msk [vmem:[%s165 + $0x58] sm:$0xff] %vm12577, %v12492
        %12590 = vst.msk [vmem:[%s165 + $0x60] sm:$0xff] %vm12577, %v12509
        %12591 = vst.msk [vmem:[%s165 + $0x68] sm:$0xff] %vm12577, %v12526
        %12592 = vst.msk [vmem:[%s165 + $0x70] sm:$0xff] %vm12577, %v12543
        %12593 = vst.msk [vmem:[%s165 + $0x78] sm:$0xff] %vm12577, %v12560
        %s12594 = sand.u32 %s79, 1
        %s12595 = scalar_lea.sflag [#allocation4], %s12594
        %s12596 = sand.u32 %s79, 1
        %s12597 = smul.addr %s12596, 128
        %s12598 = scalar_lea.vmem [#allocation5], %s12597
        // Predicated region
        $region29: #{tpu_custom_call.1} parent=23 // pred_check
          %p12599 = pneg %p89
        $region30: #{tpu_custom_call.1} parent=23 // pred_check_branch
          %12601 = sbr.rel (%p12599) target = $region32
        $region31: #{tpu_custom_call.1} parent=23 // pred_region
          %s12602 = smul.u32 4, %s23
          %s12603 = smul.u32 4, %s24
          %s12605 = ssub.s32 2048, 2048
          %12606 = vsyncadd %s12595, %s12605
          %s12607 = sadd.s32 %s25, %s12603
          %s12608 = smul.addr %s12602, 4
          %s12609 = sadd.s32 %s12607, %s12608
          %s12610 = smul.addr %s12609, 128
          %s12611 = scalar_lea.hbm %s1, %s12610
          %s12612 = sshll.u32 %s12598, 4
          %s12613 = int_to_ptr.vmem [resolvable:$true] %s12612
          %12618 = dma.vmem_to_hbm [thread:$0]  %s12613, 2048, %s12611, %s12595, 128, 128, 8
        $region32: #{tpu_custom_call.1} parent=23 // pred_fallthru
          _
      $region24: #{tpu_custom_call.1} parent=5 // pred_fallthru
        _
      %p12619 = scmp.le.s32.totalorder 2, %s13
      // Predicated region
      $region33: #{tpu_custom_call.1} parent=5 // pred_check
        %p12620 = pneg %p12619
      $region34: #{tpu_custom_call.1} parent=5 // pred_check_branch
        %12622 = sbr.rel (%p12620) target = $region36
      $region35: #{tpu_custom_call.1} parent=5 // pred_region
        %s12623 = ssub.s32 %s13, 2
        // Predicated region
        $region37: #{tpu_custom_call.1} parent=35 // pred_check
          %p12624 = pneg %p95
        $region38: #{tpu_custom_call.1} parent=35 // pred_check_branch
          %12626 = sbr.rel (%p12624) target = $region40
        $region39: #{tpu_custom_call.1} parent=35 // pred_region
          %s12627 = sand.u32 %s80, 1
          %s12628 = scalar_lea.sflag [#allocation4], %s12627
          %s12629 = sand.u32 %s80, 1
          %s12630 = smul.addr %s12629, 128
          %s12631 = scalar_lea.vmem [#allocation5], %s12630
          %12632 = dma.done %s12628, 2048
        $region40: #{tpu_custom_call.1} parent=35 // pred_fallthru
          _
      $region36: #{tpu_custom_call.1} parent=5 // pred_fallthru
        _
    $region6: #{tpu_custom_call.1} parent=1 // loop_footer
      %s17 = sadd.s32 1, %s13
    $region7: #{tpu_custom_call.1} parent=1 // loop_footer_branch
      %12 = sbr.rel target = $region3
    $region8: #{tpu_custom_call.1} parent=1 // loop_exit
      _
    %12633 = vsyncpa [#allocation3], 1
    %s12634 = scalar_lea.sflag [#allocation3], 1
    %12635 = vsyncpa %s12634, 1
    %12636 = vsyncpa [#allocation4], 1
    %s12637 = scalar_lea.sflag [#allocation4], 1
    %12638 = vsyncpa %s12637, 1

</llo_original>
